<compile_context>
chip_gen: v7x
topology: tpu7x:2x2x1
jax: 0.10.0
libtpu: 0.0.40
codegen_flags: <defaults>
</compile_context>

<pallas_src>
import numpy as np

import jax
import jax.numpy as jnp
from jax.experimental import pallas as pl
from jax.experimental.pallas import tpu as pltpu


# ----------------------------------------------------------------------------
# Host-side builders for the exact 0/1 structure matrices
# ----------------------------------------------------------------------------
def _row_shift_stack(n, hh):
    """(3, n*hh, n*hh): T[dh] @ X reads row (img, i+dh-1); zero if out of range."""
    out = np.zeros((3, n * hh, n * hh), np.float32)
    for dh in range(3):
        blk = np.zeros((hh, hh), np.float32)
        for i in range(hh):
            src = i + dh - 1
            if 0 <= src < hh:
                blk[i, src] = 1.0
        out[dh] = np.kron(np.eye(n, dtype=np.float32), blk)
    return out


def _band_matrices(w_hwio, ww):
    """(3, ww*Cin, ww*Cout): banded block weights, one matrix per vertical tap."""
    cin, cout = w_hwio.shape[2], w_hwio.shape[3]
    place = np.zeros((3, ww, ww), np.float32)       # place[dw, src_col, dst_col]
    for dw in range(3):
        for j in range(ww):
            s = j + dw - 1
            if 0 <= s < ww:
                place[dw, s, j] = 1.0
    band = jnp.einsum("dab,hdio->haibo", jnp.asarray(place), w_hwio,
                      precision="highest")          # (3, W, Cin, W, Cout)
    return band.reshape(3, ww * cin, ww * cout)


def _pool_rowsel(n, hh):
    """(2, n*hh//2, n*hh): 0/1 row-pair selection for MaxPool2d(2,2)."""
    h2 = hh // 2
    p = np.zeros((2, n * h2, n * hh), np.float32)
    for s in range(2):
        for b in range(n):
            for i in range(h2):
                p[s, b * h2 + i, b * hh + 2 * i + s] = 1.0
    return p


def _pool_colsel(ww, c):
    """(2, ww*c, ww//2*c): 0/1 column-pair selection for MaxPool2d(2,2)."""
    w2 = ww // 2
    sel = np.zeros((2, ww * c, w2 * c), np.float32)
    for s in range(2):
        for j in range(w2):
            for ch in range(c):
                sel[s, (2 * j + s) * c + ch, j * c + ch] = 1.0
    return sel


def _pool_col_perm(ww, c):
    """Column permutation: even column-blocks first, odd second (halves max)."""
    w2 = ww // 2
    perm = np.zeros(ww * c, np.int32)
    for s in range(2):
        for j in range(w2):
            for ch in range(c):
                perm[s * w2 * c + j * c + ch] = (2 * j + s) * c + ch
    return perm


def _up_rows(n, hh):
    """(n*2*hh, n*hh): nearest-neighbour row duplication."""
    return np.kron(np.eye(n, dtype=np.float32),
                   np.repeat(np.eye(hh, dtype=np.float32), 2, axis=0))


def _up_cols(ww, c):
    """(ww*c, 2*ww*c): nearest-neighbour column-block duplication."""
    return np.kron(np.repeat(np.eye(ww, dtype=np.float32), 2, axis=1),
                   np.eye(c, dtype=np.float32))


# ----------------------------------------------------------------------------
# Parameter packing (done once, host side): weights -> structure matrices
# ----------------------------------------------------------------------------
def pack_params(params, n, h, w):
    ha, wa = h, w              # conv1 grid           (16x16)
    hb, wb = h // 2, w // 2    # conv2/3/5/6 grid     (8x8)
    hc, wc = h // 4, w // 4    # conv4 grid           (4x4)

    (k1, c1), (k2, c2), (k3, c3) = params["enc1"], params["enc2"], params["enc3"]
    (k4, c4), (k5, c5), (k6, c6) = params["dec1"], params["dec2"], params["dec3"]

    # conv1 (1->64); output columns permuted so pool1's column max is a
    # 128-aligned halves max.
    b1 = _band_matrices(k1, wa)                         # (3, 16, 1024)
    bias1 = jnp.tile(c1, wa)[None, :]                   # (1, 1024)
    perm = jnp.asarray(_pool_col_perm(wa, k1.shape[-1]))
    b1, bias1 = b1[:, :, perm], bias1[:, perm]
    t1 = jnp.asarray(_row_shift_stack(n, ha))           # (3, 32, 32)
    p1 = jnp.asarray(_pool_rowsel(n, ha))               # (2, 16, 32)

    # conv2 (64->32), conv3 (32->4) on the 8x8 grid
    t8 = jnp.asarray(_row_shift_stack(n, hb))           # (3, 16, 16)
    b2 = _band_matrices(k2, wb)                         # (3, 512, 256)
    bias2 = jnp.tile(c2, wb)[None, :]
    b3 = _band_matrices(k3, wb)                         # (3, 256, 32)
    bias3 = jnp.tile(c3, wb)[None, :]

    # pool2 (tiny 0/1 selection matrices, 8x8 grid, 4 channels)
    p2 = jnp.asarray(_pool_rowsel(n, hb))               # (2, 8, 16)
    s2 = jnp.asarray(_pool_colsel(wb, k3.shape[-1]))    # (2, 32, 16)

    # conv4 (4->32) on the 4x4 grid
    t4 = jnp.asarray(_row_shift_stack(n, hc))           # (3, 8, 8)
    b4 = _band_matrices(k4, wc)                         # (3, 16, 128)
    bias4 = jnp.tile(c4, wc)[None, :]

    # conv5 (32->64) on the 8x8 grid with the nearest x2 upsample folded in
    ur1 = _up_rows(n, hc)                               # (16, 8)
    uc1 = jnp.asarray(_up_cols(wc, k4.shape[-1]))       # (128, 256)
    t5 = jnp.asarray(np.einsum("dij,jk->dik", _row_shift_stack(n, hb), ur1))
    b5 = jnp.einsum("ij,djk->dik", uc1, _band_matrices(k5, wb),
                    precision="highest")                # (3, 128, 512)
    bias5 = jnp.tile(c5, wb)[None, :]                   # (1, 512)

    # conv6 (64->1) on the 8x8 grid with the final upsample (+ Tanh commute) folded
    ur2 = jnp.asarray(_up_rows(n, hb))                  # (32, 16)
    uc2 = jnp.asarray(_up_cols(wb, k6.shape[-1]))       # (8, 16)
    t6 = jnp.einsum("ij,djk->dik", ur2, jnp.asarray(_row_shift_stack(n, hb)),
                    precision="highest")                # (3, 32, 16)
    b6 = jnp.einsum("dij,jk->dik", _band_matrices(k6, wb), uc2,
                    precision="highest")                # (3, 512, 16)
    bias6 = jnp.einsum("ij,jk->ik", jnp.tile(c6, wb)[None, :], uc2,
                       precision="highest")             # (1, 16)

    packed = (t1, b1, bias1, p1,
              t8, b2, bias2,
              t8, b3, bias3,
              p2, s2,
              t4, b4, bias4,
              t5, b5, bias5,
              t6, b6, bias6)
    return tuple(jnp.asarray(a, jnp.float32) for a in packed)


# ----------------------------------------------------------------------------
# Fused Pallas kernel: entire Denoiser forward, all activations in VMEM
# ----------------------------------------------------------------------------
def _denoiser_kernel(x_ref,
                     t1, w1, c1, p1,
                     t2, w2, c2,
                     t3, w3, c3,
                     p2, s2,
                     t4, w4, c4,
                     t5, w5, c5,
                     t6, w6, c6,
                     o_ref):
    f32 = jnp.float32

    def conv(x, t_ref, w_ref, bias_ref, act):
        rows, cols = t_ref.shape[1], w_ref.shape[2]
        acc = jnp.zeros((rows, cols), f32)
        for dh in range(3):                      # static unroll over vertical taps
            y = jnp.dot(x, w_ref[dh], preferred_element_type=f32)
            acc = acc + jnp.dot(t_ref[dh], y, preferred_element_type=f32)
        acc = acc + bias_ref[...]
        return jnp.maximum(acc, 0.0) if act == "relu" else jnp.tanh(acc)

    x = x_ref[...].astype(f32)

    # ------------------------------ encoder ------------------------------
    h = conv(x, t1, w1, c1, "relu")                                   # (32, 1024)
    # MaxPool 2x2 #1: row pairs via 0/1 matmuls, column pairs via an
    # aligned halves max (conv1 output columns were pre-permuted).
    h = jnp.maximum(jnp.dot(p1[0], h, preferred_element_type=f32),
                    jnp.dot(p1[1], h, preferred_element_type=f32))    # (16, 1024)
    half = h.shape[1] // 2
    h = jnp.maximum(h[:, :half], h[:, half:])                         # (16, 512)
    h = conv(h, t2, w2, c2, "relu")                                   # (16, 256)
    h = conv(h, t3, w3, c3, "relu")                                   # (16, 32)
    # MaxPool 2x2 #2: tiny 0/1 selection matmuls for rows and columns.
    h = jnp.maximum(jnp.dot(p2[0], h, preferred_element_type=f32),
                    jnp.dot(p2[1], h, preferred_element_type=f32))    # (8, 32)
    h = jnp.maximum(jnp.dot(h, s2[0], preferred_element_type=f32),
                    jnp.dot(h, s2[1], preferred_element_type=f32))    # (8, 16)
    # ------------------------------ decoder ------------------------------
    h = conv(h, t4, w4, c4, "relu")                                   # (8, 128)
    h = conv(h, t5, w5, c5, "relu")   # upsample x2 folded into T/B     (16, 512)
    h = conv(h, t6, w6, c6, "tanh")   # upsample x2 + Tanh folded       (32, 16)
    o_ref[...] = h.astype(o_ref.dtype)


def denoiser_forward(x_nchw, packed):
    n, c, h, w = x_nchw.shape
    x2d = jnp.transpose(x_nchw, (0, 2, 3, 1)).reshape(n * h, w * c)

    def full_spec(a):
        if a.ndim == 2:
            return pl.BlockSpec(a.shape, lambda i: (0, 0))
        return pl.BlockSpec(a.shape, lambda i: (0, 0, 0))

    out2d = pl.pallas_call(
        _denoiser_kernel,
        out_shape=jax.ShapeDtypeStruct((n * h, w), jnp.float32),
        grid=(1,),
        in_specs=[full_spec(x2d)] + [full_spec(a) for a in packed],
        out_specs=pl.BlockSpec((n * h, w), lambda i: (0, 0)),
        compiler_params=pltpu.CompilerParams(
            dimension_semantics=("arbitrary",),
            vmem_limit_bytes=32 * 1024 * 1024),
    )(x2d, *packed)
    return jnp.transpose(out2d.reshape(n, h, w, 1), (0, 3, 1, 2))


# ----------------------------------------------------------------------------
# Parameters (deterministic, PyTorch-default-like uniform init), HWIO layout
# ----------------------------------------------------------------------------
def init_conv_params(key, cin, cout):
    kw, kb = jax.random.split(key)
    bound = 1.0 / (cin * 9.0) ** 0.5
    w = jax.random.uniform(kw, (3, 3, cin, cout), jnp.float32, -bound, bound)
    b = jax.random.uniform(kb, (cout,), jnp.float32, -bound, bound)
    return w, b


# ----------------------------------------------------------------------------
# Plain-JAX reference of the same forward pass (for a correctness cross-check)
# ----------------------------------------------------------------------------
def _reference_forward(x_nchw, params):
    x = jnp.transpose(x_nchw, (0, 2, 3, 1))

    def conv(x, w, b):
        out = jax.lax.conv_general_dilated(
            x, w, (1, 1), "SAME",
            dimension_numbers=("NHWC", "HWIO", "NHWC"),
            precision=jax.lax.Precision.HIGHEST)
        return out + b

    def pool(x):
        return jax.lax.reduce_window(x, -jnp.inf, jax.lax.max,
                                     (1, 2, 2, 1), (1, 2, 2, 1), "VALID")

    def up(x):
        n, hh, ww, c = x.shape
        x = jnp.broadcast_to(x[:, :, None, :, None, :], (n, hh, 2, ww, 2, c))
        return x.reshape(n, 2 * hh, 2 * ww, c)

    h = jax.nn.relu(conv(x, *params["enc1"])); h = pool(h)
    h = jax.nn.relu(conv(h, *params["enc2"]))
    h = jax.nn.relu(conv(h, *params["enc3"])); h = pool(h)
    h = conv(h, *params["dec1"]); h = up(h); h = jax.nn.relu(h)
    h = jax.nn.relu(conv(h, *params["dec2"]))
    h = conv(h, *params["dec3"]); h = up(h); h = jnp.tanh(h)
    return jnp.transpose(h, (0, 3, 1, 2))


if __name__ == "__main__":
    key = jax.random.PRNGKey(0)
    k_in, k_p = jax.random.split(key)
    # Input matching PyTorch NCHW convention: (batch=2, channels=1, 16, 16)
    x = jax.random.normal(k_in, (2, 1, 16, 16), jnp.float32)

    keys = jax.random.split(k_p, 6)
    params = {
        "enc1": init_conv_params(keys[0], 1, 64),
        "enc2": init_conv_params(keys[1], 64, 32),
        "enc3": init_conv_params(keys[2], 32, 4),
        "dec1": init_conv_params(keys[3], 4, 32),
        "dec2": init_conv_params(keys[4], 32, 64),
        "dec3": init_conv_params(keys[5], 64, 1),
    }

    packed = pack_params(params, n=2, h=16, w=16)
    out = jax.block_until_ready(jax.jit(denoiser_forward)(x, packed))

    assert out.shape == (2, 1, 16, 16), out.shape
    assert bool(jnp.all(jnp.isfinite(out)))
    assert bool(jnp.all(jnp.abs(out) <= 1.0 + 1e-6))   # final Tanh range check

    ref = jax.block_until_ready(jax.jit(_reference_forward)(x, params))
    max_err = float(jnp.max(jnp.abs(out - ref)))
    assert max_err < 1e-2, f"mismatch vs plain-JAX reference: {max_err}"

    print("KERNEL_OK")
</pallas_src>

<mosaic_0001>
module attributes {stable_mosaic.version = 11 : i64} {
  func.func @_denoiser_kernel(%arg0: i32, %arg1: memref<32x16xf32, #tpu.memory_space<vmem>>, %arg2: memref<3x32x32xf32, #tpu.memory_space<vmem>>, %arg3: memref<3x16x1024xf32, #tpu.memory_space<vmem>>, %arg4: memref<1x1024xf32, #tpu.memory_space<vmem>>, %arg5: memref<2x16x32xf32, #tpu.memory_space<vmem>>, %arg6: memref<3x16x16xf32, #tpu.memory_space<vmem>>, %arg7: memref<3x512x256xf32, #tpu.memory_space<vmem>>, %arg8: memref<1x256xf32, #tpu.memory_space<vmem>>, %arg9: memref<3x16x16xf32, #tpu.memory_space<vmem>>, %arg10: memref<3x256x32xf32, #tpu.memory_space<vmem>>, %arg11: memref<1x32xf32, #tpu.memory_space<vmem>>, %arg12: memref<2x8x16xf32, #tpu.memory_space<vmem>>, %arg13: memref<2x32x16xf32, #tpu.memory_space<vmem>>, %arg14: memref<3x8x8xf32, #tpu.memory_space<vmem>>, %arg15: memref<3x16x128xf32, #tpu.memory_space<vmem>>, %arg16: memref<1x128xf32, #tpu.memory_space<vmem>>, %arg17: memref<3x16x8xf32, #tpu.memory_space<vmem>>, %arg18: memref<3x128x512xf32, #tpu.memory_space<vmem>>, %arg19: memref<1x512xf32, #tpu.memory_space<vmem>>, %arg20: memref<3x32x16xf32, #tpu.memory_space<vmem>>, %arg21: memref<3x512x16xf32, #tpu.memory_space<vmem>>, %arg22: memref<1x16xf32, #tpu.memory_space<vmem>>, %arg23: memref<32x16xf32, #tpu.memory_space<vmem>>) attributes {dimension_semantics = [#tpu.dimension_semantics<arbitrary>], iteration_bounds = array<i64: 1>, scalar_prefetch = 0 : i64, scratch_operands = 0 : i64, tpu.core_type = #tpu.core_type<tc>, window_params = [{pipeline_mode = #tpu.pipeline_mode<synchronous>, transform_indices = @transform_0, window_bounds = array<i64: 32, 16>}, {pipeline_mode = #tpu.pipeline_mode<synchronous>, transform_indices = @transform_1, window_bounds = array<i64: 3, 32, 32>}, {pipeline_mode = #tpu.pipeline_mode<synchronous>, transform_indices = @transform_2, window_bounds = array<i64: 3, 16, 1024>}, {pipeline_mode = #tpu.pipeline_mode<synchronous>, transform_indices = @transform_3, window_bounds = array<i64: 1, 1024>}, {pipeline_mode = #tpu.pipeline_mode<synchronous>, transform_indices = @transform_4, window_bounds = array<i64: 2, 16, 32>}, {pipeline_mode = #tpu.pipeline_mode<synchronous>, transform_indices = @transform_5, window_bounds = array<i64: 3, 16, 16>}, {pipeline_mode = #tpu.pipeline_mode<synchronous>, transform_indices = @transform_6, window_bounds = array<i64: 3, 512, 256>}, {pipeline_mode = #tpu.pipeline_mode<synchronous>, transform_indices = @transform_7, window_bounds = array<i64: 1, 256>}, {pipeline_mode = #tpu.pipeline_mode<synchronous>, transform_indices = @transform_8, window_bounds = array<i64: 3, 16, 16>}, {pipeline_mode = #tpu.pipeline_mode<synchronous>, transform_indices = @transform_9, window_bounds = array<i64: 3, 256, 32>}, {pipeline_mode = #tpu.pipeline_mode<synchronous>, transform_indices = @transform_10, window_bounds = array<i64: 1, 32>}, {pipeline_mode = #tpu.pipeline_mode<synchronous>, transform_indices = @transform_11, window_bounds = array<i64: 2, 8, 16>}, {pipeline_mode = #tpu.pipeline_mode<synchronous>, transform_indices = @transform_12, window_bounds = array<i64: 2, 32, 16>}, {pipeline_mode = #tpu.pipeline_mode<synchronous>, transform_indices = @transform_13, window_bounds = array<i64: 3, 8, 8>}, {pipeline_mode = #tpu.pipeline_mode<synchronous>, transform_indices = @transform_14, window_bounds = array<i64: 3, 16, 128>}, {pipeline_mode = #tpu.pipeline_mode<synchronous>, transform_indices = @transform_15, window_bounds = array<i64: 1, 128>}, {pipeline_mode = #tpu.pipeline_mode<synchronous>, transform_indices = @transform_16, window_bounds = array<i64: 3, 16, 8>}, {pipeline_mode = #tpu.pipeline_mode<synchronous>, transform_indices = @transform_17, window_bounds = array<i64: 3, 128, 512>}, {pipeline_mode = #tpu.pipeline_mode<synchronous>, transform_indices = @transform_18, window_bounds = array<i64: 1, 512>}, {pipeline_mode = #tpu.pipeline_mode<synchronous>, transform_indices = @transform_19, window_bounds = array<i64: 3, 32, 16>}, {pipeline_mode = #tpu.pipeline_mode<synchronous>, transform_indices = @transform_20, window_bounds = array<i64: 3, 512, 16>}, {pipeline_mode = #tpu.pipeline_mode<synchronous>, transform_indices = @transform_21, window_bounds = array<i64: 1, 16>}, {pipeline_mode = #tpu.pipeline_mode<synchronous>, transform_indices = @transform_22, window_bounds = array<i64: 32, 16>}]} {
    %c0 = arith.constant 0 : index
    %c0_0 = arith.constant 0 : index
    %0 = vector.load %arg1[%c0, %c0_0] : memref<32x16xf32, #tpu.memory_space<vmem>>, vector<32x16xf32>
    %cst = arith.constant 0.000000e+00 : f32
    %1 = vector.broadcast %cst : f32 to vector<32x1024xf32>
    %c0_1 = arith.constant 0 : index
    %c0_2 = arith.constant 0 : index
    %c0_3 = arith.constant 0 : index
    %2 = vector.load %arg3[%c0_1, %c0_2, %c0_3] : memref<3x16x1024xf32, #tpu.memory_space<vmem>>, vector<1x16x1024xf32>
    %3 = vector.shape_cast %2 : vector<1x16x1024xf32> to vector<16x1024xf32>
    %cst_4 = arith.constant dense<0.000000e+00> : vector<32x1024xf32>
    %4 = tpu.matmul %0, %3, %cst_4 {dimension_numbers = #tpu.dot_dimension_numbers<[1], [0], [0], [1], [0, 0, 1, 1], [], []>} : vector<32x16xf32>, vector<16x1024xf32>, vector<32x1024xf32> -> vector<32x1024xf32>
    %c0_5 = arith.constant 0 : index
    %c0_6 = arith.constant 0 : index
    %c0_7 = arith.constant 0 : index
    %5 = vector.load %arg2[%c0_5, %c0_6, %c0_7] : memref<3x32x32xf32, #tpu.memory_space<vmem>>, vector<1x32x32xf32>
    %6 = vector.shape_cast %5 : vector<1x32x32xf32> to vector<32x32xf32>
    %cst_8 = arith.constant dense<0.000000e+00> : vector<32x1024xf32>
    %7 = tpu.matmul %6, %4, %cst_8 {dimension_numbers = #tpu.dot_dimension_numbers<[1], [0], [0], [1], [0, 0, 1, 1], [], []>} : vector<32x32xf32>, vector<32x1024xf32>, vector<32x1024xf32> -> vector<32x1024xf32>
    %8 = arith.addf %1, %7 : vector<32x1024xf32>
    %c1 = arith.constant 1 : index
    %c0_9 = arith.constant 0 : index
    %c0_10 = arith.constant 0 : index
    %9 = vector.load %arg3[%c1, %c0_9, %c0_10] : memref<3x16x1024xf32, #tpu.memory_space<vmem>>, vector<1x16x1024xf32>
    %10 = vector.shape_cast %9 : vector<1x16x1024xf32> to vector<16x1024xf32>
    %cst_11 = arith.constant dense<0.000000e+00> : vector<32x1024xf32>
    %11 = tpu.matmul %0, %10, %cst_11 {dimension_numbers = #tpu.dot_dimension_numbers<[1], [0], [0], [1], [0, 0, 1, 1], [], []>} : vector<32x16xf32>, vector<16x1024xf32>, vector<32x1024xf32> -> vector<32x1024xf32>
    %c1_12 = arith.constant 1 : index
    %c0_13 = arith.constant 0 : index
    %c0_14 = arith.constant 0 : index
    %12 = vector.load %arg2[%c1_12, %c0_13, %c0_14] : memref<3x32x32xf32, #tpu.memory_space<vmem>>, vector<1x32x32xf32>
    %13 = vector.shape_cast %12 : vector<1x32x32xf32> to vector<32x32xf32>
    %cst_15 = arith.constant dense<0.000000e+00> : vector<32x1024xf32>
    %14 = tpu.matmul %13, %11, %cst_15 {dimension_numbers = #tpu.dot_dimension_numbers<[1], [0], [0], [1], [0, 0, 1, 1], [], []>} : vector<32x32xf32>, vector<32x1024xf32>, vector<32x1024xf32> -> vector<32x1024xf32>
    %15 = arith.addf %8, %14 : vector<32x1024xf32>
    %c2 = arith.constant 2 : index
    %c0_16 = arith.constant 0 : index
    %c0_17 = arith.constant 0 : index
    %16 = vector.load %arg3[%c2, %c0_16, %c0_17] : memref<3x16x1024xf32, #tpu.memory_space<vmem>>, vector<1x16x1024xf32>
    %17 = vector.shape_cast %16 : vector<1x16x1024xf32> to vector<16x1024xf32>
    %cst_18 = arith.constant dense<0.000000e+00> : vector<32x1024xf32>
    %18 = tpu.matmul %0, %17, %cst_18 {dimension_numbers = #tpu.dot_dimension_numbers<[1], [0], [0], [1], [0, 0, 1, 1], [], []>} : vector<32x16xf32>, vector<16x1024xf32>, vector<32x1024xf32> -> vector<32x1024xf32>
    %c2_19 = arith.constant 2 : index
    %c0_20 = arith.constant 0 : index
    %c0_21 = arith.constant 0 : index
    %19 = vector.load %arg2[%c2_19, %c0_20, %c0_21] : memref<3x32x32xf32, #tpu.memory_space<vmem>>, vector<1x32x32xf32>
    %20 = vector.shape_cast %19 : vector<1x32x32xf32> to vector<32x32xf32>
    %cst_22 = arith.constant dense<0.000000e+00> : vector<32x1024xf32>
    %21 = tpu.matmul %20, %18, %cst_22 {dimension_numbers = #tpu.dot_dimension_numbers<[1], [0], [0], [1], [0, 0, 1, 1], [], []>} : vector<32x32xf32>, vector<32x1024xf32>, vector<32x1024xf32> -> vector<32x1024xf32>
    %22 = arith.addf %15, %21 : vector<32x1024xf32>
    %c0_23 = arith.constant 0 : index
    %c0_24 = arith.constant 0 : index
    %23 = vector.load %arg4[%c0_23, %c0_24] : memref<1x1024xf32, #tpu.memory_space<vmem>>, vector<1x1024xf32>
    %24 = vector.broadcast %23 : vector<1x1024xf32> to vector<32x1024xf32>
    %25 = arith.addf %22, %24 : vector<32x1024xf32>
    %cst_25 = arith.constant 0.000000e+00 : f32
    %26 = vector.broadcast %cst_25 : f32 to vector<32x1024xf32>
    %27 = arith.maximumf %25, %26 : vector<32x1024xf32>
    %c0_26 = arith.constant 0 : index
    %c0_27 = arith.constant 0 : index
    %c0_28 = arith.constant 0 : index
    %28 = vector.load %arg5[%c0_26, %c0_27, %c0_28] : memref<2x16x32xf32, #tpu.memory_space<vmem>>, vector<1x16x32xf32>
    %29 = vector.shape_cast %28 : vector<1x16x32xf32> to vector<16x32xf32>
    %cst_29 = arith.constant dense<0.000000e+00> : vector<16x1024xf32>
    %30 = tpu.matmul %29, %27, %cst_29 {dimension_numbers = #tpu.dot_dimension_numbers<[1], [0], [0], [1], [0, 0, 1, 1], [], []>} : vector<16x32xf32>, vector<32x1024xf32>, vector<16x1024xf32> -> vector<16x1024xf32>
    %c1_30 = arith.constant 1 : index
    %c0_31 = arith.constant 0 : index
    %c0_32 = arith.constant 0 : index
    %31 = vector.load %arg5[%c1_30, %c0_31, %c0_32] : memref<2x16x32xf32, #tpu.memory_space<vmem>>, vector<1x16x32xf32>
    %32 = vector.shape_cast %31 : vector<1x16x32xf32> to vector<16x32xf32>
    %cst_33 = arith.constant dense<0.000000e+00> : vector<16x1024xf32>
    %33 = tpu.matmul %32, %27, %cst_33 {dimension_numbers = #tpu.dot_dimension_numbers<[1], [0], [0], [1], [0, 0, 1, 1], [], []>} : vector<16x32xf32>, vector<32x1024xf32>, vector<16x1024xf32> -> vector<16x1024xf32>
    %34 = arith.maximumf %30, %33 : vector<16x1024xf32>
    %35 = vector.extract_strided_slice %34 {offsets = [0, 0], sizes = [16, 512], strides = [1, 1]} : vector<16x1024xf32> to vector<16x512xf32>
    %36 = vector.extract_strided_slice %34 {offsets = [0, 512], sizes = [16, 512], strides = [1, 1]} : vector<16x1024xf32> to vector<16x512xf32>
    %37 = arith.maximumf %35, %36 : vector<16x512xf32>
    %cst_34 = arith.constant 0.000000e+00 : f32
    %38 = vector.broadcast %cst_34 : f32 to vector<16x256xf32>
    %c0_35 = arith.constant 0 : index
    %c0_36 = arith.constant 0 : index
    %c0_37 = arith.constant 0 : index
    %39 = vector.load %arg7[%c0_35, %c0_36, %c0_37] : memref<3x512x256xf32, #tpu.memory_space<vmem>>, vector<1x512x256xf32>
    %40 = vector.shape_cast %39 : vector<1x512x256xf32> to vector<512x256xf32>
    %cst_38 = arith.constant dense<0.000000e+00> : vector<16x256xf32>
    %41 = tpu.matmul %37, %40, %cst_38 {dimension_numbers = #tpu.dot_dimension_numbers<[1], [0], [0], [1], [0, 0, 1, 1], [], []>} : vector<16x512xf32>, vector<512x256xf32>, vector<16x256xf32> -> vector<16x256xf32>
    %c0_39 = arith.constant 0 : index
    %c0_40 = arith.constant 0 : index
    %c0_41 = arith.constant 0 : index
    %42 = vector.load %arg6[%c0_39, %c0_40, %c0_41] : memref<3x16x16xf32, #tpu.memory_space<vmem>>, vector<1x16x16xf32>
    %43 = vector.shape_cast %42 : vector<1x16x16xf32> to vector<16x16xf32>
    %cst_42 = arith.constant dense<0.000000e+00> : vector<16x256xf32>
    %44 = tpu.matmul %43, %41, %cst_42 {dimension_numbers = #tpu.dot_dimension_numbers<[1], [0], [0], [1], [0, 0, 1, 1], [], []>} : vector<16x16xf32>, vector<16x256xf32>, vector<16x256xf32> -> vector<16x256xf32>
    %45 = arith.addf %38, %44 : vector<16x256xf32>
    %c1_43 = arith.constant 1 : index
    %c0_44 = arith.constant 0 : index
    %c0_45 = arith.constant 0 : index
    %46 = vector.load %arg7[%c1_43, %c0_44, %c0_45] : memref<3x512x256xf32, #tpu.memory_space<vmem>>, vector<1x512x256xf32>
    %47 = vector.shape_cast %46 : vector<1x512x256xf32> to vector<512x256xf32>
    %cst_46 = arith.constant dense<0.000000e+00> : vector<16x256xf32>
    %48 = tpu.matmul %37, %47, %cst_46 {dimension_numbers = #tpu.dot_dimension_numbers<[1], [0], [0], [1], [0, 0, 1, 1], [], []>} : vector<16x512xf32>, vector<512x256xf32>, vector<16x256xf32> -> vector<16x256xf32>
    %c1_47 = arith.constant 1 : index
    %c0_48 = arith.constant 0 : index
    %c0_49 = arith.constant 0 : index
    %49 = vector.load %arg6[%c1_47, %c0_48, %c0_49] : memref<3x16x16xf32, #tpu.memory_space<vmem>>, vector<1x16x16xf32>
    %50 = vector.shape_cast %49 : vector<1x16x16xf32> to vector<16x16xf32>
    %cst_50 = arith.constant dense<0.000000e+00> : vector<16x256xf32>
    %51 = tpu.matmul %50, %48, %cst_50 {dimension_numbers = #tpu.dot_dimension_numbers<[1], [0], [0], [1], [0, 0, 1, 1], [], []>} : vector<16x16xf32>, vector<16x256xf32>, vector<16x256xf32> -> vector<16x256xf32>
    %52 = arith.addf %45, %51 : vector<16x256xf32>
    %c2_51 = arith.constant 2 : index
    %c0_52 = arith.constant 0 : index
    %c0_53 = arith.constant 0 : index
    %53 = vector.load %arg7[%c2_51, %c0_52, %c0_53] : memref<3x512x256xf32, #tpu.memory_space<vmem>>, vector<1x512x256xf32>
    %54 = vector.shape_cast %53 : vector<1x512x256xf32> to vector<512x256xf32>
    %cst_54 = arith.constant dense<0.000000e+00> : vector<16x256xf32>
    %55 = tpu.matmul %37, %54, %cst_54 {dimension_numbers = #tpu.dot_dimension_numbers<[1], [0], [0], [1], [0, 0, 1, 1], [], []>} : vector<16x512xf32>, vector<512x256xf32>, vector<16x256xf32> -> vector<16x256xf32>
    %c2_55 = arith.constant 2 : index
    %c0_56 = arith.constant 0 : index
    %c0_57 = arith.constant 0 : index
    %56 = vector.load %arg6[%c2_55, %c0_56, %c0_57] : memref<3x16x16xf32, #tpu.memory_space<vmem>>, vector<1x16x16xf32>
    %57 = vector.shape_cast %56 : vector<1x16x16xf32> to vector<16x16xf32>
    %cst_58 = arith.constant dense<0.000000e+00> : vector<16x256xf32>
    %58 = tpu.matmul %57, %55, %cst_58 {dimension_numbers = #tpu.dot_dimension_numbers<[1], [0], [0], [1], [0, 0, 1, 1], [], []>} : vector<16x16xf32>, vector<16x256xf32>, vector<16x256xf32> -> vector<16x256xf32>
    %59 = arith.addf %52, %58 : vector<16x256xf32>
    %c0_59 = arith.constant 0 : index
    %c0_60 = arith.constant 0 : index
    %60 = vector.load %arg8[%c0_59, %c0_60] : memref<1x256xf32, #tpu.memory_space<vmem>>, vector<1x256xf32>
    %61 = vector.broadcast %60 : vector<1x256xf32> to vector<16x256xf32>
    %62 = arith.addf %59, %61 : vector<16x256xf32>
    %cst_61 = arith.constant 0.000000e+00 : f32
    %63 = vector.broadcast %cst_61 : f32 to vector<16x256xf32>
    %64 = arith.maximumf %62, %63 : vector<16x256xf32>
    %cst_62 = arith.constant 0.000000e+00 : f32
    %65 = vector.broadcast %cst_62 : f32 to vector<16x32xf32>
    %c0_63 = arith.constant 0 : index
    %c0_64 = arith.constant 0 : index
    %c0_65 = arith.constant 0 : index
    %66 = vector.load %arg10[%c0_63, %c0_64, %c0_65] : memref<3x256x32xf32, #tpu.memory_space<vmem>>, vector<1x256x32xf32>
    %67 = vector.shape_cast %66 : vector<1x256x32xf32> to vector<256x32xf32>
    %cst_66 = arith.constant dense<0.000000e+00> : vector<16x32xf32>
    %68 = tpu.matmul %64, %67, %cst_66 {dimension_numbers = #tpu.dot_dimension_numbers<[1], [0], [0], [1], [0, 0, 1, 1], [], []>} : vector<16x256xf32>, vector<256x32xf32>, vector<16x32xf32> -> vector<16x32xf32>
    %c0_67 = arith.constant 0 : index
    %c0_68 = arith.constant 0 : index
    %c0_69 = arith.constant 0 : index
    %69 = vector.load %arg9[%c0_67, %c0_68, %c0_69] : memref<3x16x16xf32, #tpu.memory_space<vmem>>, vector<1x16x16xf32>
    %70 = vector.shape_cast %69 : vector<1x16x16xf32> to vector<16x16xf32>
    %cst_70 = arith.constant dense<0.000000e+00> : vector<16x32xf32>
    %71 = tpu.matmul %70, %68, %cst_70 {dimension_numbers = #tpu.dot_dimension_numbers<[1], [0], [0], [1], [0, 0, 1, 1], [], []>} : vector<16x16xf32>, vector<16x32xf32>, vector<16x32xf32> -> vector<16x32xf32>
    %72 = arith.addf %65, %71 : vector<16x32xf32>
    %c1_71 = arith.constant 1 : index
    %c0_72 = arith.constant 0 : index
    %c0_73 = arith.constant 0 : index
    %73 = vector.load %arg10[%c1_71, %c0_72, %c0_73] : memref<3x256x32xf32, #tpu.memory_space<vmem>>, vector<1x256x32xf32>
    %74 = vector.shape_cast %73 : vector<1x256x32xf32> to vector<256x32xf32>
    %cst_74 = arith.constant dense<0.000000e+00> : vector<16x32xf32>
    %75 = tpu.matmul %64, %74, %cst_74 {dimension_numbers = #tpu.dot_dimension_numbers<[1], [0], [0], [1], [0, 0, 1, 1], [], []>} : vector<16x256xf32>, vector<256x32xf32>, vector<16x32xf32> -> vector<16x32xf32>
    %c1_75 = arith.constant 1 : index
    %c0_76 = arith.constant 0 : index
    %c0_77 = arith.constant 0 : index
    %76 = vector.load %arg9[%c1_75, %c0_76, %c0_77] : memref<3x16x16xf32, #tpu.memory_space<vmem>>, vector<1x16x16xf32>
    %77 = vector.shape_cast %76 : vector<1x16x16xf32> to vector<16x16xf32>
    %cst_78 = arith.constant dense<0.000000e+00> : vector<16x32xf32>
    %78 = tpu.matmul %77, %75, %cst_78 {dimension_numbers = #tpu.dot_dimension_numbers<[1], [0], [0], [1], [0, 0, 1, 1], [], []>} : vector<16x16xf32>, vector<16x32xf32>, vector<16x32xf32> -> vector<16x32xf32>
    %79 = arith.addf %72, %78 : vector<16x32xf32>
    %c2_79 = arith.constant 2 : index
    %c0_80 = arith.constant 0 : index
    %c0_81 = arith.constant 0 : index
    %80 = vector.load %arg10[%c2_79, %c0_80, %c0_81] : memref<3x256x32xf32, #tpu.memory_space<vmem>>, vector<1x256x32xf32>
    %81 = vector.shape_cast %80 : vector<1x256x32xf32> to vector<256x32xf32>
    %cst_82 = arith.constant dense<0.000000e+00> : vector<16x32xf32>
    %82 = tpu.matmul %64, %81, %cst_82 {dimension_numbers = #tpu.dot_dimension_numbers<[1], [0], [0], [1], [0, 0, 1, 1], [], []>} : vector<16x256xf32>, vector<256x32xf32>, vector<16x32xf32> -> vector<16x32xf32>
    %c2_83 = arith.constant 2 : index
    %c0_84 = arith.constant 0 : index
    %c0_85 = arith.constant 0 : index
    %83 = vector.load %arg9[%c2_83, %c0_84, %c0_85] : memref<3x16x16xf32, #tpu.memory_space<vmem>>, vector<1x16x16xf32>
    %84 = vector.shape_cast %83 : vector<1x16x16xf32> to vector<16x16xf32>
    %cst_86 = arith.constant dense<0.000000e+00> : vector<16x32xf32>
    %85 = tpu.matmul %84, %82, %cst_86 {dimension_numbers = #tpu.dot_dimension_numbers<[1], [0], [0], [1], [0, 0, 1, 1], [], []>} : vector<16x16xf32>, vector<16x32xf32>, vector<16x32xf32> -> vector<16x32xf32>
    %86 = arith.addf %79, %85 : vector<16x32xf32>
    %c0_87 = arith.constant 0 : index
    %c0_88 = arith.constant 0 : index
    %87 = vector.load %arg11[%c0_87, %c0_88] : memref<1x32xf32, #tpu.memory_space<vmem>>, vector<1x32xf32>
    %88 = vector.broadcast %87 : vector<1x32xf32> to vector<16x32xf32>
    %89 = arith.addf %86, %88 : vector<16x32xf32>
    %cst_89 = arith.constant 0.000000e+00 : f32
    %90 = vector.broadcast %cst_89 : f32 to vector<16x32xf32>
    %91 = arith.maximumf %89, %90 : vector<16x32xf32>
    %c0_90 = arith.constant 0 : index
    %c0_91 = arith.constant 0 : index
    %c0_92 = arith.constant 0 : index
    %92 = vector.load %arg12[%c0_90, %c0_91, %c0_92] : memref<2x8x16xf32, #tpu.memory_space<vmem>>, vector<1x8x16xf32>
    %93 = vector.shape_cast %92 : vector<1x8x16xf32> to vector<8x16xf32>
    %cst_93 = arith.constant dense<0.000000e+00> : vector<8x32xf32>
    %94 = tpu.matmul %93, %91, %cst_93 {dimension_numbers = #tpu.dot_dimension_numbers<[1], [0], [0], [1], [0, 0, 1, 1], [], []>} : vector<8x16xf32>, vector<16x32xf32>, vector<8x32xf32> -> vector<8x32xf32>
    %c1_94 = arith.constant 1 : index
    %c0_95 = arith.constant 0 : index
    %c0_96 = arith.constant 0 : index
    %95 = vector.load %arg12[%c1_94, %c0_95, %c0_96] : memref<2x8x16xf32, #tpu.memory_space<vmem>>, vector<1x8x16xf32>
    %96 = vector.shape_cast %95 : vector<1x8x16xf32> to vector<8x16xf32>
    %cst_97 = arith.constant dense<0.000000e+00> : vector<8x32xf32>
    %97 = tpu.matmul %96, %91, %cst_97 {dimension_numbers = #tpu.dot_dimension_numbers<[1], [0], [0], [1], [0, 0, 1, 1], [], []>} : vector<8x16xf32>, vector<16x32xf32>, vector<8x32xf32> -> vector<8x32xf32>
    %98 = arith.maximumf %94, %97 : vector<8x32xf32>
    %c0_98 = arith.constant 0 : index
    %c0_99 = arith.constant 0 : index
    %c0_100 = arith.constant 0 : index
    %99 = vector.load %arg13[%c0_98, %c0_99, %c0_100] : memref<2x32x16xf32, #tpu.memory_space<vmem>>, vector<1x32x16xf32>
    %100 = vector.shape_cast %99 : vector<1x32x16xf32> to vector<32x16xf32>
    %cst_101 = arith.constant dense<0.000000e+00> : vector<8x16xf32>
    %101 = tpu.matmul %98, %100, %cst_101 {dimension_numbers = #tpu.dot_dimension_numbers<[1], [0], [0], [1], [0, 0, 1, 1], [], []>} : vector<8x32xf32>, vector<32x16xf32>, vector<8x16xf32> -> vector<8x16xf32>
    %c1_102 = arith.constant 1 : index
    %c0_103 = arith.constant 0 : index
    %c0_104 = arith.constant 0 : index
    %102 = vector.load %arg13[%c1_102, %c0_103, %c0_104] : memref<2x32x16xf32, #tpu.memory_space<vmem>>, vector<1x32x16xf32>
    %103 = vector.shape_cast %102 : vector<1x32x16xf32> to vector<32x16xf32>
    %cst_105 = arith.constant dense<0.000000e+00> : vector<8x16xf32>
    %104 = tpu.matmul %98, %103, %cst_105 {dimension_numbers = #tpu.dot_dimension_numbers<[1], [0], [0], [1], [0, 0, 1, 1], [], []>} : vector<8x32xf32>, vector<32x16xf32>, vector<8x16xf32> -> vector<8x16xf32>
    %105 = arith.maximumf %101, %104 : vector<8x16xf32>
    %cst_106 = arith.constant 0.000000e+00 : f32
    %106 = vector.broadcast %cst_106 : f32 to vector<8x128xf32>
    %c0_107 = arith.constant 0 : index
    %c0_108 = arith.constant 0 : index
    %c0_109 = arith.constant 0 : index
    %107 = vector.load %arg15[%c0_107, %c0_108, %c0_109] : memref<3x16x128xf32, #tpu.memory_space<vmem>>, vector<1x16x128xf32>
    %108 = vector.shape_cast %107 : vector<1x16x128xf32> to vector<16x128xf32>
    %cst_110 = arith.constant dense<0.000000e+00> : vector<8x128xf32>
    %109 = tpu.matmul %105, %108, %cst_110 {dimension_numbers = #tpu.dot_dimension_numbers<[1], [0], [0], [1], [0, 0, 1, 1], [], []>} : vector<8x16xf32>, vector<16x128xf32>, vector<8x128xf32> -> vector<8x128xf32>
    %c0_111 = arith.constant 0 : index
    %c0_112 = arith.constant 0 : index
    %c0_113 = arith.constant 0 : index
    %110 = vector.load %arg14[%c0_111, %c0_112, %c0_113] : memref<3x8x8xf32, #tpu.memory_space<vmem>>, vector<1x8x8xf32>
    %111 = vector.shape_cast %110 : vector<1x8x8xf32> to vector<8x8xf32>
    %cst_114 = arith.constant dense<0.000000e+00> : vector<8x128xf32>
    %112 = tpu.matmul %111, %109, %cst_114 {dimension_numbers = #tpu.dot_dimension_numbers<[1], [0], [0], [1], [0, 0, 1, 1], [], []>} : vector<8x8xf32>, vector<8x128xf32>, vector<8x128xf32> -> vector<8x128xf32>
    %113 = arith.addf %106, %112 : vector<8x128xf32>
    %c1_115 = arith.constant 1 : index
    %c0_116 = arith.constant 0 : index
    %c0_117 = arith.constant 0 : index
    %114 = vector.load %arg15[%c1_115, %c0_116, %c0_117] : memref<3x16x128xf32, #tpu.memory_space<vmem>>, vector<1x16x128xf32>
    %115 = vector.shape_cast %114 : vector<1x16x128xf32> to vector<16x128xf32>
    %cst_118 = arith.constant dense<0.000000e+00> : vector<8x128xf32>
    %116 = tpu.matmul %105, %115, %cst_118 {dimension_numbers = #tpu.dot_dimension_numbers<[1], [0], [0], [1], [0, 0, 1, 1], [], []>} : vector<8x16xf32>, vector<16x128xf32>, vector<8x128xf32> -> vector<8x128xf32>
    %c1_119 = arith.constant 1 : index
    %c0_120 = arith.constant 0 : index
    %c0_121 = arith.constant 0 : index
    %117 = vector.load %arg14[%c1_119, %c0_120, %c0_121] : memref<3x8x8xf32, #tpu.memory_space<vmem>>, vector<1x8x8xf32>
    %118 = vector.shape_cast %117 : vector<1x8x8xf32> to vector<8x8xf32>
    %cst_122 = arith.constant dense<0.000000e+00> : vector<8x128xf32>
    %119 = tpu.matmul %118, %116, %cst_122 {dimension_numbers = #tpu.dot_dimension_numbers<[1], [0], [0], [1], [0, 0, 1, 1], [], []>} : vector<8x8xf32>, vector<8x128xf32>, vector<8x128xf32> -> vector<8x128xf32>
    %120 = arith.addf %113, %119 : vector<8x128xf32>
    %c2_123 = arith.constant 2 : index
    %c0_124 = arith.constant 0 : index
    %c0_125 = arith.constant 0 : index
    %121 = vector.load %arg15[%c2_123, %c0_124, %c0_125] : memref<3x16x128xf32, #tpu.memory_space<vmem>>, vector<1x16x128xf32>
    %122 = vector.shape_cast %121 : vector<1x16x128xf32> to vector<16x128xf32>
    %cst_126 = arith.constant dense<0.000000e+00> : vector<8x128xf32>
    %123 = tpu.matmul %105, %122, %cst_126 {dimension_numbers = #tpu.dot_dimension_numbers<[1], [0], [0], [1], [0, 0, 1, 1], [], []>} : vector<8x16xf32>, vector<16x128xf32>, vector<8x128xf32> -> vector<8x128xf32>
    %c2_127 = arith.constant 2 : index
    %c0_128 = arith.constant 0 : index
    %c0_129 = arith.constant 0 : index
    %124 = vector.load %arg14[%c2_127, %c0_128, %c0_129] : memref<3x8x8xf32, #tpu.memory_space<vmem>>, vector<1x8x8xf32>
    %125 = vector.shape_cast %124 : vector<1x8x8xf32> to vector<8x8xf32>
    %cst_130 = arith.constant dense<0.000000e+00> : vector<8x128xf32>
    %126 = tpu.matmul %125, %123, %cst_130 {dimension_numbers = #tpu.dot_dimension_numbers<[1], [0], [0], [1], [0, 0, 1, 1], [], []>} : vector<8x8xf32>, vector<8x128xf32>, vector<8x128xf32> -> vector<8x128xf32>
    %127 = arith.addf %120, %126 : vector<8x128xf32>
    %c0_131 = arith.constant 0 : index
    %c0_132 = arith.constant 0 : index
    %128 = vector.load %arg16[%c0_131, %c0_132] : memref<1x128xf32, #tpu.memory_space<vmem>>, vector<1x128xf32>
    %129 = vector.broadcast %128 : vector<1x128xf32> to vector<8x128xf32>
    %130 = arith.addf %127, %129 : vector<8x128xf32>
    %cst_133 = arith.constant 0.000000e+00 : f32
    %131 = vector.broadcast %cst_133 : f32 to vector<8x128xf32>
    %132 = arith.maximumf %130, %131 : vector<8x128xf32>
    %cst_134 = arith.constant 0.000000e+00 : f32
    %133 = vector.broadcast %cst_134 : f32 to vector<16x512xf32>
    %c0_135 = arith.constant 0 : index
    %c0_136 = arith.constant 0 : index
    %c0_137 = arith.constant 0 : index
    %134 = vector.load %arg18[%c0_135, %c0_136, %c0_137] : memref<3x128x512xf32, #tpu.memory_space<vmem>>, vector<1x128x512xf32>
    %135 = vector.shape_cast %134 : vector<1x128x512xf32> to vector<128x512xf32>
    %cst_138 = arith.constant dense<0.000000e+00> : vector<8x512xf32>
    %136 = tpu.matmul %132, %135, %cst_138 {dimension_numbers = #tpu.dot_dimension_numbers<[1], [0], [0], [1], [0, 0, 1, 1], [], []>} : vector<8x128xf32>, vector<128x512xf32>, vector<8x512xf32> -> vector<8x512xf32>
    %c0_139 = arith.constant 0 : index
    %c0_140 = arith.constant 0 : index
    %c0_141 = arith.constant 0 : index
    %137 = vector.load %arg17[%c0_139, %c0_140, %c0_141] : memref<3x16x8xf32, #tpu.memory_space<vmem>>, vector<1x16x8xf32>
    %138 = vector.shape_cast %137 : vector<1x16x8xf32> to vector<16x8xf32>
    %cst_142 = arith.constant dense<0.000000e+00> : vector<16x512xf32>
    %139 = tpu.matmul %138, %136, %cst_142 {dimension_numbers = #tpu.dot_dimension_numbers<[1], [0], [0], [1], [0, 0, 1, 1], [], []>} : vector<16x8xf32>, vector<8x512xf32>, vector<16x512xf32> -> vector<16x512xf32>
    %140 = arith.addf %133, %139 : vector<16x512xf32>
    %c1_143 = arith.constant 1 : index
    %c0_144 = arith.constant 0 : index
    %c0_145 = arith.constant 0 : index
    %141 = vector.load %arg18[%c1_143, %c0_144, %c0_145] : memref<3x128x512xf32, #tpu.memory_space<vmem>>, vector<1x128x512xf32>
    %142 = vector.shape_cast %141 : vector<1x128x512xf32> to vector<128x512xf32>
    %cst_146 = arith.constant dense<0.000000e+00> : vector<8x512xf32>
    %143 = tpu.matmul %132, %142, %cst_146 {dimension_numbers = #tpu.dot_dimension_numbers<[1], [0], [0], [1], [0, 0, 1, 1], [], []>} : vector<8x128xf32>, vector<128x512xf32>, vector<8x512xf32> -> vector<8x512xf32>
    %c1_147 = arith.constant 1 : index
    %c0_148 = arith.constant 0 : index
    %c0_149 = arith.constant 0 : index
    %144 = vector.load %arg17[%c1_147, %c0_148, %c0_149] : memref<3x16x8xf32, #tpu.memory_space<vmem>>, vector<1x16x8xf32>
    %145 = vector.shape_cast %144 : vector<1x16x8xf32> to vector<16x8xf32>
    %cst_150 = arith.constant dense<0.000000e+00> : vector<16x512xf32>
    %146 = tpu.matmul %145, %143, %cst_150 {dimension_numbers = #tpu.dot_dimension_numbers<[1], [0], [0], [1], [0, 0, 1, 1], [], []>} : vector<16x8xf32>, vector<8x512xf32>, vector<16x512xf32> -> vector<16x512xf32>
    %147 = arith.addf %140, %146 : vector<16x512xf32>
    %c2_151 = arith.constant 2 : index
    %c0_152 = arith.constant 0 : index
    %c0_153 = arith.constant 0 : index
    %148 = vector.load %arg18[%c2_151, %c0_152, %c0_153] : memref<3x128x512xf32, #tpu.memory_space<vmem>>, vector<1x128x512xf32>
    %149 = vector.shape_cast %148 : vector<1x128x512xf32> to vector<128x512xf32>
    %cst_154 = arith.constant dense<0.000000e+00> : vector<8x512xf32>
    %150 = tpu.matmul %132, %149, %cst_154 {dimension_numbers = #tpu.dot_dimension_numbers<[1], [0], [0], [1], [0, 0, 1, 1], [], []>} : vector<8x128xf32>, vector<128x512xf32>, vector<8x512xf32> -> vector<8x512xf32>
    %c2_155 = arith.constant 2 : index
    %c0_156 = arith.constant 0 : index
    %c0_157 = arith.constant 0 : index
    %151 = vector.load %arg17[%c2_155, %c0_156, %c0_157] : memref<3x16x8xf32, #tpu.memory_space<vmem>>, vector<1x16x8xf32>
    %152 = vector.shape_cast %151 : vector<1x16x8xf32> to vector<16x8xf32>
    %cst_158 = arith.constant dense<0.000000e+00> : vector<16x512xf32>
    %153 = tpu.matmul %152, %150, %cst_158 {dimension_numbers = #tpu.dot_dimension_numbers<[1], [0], [0], [1], [0, 0, 1, 1], [], []>} : vector<16x8xf32>, vector<8x512xf32>, vector<16x512xf32> -> vector<16x512xf32>
    %154 = arith.addf %147, %153 : vector<16x512xf32>
    %c0_159 = arith.constant 0 : index
    %c0_160 = arith.constant 0 : index
    %155 = vector.load %arg19[%c0_159, %c0_160] : memref<1x512xf32, #tpu.memory_space<vmem>>, vector<1x512xf32>
    %156 = vector.broadcast %155 : vector<1x512xf32> to vector<16x512xf32>
    %157 = arith.addf %154, %156 : vector<16x512xf32>
    %cst_161 = arith.constant 0.000000e+00 : f32
    %158 = vector.broadcast %cst_161 : f32 to vector<16x512xf32>
    %159 = arith.maximumf %157, %158 : vector<16x512xf32>
    %cst_162 = arith.constant 0.000000e+00 : f32
    %160 = vector.broadcast %cst_162 : f32 to vector<32x16xf32>
    %c0_163 = arith.constant 0 : index
    %c0_164 = arith.constant 0 : index
    %c0_165 = arith.constant 0 : index
    %161 = vector.load %arg21[%c0_163, %c0_164, %c0_165] : memref<3x512x16xf32, #tpu.memory_space<vmem>>, vector<1x512x16xf32>
    %162 = vector.shape_cast %161 : vector<1x512x16xf32> to vector<512x16xf32>
    %cst_166 = arith.constant dense<0.000000e+00> : vector<16x16xf32>
    %163 = tpu.matmul %159, %162, %cst_166 {dimension_numbers = #tpu.dot_dimension_numbers<[1], [0], [0], [1], [0, 0, 1, 1], [], []>} : vector<16x512xf32>, vector<512x16xf32>, vector<16x16xf32> -> vector<16x16xf32>
    %c0_167 = arith.constant 0 : index
    %c0_168 = arith.constant 0 : index
    %c0_169 = arith.constant 0 : index
    %164 = vector.load %arg20[%c0_167, %c0_168, %c0_169] : memref<3x32x16xf32, #tpu.memory_space<vmem>>, vector<1x32x16xf32>
    %165 = vector.shape_cast %164 : vector<1x32x16xf32> to vector<32x16xf32>
    %cst_170 = arith.constant dense<0.000000e+00> : vector<32x16xf32>
    %166 = tpu.matmul %165, %163, %cst_170 {dimension_numbers = #tpu.dot_dimension_numbers<[1], [0], [0], [1], [0, 0, 1, 1], [], []>} : vector<32x16xf32>, vector<16x16xf32>, vector<32x16xf32> -> vector<32x16xf32>
    %167 = arith.addf %160, %166 : vector<32x16xf32>
    %c1_171 = arith.constant 1 : index
    %c0_172 = arith.constant 0 : index
    %c0_173 = arith.constant 0 : index
    %168 = vector.load %arg21[%c1_171, %c0_172, %c0_173] : memref<3x512x16xf32, #tpu.memory_space<vmem>>, vector<1x512x16xf32>
    %169 = vector.shape_cast %168 : vector<1x512x16xf32> to vector<512x16xf32>
    %cst_174 = arith.constant dense<0.000000e+00> : vector<16x16xf32>
    %170 = tpu.matmul %159, %169, %cst_174 {dimension_numbers = #tpu.dot_dimension_numbers<[1], [0], [0], [1], [0, 0, 1, 1], [], []>} : vector<16x512xf32>, vector<512x16xf32>, vector<16x16xf32> -> vector<16x16xf32>
    %c1_175 = arith.constant 1 : index
    %c0_176 = arith.constant 0 : index
    %c0_177 = arith.constant 0 : index
    %171 = vector.load %arg20[%c1_175, %c0_176, %c0_177] : memref<3x32x16xf32, #tpu.memory_space<vmem>>, vector<1x32x16xf32>
    %172 = vector.shape_cast %171 : vector<1x32x16xf32> to vector<32x16xf32>
    %cst_178 = arith.constant dense<0.000000e+00> : vector<32x16xf32>
    %173 = tpu.matmul %172, %170, %cst_178 {dimension_numbers = #tpu.dot_dimension_numbers<[1], [0], [0], [1], [0, 0, 1, 1], [], []>} : vector<32x16xf32>, vector<16x16xf32>, vector<32x16xf32> -> vector<32x16xf32>
    %174 = arith.addf %167, %173 : vector<32x16xf32>
    %c2_179 = arith.constant 2 : index
    %c0_180 = arith.constant 0 : index
    %c0_181 = arith.constant 0 : index
    %175 = vector.load %arg21[%c2_179, %c0_180, %c0_181] : memref<3x512x16xf32, #tpu.memory_space<vmem>>, vector<1x512x16xf32>
    %176 = vector.shape_cast %175 : vector<1x512x16xf32> to vector<512x16xf32>
    %cst_182 = arith.constant dense<0.000000e+00> : vector<16x16xf32>
    %177 = tpu.matmul %159, %176, %cst_182 {dimension_numbers = #tpu.dot_dimension_numbers<[1], [0], [0], [1], [0, 0, 1, 1], [], []>} : vector<16x512xf32>, vector<512x16xf32>, vector<16x16xf32> -> vector<16x16xf32>
    %c2_183 = arith.constant 2 : index
    %c0_184 = arith.constant 0 : index
    %c0_185 = arith.constant 0 : index
    %178 = vector.load %arg20[%c2_183, %c0_184, %c0_185] : memref<3x32x16xf32, #tpu.memory_space<vmem>>, vector<1x32x16xf32>
    %179 = vector.shape_cast %178 : vector<1x32x16xf32> to vector<32x16xf32>
    %cst_186 = arith.constant dense<0.000000e+00> : vector<32x16xf32>
    %180 = tpu.matmul %179, %177, %cst_186 {dimension_numbers = #tpu.dot_dimension_numbers<[1], [0], [0], [1], [0, 0, 1, 1], [], []>} : vector<32x16xf32>, vector<16x16xf32>, vector<32x16xf32> -> vector<32x16xf32>
    %181 = arith.addf %174, %180 : vector<32x16xf32>
    %c0_187 = arith.constant 0 : index
    %c0_188 = arith.constant 0 : index
    %182 = vector.load %arg22[%c0_187, %c0_188] : memref<1x16xf32, #tpu.memory_space<vmem>>, vector<1x16xf32>
    %183 = vector.broadcast %182 : vector<1x16xf32> to vector<32x16xf32>
    %184 = arith.addf %181, %183 : vector<32x16xf32>
    %185 = math.tanh %184 : vector<32x16xf32>
    %c0_189 = arith.constant 0 : index
    %c0_190 = arith.constant 0 : index
    %186 = vector.load %arg23[%c0_189, %c0_190] : memref<32x16xf32, #tpu.memory_space<vmem>>, vector<32x16xf32>
    tpu.vector_store %arg23[%c0_189, %c0_190], %185 {strides = array<i32>} : memref<32x16xf32, #tpu.memory_space<vmem>>, vector<32x16xf32>,
    return
  }
  func.func @transform_0(%arg0: i32) -> (i32, i32) {
    %c0_i32 = arith.constant 0 : i32
    %c0_i32_0 = arith.constant 0 : i32
    %c0_i32_1 = arith.constant 0 : i32
    return %c0_i32, %c0_i32_0 : i32, i32
  }
  func.func @transform_1(%arg0: i32) -> (i32, i32, i32) {
    %c0_i32 = arith.constant 0 : i32
    %c0_i32_0 = arith.constant 0 : i32
    %c0_i32_1 = arith.constant 0 : i32
    %c0_i32_2 = arith.constant 0 : i32
    return %c0_i32, %c0_i32_0, %c0_i32_1 : i32, i32, i32
  }
  func.func @transform_2(%arg0: i32) -> (i32, i32, i32) {
    %c0_i32 = arith.constant 0 : i32
    %c0_i32_0 = arith.constant 0 : i32
    %c0_i32_1 = arith.constant 0 : i32
    %c0_i32_2 = arith.constant 0 : i32
    return %c0_i32, %c0_i32_0, %c0_i32_1 : i32, i32, i32
  }
  func.func @transform_3(%arg0: i32) -> (i32, i32) {
    %c0_i32 = arith.constant 0 : i32
    %c0_i32_0 = arith.constant 0 : i32
    %c0_i32_1 = arith.constant 0 : i32
    return %c0_i32, %c0_i32_0 : i32, i32
  }
  func.func @transform_4(%arg0: i32) -> (i32, i32, i32) {
    %c0_i32 = arith.constant 0 : i32
    %c0_i32_0 = arith.constant 0 : i32
    %c0_i32_1 = arith.constant 0 : i32
    %c0_i32_2 = arith.constant 0 : i32
    return %c0_i32, %c0_i32_0, %c0_i32_1 : i32, i32, i32
  }
  func.func @transform_5(%arg0: i32) -> (i32, i32, i32) {
    %c0_i32 = arith.constant 0 : i32
    %c0_i32_0 = arith.constant 0 : i32
    %c0_i32_1 = arith.constant 0 : i32
    %c0_i32_2 = arith.constant 0 : i32
    return %c0_i32, %c0_i32_0, %c0_i32_1 : i32, i32, i32
  }
  func.func @transform_6(%arg0: i32) -> (i32, i32, i32) {
    %c0_i32 = arith.constant 0 : i32
    %c0_i32_0 = arith.constant 0 : i32
    %c0_i32_1 = arith.constant 0 : i32
    %c0_i32_2 = arith.constant 0 : i32
    return %c0_i32, %c0_i32_0, %c0_i32_1 : i32, i32, i32
  }
  func.func @transform_7(%arg0: i32) -> (i32, i32) {
    %c0_i32 = arith.constant 0 : i32
    %c0_i32_0 = arith.constant 0 : i32
    %c0_i32_1 = arith.constant 0 : i32
    return %c0_i32, %c0_i32_0 : i32, i32
  }
  func.func @transform_8(%arg0: i32) -> (i32, i32, i32) {
    %c0_i32 = arith.constant 0 : i32
    %c0_i32_0 = arith.constant 0 : i32
    %c0_i32_1 = arith.constant 0 : i32
    %c0_i32_2 = arith.constant 0 : i32
    return %c0_i32, %c0_i32_0, %c0_i32_1 : i32, i32, i32
  }
  func.func @transform_9(%arg0: i32) -> (i32, i32, i32) {
    %c0_i32 = arith.constant 0 : i32
    %c0_i32_0 = arith.constant 0 : i32
    %c0_i32_1 = arith.constant 0 : i32
    %c0_i32_2 = arith.constant 0 : i32
    return %c0_i32, %c0_i32_0, %c0_i32_1 : i32, i32, i32
  }
  func.func @transform_10(%arg0: i32) -> (i32, i32) {
    %c0_i32 = arith.constant 0 : i32
    %c0_i32_0 = arith.constant 0 : i32
    %c0_i32_1 = arith.constant 0 : i32
    return %c0_i32, %c0_i32_0 : i32, i32
  }
  func.func @transform_11(%arg0: i32) -> (i32, i32, i32) {
    %c0_i32 = arith.constant 0 : i32
    %c0_i32_0 = arith.constant 0 : i32
    %c0_i32_1 = arith.constant 0 : i32
    %c0_i32_2 = arith.constant 0 : i32
    return %c0_i32, %c0_i32_0, %c0_i32_1 : i32, i32, i32
  }
  func.func @transform_12(%arg0: i32) -> (i32, i32, i32) {
    %c0_i32 = arith.constant 0 : i32
    %c0_i32_0 = arith.constant 0 : i32
    %c0_i32_1 = arith.constant 0 : i32
    %c0_i32_2 = arith.constant 0 : i32
    return %c0_i32, %c0_i32_0, %c0_i32_1 : i32, i32, i32
  }
  func.func @transform_13(%arg0: i32) -> (i32, i32, i32) {
    %c0_i32 = arith.constant 0 : i32
    %c0_i32_0 = arith.constant 0 : i32
    %c0_i32_1 = arith.constant 0 : i32
    %c0_i32_2 = arith.constant 0 : i32
    return %c0_i32, %c0_i32_0, %c0_i32_1 : i32, i32, i32
  }
  func.func @transform_14(%arg0: i32) -> (i32, i32, i32) {
    %c0_i32 = arith.constant 0 : i32
    %c0_i32_0 = arith.constant 0 : i32
    %c0_i32_1 = arith.constant 0 : i32
    %c0_i32_2 = arith.constant 0 : i32
    return %c0_i32, %c0_i32_0, %c0_i32_1 : i32, i32, i32
  }
  func.func @transform_15(%arg0: i32) -> (i32, i32) {
    %c0_i32 = arith.constant 0 : i32
    %c0_i32_0 = arith.constant 0 : i32
    %c0_i32_1 = arith.constant 0 : i32
    return %c0_i32, %c0_i32_0 : i32, i32
  }
  func.func @transform_16(%arg0: i32) -> (i32, i32, i32) {
    %c0_i32 = arith.constant 0 : i32
    %c0_i32_0 = arith.constant 0 : i32
    %c0_i32_1 = arith.constant 0 : i32
    %c0_i32_2 = arith.constant 0 : i32
    return %c0_i32, %c0_i32_0, %c0_i32_1 : i32, i32, i32
  }
  func.func @transform_17(%arg0: i32) -> (i32, i32, i32) {
    %c0_i32 = arith.constant 0 : i32
    %c0_i32_0 = arith.constant 0 : i32
    %c0_i32_1 = arith.constant 0 : i32
    %c0_i32_2 = arith.constant 0 : i32
    return %c0_i32, %c0_i32_0, %c0_i32_1 : i32, i32, i32
  }
  func.func @transform_18(%arg0: i32) -> (i32, i32) {
    %c0_i32 = arith.constant 0 : i32
    %c0_i32_0 = arith.constant 0 : i32
    %c0_i32_1 = arith.constant 0 : i32
    return %c0_i32, %c0_i32_0 : i32, i32
  }
  func.func @transform_19(%arg0: i32) -> (i32, i32, i32) {
    %c0_i32 = arith.constant 0 : i32
    %c0_i32_0 = arith.constant 0 : i32
    %c0_i32_1 = arith.constant 0 : i32
    %c0_i32_2 = arith.constant 0 : i32
    return %c0_i32, %c0_i32_0, %c0_i32_1 : i32, i32, i32
  }
  func.func @transform_20(%arg0: i32) -> (i32, i32, i32) {
    %c0_i32 = arith.constant 0 : i32
    %c0_i32_0 = arith.constant 0 : i32
    %c0_i32_1 = arith.constant 0 : i32
    %c0_i32_2 = arith.constant 0 : i32
    return %c0_i32, %c0_i32_0, %c0_i32_1 : i32, i32, i32
  }
  func.func @transform_21(%arg0: i32) -> (i32, i32) {
    %c0_i32 = arith.constant 0 : i32
    %c0_i32_0 = arith.constant 0 : i32
    %c0_i32_1 = arith.constant 0 : i32
    return %c0_i32, %c0_i32_0 : i32, i32
  }
  func.func @transform_22(%arg0: i32) -> (i32, i32) {
    %c0_i32 = arith.constant 0 : i32
    %c0_i32_0 = arith.constant 0 : i32
    %c0_i32_1 = arith.constant 0 : i32
    return %c0_i32, %c0_i32_0 : i32, i32
  }
}

</mosaic_0001>

<llo_original>
// kernel: denoiser_forward.1
$region0: #{denoiser_forward.1}
  #allocation0 [shape = 'u32[]', space=smem, size = 0x4, offset = 0x4, fixed_abs, tag = 'smem constant byte address 0x4 - core index']
  #allocation1 [shape = 'u32[144,128]{1,0:T(1,128)}', space=vmem, size = 0x12000, scoped, tag = 'internal scratch']
  %s0 = inlined_call_operand.hbm [shape: f32[32,16], index: 0, kind: input, shape index: {}]
  %s1 = inlined_call_operand.vmem [shape: f32[3,32,32], index: 1, kind: input, shape index: {}]
  %s2 = inlined_call_operand.vmem [shape: f32[3,16,1024], index: 2, kind: input, shape index: {}]
  %s3 = inlined_call_operand.hbm [shape: f32[1,1024], index: 3, kind: input, shape index: {}]
  %s4 = inlined_call_operand.hbm [shape: f32[2,16,32], index: 4, kind: input, shape index: {}]
  %s5 = inlined_call_operand.hbm [shape: f32[3,16,16], index: 5, kind: input, shape index: {}]
  %s6 = inlined_call_operand.hbm [shape: f32[3,512,256], index: 6, kind: input, shape index: {}]
  %s7 = inlined_call_operand.hbm [shape: f32[1,256], index: 7, kind: input, shape index: {}]
  %s8 = inlined_call_operand.hbm [shape: f32[3,16,16], index: 8, kind: input, shape index: {}]
  %s9 = inlined_call_operand.vmem [shape: f32[3,256,32], index: 9, kind: input, shape index: {}]
  %s10 = inlined_call_operand.hbm [shape: f32[1,32], index: 10, kind: input, shape index: {}]
  %s11 = inlined_call_operand.hbm [shape: f32[2,8,16], index: 11, kind: input, shape index: {}]
  %s12 = inlined_call_operand.vmem [shape: f32[2,32,16], index: 12, kind: input, shape index: {}]
  %s13 = inlined_call_operand.hbm [shape: f32[3,8,8], index: 13, kind: input, shape index: {}]
  %s14 = inlined_call_operand.vmem [shape: f32[3,16,128], index: 14, kind: input, shape index: {}]
  %s15 = inlined_call_operand.hbm [shape: f32[1,128], index: 15, kind: input, shape index: {}]
  %s16 = inlined_call_operand.vmem [shape: f32[3,16,8], index: 16, kind: input, shape index: {}]
  %s17 = inlined_call_operand.vmem [shape: f32[3,128,512], index: 17, kind: input, shape index: {}]
  %s18 = inlined_call_operand.vmem [shape: f32[1,512], index: 18, kind: input, shape index: {}]
  %s19 = inlined_call_operand.vmem [shape: f32[3,32,16], index: 19, kind: input, shape index: {}]
  %s20 = inlined_call_operand.vmem [shape: f32[3,512,16], index: 20, kind: input, shape index: {}]
  %s21 = inlined_call_operand.vmem [shape: f32[1,16], index: 21, kind: input, shape index: {}]
  %s22 = inlined_call_operand.hbm [shape: f32[32,16], index: 22, kind: output, shape index: {}]
  %s23 = sld [smem:[#allocation0]]
  $region142: #{denoiser_forward.1} parent=0
    _
  %s25 = ssub.s32 1, %s23
  %s26 = scalar_select 0, %s25, %s23
  $region1: #{denoiser_forward.1} parent=0
    #allocation2 [shape = 'u8[16384]{0}', space=vmem, size = 0x4000, scoped, tag = 'input window, operand 0, single buffered']
    #allocation3 [shape = 's32[1]{0}', space=sflag, size = 0x4, scoped, tag = 'scoped memory for denoiser_forward.1']
    #allocation4 [shape = 's32[1]{0}', space=sflag, size = 0x4, scoped, tag = 'scoped memory for denoiser_forward.1']
    #allocation5 [shape = 'u8[4096]{0}', space=vmem, size = 0x1000, scoped, tag = 'input window, operand 3, single buffered']
    #allocation6 [shape = 's32[1]{0}', space=sflag, size = 0x4, scoped, tag = 'scoped memory for denoiser_forward.1']
    #allocation7 [shape = 'u8[16384]{0}', space=vmem, size = 0x4000, scoped, tag = 'input window, operand 4, single buffered']
    #allocation8 [shape = 'u8[24576]{0}', space=vmem, size = 0x6000, scoped, tag = 'input window, operand 5, single buffered']
    #allocation9 [shape = 's32[1]{0}', space=sflag, size = 0x4, scoped, tag = 'scoped memory for denoiser_forward.1']
    #allocation10 [shape = 'u8[1572864]{0}', space=vmem, size = 0x180000, scoped, tag = 'input window, operand 6, single buffered']
    #allocation11 [shape = 'u8[1024]{0}', space=vmem, size = 0x400, scoped, tag = 'input window, operand 7, single buffered']
    #allocation12 [shape = 's32[1]{0}', space=sflag, size = 0x4, scoped, tag = 'scoped memory for denoiser_forward.1']
    #allocation13 [shape = 'u8[24576]{0}', space=vmem, size = 0x6000, scoped, tag = 'input window, operand 8, single buffered']
    #allocation14 [shape = 'u8[512]{0}', space=vmem, size = 0x400, scoped, tag = 'input window, operand 10, single buffered']
    #allocation15 [shape = 's32[1]{0}', space=sflag, size = 0x4, scoped, tag = 'scoped memory for denoiser_forward.1']
    #allocation16 [shape = 'u8[8192]{0}', space=vmem, size = 0x2000, scoped, tag = 'input window, operand 11, single buffered']
    #allocation17 [shape = 'u8[12288]{0}', space=vmem, size = 0x3000, scoped, tag = 'input window, operand 13, single buffered']
    #allocation18 [shape = 's32[1]{0}', space=sflag, size = 0x4, scoped, tag = 'scoped memory for denoiser_forward.1']
    #allocation19 [shape = 'u8[512]{0}', space=vmem, size = 0x400, scoped, tag = 'input window, operand 15, single buffered']
    #allocation20 [shape = 'u8[16384]{0}', space=vmem, size = 0x4000, scoped, tag = 'output window, operand 0, single buffered']
    %27 = vsyncpa [#allocation3], 0
    %28 = vsyncpa [#allocation6], 0
    %29 = vsyncpa [#allocation9], 0
    %30 = vsyncpa [#allocation12], 0
    %31 = vsyncpa [#allocation15], 0
    %32 = vsyncpa [#allocation18], 0
    %33 = vsyncpa [#allocation4], 0
    // Predicated region
    $region2: #{denoiser_forward.1} parent=1 // pred_check
      _
    $region3: #{denoiser_forward.1} parent=1 // pred_check_branch
      %35 = sbr.rel (0) target = $region5
    $region4: #{denoiser_forward.1} parent=1 // pred_region
      %s37 = ssub.s32 512, 512
      %38 = vsyncadd [#allocation3], %s37
      %s39 = sshll.u32 [#allocation2], 4
      %s40 = int_to_ptr.vmem [resolvable:$true] %s39
      %45 = dma.hbm_to_vmem [thread:$0]  %s0, 512, %s40, [#allocation3], 128, 128, 8
    $region5: #{denoiser_forward.1} parent=1 // pred_fallthru
      _
    // Predicated region
    $region6: #{denoiser_forward.1} parent=1 // pred_check
      _
    $region7: #{denoiser_forward.1} parent=1 // pred_check_branch
      %47 = sbr.rel (0) target = $region9
    $region8: #{denoiser_forward.1} parent=1 // pred_region
      _
    $region9: #{denoiser_forward.1} parent=1 // pred_fallthru
      _
    // Predicated region
    $region10: #{denoiser_forward.1} parent=1 // pred_check
      _
    $region11: #{denoiser_forward.1} parent=1 // pred_check_branch
      %49 = sbr.rel (0) target = $region13
    $region12: #{denoiser_forward.1} parent=1 // pred_region
      _
    $region13: #{denoiser_forward.1} parent=1 // pred_fallthru
      _
    // Predicated region
    $region14: #{denoiser_forward.1} parent=1 // pred_check
      _
    $region15: #{denoiser_forward.1} parent=1 // pred_check_branch
      %51 = sbr.rel (0) target = $region17
    $region16: #{denoiser_forward.1} parent=1 // pred_region
      %s53 = ssub.s32 128, 128
      %54 = vsyncadd [#allocation6], %s53
      %s56 = sshll.u32 [#allocation5], 4
      %s57 = int_to_ptr.vmem [resolvable:$true] %s56
      %59 = dma.hbm_to_vmem [thread:$0]  %s3, 128, %s57, [#allocation6]
    $region17: #{denoiser_forward.1} parent=1 // pred_fallthru
      _
    // Predicated region
    $region18: #{denoiser_forward.1} parent=1 // pred_check
      _
    $region19: #{denoiser_forward.1} parent=1 // pred_check_branch
      %61 = sbr.rel (0) target = $region21
    $region20: #{denoiser_forward.1} parent=1 // pred_region
      %s63 = ssub.s32 512, 512
      %64 = vsyncadd [#allocation6], %s63
      %s65 = sshll.u32 [#allocation7], 4
      %s66 = int_to_ptr.vmem [resolvable:$true] %s65
      %71 = dma.hbm_to_vmem [thread:$0]  %s4, 512, %s66, [#allocation6], 128, 128, 8
    $region21: #{denoiser_forward.1} parent=1 // pred_fallthru
      _
    // Predicated region
    $region22: #{denoiser_forward.1} parent=1 // pred_check
      _
    $region23: #{denoiser_forward.1} parent=1 // pred_check_branch
      %73 = sbr.rel (0) target = $region25
    $region24: #{denoiser_forward.1} parent=1 // pred_region
      %s75 = ssub.s32 768, 768
      %76 = vsyncadd [#allocation9], %s75
      %s77 = sshll.u32 [#allocation8], 4
      %s78 = int_to_ptr.vmem [resolvable:$true] %s77
      %83 = dma.hbm_to_vmem [thread:$0]  %s5, 768, %s78, [#allocation9], 128, 128, 8
    $region25: #{denoiser_forward.1} parent=1 // pred_fallthru
      _
    // Predicated region
    $region26: #{denoiser_forward.1} parent=1 // pred_check
      _
    $region27: #{denoiser_forward.1} parent=1 // pred_check_branch
      %85 = sbr.rel (0) target = $region29
    $region28: #{denoiser_forward.1} parent=1 // pred_region
      %s87 = ssub.s32 49152, 49152
      %88 = vsyncadd [#allocation9], %s87
      %s89 = sshll.u32 [#allocation10], 4
      %s90 = int_to_ptr.vmem [resolvable:$true] %s89
      %95 = dma.hbm_to_vmem [thread:$0]  %s6, 49152, %s90, [#allocation9], 256, 256, 16
    $region29: #{denoiser_forward.1} parent=1 // pred_fallthru
      _
    // Predicated region
    $region30: #{denoiser_forward.1} parent=1 // pred_check
      _
    $region31: #{denoiser_forward.1} parent=1 // pred_check_branch
      %97 = sbr.rel (0) target = $region33
    $region32: #{denoiser_forward.1} parent=1 // pred_region
      %s99 = ssub.s32 32, 32
      %100 = vsyncadd [#allocation12], %s99
      %s102 = sshll.u32 [#allocation11], 4
      %s103 = int_to_ptr.vmem [resolvable:$true] %s102
      %105 = dma.hbm_to_vmem [thread:$0]  %s7, 32, %s103, [#allocation12]
    $region33: #{denoiser_forward.1} parent=1 // pred_fallthru
      _
    // Predicated region
    $region34: #{denoiser_forward.1} parent=1 // pred_check
      _
    $region35: #{denoiser_forward.1} parent=1 // pred_check_branch
      %107 = sbr.rel (0) target = $region37
    $region36: #{denoiser_forward.1} parent=1 // pred_region
      %s109 = ssub.s32 768, 768
      %110 = vsyncadd [#allocation12], %s109
      %s111 = sshll.u32 [#allocation13], 4
      %s112 = int_to_ptr.vmem [resolvable:$true] %s111
      %117 = dma.hbm_to_vmem [thread:$0]  %s8, 768, %s112, [#allocation12], 128, 128, 8
    $region37: #{denoiser_forward.1} parent=1 // pred_fallthru
      _
    // Predicated region
    $region38: #{denoiser_forward.1} parent=1 // pred_check
      _
    $region39: #{denoiser_forward.1} parent=1 // pred_check_branch
      %119 = sbr.rel (0) target = $region41
    $region40: #{denoiser_forward.1} parent=1 // pred_region
      _
    $region41: #{denoiser_forward.1} parent=1 // pred_fallthru
      _
    // Predicated region
    $region42: #{denoiser_forward.1} parent=1 // pred_check
      _
    $region43: #{denoiser_forward.1} parent=1 // pred_check_branch
      %121 = sbr.rel (0) target = $region45
    $region44: #{denoiser_forward.1} parent=1 // pred_region
      %s123 = ssub.s32 16, 16
      %124 = vsyncadd [#allocation15], %s123
      %s126 = sshll.u32 [#allocation14], 4
      %s127 = int_to_ptr.vmem [resolvable:$true] %s126
      %129 = dma.hbm_to_vmem [thread:$0]  %s10, 16, %s127, [#allocation15]
    $region45: #{denoiser_forward.1} parent=1 // pred_fallthru
      _
    // Predicated region
    $region46: #{denoiser_forward.1} parent=1 // pred_check
      _
    $region47: #{denoiser_forward.1} parent=1 // pred_check_branch
      %131 = sbr.rel (0) target = $region49
    $region48: #{denoiser_forward.1} parent=1 // pred_region
      %s133 = ssub.s32 256, 256
      %134 = vsyncadd [#allocation15], %s133
      %s135 = sshll.u32 [#allocation16], 4
      %s136 = int_to_ptr.vmem [resolvable:$true] %s135
      %141 = dma.hbm_to_vmem [thread:$0]  %s11, 256, %s136, [#allocation15], 128, 128, 8
    $region49: #{denoiser_forward.1} parent=1 // pred_fallthru
      _
    // Predicated region
    $region50: #{denoiser_forward.1} parent=1 // pred_check
      _
    $region51: #{denoiser_forward.1} parent=1 // pred_check_branch
      %143 = sbr.rel (0) target = $region53
    $region52: #{denoiser_forward.1} parent=1 // pred_region
      _
    $region53: #{denoiser_forward.1} parent=1 // pred_fallthru
      _
    // Predicated region
    $region54: #{denoiser_forward.1} parent=1 // pred_check
      _
    $region55: #{denoiser_forward.1} parent=1 // pred_check_branch
      %145 = sbr.rel (0) target = $region57
    $region56: #{denoiser_forward.1} parent=1 // pred_region
      %s147 = ssub.s32 384, 384
      %148 = vsyncadd [#allocation18], %s147
      %s149 = sshll.u32 [#allocation17], 4
      %s150 = int_to_ptr.vmem [resolvable:$true] %s149
      %155 = dma.hbm_to_vmem [thread:$0]  %s13, 384, %s150, [#allocation18], 128, 128, 8
    $region57: #{denoiser_forward.1} parent=1 // pred_fallthru
      _
    // Predicated region
    $region58: #{denoiser_forward.1} parent=1 // pred_check
      _
    $region59: #{denoiser_forward.1} parent=1 // pred_check_branch
      %157 = sbr.rel (0) target = $region61
    $region60: #{denoiser_forward.1} parent=1 // pred_region
      _
    $region61: #{denoiser_forward.1} parent=1 // pred_fallthru
      _
    // Predicated region
    $region62: #{denoiser_forward.1} parent=1 // pred_check
      _
    $region63: #{denoiser_forward.1} parent=1 // pred_check_branch
      %159 = sbr.rel (0) target = $region65
    $region64: #{denoiser_forward.1} parent=1 // pred_region
      %s161 = ssub.s32 16, 16
      %162 = vsyncadd [#allocation18], %s161
      %s164 = sshll.u32 [#allocation19], 4
      %s165 = int_to_ptr.vmem [resolvable:$true] %s164
      %167 = dma.hbm_to_vmem [thread:$0]  %s15, 16, %s165, [#allocation18]
    $region65: #{denoiser_forward.1} parent=1 // pred_fallthru
      _
    // Predicated region
    $region66: #{denoiser_forward.1} parent=1 // pred_check
      _
    $region67: #{denoiser_forward.1} parent=1 // pred_check_branch
      %169 = sbr.rel (0) target = $region69
    $region68: #{denoiser_forward.1} parent=1 // pred_region
      _
    $region69: #{denoiser_forward.1} parent=1 // pred_fallthru
      _
    // Predicated region
    $region70: #{denoiser_forward.1} parent=1 // pred_check
      _
    $region71: #{denoiser_forward.1} parent=1 // pred_check_branch
      %171 = sbr.rel (0) target = $region73
    $region72: #{denoiser_forward.1} parent=1 // pred_region
      _
    $region73: #{denoiser_forward.1} parent=1 // pred_fallthru
      _
    // Predicated region
    $region74: #{denoiser_forward.1} parent=1 // pred_check
      _
    $region75: #{denoiser_forward.1} parent=1 // pred_check_branch
      %173 = sbr.rel (0) target = $region77
    $region76: #{denoiser_forward.1} parent=1 // pred_region
      _
    $region77: #{denoiser_forward.1} parent=1 // pred_fallthru
      _
    // Predicated region
    $region78: #{denoiser_forward.1} parent=1 // pred_check
      _
    $region79: #{denoiser_forward.1} parent=1 // pred_check_branch
      %175 = sbr.rel (0) target = $region81
    $region80: #{denoiser_forward.1} parent=1 // pred_region
      _
    $region81: #{denoiser_forward.1} parent=1 // pred_fallthru
      _
    // Predicated region
    $region82: #{denoiser_forward.1} parent=1 // pred_check
      _
    $region83: #{denoiser_forward.1} parent=1 // pred_check_branch
      %177 = sbr.rel (0) target = $region85
    $region84: #{denoiser_forward.1} parent=1 // pred_region
      _
    $region85: #{denoiser_forward.1} parent=1 // pred_fallthru
      _
    // Predicated region
    $region86: #{denoiser_forward.1} parent=1 // pred_check
      _
    $region87: #{denoiser_forward.1} parent=1 // pred_check_branch
      %179 = sbr.rel (0) target = $region89
    $region88: #{denoiser_forward.1} parent=1 // pred_region
      _
    $region89: #{denoiser_forward.1} parent=1 // pred_fallthru
      _
    // Predicated region
    $region90: #{denoiser_forward.1} parent=1 // pred_check
      _
    $region91: #{denoiser_forward.1} parent=1 // pred_check_branch
      %181 = sbr.rel (0) target = $region93
    $region92: #{denoiser_forward.1} parent=1 // pred_region
      %182 = dma.done [#allocation3], 512
    $region93: #{denoiser_forward.1} parent=1 // pred_fallthru
      _
    // Predicated region
    $region94: #{denoiser_forward.1} parent=1 // pred_check
      _
    $region95: #{denoiser_forward.1} parent=1 // pred_check_branch
      %184 = sbr.rel (0) target = $region97
    $region96: #{denoiser_forward.1} parent=1 // pred_region
      %185 = dma.done [#allocation6], 128
    $region97: #{denoiser_forward.1} parent=1 // pred_fallthru
      _
    // Predicated region
    $region98: #{denoiser_forward.1} parent=1 // pred_check
      _
    $region99: #{denoiser_forward.1} parent=1 // pred_check_branch
      %187 = sbr.rel (0) target = $region101
    $region100: #{denoiser_forward.1} parent=1 // pred_region
      %188 = dma.done [#allocation6], 512
    $region101: #{denoiser_forward.1} parent=1 // pred_fallthru
      _
    // Predicated region
    $region102: #{denoiser_forward.1} parent=1 // pred_check
      _
    $region103: #{denoiser_forward.1} parent=1 // pred_check_branch
      %190 = sbr.rel (0) target = $region105
    $region104: #{denoiser_forward.1} parent=1 // pred_region
      %191 = dma.done [#allocation9], 768
    $region105: #{denoiser_forward.1} parent=1 // pred_fallthru
      _
    // Predicated region
    $region106: #{denoiser_forward.1} parent=1 // pred_check
      _
    $region107: #{denoiser_forward.1} parent=1 // pred_check_branch
      %193 = sbr.rel (0) target = $region109
    $region108: #{denoiser_forward.1} parent=1 // pred_region
      %194 = dma.done [#allocation9], 49152
    $region109: #{denoiser_forward.1} parent=1 // pred_fallthru
      _
    // Predicated region
    $region110: #{denoiser_forward.1} parent=1 // pred_check
      _
    $region111: #{denoiser_forward.1} parent=1 // pred_check_branch
      %196 = sbr.rel (0) target = $region113
    $region112: #{denoiser_forward.1} parent=1 // pred_region
      %197 = dma.done [#allocation12], 32
    $region113: #{denoiser_forward.1} parent=1 // pred_fallthru
      _
    // Predicated region
    $region114: #{denoiser_forward.1} parent=1 // pred_check
      _
    $region115: #{denoiser_forward.1} parent=1 // pred_check_branch
      %199 = sbr.rel (0) target = $region117
    $region116: #{denoiser_forward.1} parent=1 // pred_region
      %200 = dma.done [#allocation12], 768
    $region117: #{denoiser_forward.1} parent=1 // pred_fallthru
      _
    // Predicated region
    $region118: #{denoiser_forward.1} parent=1 // pred_check
      _
    $region119: #{denoiser_forward.1} parent=1 // pred_check_branch
      %202 = sbr.rel (0) target = $region121
    $region120: #{denoiser_forward.1} parent=1 // pred_region
      %203 = dma.done [#allocation15], 16
    $region121: #{denoiser_forward.1} parent=1 // pred_fallthru
      _
    // Predicated region
    $region122: #{denoiser_forward.1} parent=1 // pred_check
      _
    $region123: #{denoiser_forward.1} parent=1 // pred_check_branch
      %205 = sbr.rel (0) target = $region125
    $region124: #{denoiser_forward.1} parent=1 // pred_region
      %206 = dma.done [#allocation15], 256
    $region125: #{denoiser_forward.1} parent=1 // pred_fallthru
      _
    // Predicated region
    $region126: #{denoiser_forward.1} parent=1 // pred_check
      _
    $region127: #{denoiser_forward.1} parent=1 // pred_check_branch
      %208 = sbr.rel (0) target = $region129
    $region128: #{denoiser_forward.1} parent=1 // pred_region
      %209 = dma.done [#allocation18], 384
    $region129: #{denoiser_forward.1} parent=1 // pred_fallthru
      _
    // Predicated region
    $region130: #{denoiser_forward.1} parent=1 // pred_check
      _
    $region131: #{denoiser_forward.1} parent=1 // pred_check_branch
      %211 = sbr.rel (0) target = $region133
    $region132: #{denoiser_forward.1} parent=1 // pred_region
      %212 = dma.done [#allocation18], 16
    $region133: #{denoiser_forward.1} parent=1 // pred_fallthru
      _
    %v213 = vld [vmem:[#allocation2] sm:$0xff]
    %v214 = vld [vmem:[#allocation2 + $0x8] sm:$0xff]
    %v215 = vld [vmem:[#allocation2 + $0x10] sm:$0xff]
    %v216 = vld [vmem:[#allocation2 + $0x18] sm:$0xff]
    %v217 = vld [vmem:[%s2] sm:$0xff]
    %v218 = vld [vmem:[%s2 + $0x8] sm:$0xff]
    %v219 = vld [vmem:[%s2 + $0x10] sm:$0xff]
    %v220 = vld [vmem:[%s2 + $0x18] sm:$0xff]
    %v221 = vld [vmem:[%s2 + $0x20] sm:$0xff]
    %v222 = vld [vmem:[%s2 + $0x28] sm:$0xff]
    %v223 = vld [vmem:[%s2 + $0x30] sm:$0xff]
    %v224 = vld [vmem:[%s2 + $0x38] sm:$0xff]
    %v225 = vld [vmem:[%s2 + $0x40] sm:$0xff]
    %v226 = vld [vmem:[%s2 + $0x48] sm:$0xff]
    %v227 = vld [vmem:[%s2 + $0x50] sm:$0xff]
    %v228 = vld [vmem:[%s2 + $0x58] sm:$0xff]
    %v229 = vld [vmem:[%s2 + $0x60] sm:$0xff]
    %v230 = vld [vmem:[%s2 + $0x68] sm:$0xff]
    %v231 = vld [vmem:[%s2 + $0x70] sm:$0xff]
    %v232 = vld [vmem:[%s2 + $0x78] sm:$0xff]
    %vm233 = vcmask 130048
    %v235 = vsel %vm233, %v213, 0
    %v238 = vsel %vm233, %v214, 0
    %v241 = vsel %vm233, %v215, 0
    %v244 = vsel %vm233, %v216, 0
    %246 = vmatprep.subr.mxu0 %v218
    %247 = vmatpush1.msra.mxu0 %v217
    %248 = vmatprep.subr.mxu0 %v226
    %249 = vmatpush1.msra.mxu0 %v225
    %250 = vmatprep.subr.mxu0 0.0
    %251 = vmatpush1.msra.mxu0 0.0
    %252 = vmatprep.subr.mxu0 0.0
    %253 = vmatpush1.msra.mxu0 0.0
    %254 = vmatprep.subr.mxu0 0.0
    %255 = vmatpush1.msra.mxu0 0.0
    %256 = vmatprep.subr.mxu0 0.0
    %257 = vmatpush1.msra.mxu0 0.0
    %258 = vmatprep.subr.mxu0 0.0
    %259 = vmatpush1.msra.mxu0 0.0
    %260 = vmatprep.subr.mxu0 0.0
    %261 = vmatpush1.msra.mxu0 0.0
    %262 = vmatprep.subr.mxu0 0.0
    %263 = vmatpush1.msra.mxu0 0.0
    %264 = vmatprep.subr.mxu0 0.0
    %265 = vmatpush1.msra.mxu0 0.0
    %266 = vmatprep.subr.mxu0 0.0
    %267 = vmatpush1.msra.mxu0 0.0
    %268 = vmatprep.subr.mxu0 0.0
    %269 = vmatpush1.msra.mxu0 0.0
    %270 = vmatprep.subr.mxu0 0.0
    %271 = vmatpush1.msra.mxu0 0.0
    %272 = vmatprep.subr.mxu0 0.0
    %273 = vmatpush1.msra.mxu0 0.0
    %274 = vmatprep.subr.mxu0 0.0
    %275 = vmatpush1.msra.mxu0 0.0
    %276 = vmatprep.subr.mxu0 0.0
    %277 = vmatpush1.msra.mxu0 0.0
    %278 = vmatprep.subr.mxu0 0.0
    %279 = vmatpush1.msra.mxu0 0.0
    %280 = vmatprep.subr.mxu0 0.0
    %281 = vmatpush1.msra.mxu0 0.0
    %282 = vmatprep.subr.mxu0 0.0
    %283 = vmatpush1.msra.mxu0 0.0
    %284 = vmatprep.subr.mxu0 0.0
    %285 = vmatpush1.msra.mxu0 0.0
    %286 = vmatprep.subr.mxu0 0.0
    %287 = vmatpush1.msra.mxu0 0.0
    %288 = vmatprep.subr.mxu0 0.0
    %289 = vmatpush1.msra.mxu0 0.0
    %290 = vmatprep.subr.mxu0 0.0
    %291 = vmatpush1.msra.mxu0 0.0
    %292 = vmatprep.subr.mxu0 0.0
    %293 = vmatpush1.msra.mxu0 0.0
    %294 = vmatprep.subr.mxu0 0.0
    %295 = vmatpush1.msra.mxu0 0.0
    %296 = vmatprep.subr.mxu0 0.0
    %297 = vmatpush1.msra.mxu0 0.0
    %298 = vmatprep.subr.mxu0 0.0
    %299 = vmatpush1.msra.mxu0 0.0
    %300 = vmatprep.subr.mxu0 0.0
    %301 = vmatpush1.msra.mxu0 0.0
    %302 = vmatprep.subr.mxu0 0.0
    %303 = vmatpush1.msra.mxu0 0.0
    %304 = vmatprep.subr.mxu0 0.0
    %305 = vmatpush1.msra.mxu0 0.0
    %306 = vmatprep.subr.mxu0 0.0
    %307 = vmatpush1.msra.mxu0 0.0
    %308 = vmatprep.subr.mxu0 0.0
    %309 = vmatpush1.msra.mxu0 0.0
    %310 = vmatprep.mubr.f32.mxu0 0.0
    %311 = vmatmul.mubr.f32.gmra.mrb[0].mxu0 %v235
    %v312 = vpop.f32.mrb[0].mxu0
    %v313 = vadd.f32 0.0, %v312
    %v314 = vpop.f32.mrb[0].mxu0
    %v315 = vadd.f32 0.0, %v314
    %316 = vmatprep.mubr.f32.mxu0 0.0
    %317 = vmatmul.mubr.f32.gmra.mrb[0].mxu0 %v238
    %v318 = vpop.f32.mrb[0].mxu0
    %v319 = vadd.f32 0.0, %v318
    %v320 = vpop.f32.mrb[0].mxu0
    %v321 = vadd.f32 0.0, %v320
    %322 = vmatprep.mubr.f32.mxu0 0.0
    %323 = vmatmul.mubr.f32.gmra.mrb[0].mxu0 %v241
    %v324 = vpop.f32.mrb[0].mxu0
    %v325 = vadd.f32 0.0, %v324
    %v326 = vpop.f32.mrb[0].mxu0
    %v327 = vadd.f32 0.0, %v326
    %328 = vmatprep.mubr.f32.mxu0 0.0
    %329 = vmatmul.mubr.f32.gmra.mrb[0].mxu0 %v244
    %v330 = vpop.f32.mrb[0].mxu0
    %v331 = vadd.f32 0.0, %v330
    %v332 = vpop.f32.mrb[0].mxu0
    %v333 = vadd.f32 0.0, %v332
    %334 = vdwg.mxu0
    %335 = vmatprep.subr.mxu0 %v220
    %336 = vmatpush1.msra.mxu0 %v219
    %337 = vmatprep.subr.mxu0 %v228
    %338 = vmatpush1.msra.mxu0 %v227
    %339 = vmatprep.subr.mxu0 0.0
    %340 = vmatpush1.msra.mxu0 0.0
    %341 = vmatprep.subr.mxu0 0.0
    %342 = vmatpush1.msra.mxu0 0.0
    %343 = vmatprep.subr.mxu0 0.0
    %344 = vmatpush1.msra.mxu0 0.0
    %345 = vmatprep.subr.mxu0 0.0
    %346 = vmatpush1.msra.mxu0 0.0
    %347 = vmatprep.subr.mxu0 0.0
    %348 = vmatpush1.msra.mxu0 0.0
    %349 = vmatprep.subr.mxu0 0.0
    %350 = vmatpush1.msra.mxu0 0.0
    %351 = vmatprep.subr.mxu0 0.0
    %352 = vmatpush1.msra.mxu0 0.0
    %353 = vmatprep.subr.mxu0 0.0
    %354 = vmatpush1.msra.mxu0 0.0
    %355 = vmatprep.subr.mxu0 0.0
    %356 = vmatpush1.msra.mxu0 0.0
    %357 = vmatprep.subr.mxu0 0.0
    %358 = vmatpush1.msra.mxu0 0.0
    %359 = vmatprep.subr.mxu0 0.0
    %360 = vmatpush1.msra.mxu0 0.0
    %361 = vmatprep.subr.mxu0 0.0
    %362 = vmatpush1.msra.mxu0 0.0
    %363 = vmatprep.subr.mxu0 0.0
    %364 = vmatpush1.msra.mxu0 0.0
    %365 = vmatprep.subr.mxu0 0.0
    %366 = vmatpush1.msra.mxu0 0.0
    %367 = vmatprep.subr.mxu0 0.0
    %368 = vmatpush1.msra.mxu0 0.0
    %369 = vmatprep.subr.mxu0 0.0
    %370 = vmatpush1.msra.mxu0 0.0
    %371 = vmatprep.subr.mxu0 0.0
    %372 = vmatpush1.msra.mxu0 0.0
    %373 = vmatprep.subr.mxu0 0.0
    %374 = vmatpush1.msra.mxu0 0.0
    %375 = vmatprep.subr.mxu0 0.0
    %376 = vmatpush1.msra.mxu0 0.0
    %377 = vmatprep.subr.mxu0 0.0
    %378 = vmatpush1.msra.mxu0 0.0
    %379 = vmatprep.subr.mxu0 0.0
    %380 = vmatpush1.msra.mxu0 0.0
    %381 = vmatprep.subr.mxu0 0.0
    %382 = vmatpush1.msra.mxu0 0.0
    %383 = vmatprep.subr.mxu0 0.0
    %384 = vmatpush1.msra.mxu0 0.0
    %385 = vmatprep.subr.mxu0 0.0
    %386 = vmatpush1.msra.mxu0 0.0
    %387 = vmatprep.subr.mxu0 0.0
    %388 = vmatpush1.msra.mxu0 0.0
    %389 = vmatprep.subr.mxu0 0.0
    %390 = vmatpush1.msra.mxu0 0.0
    %391 = vmatprep.subr.mxu0 0.0
    %392 = vmatpush1.msra.mxu0 0.0
    %393 = vmatprep.subr.mxu0 0.0
    %394 = vmatpush1.msra.mxu0 0.0
    %395 = vmatprep.subr.mxu0 0.0
    %396 = vmatpush1.msra.mxu0 0.0
    %397 = vmatprep.subr.mxu0 0.0
    %398 = vmatpush1.msra.mxu0 0.0
    %399 = vmatprep.mubr.f32.mxu0 0.0
    %400 = vmatmul.mubr.f32.gmra.mrb[0].mxu0 %v235
    %v401 = vpop.f32.mrb[0].mxu0
    %v402 = vadd.f32 0.0, %v401
    %v403 = vpop.f32.mrb[0].mxu0
    %v404 = vadd.f32 0.0, %v403
    %405 = vmatprep.mubr.f32.mxu0 0.0
    %406 = vmatmul.mubr.f32.gmra.mrb[0].mxu0 %v238
    %v407 = vpop.f32.mrb[0].mxu0
    %v408 = vadd.f32 0.0, %v407
    %v409 = vpop.f32.mrb[0].mxu0
    %v410 = vadd.f32 0.0, %v409
    %411 = vmatprep.mubr.f32.mxu0 0.0
    %412 = vmatmul.mubr.f32.gmra.mrb[0].mxu0 %v241
    %v413 = vpop.f32.mrb[0].mxu0
    %v414 = vadd.f32 0.0, %v413
    %v415 = vpop.f32.mrb[0].mxu0
    %v416 = vadd.f32 0.0, %v415
    %417 = vmatprep.mubr.f32.mxu0 0.0
    %418 = vmatmul.mubr.f32.gmra.mrb[0].mxu0 %v244
    %v419 = vpop.f32.mrb[0].mxu0
    %v420 = vadd.f32 0.0, %v419
    %v421 = vpop.f32.mrb[0].mxu0
    %v422 = vadd.f32 0.0, %v421
    %423 = vdwg.mxu0
    %424 = vmatprep.subr.mxu0 %v222
    %425 = vmatpush1.msra.mxu0 %v221
    %426 = vmatprep.subr.mxu0 %v230
    %427 = vmatpush1.msra.mxu0 %v229
    %428 = vmatprep.subr.mxu0 0.0
    %429 = vmatpush1.msra.mxu0 0.0
    %430 = vmatprep.subr.mxu0 0.0
    %431 = vmatpush1.msra.mxu0 0.0
    %432 = vmatprep.subr.mxu0 0.0
    %433 = vmatpush1.msra.mxu0 0.0
    %434 = vmatprep.subr.mxu0 0.0
    %435 = vmatpush1.msra.mxu0 0.0
    %436 = vmatprep.subr.mxu0 0.0
    %437 = vmatpush1.msra.mxu0 0.0
    %438 = vmatprep.subr.mxu0 0.0
    %439 = vmatpush1.msra.mxu0 0.0
    %440 = vmatprep.subr.mxu0 0.0
    %441 = vmatpush1.msra.mxu0 0.0
    %442 = vmatprep.subr.mxu0 0.0
    %443 = vmatpush1.msra.mxu0 0.0
    %444 = vmatprep.subr.mxu0 0.0
    %445 = vmatpush1.msra.mxu0 0.0
    %446 = vmatprep.subr.mxu0 0.0
    %447 = vmatpush1.msra.mxu0 0.0
    %448 = vmatprep.subr.mxu0 0.0
    %449 = vmatpush1.msra.mxu0 0.0
    %450 = vmatprep.subr.mxu0 0.0
    %451 = vmatpush1.msra.mxu0 0.0
    %452 = vmatprep.subr.mxu0 0.0
    %453 = vmatpush1.msra.mxu0 0.0
    %454 = vmatprep.subr.mxu0 0.0
    %455 = vmatpush1.msra.mxu0 0.0
    %456 = vmatprep.subr.mxu0 0.0
    %457 = vmatpush1.msra.mxu0 0.0
    %458 = vmatprep.subr.mxu0 0.0
    %459 = vmatpush1.msra.mxu0 0.0
    %460 = vmatprep.subr.mxu0 0.0
    %461 = vmatpush1.msra.mxu0 0.0
    %462 = vmatprep.subr.mxu0 0.0
    %463 = vmatpush1.msra.mxu0 0.0
    %464 = vmatprep.subr.mxu0 0.0
    %465 = vmatpush1.msra.mxu0 0.0
    %466 = vmatprep.subr.mxu0 0.0
    %467 = vmatpush1.msra.mxu0 0.0
    %468 = vmatprep.subr.mxu0 0.0
    %469 = vmatpush1.msra.mxu0 0.0
    %470 = vmatprep.subr.mxu0 0.0
    %471 = vmatpush1.msra.mxu0 0.0
    %472 = vmatprep.subr.mxu0 0.0
    %473 = vmatpush1.msra.mxu0 0.0
    %474 = vmatprep.subr.mxu0 0.0
    %475 = vmatpush1.msra.mxu0 0.0
    %476 = vmatprep.subr.mxu0 0.0
    %477 = vmatpush1.msra.mxu0 0.0
    %478 = vmatprep.subr.mxu0 0.0
    %479 = vmatpush1.msra.mxu0 0.0
    %480 = vmatprep.subr.mxu0 0.0
    %481 = vmatpush1.msra.mxu0 0.0
    %482 = vmatprep.subr.mxu0 0.0
    %483 = vmatpush1.msra.mxu0 0.0
    %484 = vmatprep.subr.mxu0 0.0
    %485 = vmatpush1.msra.mxu0 0.0
    %486 = vmatprep.subr.mxu0 0.0
    %487 = vmatpush1.msra.mxu0 0.0
    %488 = vmatprep.mubr.f32.mxu0 0.0
    %489 = vmatmul.mubr.f32.gmra.mrb[0].mxu0 %v235
    %v490 = vpop.f32.mrb[0].mxu0
    %v491 = vadd.f32 0.0, %v490
    %v492 = vpop.f32.mrb[0].mxu0
    %v493 = vadd.f32 0.0, %v492
    %494 = vmatprep.mubr.f32.mxu0 0.0
    %495 = vmatmul.mubr.f32.gmra.mrb[0].mxu0 %v238
    %v496 = vpop.f32.mrb[0].mxu0
    %v497 = vadd.f32 0.0, %v496
    %v498 = vpop.f32.mrb[0].mxu0
    %v499 = vadd.f32 0.0, %v498
    %500 = vmatprep.mubr.f32.mxu0 0.0
    %501 = vmatmul.mubr.f32.gmra.mrb[0].mxu0 %v241
    %v502 = vpop.f32.mrb[0].mxu0
    %v503 = vadd.f32 0.0, %v502
    %v504 = vpop.f32.mrb[0].mxu0
    %v505 = vadd.f32 0.0, %v504
    %506 = vmatprep.mubr.f32.mxu0 0.0
    %507 = vmatmul.mubr.f32.gmra.mrb[0].mxu0 %v244
    %v508 = vpop.f32.mrb[0].mxu0
    %v509 = vadd.f32 0.0, %v508
    %v510 = vpop.f32.mrb[0].mxu0
    %v511 = vadd.f32 0.0, %v510
    %512 = vdwg.mxu0
    %513 = vmatprep.subr.mxu0 %v224
    %514 = vmatpush1.msra.mxu0 %v223
    %515 = vmatprep.subr.mxu0 %v232
    %516 = vmatpush1.msra.mxu0 %v231
    %517 = vmatprep.subr.mxu0 0.0
    %518 = vmatpush1.msra.mxu0 0.0
    %519 = vmatprep.subr.mxu0 0.0
    %520 = vmatpush1.msra.mxu0 0.0
    %521 = vmatprep.subr.mxu0 0.0
    %522 = vmatpush1.msra.mxu0 0.0
    %523 = vmatprep.subr.mxu0 0.0
    %524 = vmatpush1.msra.mxu0 0.0
    %525 = vmatprep.subr.mxu0 0.0
    %526 = vmatpush1.msra.mxu0 0.0
    %527 = vmatprep.subr.mxu0 0.0
    %528 = vmatpush1.msra.mxu0 0.0
    %529 = vmatprep.subr.mxu0 0.0
    %530 = vmatpush1.msra.mxu0 0.0
    %531 = vmatprep.subr.mxu0 0.0
    %532 = vmatpush1.msra.mxu0 0.0
    %533 = vmatprep.subr.mxu0 0.0
    %534 = vmatpush1.msra.mxu0 0.0
    %535 = vmatprep.subr.mxu0 0.0
    %536 = vmatpush1.msra.mxu0 0.0
    %537 = vmatprep.subr.mxu0 0.0
    %538 = vmatpush1.msra.mxu0 0.0
    %539 = vmatprep.subr.mxu0 0.0
    %540 = vmatpush1.msra.mxu0 0.0
    %541 = vmatprep.subr.mxu0 0.0
    %542 = vmatpush1.msra.mxu0 0.0
    %543 = vmatprep.subr.mxu0 0.0
    %544 = vmatpush1.msra.mxu0 0.0
    %545 = vmatprep.subr.mxu0 0.0
    %546 = vmatpush1.msra.mxu0 0.0
    %547 = vmatprep.subr.mxu0 0.0
    %548 = vmatpush1.msra.mxu0 0.0
    %549 = vmatprep.subr.mxu0 0.0
    %550 = vmatpush1.msra.mxu0 0.0
    %551 = vmatprep.subr.mxu0 0.0
    %552 = vmatpush1.msra.mxu0 0.0
    %553 = vmatprep.subr.mxu0 0.0
    %554 = vmatpush1.msra.mxu0 0.0
    %555 = vmatprep.subr.mxu0 0.0
    %556 = vmatpush1.msra.mxu0 0.0
    %557 = vmatprep.subr.mxu0 0.0
    %558 = vmatpush1.msra.mxu0 0.0
    %559 = vmatprep.subr.mxu0 0.0
    %560 = vmatpush1.msra.mxu0 0.0
    %561 = vmatprep.subr.mxu0 0.0
    %562 = vmatpush1.msra.mxu0 0.0
    %563 = vmatprep.subr.mxu0 0.0
    %564 = vmatpush1.msra.mxu0 0.0
    %565 = vmatprep.subr.mxu0 0.0
    %566 = vmatpush1.msra.mxu0 0.0
    %567 = vmatprep.subr.mxu0 0.0
    %568 = vmatpush1.msra.mxu0 0.0
    %569 = vmatprep.subr.mxu0 0.0
    %570 = vmatpush1.msra.mxu0 0.0
    %571 = vmatprep.subr.mxu0 0.0
    %572 = vmatpush1.msra.mxu0 0.0
    %573 = vmatprep.subr.mxu0 0.0
    %574 = vmatpush1.msra.mxu0 0.0
    %575 = vmatprep.subr.mxu0 0.0
    %576 = vmatpush1.msra.mxu0 0.0
    %577 = vmatprep.mubr.f32.mxu0 0.0
    %578 = vmatmul.mubr.f32.gmra.mrb[0].mxu0 %v235
    %v579 = vpop.f32.mrb[0].mxu0
    %v580 = vadd.f32 0.0, %v579
    %v581 = vpop.f32.mrb[0].mxu0
    %v582 = vadd.f32 0.0, %v581
    %583 = vmatprep.mubr.f32.mxu0 0.0
    %584 = vmatmul.mubr.f32.gmra.mrb[0].mxu0 %v238
    %v585 = vpop.f32.mrb[0].mxu0
    %v586 = vadd.f32 0.0, %v585
    %v587 = vpop.f32.mrb[0].mxu0
    %v588 = vadd.f32 0.0, %v587
    %589 = vmatprep.mubr.f32.mxu0 0.0
    %590 = vmatmul.mubr.f32.gmra.mrb[0].mxu0 %v241
    %v591 = vpop.f32.mrb[0].mxu0
    %v592 = vadd.f32 0.0, %v591
    %v593 = vpop.f32.mrb[0].mxu0
    %v594 = vadd.f32 0.0, %v593
    %595 = vmatprep.mubr.f32.mxu0 0.0
    %596 = vmatmul.mubr.f32.gmra.mrb[0].mxu0 %v244
    %v597 = vpop.f32.mrb[0].mxu0
    %v598 = vadd.f32 0.0, %v597
    %v599 = vpop.f32.mrb[0].mxu0
    %v600 = vadd.f32 0.0, %v599
    %601 = vdwg.mxu0
    %v602 = vld [vmem:[%s1] sm:$0xff]
    %v603 = vld [vmem:[%s1 + $0x8] sm:$0xff]
    %v604 = vld [vmem:[%s1 + $0x10] sm:$0xff]
    %v605 = vld [vmem:[%s1 + $0x18] sm:$0xff]
    %s606 = scalar_lea.vmem %s2, 128
    %v607 = vld [vmem:[%s606] sm:$0xff]
    %v608 = vld [vmem:[%s606 + $0x8] sm:$0xff]
    %v609 = vld [vmem:[%s606 + $0x10] sm:$0xff]
    %v610 = vld [vmem:[%s606 + $0x18] sm:$0xff]
    %v611 = vld [vmem:[%s606 + $0x20] sm:$0xff]
    %v612 = vld [vmem:[%s606 + $0x28] sm:$0xff]
    %v613 = vld [vmem:[%s606 + $0x30] sm:$0xff]
    %v614 = vld [vmem:[%s606 + $0x38] sm:$0xff]
    %v615 = vld [vmem:[%s606 + $0x40] sm:$0xff]
    %v616 = vld [vmem:[%s606 + $0x48] sm:$0xff]
    %v617 = vld [vmem:[%s606 + $0x50] sm:$0xff]
    %v618 = vld [vmem:[%s606 + $0x58] sm:$0xff]
    %v619 = vld [vmem:[%s606 + $0x60] sm:$0xff]
    %v620 = vld [vmem:[%s606 + $0x68] sm:$0xff]
    %v621 = vld [vmem:[%s606 + $0x70] sm:$0xff]
    %v622 = vld [vmem:[%s606 + $0x78] sm:$0xff]
    %623 = vmatprep.subr.mxu0 %v608
    %624 = vmatpush1.msra.mxu0 %v607
    %625 = vmatprep.subr.mxu0 %v616
    %626 = vmatpush1.msra.mxu0 %v615
    %627 = vmatprep.subr.mxu0 0.0
    %628 = vmatpush1.msra.mxu0 0.0
    %629 = vmatprep.subr.mxu0 0.0
    %630 = vmatpush1.msra.mxu0 0.0
    %631 = vmatprep.subr.mxu0 0.0
    %632 = vmatpush1.msra.mxu0 0.0
    %633 = vmatprep.subr.mxu0 0.0
    %634 = vmatpush1.msra.mxu0 0.0
    %635 = vmatprep.subr.mxu0 0.0
    %636 = vmatpush1.msra.mxu0 0.0
    %637 = vmatprep.subr.mxu0 0.0
    %638 = vmatpush1.msra.mxu0 0.0
    %639 = vmatprep.subr.mxu0 0.0
    %640 = vmatpush1.msra.mxu0 0.0
    %641 = vmatprep.subr.mxu0 0.0
    %642 = vmatpush1.msra.mxu0 0.0
    %643 = vmatprep.subr.mxu0 0.0
    %644 = vmatpush1.msra.mxu0 0.0
    %645 = vmatprep.subr.mxu0 0.0
    %646 = vmatpush1.msra.mxu0 0.0
    %647 = vmatprep.subr.mxu0 0.0
    %648 = vmatpush1.msra.mxu0 0.0
    %649 = vmatprep.subr.mxu0 0.0
    %650 = vmatpush1.msra.mxu0 0.0
    %651 = vmatprep.subr.mxu0 0.0
    %652 = vmatpush1.msra.mxu0 0.0
    %653 = vmatprep.subr.mxu0 0.0
    %654 = vmatpush1.msra.mxu0 0.0
    %655 = vmatprep.subr.mxu0 0.0
    %656 = vmatpush1.msra.mxu0 0.0
    %657 = vmatprep.subr.mxu0 0.0
    %658 = vmatpush1.msra.mxu0 0.0
    %659 = vmatprep.subr.mxu0 0.0
    %660 = vmatpush1.msra.mxu0 0.0
    %661 = vmatprep.subr.mxu0 0.0
    %662 = vmatpush1.msra.mxu0 0.0
    %663 = vmatprep.subr.mxu0 0.0
    %664 = vmatpush1.msra.mxu0 0.0
    %665 = vmatprep.subr.mxu0 0.0
    %666 = vmatpush1.msra.mxu0 0.0
    %667 = vmatprep.subr.mxu0 0.0
    %668 = vmatpush1.msra.mxu0 0.0
    %669 = vmatprep.subr.mxu0 0.0
    %670 = vmatpush1.msra.mxu0 0.0
    %671 = vmatprep.subr.mxu0 0.0
    %672 = vmatpush1.msra.mxu0 0.0
    %673 = vmatprep.subr.mxu0 0.0
    %674 = vmatpush1.msra.mxu0 0.0
    %675 = vmatprep.subr.mxu0 0.0
    %676 = vmatpush1.msra.mxu0 0.0
    %677 = vmatprep.subr.mxu0 0.0
    %678 = vmatpush1.msra.mxu0 0.0
    %679 = vmatprep.subr.mxu0 0.0
    %680 = vmatpush1.msra.mxu0 0.0
    %681 = vmatprep.subr.mxu0 0.0
    %682 = vmatpush1.msra.mxu0 0.0
    %683 = vmatprep.subr.mxu0 0.0
    %684 = vmatpush1.msra.mxu0 0.0
    %685 = vmatprep.subr.mxu0 0.0
    %686 = vmatpush1.msra.mxu0 0.0
    %687 = vmatprep.mubr.f32.mxu0 0.0
    %688 = vmatmul.mubr.f32.gmra.mrb[0].mxu0 %v235
    %v689 = vpop.f32.mrb[0].mxu0
    %v690 = vadd.f32 0.0, %v689
    %v691 = vpop.f32.mrb[0].mxu0
    %v692 = vadd.f32 0.0, %v691
    %693 = vmatprep.mubr.f32.mxu0 0.0
    %694 = vmatmul.mubr.f32.gmra.mrb[0].mxu0 %v238
    %v695 = vpop.f32.mrb[0].mxu0
    %v696 = vadd.f32 0.0, %v695
    %v697 = vpop.f32.mrb[0].mxu0
    %v698 = vadd.f32 0.0, %v697
    %699 = vmatprep.mubr.f32.mxu0 0.0
    %700 = vmatmul.mubr.f32.gmra.mrb[0].mxu0 %v241
    %v701 = vpop.f32.mrb[0].mxu0
    %v702 = vadd.f32 0.0, %v701
    %v703 = vpop.f32.mrb[0].mxu0
    %v704 = vadd.f32 0.0, %v703
    %705 = vmatprep.mubr.f32.mxu0 0.0
    %706 = vmatmul.mubr.f32.gmra.mrb[0].mxu0 %v244
    %v707 = vpop.f32.mrb[0].mxu0
    %v708 = vadd.f32 0.0, %v707
    %v709 = vpop.f32.mrb[0].mxu0
    %v710 = vadd.f32 0.0, %v709
    %711 = vdwg.mxu0
    %712 = vmatprep.subr.mxu0 %v610
    %713 = vmatpush1.msra.mxu0 %v609
    %714 = vmatprep.subr.mxu0 %v618
    %715 = vmatpush1.msra.mxu0 %v617
    %716 = vmatprep.subr.mxu0 0.0
    %717 = vmatpush1.msra.mxu0 0.0
    %718 = vmatprep.subr.mxu0 0.0
    %719 = vmatpush1.msra.mxu0 0.0
    %720 = vmatprep.subr.mxu0 0.0
    %721 = vmatpush1.msra.mxu0 0.0
    %722 = vmatprep.subr.mxu0 0.0
    %723 = vmatpush1.msra.mxu0 0.0
    %724 = vmatprep.subr.mxu0 0.0
    %725 = vmatpush1.msra.mxu0 0.0
    %726 = vmatprep.subr.mxu0 0.0
    %727 = vmatpush1.msra.mxu0 0.0
    %728 = vmatprep.subr.mxu0 0.0
    %729 = vmatpush1.msra.mxu0 0.0
    %730 = vmatprep.subr.mxu0 0.0
    %731 = vmatpush1.msra.mxu0 0.0
    %732 = vmatprep.subr.mxu0 0.0
    %733 = vmatpush1.msra.mxu0 0.0
    %734 = vmatprep.subr.mxu0 0.0
    %735 = vmatpush1.msra.mxu0 0.0
    %736 = vmatprep.subr.mxu0 0.0
    %737 = vmatpush1.msra.mxu0 0.0
    %738 = vmatprep.subr.mxu0 0.0
    %739 = vmatpush1.msra.mxu0 0.0
    %740 = vmatprep.subr.mxu0 0.0
    %741 = vmatpush1.msra.mxu0 0.0
    %742 = vmatprep.subr.mxu0 0.0
    %743 = vmatpush1.msra.mxu0 0.0
    %744 = vmatprep.subr.mxu0 0.0
    %745 = vmatpush1.msra.mxu0 0.0
    %746 = vmatprep.subr.mxu0 0.0
    %747 = vmatpush1.msra.mxu0 0.0
    %748 = vmatprep.subr.mxu0 0.0
    %749 = vmatpush1.msra.mxu0 0.0
    %750 = vmatprep.subr.mxu0 0.0
    %751 = vmatpush1.msra.mxu0 0.0
    %752 = vmatprep.subr.mxu0 0.0
    %753 = vmatpush1.msra.mxu0 0.0
    %754 = vmatprep.subr.mxu0 0.0
    %755 = vmatpush1.msra.mxu0 0.0
    %756 = vmatprep.subr.mxu0 0.0
    %757 = vmatpush1.msra.mxu0 0.0
    %758 = vmatprep.subr.mxu0 0.0
    %759 = vmatpush1.msra.mxu0 0.0
    %760 = vmatprep.subr.mxu0 0.0
    %761 = vmatpush1.msra.mxu0 0.0
    %762 = vmatprep.subr.mxu0 0.0
    %763 = vmatpush1.msra.mxu0 0.0
    %764 = vmatprep.subr.mxu0 0.0
    %765 = vmatpush1.msra.mxu0 0.0
    %766 = vmatprep.subr.mxu0 0.0
    %767 = vmatpush1.msra.mxu0 0.0
    %768 = vmatprep.subr.mxu0 0.0
    %769 = vmatpush1.msra.mxu0 0.0
    %770 = vmatprep.subr.mxu0 0.0
    %771 = vmatpush1.msra.mxu0 0.0
    %772 = vmatprep.subr.mxu0 0.0
    %773 = vmatpush1.msra.mxu0 0.0
    %774 = vmatprep.subr.mxu0 0.0
    %775 = vmatpush1.msra.mxu0 0.0
    %776 = vmatprep.mubr.f32.mxu0 0.0
    %777 = vmatmul.mubr.f32.gmra.mrb[0].mxu0 %v235
    %v778 = vpop.f32.mrb[0].mxu0
    %v779 = vadd.f32 0.0, %v778
    %v780 = vpop.f32.mrb[0].mxu0
    %v781 = vadd.f32 0.0, %v780
    %782 = vmatprep.mubr.f32.mxu0 0.0
    %783 = vmatmul.mubr.f32.gmra.mrb[0].mxu0 %v238
    %v784 = vpop.f32.mrb[0].mxu0
    %v785 = vadd.f32 0.0, %v784
    %v786 = vpop.f32.mrb[0].mxu0
    %v787 = vadd.f32 0.0, %v786
    %788 = vmatprep.mubr.f32.mxu0 0.0
    %789 = vmatmul.mubr.f32.gmra.mrb[0].mxu0 %v241
    %v790 = vpop.f32.mrb[0].mxu0
    %v791 = vadd.f32 0.0, %v790
    %v792 = vpop.f32.mrb[0].mxu0
    %v793 = vadd.f32 0.0, %v792
    %794 = vmatprep.mubr.f32.mxu0 0.0
    %795 = vmatmul.mubr.f32.gmra.mrb[0].mxu0 %v244
    %v796 = vpop.f32.mrb[0].mxu0
    %v797 = vadd.f32 0.0, %v796
    %v798 = vpop.f32.mrb[0].mxu0
    %v799 = vadd.f32 0.0, %v798
    %800 = vdwg.mxu0
    %801 = vmatprep.subr.mxu0 %v612
    %802 = vmatpush1.msra.mxu0 %v611
    %803 = vmatprep.subr.mxu0 %v620
    %804 = vmatpush1.msra.mxu0 %v619
    %805 = vmatprep.subr.mxu0 0.0
    %806 = vmatpush1.msra.mxu0 0.0
    %807 = vmatprep.subr.mxu0 0.0
    %808 = vmatpush1.msra.mxu0 0.0
    %809 = vmatprep.subr.mxu0 0.0
    %810 = vmatpush1.msra.mxu0 0.0
    %811 = vmatprep.subr.mxu0 0.0
    %812 = vmatpush1.msra.mxu0 0.0
    %813 = vmatprep.subr.mxu0 0.0
    %814 = vmatpush1.msra.mxu0 0.0
    %815 = vmatprep.subr.mxu0 0.0
    %816 = vmatpush1.msra.mxu0 0.0
    %817 = vmatprep.subr.mxu0 0.0
    %818 = vmatpush1.msra.mxu0 0.0
    %819 = vmatprep.subr.mxu0 0.0
    %820 = vmatpush1.msra.mxu0 0.0
    %821 = vmatprep.subr.mxu0 0.0
    %822 = vmatpush1.msra.mxu0 0.0
    %823 = vmatprep.subr.mxu0 0.0
    %824 = vmatpush1.msra.mxu0 0.0
    %825 = vmatprep.subr.mxu0 0.0
    %826 = vmatpush1.msra.mxu0 0.0
    %827 = vmatprep.subr.mxu0 0.0
    %828 = vmatpush1.msra.mxu0 0.0
    %829 = vmatprep.subr.mxu0 0.0
    %830 = vmatpush1.msra.mxu0 0.0
    %831 = vmatprep.subr.mxu0 0.0
    %832 = vmatpush1.msra.mxu0 0.0
    %833 = vmatprep.subr.mxu0 0.0
    %834 = vmatpush1.msra.mxu0 0.0
    %835 = vmatprep.subr.mxu0 0.0
    %836 = vmatpush1.msra.mxu0 0.0
    %837 = vmatprep.subr.mxu0 0.0
    %838 = vmatpush1.msra.mxu0 0.0
    %839 = vmatprep.subr.mxu0 0.0
    %840 = vmatpush1.msra.mxu0 0.0
    %841 = vmatprep.subr.mxu0 0.0
    %842 = vmatpush1.msra.mxu0 0.0
    %843 = vmatprep.subr.mxu0 0.0
    %844 = vmatpush1.msra.mxu0 0.0
    %845 = vmatprep.subr.mxu0 0.0
    %846 = vmatpush1.msra.mxu0 0.0
    %847 = vmatprep.subr.mxu0 0.0
    %848 = vmatpush1.msra.mxu0 0.0
    %849 = vmatprep.subr.mxu0 0.0
    %850 = vmatpush1.msra.mxu0 0.0
    %851 = vmatprep.subr.mxu0 0.0
    %852 = vmatpush1.msra.mxu0 0.0
    %853 = vmatprep.subr.mxu0 0.0
    %854 = vmatpush1.msra.mxu0 0.0
    %855 = vmatprep.subr.mxu0 0.0
    %856 = vmatpush1.msra.mxu0 0.0
    %857 = vmatprep.subr.mxu0 0.0
    %858 = vmatpush1.msra.mxu0 0.0
    %859 = vmatprep.subr.mxu0 0.0
    %860 = vmatpush1.msra.mxu0 0.0
    %861 = vmatprep.subr.mxu0 0.0
    %862 = vmatpush1.msra.mxu0 0.0
    %863 = vmatprep.subr.mxu0 0.0
    %864 = vmatpush1.msra.mxu0 0.0
    %865 = vmatprep.mubr.f32.mxu0 0.0
    %866 = vmatmul.mubr.f32.gmra.mrb[0].mxu0 %v235
    %v867 = vpop.f32.mrb[0].mxu0
    %v868 = vadd.f32 0.0, %v867
    %v869 = vpop.f32.mrb[0].mxu0
    %v870 = vadd.f32 0.0, %v869
    %871 = vmatprep.mubr.f32.mxu0 0.0
    %872 = vmatmul.mubr.f32.gmra.mrb[0].mxu0 %v238
    %v873 = vpop.f32.mrb[0].mxu0
    %v874 = vadd.f32 0.0, %v873
    %v875 = vpop.f32.mrb[0].mxu0
    %v876 = vadd.f32 0.0, %v875
    %877 = vmatprep.mubr.f32.mxu0 0.0
    %878 = vmatmul.mubr.f32.gmra.mrb[0].mxu0 %v241
    %v879 = vpop.f32.mrb[0].mxu0
    %v880 = vadd.f32 0.0, %v879
    %v881 = vpop.f32.mrb[0].mxu0
    %v882 = vadd.f32 0.0, %v881
    %883 = vmatprep.mubr.f32.mxu0 0.0
    %884 = vmatmul.mubr.f32.gmra.mrb[0].mxu0 %v244
    %v885 = vpop.f32.mrb[0].mxu0
    %v886 = vadd.f32 0.0, %v885
    %v887 = vpop.f32.mrb[0].mxu0
    %v888 = vadd.f32 0.0, %v887
    %889 = vdwg.mxu0
    %890 = vmatprep.subr.mxu0 %v614
    %891 = vmatpush1.msra.mxu0 %v613
    %892 = vmatprep.subr.mxu0 %v622
    %893 = vmatpush1.msra.mxu0 %v621
    %894 = vmatprep.subr.mxu0 0.0
    %895 = vmatpush1.msra.mxu0 0.0
    %896 = vmatprep.subr.mxu0 0.0
    %897 = vmatpush1.msra.mxu0 0.0
    %898 = vmatprep.subr.mxu0 0.0
    %899 = vmatpush1.msra.mxu0 0.0
    %900 = vmatprep.subr.mxu0 0.0
    %901 = vmatpush1.msra.mxu0 0.0
    %902 = vmatprep.subr.mxu0 0.0
    %903 = vmatpush1.msra.mxu0 0.0
    %904 = vmatprep.subr.mxu0 0.0
    %905 = vmatpush1.msra.mxu0 0.0
    %906 = vmatprep.subr.mxu0 0.0
    %907 = vmatpush1.msra.mxu0 0.0
    %908 = vmatprep.subr.mxu0 0.0
    %909 = vmatpush1.msra.mxu0 0.0
    %910 = vmatprep.subr.mxu0 0.0
    %911 = vmatpush1.msra.mxu0 0.0
    %912 = vmatprep.subr.mxu0 0.0
    %913 = vmatpush1.msra.mxu0 0.0
    %914 = vmatprep.subr.mxu0 0.0
    %915 = vmatpush1.msra.mxu0 0.0
    %916 = vmatprep.subr.mxu0 0.0
    %917 = vmatpush1.msra.mxu0 0.0
    %918 = vmatprep.subr.mxu0 0.0
    %919 = vmatpush1.msra.mxu0 0.0
    %920 = vmatprep.subr.mxu0 0.0
    %921 = vmatpush1.msra.mxu0 0.0
    %922 = vmatprep.subr.mxu0 0.0
    %923 = vmatpush1.msra.mxu0 0.0
    %924 = vmatprep.subr.mxu0 0.0
    %925 = vmatpush1.msra.mxu0 0.0
    %926 = vmatprep.subr.mxu0 0.0
    %927 = vmatpush1.msra.mxu0 0.0
    %928 = vmatprep.subr.mxu0 0.0
    %929 = vmatpush1.msra.mxu0 0.0
    %930 = vmatprep.subr.mxu0 0.0
    %931 = vmatpush1.msra.mxu0 0.0
    %932 = vmatprep.subr.mxu0 0.0
    %933 = vmatpush1.msra.mxu0 0.0
    %934 = vmatprep.subr.mxu0 0.0
    %935 = vmatpush1.msra.mxu0 0.0
    %936 = vmatprep.subr.mxu0 0.0
    %937 = vmatpush1.msra.mxu0 0.0
    %938 = vmatprep.subr.mxu0 0.0
    %939 = vmatpush1.msra.mxu0 0.0
    %940 = vmatprep.subr.mxu0 0.0
    %941 = vmatpush1.msra.mxu0 0.0
    %942 = vmatprep.subr.mxu0 0.0
    %943 = vmatpush1.msra.mxu0 0.0
    %944 = vmatprep.subr.mxu0 0.0
    %945 = vmatpush1.msra.mxu0 0.0
    %946 = vmatprep.subr.mxu0 0.0
    %947 = vmatpush1.msra.mxu0 0.0
    %948 = vmatprep.subr.mxu0 0.0
    %949 = vmatpush1.msra.mxu0 0.0
    %950 = vmatprep.subr.mxu0 0.0
    %951 = vmatpush1.msra.mxu0 0.0
    %952 = vmatprep.subr.mxu0 0.0
    %953 = vmatpush1.msra.mxu0 0.0
    %954 = vmatprep.mubr.f32.mxu0 0.0
    %955 = vmatmul.mubr.f32.gmra.mrb[0].mxu0 %v235
    %v956 = vpop.f32.mrb[0].mxu0
    %v957 = vadd.f32 0.0, %v956
    %v958 = vpop.f32.mrb[0].mxu0
    %v959 = vadd.f32 0.0, %v958
    %960 = vmatprep.mubr.f32.mxu0 0.0
    %961 = vmatmul.mubr.f32.gmra.mrb[0].mxu0 %v238
    %v962 = vpop.f32.mrb[0].mxu0
    %v963 = vadd.f32 0.0, %v962
    %v964 = vpop.f32.mrb[0].mxu0
    %v965 = vadd.f32 0.0, %v964
    %966 = vmatprep.mubr.f32.mxu0 0.0
    %967 = vmatmul.mubr.f32.gmra.mrb[0].mxu0 %v241
    %v968 = vpop.f32.mrb[0].mxu0
    %v969 = vadd.f32 0.0, %v968
    %v970 = vpop.f32.mrb[0].mxu0
    %v971 = vadd.f32 0.0, %v970
    %972 = vmatprep.mubr.f32.mxu0 0.0
    %973 = vmatmul.mubr.f32.gmra.mrb[0].mxu0 %v244
    %v974 = vpop.f32.mrb[0].mxu0
    %v975 = vadd.f32 0.0, %v974
    %v976 = vpop.f32.mrb[0].mxu0
    %v977 = vadd.f32 0.0, %v976
    %978 = vdwg.mxu0
    %s979 = scalar_lea.vmem %s1, 32
    %v980 = vld [vmem:[%s979] sm:$0xff]
    %v981 = vld [vmem:[%s979 + $0x8] sm:$0xff]
    %v982 = vld [vmem:[%s979 + $0x10] sm:$0xff]
    %v983 = vld [vmem:[%s979 + $0x18] sm:$0xff]
    %vm984 = vcmask 261120
    %v986 = vsel %vm984, %v980, 0
    %v989 = vsel %vm984, %v981, 0
    %v992 = vsel %vm984, %v982, 0
    %v995 = vsel %vm984, %v983, 0
    %997 = vmatprep.subr.mxu0 %v692
    %998 = vmatpush1.msra.mxu0 %v690
    %999 = vmatprep.subr.mxu0 %v698
    %1000 = vmatpush1.msra.mxu0 %v696
    %1001 = vmatprep.subr.mxu0 %v704
    %1002 = vmatpush1.msra.mxu0 %v702
    %1003 = vmatprep.subr.mxu0 %v710
    %1004 = vmatpush1.msra.mxu0 %v708
    %1005 = vmatprep.subr.mxu0 0.0
    %1006 = vmatpush1.msra.mxu0 0.0
    %1007 = vmatprep.subr.mxu0 0.0
    %1008 = vmatpush1.msra.mxu0 0.0
    %1009 = vmatprep.subr.mxu0 0.0
    %1010 = vmatpush1.msra.mxu0 0.0
    %1011 = vmatprep.subr.mxu0 0.0
    %1012 = vmatpush1.msra.mxu0 0.0
    %1013 = vmatprep.subr.mxu0 0.0
    %1014 = vmatpush1.msra.mxu0 0.0
    %1015 = vmatprep.subr.mxu0 0.0
    %1016 = vmatpush1.msra.mxu0 0.0
    %1017 = vmatprep.subr.mxu0 0.0
    %1018 = vmatpush1.msra.mxu0 0.0
    %1019 = vmatprep.subr.mxu0 0.0
    %1020 = vmatpush1.msra.mxu0 0.0
    %1021 = vmatprep.subr.mxu0 0.0
    %1022 = vmatpush1.msra.mxu0 0.0
    %1023 = vmatprep.subr.mxu0 0.0
    %1024 = vmatpush1.msra.mxu0 0.0
    %1025 = vmatprep.subr.mxu0 0.0
    %1026 = vmatpush1.msra.mxu0 0.0
    %1027 = vmatprep.subr.mxu0 0.0
    %1028 = vmatpush1.msra.mxu0 0.0
    %1029 = vmatprep.subr.mxu0 0.0
    %1030 = vmatpush1.msra.mxu0 0.0
    %1031 = vmatprep.subr.mxu0 0.0
    %1032 = vmatpush1.msra.mxu0 0.0
    %1033 = vmatprep.subr.mxu0 0.0
    %1034 = vmatpush1.msra.mxu0 0.0
    %1035 = vmatprep.subr.mxu0 0.0
    %1036 = vmatpush1.msra.mxu0 0.0
    %1037 = vmatprep.subr.mxu0 0.0
    %1038 = vmatpush1.msra.mxu0 0.0
    %1039 = vmatprep.subr.mxu0 0.0
    %1040 = vmatpush1.msra.mxu0 0.0
    %1041 = vmatprep.subr.mxu0 0.0
    %1042 = vmatpush1.msra.mxu0 0.0
    %1043 = vmatprep.subr.mxu0 0.0
    %1044 = vmatpush1.msra.mxu0 0.0
    %1045 = vmatprep.subr.mxu0 0.0
    %1046 = vmatpush1.msra.mxu0 0.0
    %1047 = vmatprep.subr.mxu0 0.0
    %1048 = vmatpush1.msra.mxu0 0.0
    %1049 = vmatprep.subr.mxu0 0.0
    %1050 = vmatpush1.msra.mxu0 0.0
    %1051 = vmatprep.subr.mxu0 0.0
    %1052 = vmatpush1.msra.mxu0 0.0
    %1053 = vmatprep.subr.mxu0 0.0
    %1054 = vmatpush1.msra.mxu0 0.0
    %1055 = vmatprep.subr.mxu0 0.0
    %1056 = vmatpush1.msra.mxu0 0.0
    %1057 = vmatprep.subr.mxu0 0.0
    %1058 = vmatpush1.msra.mxu0 0.0
    %1059 = vmatprep.subr.mxu0 0.0
    %1060 = vmatpush1.msra.mxu0 0.0
    %1061 = vmatprep.mubr.f32.mxu0 0.0
    %1062 = vmatmul.mubr.f32.gmra.mrb[0].mxu0 %v986
    %v1063 = vpop.f32.mrb[0].mxu0
    %v1064 = vadd.f32 0.0, %v1063
    %v1065 = vpop.f32.mrb[0].mxu0
    %v1066 = vadd.f32 0.0, %v1065
    %1067 = vmatprep.mubr.f32.mxu0 0.0
    %1068 = vmatmul.mubr.f32.gmra.mrb[0].mxu0 %v989
    %v1069 = vpop.f32.mrb[0].mxu0
    %v1070 = vadd.f32 0.0, %v1069
    %v1071 = vpop.f32.mrb[0].mxu0
    %v1072 = vadd.f32 0.0, %v1071
    %1073 = vmatprep.mubr.f32.mxu0 0.0
    %1074 = vmatmul.mubr.f32.gmra.mrb[0].mxu0 %v992
    %v1075 = vpop.f32.mrb[0].mxu0
    %v1076 = vadd.f32 0.0, %v1075
    %v1077 = vpop.f32.mrb[0].mxu0
    %v1078 = vadd.f32 0.0, %v1077
    %1079 = vmatprep.mubr.f32.mxu0 0.0
    %1080 = vmatmul.mubr.f32.gmra.mrb[0].mxu0 %v995
    %v1081 = vpop.f32.mrb[0].mxu0
    %v1082 = vadd.f32 0.0, %v1081
    %v1083 = vpop.f32.mrb[0].mxu0
    %v1084 = vadd.f32 0.0, %v1083
    %1085 = vdwg.mxu0
    %1086 = vmatprep.subr.mxu0 %v781
    %1087 = vmatpush1.msra.mxu0 %v779
    %1088 = vmatprep.subr.mxu0 %v787
    %1089 = vmatpush1.msra.mxu0 %v785
    %1090 = vmatprep.subr.mxu0 %v793
    %1091 = vmatpush1.msra.mxu0 %v791
    %1092 = vmatprep.subr.mxu0 %v799
    %1093 = vmatpush1.msra.mxu0 %v797
    %1094 = vmatprep.subr.mxu0 0.0
    %1095 = vmatpush1.msra.mxu0 0.0
    %1096 = vmatprep.subr.mxu0 0.0
    %1097 = vmatpush1.msra.mxu0 0.0
    %1098 = vmatprep.subr.mxu0 0.0
    %1099 = vmatpush1.msra.mxu0 0.0
    %1100 = vmatprep.subr.mxu0 0.0
    %1101 = vmatpush1.msra.mxu0 0.0
    %1102 = vmatprep.subr.mxu0 0.0
    %1103 = vmatpush1.msra.mxu0 0.0
    %1104 = vmatprep.subr.mxu0 0.0
    %1105 = vmatpush1.msra.mxu0 0.0
    %1106 = vmatprep.subr.mxu0 0.0
    %1107 = vmatpush1.msra.mxu0 0.0
    %1108 = vmatprep.subr.mxu0 0.0
    %1109 = vmatpush1.msra.mxu0 0.0
    %1110 = vmatprep.subr.mxu0 0.0
    %1111 = vmatpush1.msra.mxu0 0.0
    %1112 = vmatprep.subr.mxu0 0.0
    %1113 = vmatpush1.msra.mxu0 0.0
    %1114 = vmatprep.subr.mxu0 0.0
    %1115 = vmatpush1.msra.mxu0 0.0
    %1116 = vmatprep.subr.mxu0 0.0
    %1117 = vmatpush1.msra.mxu0 0.0
    %1118 = vmatprep.subr.mxu0 0.0
    %1119 = vmatpush1.msra.mxu0 0.0
    %1120 = vmatprep.subr.mxu0 0.0
    %1121 = vmatpush1.msra.mxu0 0.0
    %1122 = vmatprep.subr.mxu0 0.0
    %1123 = vmatpush1.msra.mxu0 0.0
    %1124 = vmatprep.subr.mxu0 0.0
    %1125 = vmatpush1.msra.mxu0 0.0
    %1126 = vmatprep.subr.mxu0 0.0
    %1127 = vmatpush1.msra.mxu0 0.0
    %1128 = vmatprep.subr.mxu0 0.0
    %1129 = vmatpush1.msra.mxu0 0.0
    %1130 = vmatprep.subr.mxu0 0.0
    %1131 = vmatpush1.msra.mxu0 0.0
    %1132 = vmatprep.subr.mxu0 0.0
    %1133 = vmatpush1.msra.mxu0 0.0
    %1134 = vmatprep.subr.mxu0 0.0
    %1135 = vmatpush1.msra.mxu0 0.0
    %1136 = vmatprep.subr.mxu0 0.0
    %1137 = vmatpush1.msra.mxu0 0.0
    %1138 = vmatprep.subr.mxu0 0.0
    %1139 = vmatpush1.msra.mxu0 0.0
    %1140 = vmatprep.subr.mxu0 0.0
    %1141 = vmatpush1.msra.mxu0 0.0
    %1142 = vmatprep.subr.mxu0 0.0
    %1143 = vmatpush1.msra.mxu0 0.0
    %1144 = vmatprep.subr.mxu0 0.0
    %1145 = vmatpush1.msra.mxu0 0.0
    %1146 = vmatprep.subr.mxu0 0.0
    %1147 = vmatpush1.msra.mxu0 0.0
    %1148 = vmatprep.subr.mxu0 0.0
    %1149 = vmatpush1.msra.mxu0 0.0
    %1150 = vmatprep.mubr.f32.mxu0 0.0
    %1151 = vmatmul.mubr.f32.gmra.mrb[0].mxu0 %v986
    %v1152 = vpop.f32.mrb[0].mxu0
    %v1153 = vadd.f32 0.0, %v1152
    %v1154 = vpop.f32.mrb[0].mxu0
    %v1155 = vadd.f32 0.0, %v1154
    %1156 = vmatprep.mubr.f32.mxu0 0.0
    %1157 = vmatmul.mubr.f32.gmra.mrb[0].mxu0 %v989
    %v1158 = vpop.f32.mrb[0].mxu0
    %v1159 = vadd.f32 0.0, %v1158
    %v1160 = vpop.f32.mrb[0].mxu0
    %v1161 = vadd.f32 0.0, %v1160
    %1162 = vmatprep.mubr.f32.mxu0 0.0
    %1163 = vmatmul.mubr.f32.gmra.mrb[0].mxu0 %v992
    %v1164 = vpop.f32.mrb[0].mxu0
    %v1165 = vadd.f32 0.0, %v1164
    %v1166 = vpop.f32.mrb[0].mxu0
    %v1167 = vadd.f32 0.0, %v1166
    %1168 = vmatprep.mubr.f32.mxu0 0.0
    %1169 = vmatmul.mubr.f32.gmra.mrb[0].mxu0 %v995
    %v1170 = vpop.f32.mrb[0].mxu0
    %v1171 = vadd.f32 0.0, %v1170
    %v1172 = vpop.f32.mrb[0].mxu0
    %v1173 = vadd.f32 0.0, %v1172
    %1174 = vdwg.mxu0
    %1175 = vmatprep.subr.mxu0 %v870
    %1176 = vmatpush1.msra.mxu0 %v868
    %1177 = vmatprep.subr.mxu0 %v876
    %1178 = vmatpush1.msra.mxu0 %v874
    %1179 = vmatprep.subr.mxu0 %v882
    %1180 = vmatpush1.msra.mxu0 %v880
    %1181 = vmatprep.subr.mxu0 %v888
    %1182 = vmatpush1.msra.mxu0 %v886
    %1183 = vmatprep.subr.mxu0 0.0
    %1184 = vmatpush1.msra.mxu0 0.0
    %1185 = vmatprep.subr.mxu0 0.0
    %1186 = vmatpush1.msra.mxu0 0.0
    %1187 = vmatprep.subr.mxu0 0.0
    %1188 = vmatpush1.msra.mxu0 0.0
    %1189 = vmatprep.subr.mxu0 0.0
    %1190 = vmatpush1.msra.mxu0 0.0
    %1191 = vmatprep.subr.mxu0 0.0
    %1192 = vmatpush1.msra.mxu0 0.0
    %1193 = vmatprep.subr.mxu0 0.0
    %1194 = vmatpush1.msra.mxu0 0.0
    %1195 = vmatprep.subr.mxu0 0.0
    %1196 = vmatpush1.msra.mxu0 0.0
    %1197 = vmatprep.subr.mxu0 0.0
    %1198 = vmatpush1.msra.mxu0 0.0
    %1199 = vmatprep.subr.mxu0 0.0
    %1200 = vmatpush1.msra.mxu0 0.0
    %1201 = vmatprep.subr.mxu0 0.0
    %1202 = vmatpush1.msra.mxu0 0.0
    %1203 = vmatprep.subr.mxu0 0.0
    %1204 = vmatpush1.msra.mxu0 0.0
    %1205 = vmatprep.subr.mxu0 0.0
    %1206 = vmatpush1.msra.mxu0 0.0
    %1207 = vmatprep.subr.mxu0 0.0
    %1208 = vmatpush1.msra.mxu0 0.0
    %1209 = vmatprep.subr.mxu0 0.0
    %1210 = vmatpush1.msra.mxu0 0.0
    %1211 = vmatprep.subr.mxu0 0.0
    %1212 = vmatpush1.msra.mxu0 0.0
    %1213 = vmatprep.subr.mxu0 0.0
    %1214 = vmatpush1.msra.mxu0 0.0
    %1215 = vmatprep.subr.mxu0 0.0
    %1216 = vmatpush1.msra.mxu0 0.0
    %1217 = vmatprep.subr.mxu0 0.0
    %1218 = vmatpush1.msra.mxu0 0.0
    %1219 = vmatprep.subr.mxu0 0.0
    %1220 = vmatpush1.msra.mxu0 0.0
    %1221 = vmatprep.subr.mxu0 0.0
    %1222 = vmatpush1.msra.mxu0 0.0
    %1223 = vmatprep.subr.mxu0 0.0
    %1224 = vmatpush1.msra.mxu0 0.0
    %1225 = vmatprep.subr.mxu0 0.0
    %1226 = vmatpush1.msra.mxu0 0.0
    %1227 = vmatprep.subr.mxu0 0.0
    %1228 = vmatpush1.msra.mxu0 0.0
    %1229 = vmatprep.subr.mxu0 0.0
    %1230 = vmatpush1.msra.mxu0 0.0
    %1231 = vmatprep.subr.mxu0 0.0
    %1232 = vmatpush1.msra.mxu0 0.0
    %1233 = vmatprep.subr.mxu0 0.0
    %1234 = vmatpush1.msra.mxu0 0.0
    %1235 = vmatprep.subr.mxu0 0.0
    %1236 = vmatpush1.msra.mxu0 0.0
    %1237 = vmatprep.subr.mxu0 0.0
    %1238 = vmatpush1.msra.mxu0 0.0
    %1239 = vmatprep.mubr.f32.mxu0 0.0
    %1240 = vmatmul.mubr.f32.gmra.mrb[0].mxu0 %v986
    %v1241 = vpop.f32.mrb[0].mxu0
    %v1242 = vadd.f32 0.0, %v1241
    %v1243 = vpop.f32.mrb[0].mxu0
    %v1244 = vadd.f32 0.0, %v1243
    %1245 = vmatprep.mubr.f32.mxu0 0.0
    %1246 = vmatmul.mubr.f32.gmra.mrb[0].mxu0 %v989
    %v1247 = vpop.f32.mrb[0].mxu0
    %v1248 = vadd.f32 0.0, %v1247
    %v1249 = vpop.f32.mrb[0].mxu0
    %v1250 = vadd.f32 0.0, %v1249
    %1251 = vmatprep.mubr.f32.mxu0 0.0
    %1252 = vmatmul.mubr.f32.gmra.mrb[0].mxu0 %v992
    %v1253 = vpop.f32.mrb[0].mxu0
    %v1254 = vadd.f32 0.0, %v1253
    %v1255 = vpop.f32.mrb[0].mxu0
    %v1256 = vadd.f32 0.0, %v1255
    %1257 = vmatprep.mubr.f32.mxu0 0.0
    %1258 = vmatmul.mubr.f32.gmra.mrb[0].mxu0 %v995
    %v1259 = vpop.f32.mrb[0].mxu0
    %v1260 = vadd.f32 0.0, %v1259
    %v1261 = vpop.f32.mrb[0].mxu0
    %v1262 = vadd.f32 0.0, %v1261
    %1263 = vdwg.mxu0
    %1264 = vmatprep.subr.mxu0 %v959
    %1265 = vmatpush1.msra.mxu0 %v957
    %1266 = vmatprep.subr.mxu0 %v965
    %1267 = vmatpush1.msra.mxu0 %v963
    %1268 = vmatprep.subr.mxu0 %v971
    %1269 = vmatpush1.msra.mxu0 %v969
    %1270 = vmatprep.subr.mxu0 %v977
    %1271 = vmatpush1.msra.mxu0 %v975
    %1272 = vmatprep.subr.mxu0 0.0
    %1273 = vmatpush1.msra.mxu0 0.0
    %1274 = vmatprep.subr.mxu0 0.0
    %1275 = vmatpush1.msra.mxu0 0.0
    %1276 = vmatprep.subr.mxu0 0.0
    %1277 = vmatpush1.msra.mxu0 0.0
    %1278 = vmatprep.subr.mxu0 0.0
    %1279 = vmatpush1.msra.mxu0 0.0
    %1280 = vmatprep.subr.mxu0 0.0
    %1281 = vmatpush1.msra.mxu0 0.0
    %1282 = vmatprep.subr.mxu0 0.0
    %1283 = vmatpush1.msra.mxu0 0.0
    %1284 = vmatprep.subr.mxu0 0.0
    %1285 = vmatpush1.msra.mxu0 0.0
    %1286 = vmatprep.subr.mxu0 0.0
    %1287 = vmatpush1.msra.mxu0 0.0
    %1288 = vmatprep.subr.mxu0 0.0
    %1289 = vmatpush1.msra.mxu0 0.0
    %1290 = vmatprep.subr.mxu0 0.0
    %1291 = vmatpush1.msra.mxu0 0.0
    %1292 = vmatprep.subr.mxu0 0.0
    %1293 = vmatpush1.msra.mxu0 0.0
    %1294 = vmatprep.subr.mxu0 0.0
    %1295 = vmatpush1.msra.mxu0 0.0
    %1296 = vmatprep.subr.mxu0 0.0
    %1297 = vmatpush1.msra.mxu0 0.0
    %1298 = vmatprep.subr.mxu0 0.0
    %1299 = vmatpush1.msra.mxu0 0.0
    %1300 = vmatprep.subr.mxu0 0.0
    %1301 = vmatpush1.msra.mxu0 0.0
    %1302 = vmatprep.subr.mxu0 0.0
    %1303 = vmatpush1.msra.mxu0 0.0
    %1304 = vmatprep.subr.mxu0 0.0
    %1305 = vmatpush1.msra.mxu0 0.0
    %1306 = vmatprep.subr.mxu0 0.0
    %1307 = vmatpush1.msra.mxu0 0.0
    %1308 = vmatprep.subr.mxu0 0.0
    %1309 = vmatpush1.msra.mxu0 0.0
    %1310 = vmatprep.subr.mxu0 0.0
    %1311 = vmatpush1.msra.mxu0 0.0
    %1312 = vmatprep.subr.mxu0 0.0
    %1313 = vmatpush1.msra.mxu0 0.0
    %1314 = vmatprep.subr.mxu0 0.0
    %1315 = vmatpush1.msra.mxu0 0.0
    %1316 = vmatprep.subr.mxu0 0.0
    %1317 = vmatpush1.msra.mxu0 0.0
    %1318 = vmatprep.subr.mxu0 0.0
    %1319 = vmatpush1.msra.mxu0 0.0
    %1320 = vmatprep.subr.mxu0 0.0
    %1321 = vmatpush1.msra.mxu0 0.0
    %1322 = vmatprep.subr.mxu0 0.0
    %1323 = vmatpush1.msra.mxu0 0.0
    %1324 = vmatprep.subr.mxu0 0.0
    %1325 = vmatpush1.msra.mxu0 0.0
    %1326 = vmatprep.subr.mxu0 0.0
    %1327 = vmatpush1.msra.mxu0 0.0
    %1328 = vmatprep.mubr.f32.mxu0 0.0
    %1329 = vmatmul.mubr.f32.gmra.mrb[0].mxu0 %v986
    %v1330 = vpop.f32.mrb[0].mxu0
    %v1331 = vadd.f32 0.0, %v1330
    %v1332 = vpop.f32.mrb[0].mxu0
    %v1333 = vadd.f32 0.0, %v1332
    %1334 = vmatprep.mubr.f32.mxu0 0.0
    %1335 = vmatmul.mubr.f32.gmra.mrb[0].mxu0 %v989
    %v1336 = vpop.f32.mrb[0].mxu0
    %v1337 = vadd.f32 0.0, %v1336
    %v1338 = vpop.f32.mrb[0].mxu0
    %v1339 = vadd.f32 0.0, %v1338
    %1340 = vmatprep.mubr.f32.mxu0 0.0
    %1341 = vmatmul.mubr.f32.gmra.mrb[0].mxu0 %v992
    %v1342 = vpop.f32.mrb[0].mxu0
    %v1343 = vadd.f32 0.0, %v1342
    %v1344 = vpop.f32.mrb[0].mxu0
    %v1345 = vadd.f32 0.0, %v1344
    %1346 = vmatprep.mubr.f32.mxu0 0.0
    %1347 = vmatmul.mubr.f32.gmra.mrb[0].mxu0 %v995
    %v1348 = vpop.f32.mrb[0].mxu0
    %v1349 = vadd.f32 0.0, %v1348
    %v1350 = vpop.f32.mrb[0].mxu0
    %v1351 = vadd.f32 0.0, %v1350
    %1352 = vdwg.mxu0
    %v1354 = vsel %vm984, %v602, 0
    %v1357 = vsel %vm984, %v603, 0
    %v1360 = vsel %vm984, %v604, 0
    %v1363 = vsel %vm984, %v605, 0
    %1365 = vmatprep.subr.mxu0 %v315
    %1366 = vmatpush1.msra.mxu0 %v313
    %1367 = vmatprep.subr.mxu0 %v321
    %1368 = vmatpush1.msra.mxu0 %v319
    %1369 = vmatprep.subr.mxu0 %v327
    %1370 = vmatpush1.msra.mxu0 %v325
    %1371 = vmatprep.subr.mxu0 %v333
    %1372 = vmatpush1.msra.mxu0 %v331
    %1373 = vmatprep.subr.mxu0 0.0
    %1374 = vmatpush1.msra.mxu0 0.0
    %1375 = vmatprep.subr.mxu0 0.0
    %1376 = vmatpush1.msra.mxu0 0.0
    %1377 = vmatprep.subr.mxu0 0.0
    %1378 = vmatpush1.msra.mxu0 0.0
    %1379 = vmatprep.subr.mxu0 0.0
    %1380 = vmatpush1.msra.mxu0 0.0
    %1381 = vmatprep.subr.mxu0 0.0
    %1382 = vmatpush1.msra.mxu0 0.0
    %1383 = vmatprep.subr.mxu0 0.0
    %1384 = vmatpush1.msra.mxu0 0.0
    %1385 = vmatprep.subr.mxu0 0.0
    %1386 = vmatpush1.msra.mxu0 0.0
    %1387 = vmatprep.subr.mxu0 0.0
    %1388 = vmatpush1.msra.mxu0 0.0
    %1389 = vmatprep.subr.mxu0 0.0
    %1390 = vmatpush1.msra.mxu0 0.0
    %1391 = vmatprep.subr.mxu0 0.0
    %1392 = vmatpush1.msra.mxu0 0.0
    %1393 = vmatprep.subr.mxu0 0.0
    %1394 = vmatpush1.msra.mxu0 0.0
    %1395 = vmatprep.subr.mxu0 0.0
    %1396 = vmatpush1.msra.mxu0 0.0
    %1397 = vmatprep.subr.mxu0 0.0
    %1398 = vmatpush1.msra.mxu0 0.0
    %1399 = vmatprep.subr.mxu0 0.0
    %1400 = vmatpush1.msra.mxu0 0.0
    %1401 = vmatprep.subr.mxu0 0.0
    %1402 = vmatpush1.msra.mxu0 0.0
    %1403 = vmatprep.subr.mxu0 0.0
    %1404 = vmatpush1.msra.mxu0 0.0
    %1405 = vmatprep.subr.mxu0 0.0
    %1406 = vmatpush1.msra.mxu0 0.0
    %1407 = vmatprep.subr.mxu0 0.0
    %1408 = vmatpush1.msra.mxu0 0.0
    %1409 = vmatprep.subr.mxu0 0.0
    %1410 = vmatpush1.msra.mxu0 0.0
    %1411 = vmatprep.subr.mxu0 0.0
    %1412 = vmatpush1.msra.mxu0 0.0
    %1413 = vmatprep.subr.mxu0 0.0
    %1414 = vmatpush1.msra.mxu0 0.0
    %1415 = vmatprep.subr.mxu0 0.0
    %1416 = vmatpush1.msra.mxu0 0.0
    %1417 = vmatprep.subr.mxu0 0.0
    %1418 = vmatpush1.msra.mxu0 0.0
    %1419 = vmatprep.subr.mxu0 0.0
    %1420 = vmatpush1.msra.mxu0 0.0
    %1421 = vmatprep.subr.mxu0 0.0
    %1422 = vmatpush1.msra.mxu0 0.0
    %1423 = vmatprep.subr.mxu0 0.0
    %1424 = vmatpush1.msra.mxu0 0.0
    %1425 = vmatprep.subr.mxu0 0.0
    %1426 = vmatpush1.msra.mxu0 0.0
    %1427 = vmatprep.subr.mxu0 0.0
    %1428 = vmatpush1.msra.mxu0 0.0
    %1429 = vmatprep.mubr.f32.mxu0 0.0
    %1430 = vmatmul.mubr.f32.gmra.mrb[0].mxu0 %v1354
    %v1431 = vpop.f32.mrb[0].mxu0
    %v1432 = vadd.f32 %v1064, %v1431
    %v1433 = vpop.f32.mrb[0].mxu0
    %v1434 = vadd.f32 %v1066, %v1433
    %1435 = vmatprep.mubr.f32.mxu0 0.0
    %1436 = vmatmul.mubr.f32.gmra.mrb[0].mxu0 %v1357
    %v1437 = vpop.f32.mrb[0].mxu0
    %v1438 = vadd.f32 %v1070, %v1437
    %v1439 = vpop.f32.mrb[0].mxu0
    %v1440 = vadd.f32 %v1072, %v1439
    %1441 = vmatprep.mubr.f32.mxu0 0.0
    %1442 = vmatmul.mubr.f32.gmra.mrb[0].mxu0 %v1360
    %v1443 = vpop.f32.mrb[0].mxu0
    %v1444 = vadd.f32 %v1076, %v1443
    %v1445 = vpop.f32.mrb[0].mxu0
    %v1446 = vadd.f32 %v1078, %v1445
    %1447 = vmatprep.mubr.f32.mxu0 0.0
    %1448 = vmatmul.mubr.f32.gmra.mrb[0].mxu0 %v1363
    %v1449 = vpop.f32.mrb[0].mxu0
    %v1450 = vadd.f32 %v1082, %v1449
    %v1451 = vpop.f32.mrb[0].mxu0
    %v1452 = vadd.f32 %v1084, %v1451
    %1453 = vdwg.mxu0
    %1454 = vmatprep.subr.mxu0 %v404
    %1455 = vmatpush1.msra.mxu0 %v402
    %1456 = vmatprep.subr.mxu0 %v410
    %1457 = vmatpush1.msra.mxu0 %v408
    %1458 = vmatprep.subr.mxu0 %v416
    %1459 = vmatpush1.msra.mxu0 %v414
    %1460 = vmatprep.subr.mxu0 %v422
    %1461 = vmatpush1.msra.mxu0 %v420
    %1462 = vmatprep.subr.mxu0 0.0
    %1463 = vmatpush1.msra.mxu0 0.0
    %1464 = vmatprep.subr.mxu0 0.0
    %1465 = vmatpush1.msra.mxu0 0.0
    %1466 = vmatprep.subr.mxu0 0.0
    %1467 = vmatpush1.msra.mxu0 0.0
    %1468 = vmatprep.subr.mxu0 0.0
    %1469 = vmatpush1.msra.mxu0 0.0
    %1470 = vmatprep.subr.mxu0 0.0
    %1471 = vmatpush1.msra.mxu0 0.0
    %1472 = vmatprep.subr.mxu0 0.0
    %1473 = vmatpush1.msra.mxu0 0.0
    %1474 = vmatprep.subr.mxu0 0.0
    %1475 = vmatpush1.msra.mxu0 0.0
    %1476 = vmatprep.subr.mxu0 0.0
    %1477 = vmatpush1.msra.mxu0 0.0
    %1478 = vmatprep.subr.mxu0 0.0
    %1479 = vmatpush1.msra.mxu0 0.0
    %1480 = vmatprep.subr.mxu0 0.0
    %1481 = vmatpush1.msra.mxu0 0.0
    %1482 = vmatprep.subr.mxu0 0.0
    %1483 = vmatpush1.msra.mxu0 0.0
    %1484 = vmatprep.subr.mxu0 0.0
    %1485 = vmatpush1.msra.mxu0 0.0
    %1486 = vmatprep.subr.mxu0 0.0
    %1487 = vmatpush1.msra.mxu0 0.0
    %1488 = vmatprep.subr.mxu0 0.0
    %1489 = vmatpush1.msra.mxu0 0.0
    %1490 = vmatprep.subr.mxu0 0.0
    %1491 = vmatpush1.msra.mxu0 0.0
    %1492 = vmatprep.subr.mxu0 0.0
    %1493 = vmatpush1.msra.mxu0 0.0
    %1494 = vmatprep.subr.mxu0 0.0
    %1495 = vmatpush1.msra.mxu0 0.0
    %1496 = vmatprep.subr.mxu0 0.0
    %1497 = vmatpush1.msra.mxu0 0.0
    %1498 = vmatprep.subr.mxu0 0.0
    %1499 = vmatpush1.msra.mxu0 0.0
    %1500 = vmatprep.subr.mxu0 0.0
    %1501 = vmatpush1.msra.mxu0 0.0
    %1502 = vmatprep.subr.mxu0 0.0
    %1503 = vmatpush1.msra.mxu0 0.0
    %1504 = vmatprep.subr.mxu0 0.0
    %1505 = vmatpush1.msra.mxu0 0.0
    %1506 = vmatprep.subr.mxu0 0.0
    %1507 = vmatpush1.msra.mxu0 0.0
    %1508 = vmatprep.subr.mxu0 0.0
    %1509 = vmatpush1.msra.mxu0 0.0
    %1510 = vmatprep.subr.mxu0 0.0
    %1511 = vmatpush1.msra.mxu0 0.0
    %1512 = vmatprep.subr.mxu0 0.0
    %1513 = vmatpush1.msra.mxu0 0.0
    %1514 = vmatprep.subr.mxu0 0.0
    %1515 = vmatpush1.msra.mxu0 0.0
    %1516 = vmatprep.subr.mxu0 0.0
    %1517 = vmatpush1.msra.mxu0 0.0
    %1518 = vmatprep.mubr.f32.mxu0 0.0
    %1519 = vmatmul.mubr.f32.gmra.mrb[0].mxu0 %v1354
    %v1520 = vpop.f32.mrb[0].mxu0
    %v1521 = vadd.f32 %v1153, %v1520
    %v1522 = vpop.f32.mrb[0].mxu0
    %v1523 = vadd.f32 %v1155, %v1522
    %1524 = vmatprep.mubr.f32.mxu0 0.0
    %1525 = vmatmul.mubr.f32.gmra.mrb[0].mxu0 %v1357
    %v1526 = vpop.f32.mrb[0].mxu0
    %v1527 = vadd.f32 %v1159, %v1526
    %v1528 = vpop.f32.mrb[0].mxu0
    %v1529 = vadd.f32 %v1161, %v1528
    %1530 = vmatprep.mubr.f32.mxu0 0.0
    %1531 = vmatmul.mubr.f32.gmra.mrb[0].mxu0 %v1360
    %v1532 = vpop.f32.mrb[0].mxu0
    %v1533 = vadd.f32 %v1165, %v1532
    %v1534 = vpop.f32.mrb[0].mxu0
    %v1535 = vadd.f32 %v1167, %v1534
    %1536 = vmatprep.mubr.f32.mxu0 0.0
    %1537 = vmatmul.mubr.f32.gmra.mrb[0].mxu0 %v1363
    %v1538 = vpop.f32.mrb[0].mxu0
    %v1539 = vadd.f32 %v1171, %v1538
    %v1540 = vpop.f32.mrb[0].mxu0
    %v1541 = vadd.f32 %v1173, %v1540
    %1542 = vdwg.mxu0
    %1543 = vmatprep.subr.mxu0 %v493
    %1544 = vmatpush1.msra.mxu0 %v491
    %1545 = vmatprep.subr.mxu0 %v499
    %1546 = vmatpush1.msra.mxu0 %v497
    %1547 = vmatprep.subr.mxu0 %v505
    %1548 = vmatpush1.msra.mxu0 %v503
    %1549 = vmatprep.subr.mxu0 %v511
    %1550 = vmatpush1.msra.mxu0 %v509
    %1551 = vmatprep.subr.mxu0 0.0
    %1552 = vmatpush1.msra.mxu0 0.0
    %1553 = vmatprep.subr.mxu0 0.0
    %1554 = vmatpush1.msra.mxu0 0.0
    %1555 = vmatprep.subr.mxu0 0.0
    %1556 = vmatpush1.msra.mxu0 0.0
    %1557 = vmatprep.subr.mxu0 0.0
    %1558 = vmatpush1.msra.mxu0 0.0
    %1559 = vmatprep.subr.mxu0 0.0
    %1560 = vmatpush1.msra.mxu0 0.0
    %1561 = vmatprep.subr.mxu0 0.0
    %1562 = vmatpush1.msra.mxu0 0.0
    %1563 = vmatprep.subr.mxu0 0.0
    %1564 = vmatpush1.msra.mxu0 0.0
    %1565 = vmatprep.subr.mxu0 0.0
    %1566 = vmatpush1.msra.mxu0 0.0
    %1567 = vmatprep.subr.mxu0 0.0
    %1568 = vmatpush1.msra.mxu0 0.0
    %1569 = vmatprep.subr.mxu0 0.0
    %1570 = vmatpush1.msra.mxu0 0.0
    %1571 = vmatprep.subr.mxu0 0.0
    %1572 = vmatpush1.msra.mxu0 0.0
    %1573 = vmatprep.subr.mxu0 0.0
    %1574 = vmatpush1.msra.mxu0 0.0
    %1575 = vmatprep.subr.mxu0 0.0
    %1576 = vmatpush1.msra.mxu0 0.0
    %1577 = vmatprep.subr.mxu0 0.0
    %1578 = vmatpush1.msra.mxu0 0.0
    %1579 = vmatprep.subr.mxu0 0.0
    %1580 = vmatpush1.msra.mxu0 0.0
    %1581 = vmatprep.subr.mxu0 0.0
    %1582 = vmatpush1.msra.mxu0 0.0
    %1583 = vmatprep.subr.mxu0 0.0
    %1584 = vmatpush1.msra.mxu0 0.0
    %1585 = vmatprep.subr.mxu0 0.0
    %1586 = vmatpush1.msra.mxu0 0.0
    %1587 = vmatprep.subr.mxu0 0.0
    %1588 = vmatpush1.msra.mxu0 0.0
    %1589 = vmatprep.subr.mxu0 0.0
    %1590 = vmatpush1.msra.mxu0 0.0
    %1591 = vmatprep.subr.mxu0 0.0
    %1592 = vmatpush1.msra.mxu0 0.0
    %1593 = vmatprep.subr.mxu0 0.0
    %1594 = vmatpush1.msra.mxu0 0.0
    %1595 = vmatprep.subr.mxu0 0.0
    %1596 = vmatpush1.msra.mxu0 0.0
    %1597 = vmatprep.subr.mxu0 0.0
    %1598 = vmatpush1.msra.mxu0 0.0
    %1599 = vmatprep.subr.mxu0 0.0
    %1600 = vmatpush1.msra.mxu0 0.0
    %1601 = vmatprep.subr.mxu0 0.0
    %1602 = vmatpush1.msra.mxu0 0.0
    %1603 = vmatprep.subr.mxu0 0.0
    %1604 = vmatpush1.msra.mxu0 0.0
    %1605 = vmatprep.subr.mxu0 0.0
    %1606 = vmatpush1.msra.mxu0 0.0
    %1607 = vmatprep.mubr.f32.mxu0 0.0
    %1608 = vmatmul.mubr.f32.gmra.mrb[0].mxu0 %v1354
    %v1609 = vpop.f32.mrb[0].mxu0
    %v1610 = vadd.f32 %v1242, %v1609
    %v1611 = vpop.f32.mrb[0].mxu0
    %v1612 = vadd.f32 %v1244, %v1611
    %1613 = vmatprep.mubr.f32.mxu0 0.0
    %1614 = vmatmul.mubr.f32.gmra.mrb[0].mxu0 %v1357
    %v1615 = vpop.f32.mrb[0].mxu0
    %v1616 = vadd.f32 %v1248, %v1615
    %v1617 = vpop.f32.mrb[0].mxu0
    %v1618 = vadd.f32 %v1250, %v1617
    %1619 = vmatprep.mubr.f32.mxu0 0.0
    %1620 = vmatmul.mubr.f32.gmra.mrb[0].mxu0 %v1360
    %v1621 = vpop.f32.mrb[0].mxu0
    %v1622 = vadd.f32 %v1254, %v1621
    %v1623 = vpop.f32.mrb[0].mxu0
    %v1624 = vadd.f32 %v1256, %v1623
    %1625 = vmatprep.mubr.f32.mxu0 0.0
    %1626 = vmatmul.mubr.f32.gmra.mrb[0].mxu0 %v1363
    %v1627 = vpop.f32.mrb[0].mxu0
    %v1628 = vadd.f32 %v1260, %v1627
    %v1629 = vpop.f32.mrb[0].mxu0
    %v1630 = vadd.f32 %v1262, %v1629
    %1631 = vdwg.mxu0
    %1632 = vmatprep.subr.mxu0 %v582
    %1633 = vmatpush1.msra.mxu0 %v580
    %1634 = vmatprep.subr.mxu0 %v588
    %1635 = vmatpush1.msra.mxu0 %v586
    %1636 = vmatprep.subr.mxu0 %v594
    %1637 = vmatpush1.msra.mxu0 %v592
    %1638 = vmatprep.subr.mxu0 %v600
    %1639 = vmatpush1.msra.mxu0 %v598
    %1640 = vmatprep.subr.mxu0 0.0
    %1641 = vmatpush1.msra.mxu0 0.0
    %1642 = vmatprep.subr.mxu0 0.0
    %1643 = vmatpush1.msra.mxu0 0.0
    %1644 = vmatprep.subr.mxu0 0.0
    %1645 = vmatpush1.msra.mxu0 0.0
    %1646 = vmatprep.subr.mxu0 0.0
    %1647 = vmatpush1.msra.mxu0 0.0
    %1648 = vmatprep.subr.mxu0 0.0
    %1649 = vmatpush1.msra.mxu0 0.0
    %1650 = vmatprep.subr.mxu0 0.0
    %1651 = vmatpush1.msra.mxu0 0.0
    %1652 = vmatprep.subr.mxu0 0.0
    %1653 = vmatpush1.msra.mxu0 0.0
    %1654 = vmatprep.subr.mxu0 0.0
    %1655 = vmatpush1.msra.mxu0 0.0
    %1656 = vmatprep.subr.mxu0 0.0
    %1657 = vmatpush1.msra.mxu0 0.0
    %1658 = vmatprep.subr.mxu0 0.0
    %1659 = vmatpush1.msra.mxu0 0.0
    %1660 = vmatprep.subr.mxu0 0.0
    %1661 = vmatpush1.msra.mxu0 0.0
    %1662 = vmatprep.subr.mxu0 0.0
    %1663 = vmatpush1.msra.mxu0 0.0
    %1664 = vmatprep.subr.mxu0 0.0
    %1665 = vmatpush1.msra.mxu0 0.0
    %1666 = vmatprep.subr.mxu0 0.0
    %1667 = vmatpush1.msra.mxu0 0.0
    %1668 = vmatprep.subr.mxu0 0.0
    %1669 = vmatpush1.msra.mxu0 0.0
    %1670 = vmatprep.subr.mxu0 0.0
    %1671 = vmatpush1.msra.mxu0 0.0
    %1672 = vmatprep.subr.mxu0 0.0
    %1673 = vmatpush1.msra.mxu0 0.0
    %1674 = vmatprep.subr.mxu0 0.0
    %1675 = vmatpush1.msra.mxu0 0.0
    %1676 = vmatprep.subr.mxu0 0.0
    %1677 = vmatpush1.msra.mxu0 0.0
    %1678 = vmatprep.subr.mxu0 0.0
    %1679 = vmatpush1.msra.mxu0 0.0
    %1680 = vmatprep.subr.mxu0 0.0
    %1681 = vmatpush1.msra.mxu0 0.0
    %1682 = vmatprep.subr.mxu0 0.0
    %1683 = vmatpush1.msra.mxu0 0.0
    %1684 = vmatprep.subr.mxu0 0.0
    %1685 = vmatpush1.msra.mxu0 0.0
    %1686 = vmatprep.subr.mxu0 0.0
    %1687 = vmatpush1.msra.mxu0 0.0
    %1688 = vmatprep.subr.mxu0 0.0
    %1689 = vmatpush1.msra.mxu0 0.0
    %1690 = vmatprep.subr.mxu0 0.0
    %1691 = vmatpush1.msra.mxu0 0.0
    %1692 = vmatprep.subr.mxu0 0.0
    %1693 = vmatpush1.msra.mxu0 0.0
    %1694 = vmatprep.subr.mxu0 0.0
    %1695 = vmatpush1.msra.mxu0 0.0
    %1696 = vmatprep.mubr.f32.mxu0 0.0
    %1697 = vmatmul.mubr.f32.gmra.mrb[0].mxu0 %v1354
    %v1698 = vpop.f32.mrb[0].mxu0
    %v1699 = vadd.f32 %v1331, %v1698
    %v1700 = vpop.f32.mrb[0].mxu0
    %v1701 = vadd.f32 %v1333, %v1700
    %1702 = vmatprep.mubr.f32.mxu0 0.0
    %1703 = vmatmul.mubr.f32.gmra.mrb[0].mxu0 %v1357
    %v1704 = vpop.f32.mrb[0].mxu0
    %v1705 = vadd.f32 %v1337, %v1704
    %v1706 = vpop.f32.mrb[0].mxu0
    %v1707 = vadd.f32 %v1339, %v1706
    %1708 = vmatprep.mubr.f32.mxu0 0.0
    %1709 = vmatmul.mubr.f32.gmra.mrb[0].mxu0 %v1360
    %v1710 = vpop.f32.mrb[0].mxu0
    %v1711 = vadd.f32 %v1343, %v1710
    %v1712 = vpop.f32.mrb[0].mxu0
    %v1713 = vadd.f32 %v1345, %v1712
    %1714 = vmatprep.mubr.f32.mxu0 0.0
    %1715 = vmatmul.mubr.f32.gmra.mrb[0].mxu0 %v1363
    %v1716 = vpop.f32.mrb[0].mxu0
    %v1717 = vadd.f32 %v1349, %v1716
    %v1718 = vpop.f32.mrb[0].mxu0
    %v1719 = vadd.f32 %v1351, %v1718
    %1720 = vdwg.mxu0
    %s1721 = scalar_lea.vmem %s2, 256
    %v1722 = vld [vmem:[%s1721] sm:$0xff]
    %v1723 = vld [vmem:[%s1721 + $0x8] sm:$0xff]
    %v1724 = vld [vmem:[%s1721 + $0x10] sm:$0xff]
    %v1725 = vld [vmem:[%s1721 + $0x18] sm:$0xff]
    %v1726 = vld [vmem:[%s1721 + $0x20] sm:$0xff]
    %v1727 = vld [vmem:[%s1721 + $0x28] sm:$0xff]
    %v1728 = vld [vmem:[%s1721 + $0x30] sm:$0xff]
    %v1729 = vld [vmem:[%s1721 + $0x38] sm:$0xff]
    %v1730 = vld [vmem:[%s1721 + $0x40] sm:$0xff]
    %v1731 = vld [vmem:[%s1721 + $0x48] sm:$0xff]
    %v1732 = vld [vmem:[%s1721 + $0x50] sm:$0xff]
    %v1733 = vld [vmem:[%s1721 + $0x58] sm:$0xff]
    %v1734 = vld [vmem:[%s1721 + $0x60] sm:$0xff]
    %v1735 = vld [vmem:[%s1721 + $0x68] sm:$0xff]
    %v1736 = vld [vmem:[%s1721 + $0x70] sm:$0xff]
    %v1737 = vld [vmem:[%s1721 + $0x78] sm:$0xff]
    %1738 = vmatprep.subr.mxu0 %v1723
    %1739 = vmatpush1.msra.mxu0 %v1722
    %1740 = vmatprep.subr.mxu0 %v1731
    %1741 = vmatpush1.msra.mxu0 %v1730
    %1742 = vmatprep.subr.mxu0 0.0
    %1743 = vmatpush1.msra.mxu0 0.0
    %1744 = vmatprep.subr.mxu0 0.0
    %1745 = vmatpush1.msra.mxu0 0.0
    %1746 = vmatprep.subr.mxu0 0.0
    %1747 = vmatpush1.msra.mxu0 0.0
    %1748 = vmatprep.subr.mxu0 0.0
    %1749 = vmatpush1.msra.mxu0 0.0
    %1750 = vmatprep.subr.mxu0 0.0
    %1751 = vmatpush1.msra.mxu0 0.0
    %1752 = vmatprep.subr.mxu0 0.0
    %1753 = vmatpush1.msra.mxu0 0.0
    %1754 = vmatprep.subr.mxu0 0.0
    %1755 = vmatpush1.msra.mxu0 0.0
    %1756 = vmatprep.subr.mxu0 0.0
    %1757 = vmatpush1.msra.mxu0 0.0
    %1758 = vmatprep.subr.mxu0 0.0
    %1759 = vmatpush1.msra.mxu0 0.0
    %1760 = vmatprep.subr.mxu0 0.0
    %1761 = vmatpush1.msra.mxu0 0.0
    %1762 = vmatprep.subr.mxu0 0.0
    %1763 = vmatpush1.msra.mxu0 0.0
    %1764 = vmatprep.subr.mxu0 0.0
    %1765 = vmatpush1.msra.mxu0 0.0
    %1766 = vmatprep.subr.mxu0 0.0
    %1767 = vmatpush1.msra.mxu0 0.0
    %1768 = vmatprep.subr.mxu0 0.0
    %1769 = vmatpush1.msra.mxu0 0.0
    %1770 = vmatprep.subr.mxu0 0.0
    %1771 = vmatpush1.msra.mxu0 0.0
    %1772 = vmatprep.subr.mxu0 0.0
    %1773 = vmatpush1.msra.mxu0 0.0
    %1774 = vmatprep.subr.mxu0 0.0
    %1775 = vmatpush1.msra.mxu0 0.0
    %1776 = vmatprep.subr.mxu0 0.0
    %1777 = vmatpush1.msra.mxu0 0.0
    %1778 = vmatprep.subr.mxu0 0.0
    %1779 = vmatpush1.msra.mxu0 0.0
    %1780 = vmatprep.subr.mxu0 0.0
    %1781 = vmatpush1.msra.mxu0 0.0
    %1782 = vmatprep.subr.mxu0 0.0
    %1783 = vmatpush1.msra.mxu0 0.0
    %1784 = vmatprep.subr.mxu0 0.0
    %1785 = vmatpush1.msra.mxu0 0.0
    %1786 = vmatprep.subr.mxu0 0.0
    %1787 = vmatpush1.msra.mxu0 0.0
    %1788 = vmatprep.subr.mxu0 0.0
    %1789 = vmatpush1.msra.mxu0 0.0
    %1790 = vmatprep.subr.mxu0 0.0
    %1791 = vmatpush1.msra.mxu0 0.0
    %1792 = vmatprep.subr.mxu0 0.0
    %1793 = vmatpush1.msra.mxu0 0.0
    %1794 = vmatprep.subr.mxu0 0.0
    %1795 = vmatpush1.msra.mxu0 0.0
    %1796 = vmatprep.subr.mxu0 0.0
    %1797 = vmatpush1.msra.mxu0 0.0
    %1798 = vmatprep.subr.mxu0 0.0
    %1799 = vmatpush1.msra.mxu0 0.0
    %1800 = vmatprep.subr.mxu0 0.0
    %1801 = vmatpush1.msra.mxu0 0.0
    %1802 = vmatprep.mubr.f32.mxu0 0.0
    %1803 = vmatmul.mubr.f32.gmra.mrb[0].mxu0 %v235
    %v1804 = vpop.f32.mrb[0].mxu0
    %v1805 = vadd.f32 0.0, %v1804
    %v1806 = vpop.f32.mrb[0].mxu0
    %v1807 = vadd.f32 0.0, %v1806
    %1808 = vmatprep.mubr.f32.mxu0 0.0
    %1809 = vmatmul.mubr.f32.gmra.mrb[0].mxu0 %v238
    %v1810 = vpop.f32.mrb[0].mxu0
    %v1811 = vadd.f32 0.0, %v1810
    %v1812 = vpop.f32.mrb[0].mxu0
    %v1813 = vadd.f32 0.0, %v1812
    %1814 = vmatprep.mubr.f32.mxu0 0.0
    %1815 = vmatmul.mubr.f32.gmra.mrb[0].mxu0 %v241
    %v1816 = vpop.f32.mrb[0].mxu0
    %v1817 = vadd.f32 0.0, %v1816
    %v1818 = vpop.f32.mrb[0].mxu0
    %v1819 = vadd.f32 0.0, %v1818
    %1820 = vmatprep.mubr.f32.mxu0 0.0
    %1821 = vmatmul.mubr.f32.gmra.mrb[0].mxu0 %v244
    %v1822 = vpop.f32.mrb[0].mxu0
    %v1823 = vadd.f32 0.0, %v1822
    %v1824 = vpop.f32.mrb[0].mxu0
    %v1825 = vadd.f32 0.0, %v1824
    %1826 = vdwg.mxu0
    %1827 = vmatprep.subr.mxu0 %v1725
    %1828 = vmatpush1.msra.mxu0 %v1724
    %1829 = vmatprep.subr.mxu0 %v1733
    %1830 = vmatpush1.msra.mxu0 %v1732
    %1831 = vmatprep.subr.mxu0 0.0
    %1832 = vmatpush1.msra.mxu0 0.0
    %1833 = vmatprep.subr.mxu0 0.0
    %1834 = vmatpush1.msra.mxu0 0.0
    %1835 = vmatprep.subr.mxu0 0.0
    %1836 = vmatpush1.msra.mxu0 0.0
    %1837 = vmatprep.subr.mxu0 0.0
    %1838 = vmatpush1.msra.mxu0 0.0
    %1839 = vmatprep.subr.mxu0 0.0
    %1840 = vmatpush1.msra.mxu0 0.0
    %1841 = vmatprep.subr.mxu0 0.0
    %1842 = vmatpush1.msra.mxu0 0.0
    %1843 = vmatprep.subr.mxu0 0.0
    %1844 = vmatpush1.msra.mxu0 0.0
    %1845 = vmatprep.subr.mxu0 0.0
    %1846 = vmatpush1.msra.mxu0 0.0
    %1847 = vmatprep.subr.mxu0 0.0
    %1848 = vmatpush1.msra.mxu0 0.0
    %1849 = vmatprep.subr.mxu0 0.0
    %1850 = vmatpush1.msra.mxu0 0.0
    %1851 = vmatprep.subr.mxu0 0.0
    %1852 = vmatpush1.msra.mxu0 0.0
    %1853 = vmatprep.subr.mxu0 0.0
    %1854 = vmatpush1.msra.mxu0 0.0
    %1855 = vmatprep.subr.mxu0 0.0
    %1856 = vmatpush1.msra.mxu0 0.0
    %1857 = vmatprep.subr.mxu0 0.0
    %1858 = vmatpush1.msra.mxu0 0.0
    %1859 = vmatprep.subr.mxu0 0.0
    %1860 = vmatpush1.msra.mxu0 0.0
    %1861 = vmatprep.subr.mxu0 0.0
    %1862 = vmatpush1.msra.mxu0 0.0
    %1863 = vmatprep.subr.mxu0 0.0
    %1864 = vmatpush1.msra.mxu0 0.0
    %1865 = vmatprep.subr.mxu0 0.0
    %1866 = vmatpush1.msra.mxu0 0.0
    %1867 = vmatprep.subr.mxu0 0.0
    %1868 = vmatpush1.msra.mxu0 0.0
    %1869 = vmatprep.subr.mxu0 0.0
    %1870 = vmatpush1.msra.mxu0 0.0
    %1871 = vmatprep.subr.mxu0 0.0
    %1872 = vmatpush1.msra.mxu0 0.0
    %1873 = vmatprep.subr.mxu0 0.0
    %1874 = vmatpush1.msra.mxu0 0.0
    %1875 = vmatprep.subr.mxu0 0.0
    %1876 = vmatpush1.msra.mxu0 0.0
    %1877 = vmatprep.subr.mxu0 0.0
    %1878 = vmatpush1.msra.mxu0 0.0
    %1879 = vmatprep.subr.mxu0 0.0
    %1880 = vmatpush1.msra.mxu0 0.0
    %1881 = vmatprep.subr.mxu0 0.0
    %1882 = vmatpush1.msra.mxu0 0.0
    %1883 = vmatprep.subr.mxu0 0.0
    %1884 = vmatpush1.msra.mxu0 0.0
    %1885 = vmatprep.subr.mxu0 0.0
    %1886 = vmatpush1.msra.mxu0 0.0
    %1887 = vmatprep.subr.mxu0 0.0
    %1888 = vmatpush1.msra.mxu0 0.0
    %1889 = vmatprep.subr.mxu0 0.0
    %1890 = vmatpush1.msra.mxu0 0.0
    %1891 = vmatprep.mubr.f32.mxu0 0.0
    %1892 = vmatmul.mubr.f32.gmra.mrb[0].mxu0 %v235
    %v1893 = vpop.f32.mrb[0].mxu0
    %v1894 = vadd.f32 0.0, %v1893
    %v1895 = vpop.f32.mrb[0].mxu0
    %v1896 = vadd.f32 0.0, %v1895
    %1897 = vmatprep.mubr.f32.mxu0 0.0
    %1898 = vmatmul.mubr.f32.gmra.mrb[0].mxu0 %v238
    %v1899 = vpop.f32.mrb[0].mxu0
    %v1900 = vadd.f32 0.0, %v1899
    %v1901 = vpop.f32.mrb[0].mxu0
    %v1902 = vadd.f32 0.0, %v1901
    %1903 = vmatprep.mubr.f32.mxu0 0.0
    %1904 = vmatmul.mubr.f32.gmra.mrb[0].mxu0 %v241
    %v1905 = vpop.f32.mrb[0].mxu0
    %v1906 = vadd.f32 0.0, %v1905
    %v1907 = vpop.f32.mrb[0].mxu0
    %v1908 = vadd.f32 0.0, %v1907
    %1909 = vmatprep.mubr.f32.mxu0 0.0
    %1910 = vmatmul.mubr.f32.gmra.mrb[0].mxu0 %v244
    %v1911 = vpop.f32.mrb[0].mxu0
    %v1912 = vadd.f32 0.0, %v1911
    %v1913 = vpop.f32.mrb[0].mxu0
    %v1914 = vadd.f32 0.0, %v1913
    %1915 = vdwg.mxu0
    %1916 = vmatprep.subr.mxu0 %v1727
    %1917 = vmatpush1.msra.mxu0 %v1726
    %1918 = vmatprep.subr.mxu0 %v1735
    %1919 = vmatpush1.msra.mxu0 %v1734
    %1920 = vmatprep.subr.mxu0 0.0
    %1921 = vmatpush1.msra.mxu0 0.0
    %1922 = vmatprep.subr.mxu0 0.0
    %1923 = vmatpush1.msra.mxu0 0.0
    %1924 = vmatprep.subr.mxu0 0.0
    %1925 = vmatpush1.msra.mxu0 0.0
    %1926 = vmatprep.subr.mxu0 0.0
    %1927 = vmatpush1.msra.mxu0 0.0
    %1928 = vmatprep.subr.mxu0 0.0
    %1929 = vmatpush1.msra.mxu0 0.0
    %1930 = vmatprep.subr.mxu0 0.0
    %1931 = vmatpush1.msra.mxu0 0.0
    %1932 = vmatprep.subr.mxu0 0.0
    %1933 = vmatpush1.msra.mxu0 0.0
    %1934 = vmatprep.subr.mxu0 0.0
    %1935 = vmatpush1.msra.mxu0 0.0
    %1936 = vmatprep.subr.mxu0 0.0
    %1937 = vmatpush1.msra.mxu0 0.0
    %1938 = vmatprep.subr.mxu0 0.0
    %1939 = vmatpush1.msra.mxu0 0.0
    %1940 = vmatprep.subr.mxu0 0.0
    %1941 = vmatpush1.msra.mxu0 0.0
    %1942 = vmatprep.subr.mxu0 0.0
    %1943 = vmatpush1.msra.mxu0 0.0
    %1944 = vmatprep.subr.mxu0 0.0
    %1945 = vmatpush1.msra.mxu0 0.0
    %1946 = vmatprep.subr.mxu0 0.0
    %1947 = vmatpush1.msra.mxu0 0.0
    %1948 = vmatprep.subr.mxu0 0.0
    %1949 = vmatpush1.msra.mxu0 0.0
    %1950 = vmatprep.subr.mxu0 0.0
    %1951 = vmatpush1.msra.mxu0 0.0
    %1952 = vmatprep.subr.mxu0 0.0
    %1953 = vmatpush1.msra.mxu0 0.0
    %1954 = vmatprep.subr.mxu0 0.0
    %1955 = vmatpush1.msra.mxu0 0.0
    %1956 = vmatprep.subr.mxu0 0.0
    %1957 = vmatpush1.msra.mxu0 0.0
    %1958 = vmatprep.subr.mxu0 0.0
    %1959 = vmatpush1.msra.mxu0 0.0
    %1960 = vmatprep.subr.mxu0 0.0
    %1961 = vmatpush1.msra.mxu0 0.0
    %1962 = vmatprep.subr.mxu0 0.0
    %1963 = vmatpush1.msra.mxu0 0.0
    %1964 = vmatprep.subr.mxu0 0.0
    %1965 = vmatpush1.msra.mxu0 0.0
    %1966 = vmatprep.subr.mxu0 0.0
    %1967 = vmatpush1.msra.mxu0 0.0
    %1968 = vmatprep.subr.mxu0 0.0
    %1969 = vmatpush1.msra.mxu0 0.0
    %1970 = vmatprep.subr.mxu0 0.0
    %1971 = vmatpush1.msra.mxu0 0.0
    %1972 = vmatprep.subr.mxu0 0.0
    %1973 = vmatpush1.msra.mxu0 0.0
    %1974 = vmatprep.subr.mxu0 0.0
    %1975 = vmatpush1.msra.mxu0 0.0
    %1976 = vmatprep.subr.mxu0 0.0
    %1977 = vmatpush1.msra.mxu0 0.0
    %1978 = vmatprep.subr.mxu0 0.0
    %1979 = vmatpush1.msra.mxu0 0.0
    %1980 = vmatprep.mubr.f32.mxu0 0.0
    %1981 = vmatmul.mubr.f32.gmra.mrb[0].mxu0 %v235
    %v1982 = vpop.f32.mrb[0].mxu0
    %v1983 = vadd.f32 0.0, %v1982
    %v1984 = vpop.f32.mrb[0].mxu0
    %v1985 = vadd.f32 0.0, %v1984
    %1986 = vmatprep.mubr.f32.mxu0 0.0
    %1987 = vmatmul.mubr.f32.gmra.mrb[0].mxu0 %v238
    %v1988 = vpop.f32.mrb[0].mxu0
    %v1989 = vadd.f32 0.0, %v1988
    %v1990 = vpop.f32.mrb[0].mxu0
    %v1991 = vadd.f32 0.0, %v1990
    %1992 = vmatprep.mubr.f32.mxu0 0.0
    %1993 = vmatmul.mubr.f32.gmra.mrb[0].mxu0 %v241
    %v1994 = vpop.f32.mrb[0].mxu0
    %v1995 = vadd.f32 0.0, %v1994
    %v1996 = vpop.f32.mrb[0].mxu0
    %v1997 = vadd.f32 0.0, %v1996
    %1998 = vmatprep.mubr.f32.mxu0 0.0
    %1999 = vmatmul.mubr.f32.gmra.mrb[0].mxu0 %v244
    %v2000 = vpop.f32.mrb[0].mxu0
    %v2001 = vadd.f32 0.0, %v2000
    %v2002 = vpop.f32.mrb[0].mxu0
    %v2003 = vadd.f32 0.0, %v2002
    %2004 = vdwg.mxu0
    %2005 = vmatprep.subr.mxu0 %v1729
    %2006 = vmatpush1.msra.mxu0 %v1728
    %2007 = vmatprep.subr.mxu0 %v1737
    %2008 = vmatpush1.msra.mxu0 %v1736
    %2009 = vmatprep.subr.mxu0 0.0
    %2010 = vmatpush1.msra.mxu0 0.0
    %2011 = vmatprep.subr.mxu0 0.0
    %2012 = vmatpush1.msra.mxu0 0.0
    %2013 = vmatprep.subr.mxu0 0.0
    %2014 = vmatpush1.msra.mxu0 0.0
    %2015 = vmatprep.subr.mxu0 0.0
    %2016 = vmatpush1.msra.mxu0 0.0
    %2017 = vmatprep.subr.mxu0 0.0
    %2018 = vmatpush1.msra.mxu0 0.0
    %2019 = vmatprep.subr.mxu0 0.0
    %2020 = vmatpush1.msra.mxu0 0.0
    %2021 = vmatprep.subr.mxu0 0.0
    %2022 = vmatpush1.msra.mxu0 0.0
    %2023 = vmatprep.subr.mxu0 0.0
    %2024 = vmatpush1.msra.mxu0 0.0
    %2025 = vmatprep.subr.mxu0 0.0
    %2026 = vmatpush1.msra.mxu0 0.0
    %2027 = vmatprep.subr.mxu0 0.0
    %2028 = vmatpush1.msra.mxu0 0.0
    %2029 = vmatprep.subr.mxu0 0.0
    %2030 = vmatpush1.msra.mxu0 0.0
    %2031 = vmatprep.subr.mxu0 0.0
    %2032 = vmatpush1.msra.mxu0 0.0
    %2033 = vmatprep.subr.mxu0 0.0
    %2034 = vmatpush1.msra.mxu0 0.0
    %2035 = vmatprep.subr.mxu0 0.0
    %2036 = vmatpush1.msra.mxu0 0.0
    %2037 = vmatprep.subr.mxu0 0.0
    %2038 = vmatpush1.msra.mxu0 0.0
    %2039 = vmatprep.subr.mxu0 0.0
    %2040 = vmatpush1.msra.mxu0 0.0
    %2041 = vmatprep.subr.mxu0 0.0
    %2042 = vmatpush1.msra.mxu0 0.0
    %2043 = vmatprep.subr.mxu0 0.0
    %2044 = vmatpush1.msra.mxu0 0.0
    %2045 = vmatprep.subr.mxu0 0.0
    %2046 = vmatpush1.msra.mxu0 0.0
    %2047 = vmatprep.subr.mxu0 0.0
    %2048 = vmatpush1.msra.mxu0 0.0
    %2049 = vmatprep.subr.mxu0 0.0
    %2050 = vmatpush1.msra.mxu0 0.0
    %2051 = vmatprep.subr.mxu0 0.0
    %2052 = vmatpush1.msra.mxu0 0.0
    %2053 = vmatprep.subr.mxu0 0.0
    %2054 = vmatpush1.msra.mxu0 0.0
    %2055 = vmatprep.subr.mxu0 0.0
    %2056 = vmatpush1.msra.mxu0 0.0
    %2057 = vmatprep.subr.mxu0 0.0
    %2058 = vmatpush1.msra.mxu0 0.0
    %2059 = vmatprep.subr.mxu0 0.0
    %2060 = vmatpush1.msra.mxu0 0.0
    %2061 = vmatprep.subr.mxu0 0.0
    %2062 = vmatpush1.msra.mxu0 0.0
    %2063 = vmatprep.subr.mxu0 0.0
    %2064 = vmatpush1.msra.mxu0 0.0
    %2065 = vmatprep.subr.mxu0 0.0
    %2066 = vmatpush1.msra.mxu0 0.0
    %2067 = vmatprep.subr.mxu0 0.0
    %2068 = vmatpush1.msra.mxu0 0.0
    %2069 = vmatprep.mubr.f32.mxu0 0.0
    %2070 = vmatmul.mubr.f32.gmra.mrb[0].mxu0 %v235
    %v2071 = vpop.f32.mrb[0].mxu0
    %v2072 = vadd.f32 0.0, %v2071
    %v2073 = vpop.f32.mrb[0].mxu0
    %v2074 = vadd.f32 0.0, %v2073
    %2075 = vmatprep.mubr.f32.mxu0 0.0
    %2076 = vmatmul.mubr.f32.gmra.mrb[0].mxu0 %v238
    %v2077 = vpop.f32.mrb[0].mxu0
    %v2078 = vadd.f32 0.0, %v2077
    %v2079 = vpop.f32.mrb[0].mxu0
    %v2080 = vadd.f32 0.0, %v2079
    %2081 = vmatprep.mubr.f32.mxu0 0.0
    %2082 = vmatmul.mubr.f32.gmra.mrb[0].mxu0 %v241
    %v2083 = vpop.f32.mrb[0].mxu0
    %v2084 = vadd.f32 0.0, %v2083
    %v2085 = vpop.f32.mrb[0].mxu0
    %v2086 = vadd.f32 0.0, %v2085
    %2087 = vmatprep.mubr.f32.mxu0 0.0
    %2088 = vmatmul.mubr.f32.gmra.mrb[0].mxu0 %v244
    %v2089 = vpop.f32.mrb[0].mxu0
    %v2090 = vadd.f32 0.0, %v2089
    %v2091 = vpop.f32.mrb[0].mxu0
    %v2092 = vadd.f32 0.0, %v2091
    %2093 = vdwg.mxu0
    %s2094 = scalar_lea.vmem %s1, 64
    %v2095 = vld [vmem:[%s2094] sm:$0xff]
    %v2096 = vld [vmem:[%s2094 + $0x8] sm:$0xff]
    %v2097 = vld [vmem:[%s2094 + $0x10] sm:$0xff]
    %v2098 = vld [vmem:[%s2094 + $0x18] sm:$0xff]
    %v2100 = vsel %vm984, %v2095, 0
    %v2103 = vsel %vm984, %v2096, 0
    %v2106 = vsel %vm984, %v2097, 0
    %v2109 = vsel %vm984, %v2098, 0
    %2111 = vmatprep.subr.mxu0 %v1807
    %2112 = vmatpush1.msra.mxu0 %v1805
    %2113 = vmatprep.subr.mxu0 %v1813
    %2114 = vmatpush1.msra.mxu0 %v1811
    %2115 = vmatprep.subr.mxu0 %v1819
    %2116 = vmatpush1.msra.mxu0 %v1817
    %2117 = vmatprep.subr.mxu0 %v1825
    %2118 = vmatpush1.msra.mxu0 %v1823
    %2119 = vmatprep.subr.mxu0 0.0
    %2120 = vmatpush1.msra.mxu0 0.0
    %2121 = vmatprep.subr.mxu0 0.0
    %2122 = vmatpush1.msra.mxu0 0.0
    %2123 = vmatprep.subr.mxu0 0.0
    %2124 = vmatpush1.msra.mxu0 0.0
    %2125 = vmatprep.subr.mxu0 0.0
    %2126 = vmatpush1.msra.mxu0 0.0
    %2127 = vmatprep.subr.mxu0 0.0
    %2128 = vmatpush1.msra.mxu0 0.0
    %2129 = vmatprep.subr.mxu0 0.0
    %2130 = vmatpush1.msra.mxu0 0.0
    %2131 = vmatprep.subr.mxu0 0.0
    %2132 = vmatpush1.msra.mxu0 0.0
    %2133 = vmatprep.subr.mxu0 0.0
    %2134 = vmatpush1.msra.mxu0 0.0
    %2135 = vmatprep.subr.mxu0 0.0
    %2136 = vmatpush1.msra.mxu0 0.0
    %2137 = vmatprep.subr.mxu0 0.0
    %2138 = vmatpush1.msra.mxu0 0.0
    %2139 = vmatprep.subr.mxu0 0.0
    %2140 = vmatpush1.msra.mxu0 0.0
    %2141 = vmatprep.subr.mxu0 0.0
    %2142 = vmatpush1.msra.mxu0 0.0
    %2143 = vmatprep.subr.mxu0 0.0
    %2144 = vmatpush1.msra.mxu0 0.0
    %2145 = vmatprep.subr.mxu0 0.0
    %2146 = vmatpush1.msra.mxu0 0.0
    %2147 = vmatprep.subr.mxu0 0.0
    %2148 = vmatpush1.msra.mxu0 0.0
    %2149 = vmatprep.subr.mxu0 0.0
    %2150 = vmatpush1.msra.mxu0 0.0
    %2151 = vmatprep.subr.mxu0 0.0
    %2152 = vmatpush1.msra.mxu0 0.0
    %2153 = vmatprep.subr.mxu0 0.0
    %2154 = vmatpush1.msra.mxu0 0.0
    %2155 = vmatprep.subr.mxu0 0.0
    %2156 = vmatpush1.msra.mxu0 0.0
    %2157 = vmatprep.subr.mxu0 0.0
    %2158 = vmatpush1.msra.mxu0 0.0
    %2159 = vmatprep.subr.mxu0 0.0
    %2160 = vmatpush1.msra.mxu0 0.0
    %2161 = vmatprep.subr.mxu0 0.0
    %2162 = vmatpush1.msra.mxu0 0.0
    %2163 = vmatprep.subr.mxu0 0.0
    %2164 = vmatpush1.msra.mxu0 0.0
    %2165 = vmatprep.subr.mxu0 0.0
    %2166 = vmatpush1.msra.mxu0 0.0
    %2167 = vmatprep.subr.mxu0 0.0
    %2168 = vmatpush1.msra.mxu0 0.0
    %2169 = vmatprep.subr.mxu0 0.0
    %2170 = vmatpush1.msra.mxu0 0.0
    %2171 = vmatprep.subr.mxu0 0.0
    %2172 = vmatpush1.msra.mxu0 0.0
    %2173 = vmatprep.subr.mxu0 0.0
    %2174 = vmatpush1.msra.mxu0 0.0
    %2175 = vmatprep.mubr.f32.mxu0 0.0
    %2176 = vmatmul.mubr.f32.gmra.mrb[0].mxu0 %v2100
    %v2177 = vpop.f32.mrb[0].mxu0
    %v2178 = vadd.f32 0.0, %v2177
    %v2179 = vpop.f32.mrb[0].mxu0
    %v2180 = vadd.f32 0.0, %v2179
    %2181 = vmatprep.mubr.f32.mxu0 0.0
    %2182 = vmatmul.mubr.f32.gmra.mrb[0].mxu0 %v2103
    %v2183 = vpop.f32.mrb[0].mxu0
    %v2184 = vadd.f32 0.0, %v2183
    %v2185 = vpop.f32.mrb[0].mxu0
    %v2186 = vadd.f32 0.0, %v2185
    %2187 = vmatprep.mubr.f32.mxu0 0.0
    %2188 = vmatmul.mubr.f32.gmra.mrb[0].mxu0 %v2106
    %v2189 = vpop.f32.mrb[0].mxu0
    %v2190 = vadd.f32 0.0, %v2189
    %v2191 = vpop.f32.mrb[0].mxu0
    %v2192 = vadd.f32 0.0, %v2191
    %2193 = vmatprep.mubr.f32.mxu0 0.0
    %2194 = vmatmul.mubr.f32.gmra.mrb[0].mxu0 %v2109
    %v2195 = vpop.f32.mrb[0].mxu0
    %v2196 = vadd.f32 0.0, %v2195
    %v2197 = vpop.f32.mrb[0].mxu0
    %v2198 = vadd.f32 0.0, %v2197
    %2199 = vdwg.mxu0
    %2200 = vmatprep.subr.mxu0 %v1896
    %2201 = vmatpush1.msra.mxu0 %v1894
    %2202 = vmatprep.subr.mxu0 %v1902
    %2203 = vmatpush1.msra.mxu0 %v1900
    %2204 = vmatprep.subr.mxu0 %v1908
    %2205 = vmatpush1.msra.mxu0 %v1906
    %2206 = vmatprep.subr.mxu0 %v1914
    %2207 = vmatpush1.msra.mxu0 %v1912
    %2208 = vmatprep.subr.mxu0 0.0
    %2209 = vmatpush1.msra.mxu0 0.0
    %2210 = vmatprep.subr.mxu0 0.0
    %2211 = vmatpush1.msra.mxu0 0.0
    %2212 = vmatprep.subr.mxu0 0.0
    %2213 = vmatpush1.msra.mxu0 0.0
    %2214 = vmatprep.subr.mxu0 0.0
    %2215 = vmatpush1.msra.mxu0 0.0
    %2216 = vmatprep.subr.mxu0 0.0
    %2217 = vmatpush1.msra.mxu0 0.0
    %2218 = vmatprep.subr.mxu0 0.0
    %2219 = vmatpush1.msra.mxu0 0.0
    %2220 = vmatprep.subr.mxu0 0.0
    %2221 = vmatpush1.msra.mxu0 0.0
    %2222 = vmatprep.subr.mxu0 0.0
    %2223 = vmatpush1.msra.mxu0 0.0
    %2224 = vmatprep.subr.mxu0 0.0
    %2225 = vmatpush1.msra.mxu0 0.0
    %2226 = vmatprep.subr.mxu0 0.0
    %2227 = vmatpush1.msra.mxu0 0.0
    %2228 = vmatprep.subr.mxu0 0.0
    %2229 = vmatpush1.msra.mxu0 0.0
    %2230 = vmatprep.subr.mxu0 0.0
    %2231 = vmatpush1.msra.mxu0 0.0
    %2232 = vmatprep.subr.mxu0 0.0
    %2233 = vmatpush1.msra.mxu0 0.0
    %2234 = vmatprep.subr.mxu0 0.0
    %2235 = vmatpush1.msra.mxu0 0.0
    %2236 = vmatprep.subr.mxu0 0.0
    %2237 = vmatpush1.msra.mxu0 0.0
    %2238 = vmatprep.subr.mxu0 0.0
    %2239 = vmatpush1.msra.mxu0 0.0
    %2240 = vmatprep.subr.mxu0 0.0
    %2241 = vmatpush1.msra.mxu0 0.0
    %2242 = vmatprep.subr.mxu0 0.0
    %2243 = vmatpush1.msra.mxu0 0.0
    %2244 = vmatprep.subr.mxu0 0.0
    %2245 = vmatpush1.msra.mxu0 0.0
    %2246 = vmatprep.subr.mxu0 0.0
    %2247 = vmatpush1.msra.mxu0 0.0
    %2248 = vmatprep.subr.mxu0 0.0
    %2249 = vmatpush1.msra.mxu0 0.0
    %2250 = vmatprep.subr.mxu0 0.0
    %2251 = vmatpush1.msra.mxu0 0.0
    %2252 = vmatprep.subr.mxu0 0.0
    %2253 = vmatpush1.msra.mxu0 0.0
    %2254 = vmatprep.subr.mxu0 0.0
    %2255 = vmatpush1.msra.mxu0 0.0
    %2256 = vmatprep.subr.mxu0 0.0
    %2257 = vmatpush1.msra.mxu0 0.0
    %2258 = vmatprep.subr.mxu0 0.0
    %2259 = vmatpush1.msra.mxu0 0.0
    %2260 = vmatprep.subr.mxu0 0.0
    %2261 = vmatpush1.msra.mxu0 0.0
    %2262 = vmatprep.subr.mxu0 0.0
    %2263 = vmatpush1.msra.mxu0 0.0
    %2264 = vmatprep.mubr.f32.mxu0 0.0
    %2265 = vmatmul.mubr.f32.gmra.mrb[0].mxu0 %v2100
    %v2266 = vpop.f32.mrb[0].mxu0
    %v2267 = vadd.f32 0.0, %v2266
    %v2268 = vpop.f32.mrb[0].mxu0
    %v2269 = vadd.f32 0.0, %v2268
    %2270 = vmatprep.mubr.f32.mxu0 0.0
    %2271 = vmatmul.mubr.f32.gmra.mrb[0].mxu0 %v2103
    %v2272 = vpop.f32.mrb[0].mxu0
    %v2273 = vadd.f32 0.0, %v2272
    %v2274 = vpop.f32.mrb[0].mxu0
    %v2275 = vadd.f32 0.0, %v2274
    %2276 = vmatprep.mubr.f32.mxu0 0.0
    %2277 = vmatmul.mubr.f32.gmra.mrb[0].mxu0 %v2106
    %v2278 = vpop.f32.mrb[0].mxu0
    %v2279 = vadd.f32 0.0, %v2278
    %v2280 = vpop.f32.mrb[0].mxu0
    %v2281 = vadd.f32 0.0, %v2280
    %2282 = vmatprep.mubr.f32.mxu0 0.0
    %2283 = vmatmul.mubr.f32.gmra.mrb[0].mxu0 %v2109
    %v2284 = vpop.f32.mrb[0].mxu0
    %v2285 = vadd.f32 0.0, %v2284
    %v2286 = vpop.f32.mrb[0].mxu0
    %v2287 = vadd.f32 0.0, %v2286
    %2288 = vdwg.mxu0
    %2289 = vmatprep.subr.mxu0 %v1985
    %2290 = vmatpush1.msra.mxu0 %v1983
    %2291 = vmatprep.subr.mxu0 %v1991
    %2292 = vmatpush1.msra.mxu0 %v1989
    %2293 = vmatprep.subr.mxu0 %v1997
    %2294 = vmatpush1.msra.mxu0 %v1995
    %2295 = vmatprep.subr.mxu0 %v2003
    %2296 = vmatpush1.msra.mxu0 %v2001
    %2297 = vmatprep.subr.mxu0 0.0
    %2298 = vmatpush1.msra.mxu0 0.0
    %2299 = vmatprep.subr.mxu0 0.0
    %2300 = vmatpush1.msra.mxu0 0.0
    %2301 = vmatprep.subr.mxu0 0.0
    %2302 = vmatpush1.msra.mxu0 0.0
    %2303 = vmatprep.subr.mxu0 0.0
    %2304 = vmatpush1.msra.mxu0 0.0
    %2305 = vmatprep.subr.mxu0 0.0
    %2306 = vmatpush1.msra.mxu0 0.0
    %2307 = vmatprep.subr.mxu0 0.0
    %2308 = vmatpush1.msra.mxu0 0.0
    %2309 = vmatprep.subr.mxu0 0.0
    %2310 = vmatpush1.msra.mxu0 0.0
    %2311 = vmatprep.subr.mxu0 0.0
    %2312 = vmatpush1.msra.mxu0 0.0
    %2313 = vmatprep.subr.mxu0 0.0
    %2314 = vmatpush1.msra.mxu0 0.0
    %2315 = vmatprep.subr.mxu0 0.0
    %2316 = vmatpush1.msra.mxu0 0.0
    %2317 = vmatprep.subr.mxu0 0.0
    %2318 = vmatpush1.msra.mxu0 0.0
    %2319 = vmatprep.subr.mxu0 0.0
    %2320 = vmatpush1.msra.mxu0 0.0
    %2321 = vmatprep.subr.mxu0 0.0
    %2322 = vmatpush1.msra.mxu0 0.0
    %2323 = vmatprep.subr.mxu0 0.0
    %2324 = vmatpush1.msra.mxu0 0.0
    %2325 = vmatprep.subr.mxu0 0.0
    %2326 = vmatpush1.msra.mxu0 0.0
    %2327 = vmatprep.subr.mxu0 0.0
    %2328 = vmatpush1.msra.mxu0 0.0
    %2329 = vmatprep.subr.mxu0 0.0
    %2330 = vmatpush1.msra.mxu0 0.0
    %2331 = vmatprep.subr.mxu0 0.0
    %2332 = vmatpush1.msra.mxu0 0.0
    %2333 = vmatprep.subr.mxu0 0.0
    %2334 = vmatpush1.msra.mxu0 0.0
    %2335 = vmatprep.subr.mxu0 0.0
    %2336 = vmatpush1.msra.mxu0 0.0
    %2337 = vmatprep.subr.mxu0 0.0
    %2338 = vmatpush1.msra.mxu0 0.0
    %2339 = vmatprep.subr.mxu0 0.0
    %2340 = vmatpush1.msra.mxu0 0.0
    %2341 = vmatprep.subr.mxu0 0.0
    %2342 = vmatpush1.msra.mxu0 0.0
    %2343 = vmatprep.subr.mxu0 0.0
    %2344 = vmatpush1.msra.mxu0 0.0
    %2345 = vmatprep.subr.mxu0 0.0
    %2346 = vmatpush1.msra.mxu0 0.0
    %2347 = vmatprep.subr.mxu0 0.0
    %2348 = vmatpush1.msra.mxu0 0.0
    %2349 = vmatprep.subr.mxu0 0.0
    %2350 = vmatpush1.msra.mxu0 0.0
    %2351 = vmatprep.subr.mxu0 0.0
    %2352 = vmatpush1.msra.mxu0 0.0
    %2353 = vmatprep.mubr.f32.mxu0 0.0
    %2354 = vmatmul.mubr.f32.gmra.mrb[0].mxu0 %v2100
    %v2355 = vpop.f32.mrb[0].mxu0
    %v2356 = vadd.f32 0.0, %v2355
    %v2357 = vpop.f32.mrb[0].mxu0
    %v2358 = vadd.f32 0.0, %v2357
    %2359 = vmatprep.mubr.f32.mxu0 0.0
    %2360 = vmatmul.mubr.f32.gmra.mrb[0].mxu0 %v2103
    %v2361 = vpop.f32.mrb[0].mxu0
    %v2362 = vadd.f32 0.0, %v2361
    %v2363 = vpop.f32.mrb[0].mxu0
    %v2364 = vadd.f32 0.0, %v2363
    %2365 = vmatprep.mubr.f32.mxu0 0.0
    %2366 = vmatmul.mubr.f32.gmra.mrb[0].mxu0 %v2106
    %v2367 = vpop.f32.mrb[0].mxu0
    %v2368 = vadd.f32 0.0, %v2367
    %v2369 = vpop.f32.mrb[0].mxu0
    %v2370 = vadd.f32 0.0, %v2369
    %2371 = vmatprep.mubr.f32.mxu0 0.0
    %2372 = vmatmul.mubr.f32.gmra.mrb[0].mxu0 %v2109
    %v2373 = vpop.f32.mrb[0].mxu0
    %v2374 = vadd.f32 0.0, %v2373
    %v2375 = vpop.f32.mrb[0].mxu0
    %v2376 = vadd.f32 0.0, %v2375
    %2377 = vdwg.mxu0
    %2378 = vmatprep.subr.mxu0 %v2074
    %2379 = vmatpush1.msra.mxu0 %v2072
    %2380 = vmatprep.subr.mxu0 %v2080
    %2381 = vmatpush1.msra.mxu0 %v2078
    %2382 = vmatprep.subr.mxu0 %v2086
    %2383 = vmatpush1.msra.mxu0 %v2084
    %2384 = vmatprep.subr.mxu0 %v2092
    %2385 = vmatpush1.msra.mxu0 %v2090
    %2386 = vmatprep.subr.mxu0 0.0
    %2387 = vmatpush1.msra.mxu0 0.0
    %2388 = vmatprep.subr.mxu0 0.0
    %2389 = vmatpush1.msra.mxu0 0.0
    %2390 = vmatprep.subr.mxu0 0.0
    %2391 = vmatpush1.msra.mxu0 0.0
    %2392 = vmatprep.subr.mxu0 0.0
    %2393 = vmatpush1.msra.mxu0 0.0
    %2394 = vmatprep.subr.mxu0 0.0
    %2395 = vmatpush1.msra.mxu0 0.0
    %2396 = vmatprep.subr.mxu0 0.0
    %2397 = vmatpush1.msra.mxu0 0.0
    %2398 = vmatprep.subr.mxu0 0.0
    %2399 = vmatpush1.msra.mxu0 0.0
    %2400 = vmatprep.subr.mxu0 0.0
    %2401 = vmatpush1.msra.mxu0 0.0
    %2402 = vmatprep.subr.mxu0 0.0
    %2403 = vmatpush1.msra.mxu0 0.0
    %2404 = vmatprep.subr.mxu0 0.0
    %2405 = vmatpush1.msra.mxu0 0.0
    %2406 = vmatprep.subr.mxu0 0.0
    %2407 = vmatpush1.msra.mxu0 0.0
    %2408 = vmatprep.subr.mxu0 0.0
    %2409 = vmatpush1.msra.mxu0 0.0
    %2410 = vmatprep.subr.mxu0 0.0
    %2411 = vmatpush1.msra.mxu0 0.0
    %2412 = vmatprep.subr.mxu0 0.0
    %2413 = vmatpush1.msra.mxu0 0.0
    %2414 = vmatprep.subr.mxu0 0.0
    %2415 = vmatpush1.msra.mxu0 0.0
    %2416 = vmatprep.subr.mxu0 0.0
    %2417 = vmatpush1.msra.mxu0 0.0
    %2418 = vmatprep.subr.mxu0 0.0
    %2419 = vmatpush1.msra.mxu0 0.0
    %2420 = vmatprep.subr.mxu0 0.0
    %2421 = vmatpush1.msra.mxu0 0.0
    %2422 = vmatprep.subr.mxu0 0.0
    %2423 = vmatpush1.msra.mxu0 0.0
    %2424 = vmatprep.subr.mxu0 0.0
    %2425 = vmatpush1.msra.mxu0 0.0
    %2426 = vmatprep.subr.mxu0 0.0
    %2427 = vmatpush1.msra.mxu0 0.0
    %2428 = vmatprep.subr.mxu0 0.0
    %2429 = vmatpush1.msra.mxu0 0.0
    %2430 = vmatprep.subr.mxu0 0.0
    %2431 = vmatpush1.msra.mxu0 0.0
    %2432 = vmatprep.subr.mxu0 0.0
    %2433 = vmatpush1.msra.mxu0 0.0
    %2434 = vmatprep.subr.mxu0 0.0
    %2435 = vmatpush1.msra.mxu0 0.0
    %2436 = vmatprep.subr.mxu0 0.0
    %2437 = vmatpush1.msra.mxu0 0.0
    %2438 = vmatprep.subr.mxu0 0.0
    %2439 = vmatpush1.msra.mxu0 0.0
    %2440 = vmatprep.subr.mxu0 0.0
    %2441 = vmatpush1.msra.mxu0 0.0
    %2442 = vmatprep.mubr.f32.mxu0 0.0
    %2443 = vmatmul.mubr.f32.gmra.mrb[0].mxu0 %v2100
    %v2444 = vpop.f32.mrb[0].mxu0
    %v2445 = vadd.f32 0.0, %v2444
    %v2446 = vpop.f32.mrb[0].mxu0
    %v2447 = vadd.f32 0.0, %v2446
    %2448 = vmatprep.mubr.f32.mxu0 0.0
    %2449 = vmatmul.mubr.f32.gmra.mrb[0].mxu0 %v2103
    %v2450 = vpop.f32.mrb[0].mxu0
    %v2451 = vadd.f32 0.0, %v2450
    %v2452 = vpop.f32.mrb[0].mxu0
    %v2453 = vadd.f32 0.0, %v2452
    %2454 = vmatprep.mubr.f32.mxu0 0.0
    %2455 = vmatmul.mubr.f32.gmra.mrb[0].mxu0 %v2106
    %v2456 = vpop.f32.mrb[0].mxu0
    %v2457 = vadd.f32 0.0, %v2456
    %v2458 = vpop.f32.mrb[0].mxu0
    %v2459 = vadd.f32 0.0, %v2458
    %2460 = vmatprep.mubr.f32.mxu0 0.0
    %2461 = vmatmul.mubr.f32.gmra.mrb[0].mxu0 %v2109
    %v2462 = vpop.f32.mrb[0].mxu0
    %v2463 = vadd.f32 0.0, %v2462
    %v2464 = vpop.f32.mrb[0].mxu0
    %v2465 = vadd.f32 0.0, %v2464
    %2466 = vdwg.mxu0
    %v2467 = vadd.f32 %v1432, %v2178
    %v2468 = vadd.f32 %v1434, %v2180
    %v2469 = vadd.f32 %v1521, %v2267
    %v2470 = vadd.f32 %v1523, %v2269
    %v2471 = vadd.f32 %v1610, %v2356
    %v2472 = vadd.f32 %v1612, %v2358
    %v2473 = vadd.f32 %v1699, %v2445
    %v2474 = vadd.f32 %v1701, %v2447
    %v2475 = vadd.f32 %v1438, %v2184
    %v2476 = vadd.f32 %v1440, %v2186
    %v2477 = vadd.f32 %v1527, %v2273
    %v2478 = vadd.f32 %v1529, %v2275
    %v2479 = vadd.f32 %v1616, %v2362
    %v2480 = vadd.f32 %v1618, %v2364
    %v2481 = vadd.f32 %v1705, %v2451
    %v2482 = vadd.f32 %v1707, %v2453
    %v2483 = vadd.f32 %v1444, %v2190
    %v2484 = vadd.f32 %v1446, %v2192
    %v2485 = vadd.f32 %v1533, %v2279
    %v2486 = vadd.f32 %v1535, %v2281
    %v2487 = vadd.f32 %v1622, %v2368
    %v2488 = vadd.f32 %v1624, %v2370
    %v2489 = vadd.f32 %v1711, %v2457
    %v2490 = vadd.f32 %v1713, %v2459
    %v2491 = vadd.f32 %v1450, %v2196
    %v2492 = vadd.f32 %v1452, %v2198
    %v2493 = vadd.f32 %v1539, %v2285
    %v2494 = vadd.f32 %v1541, %v2287
    %v2495 = vadd.f32 %v1628, %v2374
    %v2496 = vadd.f32 %v1630, %v2376
    %v2497 = vadd.f32 %v1717, %v2463
    %v2498 = vadd.f32 %v1719, %v2465
    %v2499 = vld [vmem:[#allocation5] sm:$0xff]
    %v2501 = vlaneseq
    %v2502 = vshrl.u32 %v2501, 7
    %v2503 = vsub.s32 0, %v2502
    %v2504 = vrot.slane %v2499, %v2503
    %v2505 = vlaneseq
    %v2506 = vshrl.u32 %v2505, 7
    %v2507 = vsub.s32 1, %v2506
    %v2508 = vrot.slane %v2499, %v2507
    %v2509 = vlaneseq
    %v2510 = vshrl.u32 %v2509, 7
    %v2511 = vsub.s32 2, %v2510
    %v2512 = vrot.slane %v2499, %v2511
    %v2513 = vlaneseq
    %v2514 = vshrl.u32 %v2513, 7
    %v2515 = vsub.s32 3, %v2514
    %v2516 = vrot.slane %v2499, %v2515
    %v2517 = vlaneseq
    %v2518 = vshrl.u32 %v2517, 7
    %v2519 = vsub.s32 4, %v2518
    %v2520 = vrot.slane %v2499, %v2519
    %v2521 = vlaneseq
    %v2522 = vshrl.u32 %v2521, 7
    %v2523 = vsub.s32 5, %v2522
    %v2524 = vrot.slane %v2499, %v2523
    %v2525 = vlaneseq
    %v2526 = vshrl.u32 %v2525, 7
    %v2527 = vsub.s32 6, %v2526
    %v2528 = vrot.slane %v2499, %v2527
    %v2529 = vlaneseq
    %v2530 = vshrl.u32 %v2529, 7
    %v2531 = vsub.s32 7, %v2530
    %v2532 = vrot.slane %v2499, %v2531
    %v2541 = vadd.f32 %v2467, %v2504
    %v2542 = vadd.f32 %v2468, %v2508
    %v2543 = vadd.f32 %v2469, %v2512
    %v2544 = vadd.f32 %v2470, %v2516
    %v2545 = vadd.f32 %v2471, %v2520
    %v2546 = vadd.f32 %v2472, %v2524
    %v2547 = vadd.f32 %v2473, %v2528
    %v2548 = vadd.f32 %v2474, %v2532
    %v2549 = vadd.f32 %v2475, %v2504
    %v2550 = vadd.f32 %v2476, %v2508
    %v2551 = vadd.f32 %v2477, %v2512
    %v2552 = vadd.f32 %v2478, %v2516
    %v2553 = vadd.f32 %v2479, %v2520
    %v2554 = vadd.f32 %v2480, %v2524
    %v2555 = vadd.f32 %v2481, %v2528
    %v2556 = vadd.f32 %v2482, %v2532
    %v2557 = vadd.f32 %v2483, %v2504
    %v2558 = vadd.f32 %v2484, %v2508
    %v2559 = vadd.f32 %v2485, %v2512
    %v2560 = vadd.f32 %v2486, %v2516
    %v2561 = vadd.f32 %v2487, %v2520
    %v2562 = vadd.f32 %v2488, %v2524
    %v2563 = vadd.f32 %v2489, %v2528
    %v2564 = vadd.f32 %v2490, %v2532
    %v2565 = vadd.f32 %v2491, %v2504
    %v2566 = vadd.f32 %v2492, %v2508
    %v2567 = vadd.f32 %v2493, %v2512
    %v2568 = vadd.f32 %v2494, %v2516
    %v2569 = vadd.f32 %v2495, %v2520
    %v2570 = vadd.f32 %v2496, %v2524
    %v2571 = vadd.f32 %v2497, %v2528
    %v2572 = vadd.f32 %v2498, %v2532
    %v2573 = vmax.f32 %v2541, 0.0
    %v2574 = vmax.f32 %v2542, 0.0
    %v2575 = vmax.f32 %v2543, 0.0
    %v2576 = vmax.f32 %v2544, 0.0
    %v2577 = vmax.f32 %v2545, 0.0
    %v2578 = vmax.f32 %v2546, 0.0
    %v2579 = vmax.f32 %v2547, 0.0
    %v2580 = vmax.f32 %v2548, 0.0
    %v2581 = vmax.f32 %v2549, 0.0
    %v2582 = vmax.f32 %v2550, 0.0
    %v2583 = vmax.f32 %v2551, 0.0
    %v2584 = vmax.f32 %v2552, 0.0
    %v2585 = vmax.f32 %v2553, 0.0
    %v2586 = vmax.f32 %v2554, 0.0
    %v2587 = vmax.f32 %v2555, 0.0
    %v2588 = vmax.f32 %v2556, 0.0
    %v2589 = vmax.f32 %v2557, 0.0
    %v2590 = vmax.f32 %v2558, 0.0
    %v2591 = vmax.f32 %v2559, 0.0
    %v2592 = vmax.f32 %v2560, 0.0
    %v2593 = vmax.f32 %v2561, 0.0
    %v2594 = vmax.f32 %v2562, 0.0
    %v2595 = vmax.f32 %v2563, 0.0
    %v2596 = vmax.f32 %v2564, 0.0
    %v2597 = vmax.f32 %v2565, 0.0
    %v2598 = vmax.f32 %v2566, 0.0
    %v2599 = vmax.f32 %v2567, 0.0
    %v2600 = vmax.f32 %v2568, 0.0
    %v2601 = vmax.f32 %v2569, 0.0
    %v2602 = vmax.f32 %v2570, 0.0
    %v2603 = vmax.f32 %v2571, 0.0
    %v2604 = vmax.f32 %v2572, 0.0
    %v2605 = vld [vmem:[#allocation7] sm:$0xff]
    %v2606 = vld [vmem:[#allocation7 + $0x8] sm:$0xff]
    %v2608 = vsel %vm984, %v2605, 0
    %v2611 = vsel %vm984, %v2606, 0
    %2613 = vmatprep.subr.mxu0 %v2574
    %2614 = vmatpush1.msra.mxu0 %v2573
    %2615 = vmatprep.subr.mxu0 %v2582
    %2616 = vmatpush1.msra.mxu0 %v2581
    %2617 = vmatprep.subr.mxu0 %v2590
    %2618 = vmatpush1.msra.mxu0 %v2589
    %2619 = vmatprep.subr.mxu0 %v2598
    %2620 = vmatpush1.msra.mxu0 %v2597
    %2621 = vmatprep.subr.mxu0 0.0
    %2622 = vmatpush1.msra.mxu0 0.0
    %2623 = vmatprep.subr.mxu0 0.0
    %2624 = vmatpush1.msra.mxu0 0.0
    %2625 = vmatprep.subr.mxu0 0.0
    %2626 = vmatpush1.msra.mxu0 0.0
    %2627 = vmatprep.subr.mxu0 0.0
    %2628 = vmatpush1.msra.mxu0 0.0
    %2629 = vmatprep.subr.mxu0 0.0
    %2630 = vmatpush1.msra.mxu0 0.0
    %2631 = vmatprep.subr.mxu0 0.0
    %2632 = vmatpush1.msra.mxu0 0.0
    %2633 = vmatprep.subr.mxu0 0.0
    %2634 = vmatpush1.msra.mxu0 0.0
    %2635 = vmatprep.subr.mxu0 0.0
    %2636 = vmatpush1.msra.mxu0 0.0
    %2637 = vmatprep.subr.mxu0 0.0
    %2638 = vmatpush1.msra.mxu0 0.0
    %2639 = vmatprep.subr.mxu0 0.0
    %2640 = vmatpush1.msra.mxu0 0.0
    %2641 = vmatprep.subr.mxu0 0.0
    %2642 = vmatpush1.msra.mxu0 0.0
    %2643 = vmatprep.subr.mxu0 0.0
    %2644 = vmatpush1.msra.mxu0 0.0
    %2645 = vmatprep.subr.mxu0 0.0
    %2646 = vmatpush1.msra.mxu0 0.0
    %2647 = vmatprep.subr.mxu0 0.0
    %2648 = vmatpush1.msra.mxu0 0.0
    %2649 = vmatprep.subr.mxu0 0.0
    %2650 = vmatpush1.msra.mxu0 0.0
    %2651 = vmatprep.subr.mxu0 0.0
    %2652 = vmatpush1.msra.mxu0 0.0
    %2653 = vmatprep.subr.mxu0 0.0
    %2654 = vmatpush1.msra.mxu0 0.0
    %2655 = vmatprep.subr.mxu0 0.0
    %2656 = vmatpush1.msra.mxu0 0.0
    %2657 = vmatprep.subr.mxu0 0.0
    %2658 = vmatpush1.msra.mxu0 0.0
    %2659 = vmatprep.subr.mxu0 0.0
    %2660 = vmatpush1.msra.mxu0 0.0
    %2661 = vmatprep.subr.mxu0 0.0
    %2662 = vmatpush1.msra.mxu0 0.0
    %2663 = vmatprep.subr.mxu0 0.0
    %2664 = vmatpush1.msra.mxu0 0.0
    %2665 = vmatprep.subr.mxu0 0.0
    %2666 = vmatpush1.msra.mxu0 0.0
    %2667 = vmatprep.subr.mxu0 0.0
    %2668 = vmatpush1.msra.mxu0 0.0
    %2669 = vmatprep.subr.mxu0 0.0
    %2670 = vmatpush1.msra.mxu0 0.0
    %2671 = vmatprep.subr.mxu0 0.0
    %2672 = vmatpush1.msra.mxu0 0.0
    %2673 = vmatprep.subr.mxu0 0.0
    %2674 = vmatpush1.msra.mxu0 0.0
    %2675 = vmatprep.subr.mxu0 0.0
    %2676 = vmatpush1.msra.mxu0 0.0
    %2677 = vmatprep.mubr.f32.mxu0 0.0
    %2678 = vmatmul.mubr.f32.gmra.mrb[0].mxu0 %v2608
    %v2679 = vpop.f32.mrb[0].mxu0
    %v2680 = vadd.f32 0.0, %v2679
    %v2681 = vpop.f32.mrb[0].mxu0
    %v2682 = vadd.f32 0.0, %v2681
    %2683 = vmatprep.mubr.f32.mxu0 0.0
    %2684 = vmatmul.mubr.f32.gmra.mrb[0].mxu0 %v2611
    %v2685 = vpop.f32.mrb[0].mxu0
    %v2686 = vadd.f32 0.0, %v2685
    %v2687 = vpop.f32.mrb[0].mxu0
    %v2688 = vadd.f32 0.0, %v2687
    %2689 = vdwg.mxu0
    %2690 = vmatprep.subr.mxu0 %v2576
    %2691 = vmatpush1.msra.mxu0 %v2575
    %2692 = vmatprep.subr.mxu0 %v2584
    %2693 = vmatpush1.msra.mxu0 %v2583
    %2694 = vmatprep.subr.mxu0 %v2592
    %2695 = vmatpush1.msra.mxu0 %v2591
    %2696 = vmatprep.subr.mxu0 %v2600
    %2697 = vmatpush1.msra.mxu0 %v2599
    %2698 = vmatprep.subr.mxu0 0.0
    %2699 = vmatpush1.msra.mxu0 0.0
    %2700 = vmatprep.subr.mxu0 0.0
    %2701 = vmatpush1.msra.mxu0 0.0
    %2702 = vmatprep.subr.mxu0 0.0
    %2703 = vmatpush1.msra.mxu0 0.0
    %2704 = vmatprep.subr.mxu0 0.0
    %2705 = vmatpush1.msra.mxu0 0.0
    %2706 = vmatprep.subr.mxu0 0.0
    %2707 = vmatpush1.msra.mxu0 0.0
    %2708 = vmatprep.subr.mxu0 0.0
    %2709 = vmatpush1.msra.mxu0 0.0
    %2710 = vmatprep.subr.mxu0 0.0
    %2711 = vmatpush1.msra.mxu0 0.0
    %2712 = vmatprep.subr.mxu0 0.0
    %2713 = vmatpush1.msra.mxu0 0.0
    %2714 = vmatprep.subr.mxu0 0.0
    %2715 = vmatpush1.msra.mxu0 0.0
    %2716 = vmatprep.subr.mxu0 0.0
    %2717 = vmatpush1.msra.mxu0 0.0
    %2718 = vmatprep.subr.mxu0 0.0
    %2719 = vmatpush1.msra.mxu0 0.0
    %2720 = vmatprep.subr.mxu0 0.0
    %2721 = vmatpush1.msra.mxu0 0.0
    %2722 = vmatprep.subr.mxu0 0.0
    %2723 = vmatpush1.msra.mxu0 0.0
    %2724 = vmatprep.subr.mxu0 0.0
    %2725 = vmatpush1.msra.mxu0 0.0
    %2726 = vmatprep.subr.mxu0 0.0
    %2727 = vmatpush1.msra.mxu0 0.0
    %2728 = vmatprep.subr.mxu0 0.0
    %2729 = vmatpush1.msra.mxu0 0.0
    %2730 = vmatprep.subr.mxu0 0.0
    %2731 = vmatpush1.msra.mxu0 0.0
    %2732 = vmatprep.subr.mxu0 0.0
    %2733 = vmatpush1.msra.mxu0 0.0
    %2734 = vmatprep.subr.mxu0 0.0
    %2735 = vmatpush1.msra.mxu0 0.0
    %2736 = vmatprep.subr.mxu0 0.0
    %2737 = vmatpush1.msra.mxu0 0.0
    %2738 = vmatprep.subr.mxu0 0.0
    %2739 = vmatpush1.msra.mxu0 0.0
    %2740 = vmatprep.subr.mxu0 0.0
    %2741 = vmatpush1.msra.mxu0 0.0
    %2742 = vmatprep.subr.mxu0 0.0
    %2743 = vmatpush1.msra.mxu0 0.0
    %2744 = vmatprep.subr.mxu0 0.0
    %2745 = vmatpush1.msra.mxu0 0.0
    %2746 = vmatprep.subr.mxu0 0.0
    %2747 = vmatpush1.msra.mxu0 0.0
    %2748 = vmatprep.subr.mxu0 0.0
    %2749 = vmatpush1.msra.mxu0 0.0
    %2750 = vmatprep.subr.mxu0 0.0
    %2751 = vmatpush1.msra.mxu0 0.0
    %2752 = vmatprep.subr.mxu0 0.0
    %2753 = vmatpush1.msra.mxu0 0.0
    %2754 = vmatprep.mubr.f32.mxu0 0.0
    %2755 = vmatmul.mubr.f32.gmra.mrb[0].mxu0 %v2608
    %v2756 = vpop.f32.mrb[0].mxu0
    %v2757 = vadd.f32 0.0, %v2756
    %v2758 = vpop.f32.mrb[0].mxu0
    %v2759 = vadd.f32 0.0, %v2758
    %2760 = vmatprep.mubr.f32.mxu0 0.0
    %2761 = vmatmul.mubr.f32.gmra.mrb[0].mxu0 %v2611
    %v2762 = vpop.f32.mrb[0].mxu0
    %v2763 = vadd.f32 0.0, %v2762
    %v2764 = vpop.f32.mrb[0].mxu0
    %v2765 = vadd.f32 0.0, %v2764
    %2766 = vdwg.mxu0
    %2767 = vmatprep.subr.mxu0 %v2578
    %2768 = vmatpush1.msra.mxu0 %v2577
    %2769 = vmatprep.subr.mxu0 %v2586
    %2770 = vmatpush1.msra.mxu0 %v2585
    %2771 = vmatprep.subr.mxu0 %v2594
    %2772 = vmatpush1.msra.mxu0 %v2593
    %2773 = vmatprep.subr.mxu0 %v2602
    %2774 = vmatpush1.msra.mxu0 %v2601
    %2775 = vmatprep.subr.mxu0 0.0
    %2776 = vmatpush1.msra.mxu0 0.0
    %2777 = vmatprep.subr.mxu0 0.0
    %2778 = vmatpush1.msra.mxu0 0.0
    %2779 = vmatprep.subr.mxu0 0.0
    %2780 = vmatpush1.msra.mxu0 0.0
    %2781 = vmatprep.subr.mxu0 0.0
    %2782 = vmatpush1.msra.mxu0 0.0
    %2783 = vmatprep.subr.mxu0 0.0
    %2784 = vmatpush1.msra.mxu0 0.0
    %2785 = vmatprep.subr.mxu0 0.0
    %2786 = vmatpush1.msra.mxu0 0.0
    %2787 = vmatprep.subr.mxu0 0.0
    %2788 = vmatpush1.msra.mxu0 0.0
    %2789 = vmatprep.subr.mxu0 0.0
    %2790 = vmatpush1.msra.mxu0 0.0
    %2791 = vmatprep.subr.mxu0 0.0
    %2792 = vmatpush1.msra.mxu0 0.0
    %2793 = vmatprep.subr.mxu0 0.0
    %2794 = vmatpush1.msra.mxu0 0.0
    %2795 = vmatprep.subr.mxu0 0.0
    %2796 = vmatpush1.msra.mxu0 0.0
    %2797 = vmatprep.subr.mxu0 0.0
    %2798 = vmatpush1.msra.mxu0 0.0
    %2799 = vmatprep.subr.mxu0 0.0
    %2800 = vmatpush1.msra.mxu0 0.0
    %2801 = vmatprep.subr.mxu0 0.0
    %2802 = vmatpush1.msra.mxu0 0.0
    %2803 = vmatprep.subr.mxu0 0.0
    %2804 = vmatpush1.msra.mxu0 0.0
    %2805 = vmatprep.subr.mxu0 0.0
    %2806 = vmatpush1.msra.mxu0 0.0
    %2807 = vmatprep.subr.mxu0 0.0
    %2808 = vmatpush1.msra.mxu0 0.0
    %2809 = vmatprep.subr.mxu0 0.0
    %2810 = vmatpush1.msra.mxu0 0.0
    %2811 = vmatprep.subr.mxu0 0.0
    %2812 = vmatpush1.msra.mxu0 0.0
    %2813 = vmatprep.subr.mxu0 0.0
    %2814 = vmatpush1.msra.mxu0 0.0
    %2815 = vmatprep.subr.mxu0 0.0
    %2816 = vmatpush1.msra.mxu0 0.0
    %2817 = vmatprep.subr.mxu0 0.0
    %2818 = vmatpush1.msra.mxu0 0.0
    %2819 = vmatprep.subr.mxu0 0.0
    %2820 = vmatpush1.msra.mxu0 0.0
    %2821 = vmatprep.subr.mxu0 0.0
    %2822 = vmatpush1.msra.mxu0 0.0
    %2823 = vmatprep.subr.mxu0 0.0
    %2824 = vmatpush1.msra.mxu0 0.0
    %2825 = vmatprep.subr.mxu0 0.0
    %2826 = vmatpush1.msra.mxu0 0.0
    %2827 = vmatprep.subr.mxu0 0.0
    %2828 = vmatpush1.msra.mxu0 0.0
    %2829 = vmatprep.subr.mxu0 0.0
    %2830 = vmatpush1.msra.mxu0 0.0
    %2831 = vmatprep.mubr.f32.mxu0 0.0
    %2832 = vmatmul.mubr.f32.gmra.mrb[0].mxu0 %v2608
    %v2833 = vpop.f32.mrb[0].mxu0
    %v2834 = vadd.f32 0.0, %v2833
    %v2835 = vpop.f32.mrb[0].mxu0
    %v2836 = vadd.f32 0.0, %v2835
    %2837 = vmatprep.mubr.f32.mxu0 0.0
    %2838 = vmatmul.mubr.f32.gmra.mrb[0].mxu0 %v2611
    %v2839 = vpop.f32.mrb[0].mxu0
    %v2840 = vadd.f32 0.0, %v2839
    %v2841 = vpop.f32.mrb[0].mxu0
    %v2842 = vadd.f32 0.0, %v2841
    %2843 = vdwg.mxu0
    %2844 = vmatprep.subr.mxu0 %v2580
    %2845 = vmatpush1.msra.mxu0 %v2579
    %2846 = vmatprep.subr.mxu0 %v2588
    %2847 = vmatpush1.msra.mxu0 %v2587
    %2848 = vmatprep.subr.mxu0 %v2596
    %2849 = vmatpush1.msra.mxu0 %v2595
    %2850 = vmatprep.subr.mxu0 %v2604
    %2851 = vmatpush1.msra.mxu0 %v2603
    %2852 = vmatprep.subr.mxu0 0.0
    %2853 = vmatpush1.msra.mxu0 0.0
    %2854 = vmatprep.subr.mxu0 0.0
    %2855 = vmatpush1.msra.mxu0 0.0
    %2856 = vmatprep.subr.mxu0 0.0
    %2857 = vmatpush1.msra.mxu0 0.0
    %2858 = vmatprep.subr.mxu0 0.0
    %2859 = vmatpush1.msra.mxu0 0.0
    %2860 = vmatprep.subr.mxu0 0.0
    %2861 = vmatpush1.msra.mxu0 0.0
    %2862 = vmatprep.subr.mxu0 0.0
    %2863 = vmatpush1.msra.mxu0 0.0
    %2864 = vmatprep.subr.mxu0 0.0
    %2865 = vmatpush1.msra.mxu0 0.0
    %2866 = vmatprep.subr.mxu0 0.0
    %2867 = vmatpush1.msra.mxu0 0.0
    %2868 = vmatprep.subr.mxu0 0.0
    %2869 = vmatpush1.msra.mxu0 0.0
    %2870 = vmatprep.subr.mxu0 0.0
    %2871 = vmatpush1.msra.mxu0 0.0
    %2872 = vmatprep.subr.mxu0 0.0
    %2873 = vmatpush1.msra.mxu0 0.0
    %2874 = vmatprep.subr.mxu0 0.0
    %2875 = vmatpush1.msra.mxu0 0.0
    %2876 = vmatprep.subr.mxu0 0.0
    %2877 = vmatpush1.msra.mxu0 0.0
    %2878 = vmatprep.subr.mxu0 0.0
    %2879 = vmatpush1.msra.mxu0 0.0
    %2880 = vmatprep.subr.mxu0 0.0
    %2881 = vmatpush1.msra.mxu0 0.0
    %2882 = vmatprep.subr.mxu0 0.0
    %2883 = vmatpush1.msra.mxu0 0.0
    %2884 = vmatprep.subr.mxu0 0.0
    %2885 = vmatpush1.msra.mxu0 0.0
    %2886 = vmatprep.subr.mxu0 0.0
    %2887 = vmatpush1.msra.mxu0 0.0
    %2888 = vmatprep.subr.mxu0 0.0
    %2889 = vmatpush1.msra.mxu0 0.0
    %2890 = vmatprep.subr.mxu0 0.0
    %2891 = vmatpush1.msra.mxu0 0.0
    %2892 = vmatprep.subr.mxu0 0.0
    %2893 = vmatpush1.msra.mxu0 0.0
    %2894 = vmatprep.subr.mxu0 0.0
    %2895 = vmatpush1.msra.mxu0 0.0
    %2896 = vmatprep.subr.mxu0 0.0
    %2897 = vmatpush1.msra.mxu0 0.0
    %2898 = vmatprep.subr.mxu0 0.0
    %2899 = vmatpush1.msra.mxu0 0.0
    %2900 = vmatprep.subr.mxu0 0.0
    %2901 = vmatpush1.msra.mxu0 0.0
    %2902 = vmatprep.subr.mxu0 0.0
    %2903 = vmatpush1.msra.mxu0 0.0
    %2904 = vmatprep.subr.mxu0 0.0
    %2905 = vmatpush1.msra.mxu0 0.0
    %2906 = vmatprep.subr.mxu0 0.0
    %2907 = vmatpush1.msra.mxu0 0.0
    %2908 = vmatprep.mubr.f32.mxu0 0.0
    %2909 = vmatmul.mubr.f32.gmra.mrb[0].mxu0 %v2608
    %v2910 = vpop.f32.mrb[0].mxu0
    %v2911 = vadd.f32 0.0, %v2910
    %v2912 = vpop.f32.mrb[0].mxu0
    %v2913 = vadd.f32 0.0, %v2912
    %2914 = vmatprep.mubr.f32.mxu0 0.0
    %2915 = vmatmul.mubr.f32.gmra.mrb[0].mxu0 %v2611
    %v2916 = vpop.f32.mrb[0].mxu0
    %v2917 = vadd.f32 0.0, %v2916
    %v2918 = vpop.f32.mrb[0].mxu0
    %v2919 = vadd.f32 0.0, %v2918
    %2920 = vdwg.mxu0
    %s2921 = scalar_lea.vmem [#allocation7], 16
    %v2922 = vld [vmem:[%s2921] sm:$0xff]
    %v2923 = vld [vmem:[%s2921 + $0x8] sm:$0xff]
    %v2925 = vsel %vm984, %v2922, 0
    %v2928 = vsel %vm984, %v2923, 0
    %2930 = vmatprep.subr.mxu0 %v2574
    %2931 = vmatpush1.msra.mxu0 %v2573
    %2932 = vmatprep.subr.mxu0 %v2582
    %2933 = vmatpush1.msra.mxu0 %v2581
    %2934 = vmatprep.subr.mxu0 %v2590
    %2935 = vmatpush1.msra.mxu0 %v2589
    %2936 = vmatprep.subr.mxu0 %v2598
    %2937 = vmatpush1.msra.mxu0 %v2597
    %2938 = vmatprep.subr.mxu0 0.0
    %2939 = vmatpush1.msra.mxu0 0.0
    %2940 = vmatprep.subr.mxu0 0.0
    %2941 = vmatpush1.msra.mxu0 0.0
    %2942 = vmatprep.subr.mxu0 0.0
    %2943 = vmatpush1.msra.mxu0 0.0
    %2944 = vmatprep.subr.mxu0 0.0
    %2945 = vmatpush1.msra.mxu0 0.0
    %2946 = vmatprep.subr.mxu0 0.0
    %2947 = vmatpush1.msra.mxu0 0.0
    %2948 = vmatprep.subr.mxu0 0.0
    %2949 = vmatpush1.msra.mxu0 0.0
    %2950 = vmatprep.subr.mxu0 0.0
    %2951 = vmatpush1.msra.mxu0 0.0
    %2952 = vmatprep.subr.mxu0 0.0
    %2953 = vmatpush1.msra.mxu0 0.0
    %2954 = vmatprep.subr.mxu0 0.0
    %2955 = vmatpush1.msra.mxu0 0.0
    %2956 = vmatprep.subr.mxu0 0.0
    %2957 = vmatpush1.msra.mxu0 0.0
    %2958 = vmatprep.subr.mxu0 0.0
    %2959 = vmatpush1.msra.mxu0 0.0
    %2960 = vmatprep.subr.mxu0 0.0
    %2961 = vmatpush1.msra.mxu0 0.0
    %2962 = vmatprep.subr.mxu0 0.0
    %2963 = vmatpush1.msra.mxu0 0.0
    %2964 = vmatprep.subr.mxu0 0.0
    %2965 = vmatpush1.msra.mxu0 0.0
    %2966 = vmatprep.subr.mxu0 0.0
    %2967 = vmatpush1.msra.mxu0 0.0
    %2968 = vmatprep.subr.mxu0 0.0
    %2969 = vmatpush1.msra.mxu0 0.0
    %2970 = vmatprep.subr.mxu0 0.0
    %2971 = vmatpush1.msra.mxu0 0.0
    %2972 = vmatprep.subr.mxu0 0.0
    %2973 = vmatpush1.msra.mxu0 0.0
    %2974 = vmatprep.subr.mxu0 0.0
    %2975 = vmatpush1.msra.mxu0 0.0
    %2976 = vmatprep.subr.mxu0 0.0
    %2977 = vmatpush1.msra.mxu0 0.0
    %2978 = vmatprep.subr.mxu0 0.0
    %2979 = vmatpush1.msra.mxu0 0.0
    %2980 = vmatprep.subr.mxu0 0.0
    %2981 = vmatpush1.msra.mxu0 0.0
    %2982 = vmatprep.subr.mxu0 0.0
    %2983 = vmatpush1.msra.mxu0 0.0
    %2984 = vmatprep.subr.mxu0 0.0
    %2985 = vmatpush1.msra.mxu0 0.0
    %2986 = vmatprep.subr.mxu0 0.0
    %2987 = vmatpush1.msra.mxu0 0.0
    %2988 = vmatprep.subr.mxu0 0.0
    %2989 = vmatpush1.msra.mxu0 0.0
    %2990 = vmatprep.subr.mxu0 0.0
    %2991 = vmatpush1.msra.mxu0 0.0
    %2992 = vmatprep.subr.mxu0 0.0
    %2993 = vmatpush1.msra.mxu0 0.0
    %2994 = vmatprep.mubr.f32.mxu0 0.0
    %2995 = vmatmul.mubr.f32.gmra.mrb[0].mxu0 %v2925
    %v2996 = vpop.f32.mrb[0].mxu0
    %v2997 = vadd.f32 0.0, %v2996
    %v2998 = vpop.f32.mrb[0].mxu0
    %v2999 = vadd.f32 0.0, %v2998
    %3000 = vmatprep.mubr.f32.mxu0 0.0
    %3001 = vmatmul.mubr.f32.gmra.mrb[0].mxu0 %v2928
    %v3002 = vpop.f32.mrb[0].mxu0
    %v3003 = vadd.f32 0.0, %v3002
    %v3004 = vpop.f32.mrb[0].mxu0
    %v3005 = vadd.f32 0.0, %v3004
    %3006 = vdwg.mxu0
    %3007 = vmatprep.subr.mxu0 %v2576
    %3008 = vmatpush1.msra.mxu0 %v2575
    %3009 = vmatprep.subr.mxu0 %v2584
    %3010 = vmatpush1.msra.mxu0 %v2583
    %3011 = vmatprep.subr.mxu0 %v2592
    %3012 = vmatpush1.msra.mxu0 %v2591
    %3013 = vmatprep.subr.mxu0 %v2600
    %3014 = vmatpush1.msra.mxu0 %v2599
    %3015 = vmatprep.subr.mxu0 0.0
    %3016 = vmatpush1.msra.mxu0 0.0
    %3017 = vmatprep.subr.mxu0 0.0
    %3018 = vmatpush1.msra.mxu0 0.0
    %3019 = vmatprep.subr.mxu0 0.0
    %3020 = vmatpush1.msra.mxu0 0.0
    %3021 = vmatprep.subr.mxu0 0.0
    %3022 = vmatpush1.msra.mxu0 0.0
    %3023 = vmatprep.subr.mxu0 0.0
    %3024 = vmatpush1.msra.mxu0 0.0
    %3025 = vmatprep.subr.mxu0 0.0
    %3026 = vmatpush1.msra.mxu0 0.0
    %3027 = vmatprep.subr.mxu0 0.0
    %3028 = vmatpush1.msra.mxu0 0.0
    %3029 = vmatprep.subr.mxu0 0.0
    %3030 = vmatpush1.msra.mxu0 0.0
    %3031 = vmatprep.subr.mxu0 0.0
    %3032 = vmatpush1.msra.mxu0 0.0
    %3033 = vmatprep.subr.mxu0 0.0
    %3034 = vmatpush1.msra.mxu0 0.0
    %3035 = vmatprep.subr.mxu0 0.0
    %3036 = vmatpush1.msra.mxu0 0.0
    %3037 = vmatprep.subr.mxu0 0.0
    %3038 = vmatpush1.msra.mxu0 0.0
    %3039 = vmatprep.subr.mxu0 0.0
    %3040 = vmatpush1.msra.mxu0 0.0
    %3041 = vmatprep.subr.mxu0 0.0
    %3042 = vmatpush1.msra.mxu0 0.0
    %3043 = vmatprep.subr.mxu0 0.0
    %3044 = vmatpush1.msra.mxu0 0.0
    %3045 = vmatprep.subr.mxu0 0.0
    %3046 = vmatpush1.msra.mxu0 0.0
    %3047 = vmatprep.subr.mxu0 0.0
    %3048 = vmatpush1.msra.mxu0 0.0
    %3049 = vmatprep.subr.mxu0 0.0
    %3050 = vmatpush1.msra.mxu0 0.0
    %3051 = vmatprep.subr.mxu0 0.0
    %3052 = vmatpush1.msra.mxu0 0.0
    %3053 = vmatprep.subr.mxu0 0.0
    %3054 = vmatpush1.msra.mxu0 0.0
    %3055 = vmatprep.subr.mxu0 0.0
    %3056 = vmatpush1.msra.mxu0 0.0
    %3057 = vmatprep.subr.mxu0 0.0
    %3058 = vmatpush1.msra.mxu0 0.0
    %3059 = vmatprep.subr.mxu0 0.0
    %3060 = vmatpush1.msra.mxu0 0.0
    %3061 = vmatprep.subr.mxu0 0.0
    %3062 = vmatpush1.msra.mxu0 0.0
    %3063 = vmatprep.subr.mxu0 0.0
    %3064 = vmatpush1.msra.mxu0 0.0
    %3065 = vmatprep.subr.mxu0 0.0
    %3066 = vmatpush1.msra.mxu0 0.0
    %3067 = vmatprep.subr.mxu0 0.0
    %3068 = vmatpush1.msra.mxu0 0.0
    %3069 = vmatprep.subr.mxu0 0.0
    %3070 = vmatpush1.msra.mxu0 0.0
    %3071 = vmatprep.mubr.f32.mxu0 0.0
    %3072 = vmatmul.mubr.f32.gmra.mrb[0].mxu0 %v2925
    %v3073 = vpop.f32.mrb[0].mxu0
    %v3074 = vadd.f32 0.0, %v3073
    %v3075 = vpop.f32.mrb[0].mxu0
    %v3076 = vadd.f32 0.0, %v3075
    %3077 = vmatprep.mubr.f32.mxu0 0.0
    %3078 = vmatmul.mubr.f32.gmra.mrb[0].mxu0 %v2928
    %v3079 = vpop.f32.mrb[0].mxu0
    %v3080 = vadd.f32 0.0, %v3079
    %v3081 = vpop.f32.mrb[0].mxu0
    %v3082 = vadd.f32 0.0, %v3081
    %3083 = vdwg.mxu0
    %3084 = vmatprep.subr.mxu0 %v2578
    %3085 = vmatpush1.msra.mxu0 %v2577
    %3086 = vmatprep.subr.mxu0 %v2586
    %3087 = vmatpush1.msra.mxu0 %v2585
    %3088 = vmatprep.subr.mxu0 %v2594
    %3089 = vmatpush1.msra.mxu0 %v2593
    %3090 = vmatprep.subr.mxu0 %v2602
    %3091 = vmatpush1.msra.mxu0 %v2601
    %3092 = vmatprep.subr.mxu0 0.0
    %3093 = vmatpush1.msra.mxu0 0.0
    %3094 = vmatprep.subr.mxu0 0.0
    %3095 = vmatpush1.msra.mxu0 0.0
    %3096 = vmatprep.subr.mxu0 0.0
    %3097 = vmatpush1.msra.mxu0 0.0
    %3098 = vmatprep.subr.mxu0 0.0
    %3099 = vmatpush1.msra.mxu0 0.0
    %3100 = vmatprep.subr.mxu0 0.0
    %3101 = vmatpush1.msra.mxu0 0.0
    %3102 = vmatprep.subr.mxu0 0.0
    %3103 = vmatpush1.msra.mxu0 0.0
    %3104 = vmatprep.subr.mxu0 0.0
    %3105 = vmatpush1.msra.mxu0 0.0
    %3106 = vmatprep.subr.mxu0 0.0
    %3107 = vmatpush1.msra.mxu0 0.0
    %3108 = vmatprep.subr.mxu0 0.0
    %3109 = vmatpush1.msra.mxu0 0.0
    %3110 = vmatprep.subr.mxu0 0.0
    %3111 = vmatpush1.msra.mxu0 0.0
    %3112 = vmatprep.subr.mxu0 0.0
    %3113 = vmatpush1.msra.mxu0 0.0
    %3114 = vmatprep.subr.mxu0 0.0
    %3115 = vmatpush1.msra.mxu0 0.0
    %3116 = vmatprep.subr.mxu0 0.0
    %3117 = vmatpush1.msra.mxu0 0.0
    %3118 = vmatprep.subr.mxu0 0.0
    %3119 = vmatpush1.msra.mxu0 0.0
    %3120 = vmatprep.subr.mxu0 0.0
    %3121 = vmatpush1.msra.mxu0 0.0
    %3122 = vmatprep.subr.mxu0 0.0
    %3123 = vmatpush1.msra.mxu0 0.0
    %3124 = vmatprep.subr.mxu0 0.0
    %3125 = vmatpush1.msra.mxu0 0.0
    %3126 = vmatprep.subr.mxu0 0.0
    %3127 = vmatpush1.msra.mxu0 0.0
    %3128 = vmatprep.subr.mxu0 0.0
    %3129 = vmatpush1.msra.mxu0 0.0
    %3130 = vmatprep.subr.mxu0 0.0
    %3131 = vmatpush1.msra.mxu0 0.0
    %3132 = vmatprep.subr.mxu0 0.0
    %3133 = vmatpush1.msra.mxu0 0.0
    %3134 = vmatprep.subr.mxu0 0.0
    %3135 = vmatpush1.msra.mxu0 0.0
    %3136 = vmatprep.subr.mxu0 0.0
    %3137 = vmatpush1.msra.mxu0 0.0
    %3138 = vmatprep.subr.mxu0 0.0
    %3139 = vmatpush1.msra.mxu0 0.0
    %3140 = vmatprep.subr.mxu0 0.0
    %3141 = vmatpush1.msra.mxu0 0.0
    %3142 = vmatprep.subr.mxu0 0.0
    %3143 = vmatpush1.msra.mxu0 0.0
    %3144 = vmatprep.subr.mxu0 0.0
    %3145 = vmatpush1.msra.mxu0 0.0
    %3146 = vmatprep.subr.mxu0 0.0
    %3147 = vmatpush1.msra.mxu0 0.0
    %3148 = vmatprep.mubr.f32.mxu0 0.0
    %3149 = vmatmul.mubr.f32.gmra.mrb[0].mxu0 %v2925
    %v3150 = vpop.f32.mrb[0].mxu0
    %v3151 = vadd.f32 0.0, %v3150
    %v3152 = vpop.f32.mrb[0].mxu0
    %v3153 = vadd.f32 0.0, %v3152
    %3154 = vmatprep.mubr.f32.mxu0 0.0
    %3155 = vmatmul.mubr.f32.gmra.mrb[0].mxu0 %v2928
    %v3156 = vpop.f32.mrb[0].mxu0
    %v3157 = vadd.f32 0.0, %v3156
    %v3158 = vpop.f32.mrb[0].mxu0
    %v3159 = vadd.f32 0.0, %v3158
    %3160 = vdwg.mxu0
    %3161 = vmatprep.subr.mxu0 %v2580
    %3162 = vmatpush1.msra.mxu0 %v2579
    %3163 = vmatprep.subr.mxu0 %v2588
    %3164 = vmatpush1.msra.mxu0 %v2587
    %3165 = vmatprep.subr.mxu0 %v2596
    %3166 = vmatpush1.msra.mxu0 %v2595
    %3167 = vmatprep.subr.mxu0 %v2604
    %3168 = vmatpush1.msra.mxu0 %v2603
    %3169 = vmatprep.subr.mxu0 0.0
    %3170 = vmatpush1.msra.mxu0 0.0
    %3171 = vmatprep.subr.mxu0 0.0
    %3172 = vmatpush1.msra.mxu0 0.0
    %3173 = vmatprep.subr.mxu0 0.0
    %3174 = vmatpush1.msra.mxu0 0.0
    %3175 = vmatprep.subr.mxu0 0.0
    %3176 = vmatpush1.msra.mxu0 0.0
    %3177 = vmatprep.subr.mxu0 0.0
    %3178 = vmatpush1.msra.mxu0 0.0
    %3179 = vmatprep.subr.mxu0 0.0
    %3180 = vmatpush1.msra.mxu0 0.0
    %3181 = vmatprep.subr.mxu0 0.0
    %3182 = vmatpush1.msra.mxu0 0.0
    %3183 = vmatprep.subr.mxu0 0.0
    %3184 = vmatpush1.msra.mxu0 0.0
    %3185 = vmatprep.subr.mxu0 0.0
    %3186 = vmatpush1.msra.mxu0 0.0
    %3187 = vmatprep.subr.mxu0 0.0
    %3188 = vmatpush1.msra.mxu0 0.0
    %3189 = vmatprep.subr.mxu0 0.0
    %3190 = vmatpush1.msra.mxu0 0.0
    %3191 = vmatprep.subr.mxu0 0.0
    %3192 = vmatpush1.msra.mxu0 0.0
    %3193 = vmatprep.subr.mxu0 0.0
    %3194 = vmatpush1.msra.mxu0 0.0
    %3195 = vmatprep.subr.mxu0 0.0
    %3196 = vmatpush1.msra.mxu0 0.0
    %3197 = vmatprep.subr.mxu0 0.0
    %3198 = vmatpush1.msra.mxu0 0.0
    %3199 = vmatprep.subr.mxu0 0.0
    %3200 = vmatpush1.msra.mxu0 0.0
    %3201 = vmatprep.subr.mxu0 0.0
    %3202 = vmatpush1.msra.mxu0 0.0
    %3203 = vmatprep.subr.mxu0 0.0
    %3204 = vmatpush1.msra.mxu0 0.0
    %3205 = vmatprep.subr.mxu0 0.0
    %3206 = vmatpush1.msra.mxu0 0.0
    %3207 = vmatprep.subr.mxu0 0.0
    %3208 = vmatpush1.msra.mxu0 0.0
    %3209 = vmatprep.subr.mxu0 0.0
    %3210 = vmatpush1.msra.mxu0 0.0
    %3211 = vmatprep.subr.mxu0 0.0
    %3212 = vmatpush1.msra.mxu0 0.0
    %3213 = vmatprep.subr.mxu0 0.0
    %3214 = vmatpush1.msra.mxu0 0.0
    %3215 = vmatprep.subr.mxu0 0.0
    %3216 = vmatpush1.msra.mxu0 0.0
    %3217 = vmatprep.subr.mxu0 0.0
    %3218 = vmatpush1.msra.mxu0 0.0
    %3219 = vmatprep.subr.mxu0 0.0
    %3220 = vmatpush1.msra.mxu0 0.0
    %3221 = vmatprep.subr.mxu0 0.0
    %3222 = vmatpush1.msra.mxu0 0.0
    %3223 = vmatprep.subr.mxu0 0.0
    %3224 = vmatpush1.msra.mxu0 0.0
    %3225 = vmatprep.mubr.f32.mxu0 0.0
    %3226 = vmatmul.mubr.f32.gmra.mrb[0].mxu0 %v2925
    %v3227 = vpop.f32.mrb[0].mxu0
    %v3228 = vadd.f32 0.0, %v3227
    %v3229 = vpop.f32.mrb[0].mxu0
    %v3230 = vadd.f32 0.0, %v3229
    %3231 = vmatprep.mubr.f32.mxu0 0.0
    %3232 = vmatmul.mubr.f32.gmra.mrb[0].mxu0 %v2928
    %v3233 = vpop.f32.mrb[0].mxu0
    %v3234 = vadd.f32 0.0, %v3233
    %v3235 = vpop.f32.mrb[0].mxu0
    %v3236 = vadd.f32 0.0, %v3235
    %3237 = vdwg.mxu0
    %v3238 = vmax.f32 %v2680, %v2997
    %v3239 = vmax.f32 %v2682, %v2999
    %v3240 = vmax.f32 %v2757, %v3074
    %v3241 = vmax.f32 %v2759, %v3076
    %v3242 = vmax.f32 %v2834, %v3151
    %v3243 = vmax.f32 %v2836, %v3153
    %v3244 = vmax.f32 %v2911, %v3228
    %v3245 = vmax.f32 %v2913, %v3230
    %v3246 = vmax.f32 %v2686, %v3003
    %v3247 = vmax.f32 %v2688, %v3005
    %v3248 = vmax.f32 %v2763, %v3080
    %v3249 = vmax.f32 %v2765, %v3082
    %v3250 = vmax.f32 %v2840, %v3157
    %v3251 = vmax.f32 %v2842, %v3159
    %v3252 = vmax.f32 %v2917, %v3234
    %v3253 = vmax.f32 %v2919, %v3236
    %v3254 = vmax.f32 %v3238, %v3242
    %v3255 = vmax.f32 %v3239, %v3243
    %v3256 = vmax.f32 %v3240, %v3244
    %v3257 = vmax.f32 %v3241, %v3245
    %v3258 = vmax.f32 %v3246, %v3250
    %v3259 = vmax.f32 %v3247, %v3251
    %v3260 = vmax.f32 %v3248, %v3252
    %v3261 = vmax.f32 %v3249, %v3253
    %v3262 = vld [vmem:[#allocation10] sm:$0xff]
    %v3263 = vld [vmem:[#allocation10 + $0x8] sm:$0xff]
    %v3264 = vld [vmem:[#allocation10 + $0x10] sm:$0xff]
    %v3265 = vld [vmem:[#allocation10 + $0x18] sm:$0xff]
    %v3266 = vld [vmem:[#allocation10 + $0x20] sm:$0xff]
    %v3267 = vld [vmem:[#allocation10 + $0x28] sm:$0xff]
    %v3268 = vld [vmem:[#allocation10 + $0x30] sm:$0xff]
    %v3269 = vld [vmem:[#allocation10 + $0x38] sm:$0xff]
    %v3270 = vld [vmem:[#allocation10 + $0x40] sm:$0xff]
    %v3271 = vld [vmem:[#allocation10 + $0x48] sm:$0xff]
    %v3272 = vld [vmem:[#allocation10 + $0x50] sm:$0xff]
    %v3273 = vld [vmem:[#allocation10 + $0x58] sm:$0xff]
    %v3274 = vld [vmem:[#allocation10 + $0x60] sm:$0xff]
    %v3275 = vld [vmem:[#allocation10 + $0x68] sm:$0xff]
    %v3276 = vld [vmem:[#allocation10 + $0x70] sm:$0xff]
    %v3277 = vld [vmem:[#allocation10 + $0x78] sm:$0xff]
    %v3278 = vld [vmem:[#allocation10 + $0x80] sm:$0xff]
    %v3279 = vld [vmem:[#allocation10 + $0x88] sm:$0xff]
    %v3280 = vld [vmem:[#allocation10 + $0x90] sm:$0xff]
    %v3281 = vld [vmem:[#allocation10 + $0x98] sm:$0xff]
    %v3282 = vld [vmem:[#allocation10 + $0xa0] sm:$0xff]
    %v3283 = vld [vmem:[#allocation10 + $0xa8] sm:$0xff]
    %v3284 = vld [vmem:[#allocation10 + $0xb0] sm:$0xff]
    %v3285 = vld [vmem:[#allocation10 + $0xb8] sm:$0xff]
    %v3286 = vld [vmem:[#allocation10 + $0xc0] sm:$0xff]
    %v3287 = vld [vmem:[#allocation10 + $0xc8] sm:$0xff]
    %v3288 = vld [vmem:[#allocation10 + $0xd0] sm:$0xff]
    %v3289 = vld [vmem:[#allocation10 + $0xd8] sm:$0xff]
    %v3290 = vld [vmem:[#allocation10 + $0xe0] sm:$0xff]
    %v3291 = vld [vmem:[#allocation10 + $0xe8] sm:$0xff]
    %v3292 = vld [vmem:[#allocation10 + $0xf0] sm:$0xff]
    %v3293 = vld [vmem:[#allocation10 + $0xf8] sm:$0xff]
    %v3294 = vld [vmem:[#allocation10 + $0x100] sm:$0xff]
    %v3295 = vld [vmem:[#allocation10 + $0x108] sm:$0xff]
    %v3296 = vld [vmem:[#allocation10 + $0x110] sm:$0xff]
    %v3297 = vld [vmem:[#allocation10 + $0x118] sm:$0xff]
    %v3298 = vld [vmem:[#allocation10 + $0x120] sm:$0xff]
    %v3299 = vld [vmem:[#allocation10 + $0x128] sm:$0xff]
    %v3300 = vld [vmem:[#allocation10 + $0x130] sm:$0xff]
    %v3301 = vld [vmem:[#allocation10 + $0x138] sm:$0xff]
    %v3302 = vld [vmem:[#allocation10 + $0x140] sm:$0xff]
    %v3303 = vld [vmem:[#allocation10 + $0x148] sm:$0xff]
    %v3304 = vld [vmem:[#allocation10 + $0x150] sm:$0xff]
    %v3305 = vld [vmem:[#allocation10 + $0x158] sm:$0xff]
    %v3306 = vld [vmem:[#allocation10 + $0x160] sm:$0xff]
    %v3307 = vld [vmem:[#allocation10 + $0x168] sm:$0xff]
    %v3308 = vld [vmem:[#allocation10 + $0x170] sm:$0xff]
    %v3309 = vld [vmem:[#allocation10 + $0x178] sm:$0xff]
    %v3310 = vld [vmem:[#allocation10 + $0x180] sm:$0xff]
    %v3311 = vld [vmem:[#allocation10 + $0x188] sm:$0xff]
    %v3312 = vld [vmem:[#allocation10 + $0x190] sm:$0xff]
    %v3313 = vld [vmem:[#allocation10 + $0x198] sm:$0xff]
    %v3314 = vld [vmem:[#allocation10 + $0x1a0] sm:$0xff]
    %v3315 = vld [vmem:[#allocation10 + $0x1a8] sm:$0xff]
    %v3316 = vld [vmem:[#allocation10 + $0x1b0] sm:$0xff]
    %v3317 = vld [vmem:[#allocation10 + $0x1b8] sm:$0xff]
    %v3318 = vld [vmem:[#allocation10 + $0x1c0] sm:$0xff]
    %v3319 = vld [vmem:[#allocation10 + $0x1c8] sm:$0xff]
    %v3320 = vld [vmem:[#allocation10 + $0x1d0] sm:$0xff]
    %v3321 = vld [vmem:[#allocation10 + $0x1d8] sm:$0xff]
    %v3322 = vld [vmem:[#allocation10 + $0x1e0] sm:$0xff]
    %v3323 = vld [vmem:[#allocation10 + $0x1e8] sm:$0xff]
    %v3324 = vld [vmem:[#allocation10 + $0x1f0] sm:$0xff]
    %v3325 = vld [vmem:[#allocation10 + $0x1f8] sm:$0xff]
    %v3326 = vld [vmem:[#allocation10 + $0x200] sm:$0xff]
    %v3327 = vld [vmem:[#allocation10 + $0x208] sm:$0xff]
    %v3328 = vld [vmem:[#allocation10 + $0x210] sm:$0xff]
    %v3329 = vld [vmem:[#allocation10 + $0x218] sm:$0xff]
    %v3330 = vld [vmem:[#allocation10 + $0x220] sm:$0xff]
    %v3331 = vld [vmem:[#allocation10 + $0x228] sm:$0xff]
    %v3332 = vld [vmem:[#allocation10 + $0x230] sm:$0xff]
    %v3333 = vld [vmem:[#allocation10 + $0x238] sm:$0xff]
    %v3334 = vld [vmem:[#allocation10 + $0x240] sm:$0xff]
    %v3335 = vld [vmem:[#allocation10 + $0x248] sm:$0xff]
    %v3336 = vld [vmem:[#allocation10 + $0x250] sm:$0xff]
    %v3337 = vld [vmem:[#allocation10 + $0x258] sm:$0xff]
    %v3338 = vld [vmem:[#allocation10 + $0x260] sm:$0xff]
    %v3339 = vld [vmem:[#allocation10 + $0x268] sm:$0xff]
    %v3340 = vld [vmem:[#allocation10 + $0x270] sm:$0xff]
    %v3341 = vld [vmem:[#allocation10 + $0x278] sm:$0xff]
    %v3342 = vld [vmem:[#allocation10 + $0x280] sm:$0xff]
    %v3343 = vld [vmem:[#allocation10 + $0x288] sm:$0xff]
    %v3344 = vld [vmem:[#allocation10 + $0x290] sm:$0xff]
    %v3345 = vld [vmem:[#allocation10 + $0x298] sm:$0xff]
    %v3346 = vld [vmem:[#allocation10 + $0x2a0] sm:$0xff]
    %v3347 = vld [vmem:[#allocation10 + $0x2a8] sm:$0xff]
    %v3348 = vld [vmem:[#allocation10 + $0x2b0] sm:$0xff]
    %v3349 = vld [vmem:[#allocation10 + $0x2b8] sm:$0xff]
    %v3350 = vld [vmem:[#allocation10 + $0x2c0] sm:$0xff]
    %v3351 = vld [vmem:[#allocation10 + $0x2c8] sm:$0xff]
    %v3352 = vld [vmem:[#allocation10 + $0x2d0] sm:$0xff]
    %v3353 = vld [vmem:[#allocation10 + $0x2d8] sm:$0xff]
    %v3354 = vld [vmem:[#allocation10 + $0x2e0] sm:$0xff]
    %v3355 = vld [vmem:[#allocation10 + $0x2e8] sm:$0xff]
    %v3356 = vld [vmem:[#allocation10 + $0x2f0] sm:$0xff]
    %v3357 = vld [vmem:[#allocation10 + $0x2f8] sm:$0xff]
    %v3358 = vld [vmem:[#allocation10 + $0x300] sm:$0xff]
    %v3359 = vld [vmem:[#allocation10 + $0x308] sm:$0xff]
    %v3360 = vld [vmem:[#allocation10 + $0x310] sm:$0xff]
    %v3361 = vld [vmem:[#allocation10 + $0x318] sm:$0xff]
    %v3362 = vld [vmem:[#allocation10 + $0x320] sm:$0xff]
    %v3363 = vld [vmem:[#allocation10 + $0x328] sm:$0xff]
    %v3364 = vld [vmem:[#allocation10 + $0x330] sm:$0xff]
    %v3365 = vld [vmem:[#allocation10 + $0x338] sm:$0xff]
    %v3366 = vld [vmem:[#allocation10 + $0x340] sm:$0xff]
    %v3367 = vld [vmem:[#allocation10 + $0x348] sm:$0xff]
    %v3368 = vld [vmem:[#allocation10 + $0x350] sm:$0xff]
    %v3369 = vld [vmem:[#allocation10 + $0x358] sm:$0xff]
    %v3370 = vld [vmem:[#allocation10 + $0x360] sm:$0xff]
    %v3371 = vld [vmem:[#allocation10 + $0x368] sm:$0xff]
    %v3372 = vld [vmem:[#allocation10 + $0x370] sm:$0xff]
    %v3373 = vld [vmem:[#allocation10 + $0x378] sm:$0xff]
    %v3374 = vld [vmem:[#allocation10 + $0x380] sm:$0xff]
    %v3375 = vld [vmem:[#allocation10 + $0x388] sm:$0xff]
    %v3376 = vld [vmem:[#allocation10 + $0x390] sm:$0xff]
    %v3377 = vld [vmem:[#allocation10 + $0x398] sm:$0xff]
    %v3378 = vld [vmem:[#allocation10 + $0x3a0] sm:$0xff]
    %v3379 = vld [vmem:[#allocation10 + $0x3a8] sm:$0xff]
    %v3380 = vld [vmem:[#allocation10 + $0x3b0] sm:$0xff]
    %v3381 = vld [vmem:[#allocation10 + $0x3b8] sm:$0xff]
    %v3382 = vld [vmem:[#allocation10 + $0x3c0] sm:$0xff]
    %v3383 = vld [vmem:[#allocation10 + $0x3c8] sm:$0xff]
    %v3384 = vld [vmem:[#allocation10 + $0x3d0] sm:$0xff]
    %v3385 = vld [vmem:[#allocation10 + $0x3d8] sm:$0xff]
    %v3386 = vld [vmem:[#allocation10 + $0x3e0] sm:$0xff]
    %v3387 = vld [vmem:[#allocation10 + $0x3e8] sm:$0xff]
    %v3388 = vld [vmem:[#allocation10 + $0x3f0] sm:$0xff]
    %v3389 = vld [vmem:[#allocation10 + $0x3f8] sm:$0xff]
    %3390 = vmatprep.subr.mxu0 %v3263
    %3391 = vmatpush1.msra.mxu0 %v3262
    %3392 = vmatprep.subr.mxu0 %v3265
    %3393 = vmatpush1.msra.mxu0 %v3264
    %3394 = vmatprep.subr.mxu0 %v3267
    %3395 = vmatpush1.msra.mxu0 %v3266
    %3396 = vmatprep.subr.mxu0 %v3269
    %3397 = vmatpush1.msra.mxu0 %v3268
    %3398 = vmatprep.subr.mxu0 %v3271
    %3399 = vmatpush1.msra.mxu0 %v3270
    %3400 = vmatprep.subr.mxu0 %v3273
    %3401 = vmatpush1.msra.mxu0 %v3272
    %3402 = vmatprep.subr.mxu0 %v3275
    %3403 = vmatpush1.msra.mxu0 %v3274
    %3404 = vmatprep.subr.mxu0 %v3277
    %3405 = vmatpush1.msra.mxu0 %v3276
    %3406 = vmatprep.subr.mxu0 %v3279
    %3407 = vmatpush1.msra.mxu0 %v3278
    %3408 = vmatprep.subr.mxu0 %v3281
    %3409 = vmatpush1.msra.mxu0 %v3280
    %3410 = vmatprep.subr.mxu0 %v3283
    %3411 = vmatpush1.msra.mxu0 %v3282
    %3412 = vmatprep.subr.mxu0 %v3285
    %3413 = vmatpush1.msra.mxu0 %v3284
    %3414 = vmatprep.subr.mxu0 %v3287
    %3415 = vmatpush1.msra.mxu0 %v3286
    %3416 = vmatprep.subr.mxu0 %v3289
    %3417 = vmatpush1.msra.mxu0 %v3288
    %3418 = vmatprep.subr.mxu0 %v3291
    %3419 = vmatpush1.msra.mxu0 %v3290
    %3420 = vmatprep.subr.mxu0 %v3293
    %3421 = vmatpush1.msra.mxu0 %v3292
    %3422 = vmatprep.subr.mxu0 %v3295
    %3423 = vmatpush1.msra.mxu0 %v3294
    %3424 = vmatprep.subr.mxu0 %v3297
    %3425 = vmatpush1.msra.mxu0 %v3296
    %3426 = vmatprep.subr.mxu0 %v3299
    %3427 = vmatpush1.msra.mxu0 %v3298
    %3428 = vmatprep.subr.mxu0 %v3301
    %3429 = vmatpush1.msra.mxu0 %v3300
    %3430 = vmatprep.subr.mxu0 %v3303
    %3431 = vmatpush1.msra.mxu0 %v3302
    %3432 = vmatprep.subr.mxu0 %v3305
    %3433 = vmatpush1.msra.mxu0 %v3304
    %3434 = vmatprep.subr.mxu0 %v3307
    %3435 = vmatpush1.msra.mxu0 %v3306
    %3436 = vmatprep.subr.mxu0 %v3309
    %3437 = vmatpush1.msra.mxu0 %v3308
    %3438 = vmatprep.subr.mxu0 %v3311
    %3439 = vmatpush1.msra.mxu0 %v3310
    %3440 = vmatprep.subr.mxu0 %v3313
    %3441 = vmatpush1.msra.mxu0 %v3312
    %3442 = vmatprep.subr.mxu0 %v3315
    %3443 = vmatpush1.msra.mxu0 %v3314
    %3444 = vmatprep.subr.mxu0 %v3317
    %3445 = vmatpush1.msra.mxu0 %v3316
    %3446 = vmatprep.subr.mxu0 %v3319
    %3447 = vmatpush1.msra.mxu0 %v3318
    %3448 = vmatprep.subr.mxu0 %v3321
    %3449 = vmatpush1.msra.mxu0 %v3320
    %3450 = vmatprep.subr.mxu0 %v3323
    %3451 = vmatpush1.msra.mxu0 %v3322
    %3452 = vmatprep.subr.mxu0 %v3325
    %3453 = vmatpush1.msra.mxu0 %v3324
    %3454 = vmatprep.mubr.f32.mxu0 %v3255
    %3455 = vmatmul.mubr.f32.gmra.mrb[0].mxu0 %v3254
    %v3456 = vpop.f32.mrb[0].mxu0
    %v3457 = vadd.f32 0.0, %v3456
    %v3458 = vpop.f32.mrb[0].mxu0
    %v3459 = vadd.f32 0.0, %v3458
    %3460 = vmatprep.mubr.f32.mxu0 %v3259
    %3461 = vmatmul.mubr.f32.gmra.mrb[0].mxu0 %v3258
    %v3462 = vpop.f32.mrb[0].mxu0
    %v3463 = vadd.f32 0.0, %v3462
    %v3464 = vpop.f32.mrb[0].mxu0
    %v3465 = vadd.f32 0.0, %v3464
    %3466 = vdwg.mxu0
    %3467 = vmatprep.subr.mxu0 %v3327
    %3468 = vmatpush1.msra.mxu0 %v3326
    %3469 = vmatprep.subr.mxu0 %v3329
    %3470 = vmatpush1.msra.mxu0 %v3328
    %3471 = vmatprep.subr.mxu0 %v3331
    %3472 = vmatpush1.msra.mxu0 %v3330
    %3473 = vmatprep.subr.mxu0 %v3333
    %3474 = vmatpush1.msra.mxu0 %v3332
    %3475 = vmatprep.subr.mxu0 %v3335
    %3476 = vmatpush1.msra.mxu0 %v3334
    %3477 = vmatprep.subr.mxu0 %v3337
    %3478 = vmatpush1.msra.mxu0 %v3336
    %3479 = vmatprep.subr.mxu0 %v3339
    %3480 = vmatpush1.msra.mxu0 %v3338
    %3481 = vmatprep.subr.mxu0 %v3341
    %3482 = vmatpush1.msra.mxu0 %v3340
    %3483 = vmatprep.subr.mxu0 %v3343
    %3484 = vmatpush1.msra.mxu0 %v3342
    %3485 = vmatprep.subr.mxu0 %v3345
    %3486 = vmatpush1.msra.mxu0 %v3344
    %3487 = vmatprep.subr.mxu0 %v3347
    %3488 = vmatpush1.msra.mxu0 %v3346
    %3489 = vmatprep.subr.mxu0 %v3349
    %3490 = vmatpush1.msra.mxu0 %v3348
    %3491 = vmatprep.subr.mxu0 %v3351
    %3492 = vmatpush1.msra.mxu0 %v3350
    %3493 = vmatprep.subr.mxu0 %v3353
    %3494 = vmatpush1.msra.mxu0 %v3352
    %3495 = vmatprep.subr.mxu0 %v3355
    %3496 = vmatpush1.msra.mxu0 %v3354
    %3497 = vmatprep.subr.mxu0 %v3357
    %3498 = vmatpush1.msra.mxu0 %v3356
    %3499 = vmatprep.subr.mxu0 %v3359
    %3500 = vmatpush1.msra.mxu0 %v3358
    %3501 = vmatprep.subr.mxu0 %v3361
    %3502 = vmatpush1.msra.mxu0 %v3360
    %3503 = vmatprep.subr.mxu0 %v3363
    %3504 = vmatpush1.msra.mxu0 %v3362
    %3505 = vmatprep.subr.mxu0 %v3365
    %3506 = vmatpush1.msra.mxu0 %v3364
    %3507 = vmatprep.subr.mxu0 %v3367
    %3508 = vmatpush1.msra.mxu0 %v3366
    %3509 = vmatprep.subr.mxu0 %v3369
    %3510 = vmatpush1.msra.mxu0 %v3368
    %3511 = vmatprep.subr.mxu0 %v3371
    %3512 = vmatpush1.msra.mxu0 %v3370
    %3513 = vmatprep.subr.mxu0 %v3373
    %3514 = vmatpush1.msra.mxu0 %v3372
    %3515 = vmatprep.subr.mxu0 %v3375
    %3516 = vmatpush1.msra.mxu0 %v3374
    %3517 = vmatprep.subr.mxu0 %v3377
    %3518 = vmatpush1.msra.mxu0 %v3376
    %3519 = vmatprep.subr.mxu0 %v3379
    %3520 = vmatpush1.msra.mxu0 %v3378
    %3521 = vmatprep.subr.mxu0 %v3381
    %3522 = vmatpush1.msra.mxu0 %v3380
    %3523 = vmatprep.subr.mxu0 %v3383
    %3524 = vmatpush1.msra.mxu0 %v3382
    %3525 = vmatprep.subr.mxu0 %v3385
    %3526 = vmatpush1.msra.mxu0 %v3384
    %3527 = vmatprep.subr.mxu0 %v3387
    %3528 = vmatpush1.msra.mxu0 %v3386
    %3529 = vmatprep.subr.mxu0 %v3389
    %3530 = vmatpush1.msra.mxu0 %v3388
    %3531 = vmatprep.mubr.f32.mxu0 %v3257
    %3532 = vmatmul.mubr.f32.gmra.mrb[0].mxu0 %v3256
    %v3533 = vpop.f32.mrb[0].mxu0
    %v3534 = vadd.f32 %v3457, %v3533
    %v3535 = vpop.f32.mrb[0].mxu0
    %v3536 = vadd.f32 %v3459, %v3535
    %3537 = vmatprep.mubr.f32.mxu0 %v3261
    %3538 = vmatmul.mubr.f32.gmra.mrb[0].mxu0 %v3260
    %v3539 = vpop.f32.mrb[0].mxu0
    %v3540 = vadd.f32 %v3463, %v3539
    %v3541 = vpop.f32.mrb[0].mxu0
    %v3542 = vadd.f32 %v3465, %v3541
    %3543 = vdwg.mxu0
    %v3544 = vld [vmem:[#allocation8] sm:$0xff]
    %v3545 = vld [vmem:[#allocation8 + $0x8] sm:$0xff]
    %s3546 = scalar_lea.vmem [#allocation10], 1024
    %v3547 = vld [vmem:[%s3546] sm:$0xff]
    %v3548 = vld [vmem:[%s3546 + $0x8] sm:$0xff]
    %v3549 = vld [vmem:[%s3546 + $0x10] sm:$0xff]
    %v3550 = vld [vmem:[%s3546 + $0x18] sm:$0xff]
    %v3551 = vld [vmem:[%s3546 + $0x20] sm:$0xff]
    %v3552 = vld [vmem:[%s3546 + $0x28] sm:$0xff]
    %v3553 = vld [vmem:[%s3546 + $0x30] sm:$0xff]
    %v3554 = vld [vmem:[%s3546 + $0x38] sm:$0xff]
    %v3555 = vld [vmem:[%s3546 + $0x40] sm:$0xff]
    %v3556 = vld [vmem:[%s3546 + $0x48] sm:$0xff]
    %v3557 = vld [vmem:[%s3546 + $0x50] sm:$0xff]
    %v3558 = vld [vmem:[%s3546 + $0x58] sm:$0xff]
    %v3559 = vld [vmem:[%s3546 + $0x60] sm:$0xff]
    %v3560 = vld [vmem:[%s3546 + $0x68] sm:$0xff]
    %v3561 = vld [vmem:[%s3546 + $0x70] sm:$0xff]
    %v3562 = vld [vmem:[%s3546 + $0x78] sm:$0xff]
    %v3563 = vld [vmem:[%s3546 + $0x80] sm:$0xff]
    %v3564 = vld [vmem:[%s3546 + $0x88] sm:$0xff]
    %v3565 = vld [vmem:[%s3546 + $0x90] sm:$0xff]
    %v3566 = vld [vmem:[%s3546 + $0x98] sm:$0xff]
    %v3567 = vld [vmem:[%s3546 + $0xa0] sm:$0xff]
    %v3568 = vld [vmem:[%s3546 + $0xa8] sm:$0xff]
    %v3569 = vld [vmem:[%s3546 + $0xb0] sm:$0xff]
    %v3570 = vld [vmem:[%s3546 + $0xb8] sm:$0xff]
    %v3571 = vld [vmem:[%s3546 + $0xc0] sm:$0xff]
    %v3572 = vld [vmem:[%s3546 + $0xc8] sm:$0xff]
    %v3573 = vld [vmem:[%s3546 + $0xd0] sm:$0xff]
    %v3574 = vld [vmem:[%s3546 + $0xd8] sm:$0xff]
    %v3575 = vld [vmem:[%s3546 + $0xe0] sm:$0xff]
    %v3576 = vld [vmem:[%s3546 + $0xe8] sm:$0xff]
    %v3577 = vld [vmem:[%s3546 + $0xf0] sm:$0xff]
    %v3578 = vld [vmem:[%s3546 + $0xf8] sm:$0xff]
    %v3579 = vld [vmem:[%s3546 + $0x100] sm:$0xff]
    %v3580 = vld [vmem:[%s3546 + $0x108] sm:$0xff]
    %v3581 = vld [vmem:[%s3546 + $0x110] sm:$0xff]
    %v3582 = vld [vmem:[%s3546 + $0x118] sm:$0xff]
    %v3583 = vld [vmem:[%s3546 + $0x120] sm:$0xff]
    %v3584 = vld [vmem:[%s3546 + $0x128] sm:$0xff]
    %v3585 = vld [vmem:[%s3546 + $0x130] sm:$0xff]
    %v3586 = vld [vmem:[%s3546 + $0x138] sm:$0xff]
    %v3587 = vld [vmem:[%s3546 + $0x140] sm:$0xff]
    %v3588 = vld [vmem:[%s3546 + $0x148] sm:$0xff]
    %v3589 = vld [vmem:[%s3546 + $0x150] sm:$0xff]
    %v3590 = vld [vmem:[%s3546 + $0x158] sm:$0xff]
    %v3591 = vld [vmem:[%s3546 + $0x160] sm:$0xff]
    %v3592 = vld [vmem:[%s3546 + $0x168] sm:$0xff]
    %v3593 = vld [vmem:[%s3546 + $0x170] sm:$0xff]
    %v3594 = vld [vmem:[%s3546 + $0x178] sm:$0xff]
    %v3595 = vld [vmem:[%s3546 + $0x180] sm:$0xff]
    %v3596 = vld [vmem:[%s3546 + $0x188] sm:$0xff]
    %v3597 = vld [vmem:[%s3546 + $0x190] sm:$0xff]
    %v3598 = vld [vmem:[%s3546 + $0x198] sm:$0xff]
    %v3599 = vld [vmem:[%s3546 + $0x1a0] sm:$0xff]
    %v3600 = vld [vmem:[%s3546 + $0x1a8] sm:$0xff]
    %v3601 = vld [vmem:[%s3546 + $0x1b0] sm:$0xff]
    %v3602 = vld [vmem:[%s3546 + $0x1b8] sm:$0xff]
    %v3603 = vld [vmem:[%s3546 + $0x1c0] sm:$0xff]
    %v3604 = vld [vmem:[%s3546 + $0x1c8] sm:$0xff]
    %v3605 = vld [vmem:[%s3546 + $0x1d0] sm:$0xff]
    %v3606 = vld [vmem:[%s3546 + $0x1d8] sm:$0xff]
    %v3607 = vld [vmem:[%s3546 + $0x1e0] sm:$0xff]
    %v3608 = vld [vmem:[%s3546 + $0x1e8] sm:$0xff]
    %v3609 = vld [vmem:[%s3546 + $0x1f0] sm:$0xff]
    %v3610 = vld [vmem:[%s3546 + $0x1f8] sm:$0xff]
    %v3611 = vld [vmem:[%s3546 + $0x200] sm:$0xff]
    %v3612 = vld [vmem:[%s3546 + $0x208] sm:$0xff]
    %v3613 = vld [vmem:[%s3546 + $0x210] sm:$0xff]
    %v3614 = vld [vmem:[%s3546 + $0x218] sm:$0xff]
    %v3615 = vld [vmem:[%s3546 + $0x220] sm:$0xff]
    %v3616 = vld [vmem:[%s3546 + $0x228] sm:$0xff]
    %v3617 = vld [vmem:[%s3546 + $0x230] sm:$0xff]
    %v3618 = vld [vmem:[%s3546 + $0x238] sm:$0xff]
    %v3619 = vld [vmem:[%s3546 + $0x240] sm:$0xff]
    %v3620 = vld [vmem:[%s3546 + $0x248] sm:$0xff]
    %v3621 = vld [vmem:[%s3546 + $0x250] sm:$0xff]
    %v3622 = vld [vmem:[%s3546 + $0x258] sm:$0xff]
    %v3623 = vld [vmem:[%s3546 + $0x260] sm:$0xff]
    %v3624 = vld [vmem:[%s3546 + $0x268] sm:$0xff]
    %v3625 = vld [vmem:[%s3546 + $0x270] sm:$0xff]
    %v3626 = vld [vmem:[%s3546 + $0x278] sm:$0xff]
    %v3627 = vld [vmem:[%s3546 + $0x280] sm:$0xff]
    %v3628 = vld [vmem:[%s3546 + $0x288] sm:$0xff]
    %v3629 = vld [vmem:[%s3546 + $0x290] sm:$0xff]
    %v3630 = vld [vmem:[%s3546 + $0x298] sm:$0xff]
    %v3631 = vld [vmem:[%s3546 + $0x2a0] sm:$0xff]
    %v3632 = vld [vmem:[%s3546 + $0x2a8] sm:$0xff]
    %v3633 = vld [vmem:[%s3546 + $0x2b0] sm:$0xff]
    %v3634 = vld [vmem:[%s3546 + $0x2b8] sm:$0xff]
    %v3635 = vld [vmem:[%s3546 + $0x2c0] sm:$0xff]
    %v3636 = vld [vmem:[%s3546 + $0x2c8] sm:$0xff]
    %v3637 = vld [vmem:[%s3546 + $0x2d0] sm:$0xff]
    %v3638 = vld [vmem:[%s3546 + $0x2d8] sm:$0xff]
    %v3639 = vld [vmem:[%s3546 + $0x2e0] sm:$0xff]
    %v3640 = vld [vmem:[%s3546 + $0x2e8] sm:$0xff]
    %v3641 = vld [vmem:[%s3546 + $0x2f0] sm:$0xff]
    %v3642 = vld [vmem:[%s3546 + $0x2f8] sm:$0xff]
    %v3643 = vld [vmem:[%s3546 + $0x300] sm:$0xff]
    %v3644 = vld [vmem:[%s3546 + $0x308] sm:$0xff]
    %v3645 = vld [vmem:[%s3546 + $0x310] sm:$0xff]
    %v3646 = vld [vmem:[%s3546 + $0x318] sm:$0xff]
    %v3647 = vld [vmem:[%s3546 + $0x320] sm:$0xff]
    %v3648 = vld [vmem:[%s3546 + $0x328] sm:$0xff]
    %v3649 = vld [vmem:[%s3546 + $0x330] sm:$0xff]
    %v3650 = vld [vmem:[%s3546 + $0x338] sm:$0xff]
    %v3651 = vld [vmem:[%s3546 + $0x340] sm:$0xff]
    %v3652 = vld [vmem:[%s3546 + $0x348] sm:$0xff]
    %v3653 = vld [vmem:[%s3546 + $0x350] sm:$0xff]
    %v3654 = vld [vmem:[%s3546 + $0x358] sm:$0xff]
    %v3655 = vld [vmem:[%s3546 + $0x360] sm:$0xff]
    %v3656 = vld [vmem:[%s3546 + $0x368] sm:$0xff]
    %v3657 = vld [vmem:[%s3546 + $0x370] sm:$0xff]
    %v3658 = vld [vmem:[%s3546 + $0x378] sm:$0xff]
    %v3659 = vld [vmem:[%s3546 + $0x380] sm:$0xff]
    %v3660 = vld [vmem:[%s3546 + $0x388] sm:$0xff]
    %v3661 = vld [vmem:[%s3546 + $0x390] sm:$0xff]
    %v3662 = vld [vmem:[%s3546 + $0x398] sm:$0xff]
    %v3663 = vld [vmem:[%s3546 + $0x3a0] sm:$0xff]
    %v3664 = vld [vmem:[%s3546 + $0x3a8] sm:$0xff]
    %v3665 = vld [vmem:[%s3546 + $0x3b0] sm:$0xff]
    %v3666 = vld [vmem:[%s3546 + $0x3b8] sm:$0xff]
    %v3667 = vld [vmem:[%s3546 + $0x3c0] sm:$0xff]
    %v3668 = vld [vmem:[%s3546 + $0x3c8] sm:$0xff]
    %v3669 = vld [vmem:[%s3546 + $0x3d0] sm:$0xff]
    %v3670 = vld [vmem:[%s3546 + $0x3d8] sm:$0xff]
    %v3671 = vld [vmem:[%s3546 + $0x3e0] sm:$0xff]
    %v3672 = vld [vmem:[%s3546 + $0x3e8] sm:$0xff]
    %v3673 = vld [vmem:[%s3546 + $0x3f0] sm:$0xff]
    %v3674 = vld [vmem:[%s3546 + $0x3f8] sm:$0xff]
    %3675 = vmatprep.subr.mxu0 %v3548
    %3676 = vmatpush1.msra.mxu0 %v3547
    %3677 = vmatprep.subr.mxu0 %v3550
    %3678 = vmatpush1.msra.mxu0 %v3549
    %3679 = vmatprep.subr.mxu0 %v3552
    %3680 = vmatpush1.msra.mxu0 %v3551
    %3681 = vmatprep.subr.mxu0 %v3554
    %3682 = vmatpush1.msra.mxu0 %v3553
    %3683 = vmatprep.subr.mxu0 %v3556
    %3684 = vmatpush1.msra.mxu0 %v3555
    %3685 = vmatprep.subr.mxu0 %v3558
    %3686 = vmatpush1.msra.mxu0 %v3557
    %3687 = vmatprep.subr.mxu0 %v3560
    %3688 = vmatpush1.msra.mxu0 %v3559
    %3689 = vmatprep.subr.mxu0 %v3562
    %3690 = vmatpush1.msra.mxu0 %v3561
    %3691 = vmatprep.subr.mxu0 %v3564
    %3692 = vmatpush1.msra.mxu0 %v3563
    %3693 = vmatprep.subr.mxu0 %v3566
    %3694 = vmatpush1.msra.mxu0 %v3565
    %3695 = vmatprep.subr.mxu0 %v3568
    %3696 = vmatpush1.msra.mxu0 %v3567
    %3697 = vmatprep.subr.mxu0 %v3570
    %3698 = vmatpush1.msra.mxu0 %v3569
    %3699 = vmatprep.subr.mxu0 %v3572
    %3700 = vmatpush1.msra.mxu0 %v3571
    %3701 = vmatprep.subr.mxu0 %v3574
    %3702 = vmatpush1.msra.mxu0 %v3573
    %3703 = vmatprep.subr.mxu0 %v3576
    %3704 = vmatpush1.msra.mxu0 %v3575
    %3705 = vmatprep.subr.mxu0 %v3578
    %3706 = vmatpush1.msra.mxu0 %v3577
    %3707 = vmatprep.subr.mxu0 %v3580
    %3708 = vmatpush1.msra.mxu0 %v3579
    %3709 = vmatprep.subr.mxu0 %v3582
    %3710 = vmatpush1.msra.mxu0 %v3581
    %3711 = vmatprep.subr.mxu0 %v3584
    %3712 = vmatpush1.msra.mxu0 %v3583
    %3713 = vmatprep.subr.mxu0 %v3586
    %3714 = vmatpush1.msra.mxu0 %v3585
    %3715 = vmatprep.subr.mxu0 %v3588
    %3716 = vmatpush1.msra.mxu0 %v3587
    %3717 = vmatprep.subr.mxu0 %v3590
    %3718 = vmatpush1.msra.mxu0 %v3589
    %3719 = vmatprep.subr.mxu0 %v3592
    %3720 = vmatpush1.msra.mxu0 %v3591
    %3721 = vmatprep.subr.mxu0 %v3594
    %3722 = vmatpush1.msra.mxu0 %v3593
    %3723 = vmatprep.subr.mxu0 %v3596
    %3724 = vmatpush1.msra.mxu0 %v3595
    %3725 = vmatprep.subr.mxu0 %v3598
    %3726 = vmatpush1.msra.mxu0 %v3597
    %3727 = vmatprep.subr.mxu0 %v3600
    %3728 = vmatpush1.msra.mxu0 %v3599
    %3729 = vmatprep.subr.mxu0 %v3602
    %3730 = vmatpush1.msra.mxu0 %v3601
    %3731 = vmatprep.subr.mxu0 %v3604
    %3732 = vmatpush1.msra.mxu0 %v3603
    %3733 = vmatprep.subr.mxu0 %v3606
    %3734 = vmatpush1.msra.mxu0 %v3605
    %3735 = vmatprep.subr.mxu0 %v3608
    %3736 = vmatpush1.msra.mxu0 %v3607
    %3737 = vmatprep.subr.mxu0 %v3610
    %3738 = vmatpush1.msra.mxu0 %v3609
    %3739 = vmatprep.mubr.f32.mxu0 %v3255
    %3740 = vmatmul.mubr.f32.gmra.mrb[0].mxu0 %v3254
    %v3741 = vpop.f32.mrb[0].mxu0
    %v3742 = vadd.f32 0.0, %v3741
    %v3743 = vpop.f32.mrb[0].mxu0
    %v3744 = vadd.f32 0.0, %v3743
    %3745 = vmatprep.mubr.f32.mxu0 %v3259
    %3746 = vmatmul.mubr.f32.gmra.mrb[0].mxu0 %v3258
    %v3747 = vpop.f32.mrb[0].mxu0
    %v3748 = vadd.f32 0.0, %v3747
    %v3749 = vpop.f32.mrb[0].mxu0
    %v3750 = vadd.f32 0.0, %v3749
    %3751 = vdwg.mxu0
    %3752 = vmatprep.subr.mxu0 %v3612
    %3753 = vmatpush1.msra.mxu0 %v3611
    %3754 = vmatprep.subr.mxu0 %v3614
    %3755 = vmatpush1.msra.mxu0 %v3613
    %3756 = vmatprep.subr.mxu0 %v3616
    %3757 = vmatpush1.msra.mxu0 %v3615
    %3758 = vmatprep.subr.mxu0 %v3618
    %3759 = vmatpush1.msra.mxu0 %v3617
    %3760 = vmatprep.subr.mxu0 %v3620
    %3761 = vmatpush1.msra.mxu0 %v3619
    %3762 = vmatprep.subr.mxu0 %v3622
    %3763 = vmatpush1.msra.mxu0 %v3621
    %3764 = vmatprep.subr.mxu0 %v3624
    %3765 = vmatpush1.msra.mxu0 %v3623
    %3766 = vmatprep.subr.mxu0 %v3626
    %3767 = vmatpush1.msra.mxu0 %v3625
    %3768 = vmatprep.subr.mxu0 %v3628
    %3769 = vmatpush1.msra.mxu0 %v3627
    %3770 = vmatprep.subr.mxu0 %v3630
    %3771 = vmatpush1.msra.mxu0 %v3629
    %3772 = vmatprep.subr.mxu0 %v3632
    %3773 = vmatpush1.msra.mxu0 %v3631
    %3774 = vmatprep.subr.mxu0 %v3634
    %3775 = vmatpush1.msra.mxu0 %v3633
    %3776 = vmatprep.subr.mxu0 %v3636
    %3777 = vmatpush1.msra.mxu0 %v3635
    %3778 = vmatprep.subr.mxu0 %v3638
    %3779 = vmatpush1.msra.mxu0 %v3637
    %3780 = vmatprep.subr.mxu0 %v3640
    %3781 = vmatpush1.msra.mxu0 %v3639
    %3782 = vmatprep.subr.mxu0 %v3642
    %3783 = vmatpush1.msra.mxu0 %v3641
    %3784 = vmatprep.subr.mxu0 %v3644
    %3785 = vmatpush1.msra.mxu0 %v3643
    %3786 = vmatprep.subr.mxu0 %v3646
    %3787 = vmatpush1.msra.mxu0 %v3645
    %3788 = vmatprep.subr.mxu0 %v3648
    %3789 = vmatpush1.msra.mxu0 %v3647
    %3790 = vmatprep.subr.mxu0 %v3650
    %3791 = vmatpush1.msra.mxu0 %v3649
    %3792 = vmatprep.subr.mxu0 %v3652
    %3793 = vmatpush1.msra.mxu0 %v3651
    %3794 = vmatprep.subr.mxu0 %v3654
    %3795 = vmatpush1.msra.mxu0 %v3653
    %3796 = vmatprep.subr.mxu0 %v3656
    %3797 = vmatpush1.msra.mxu0 %v3655
    %3798 = vmatprep.subr.mxu0 %v3658
    %3799 = vmatpush1.msra.mxu0 %v3657
    %3800 = vmatprep.subr.mxu0 %v3660
    %3801 = vmatpush1.msra.mxu0 %v3659
    %3802 = vmatprep.subr.mxu0 %v3662
    %3803 = vmatpush1.msra.mxu0 %v3661
    %3804 = vmatprep.subr.mxu0 %v3664
    %3805 = vmatpush1.msra.mxu0 %v3663
    %3806 = vmatprep.subr.mxu0 %v3666
    %3807 = vmatpush1.msra.mxu0 %v3665
    %3808 = vmatprep.subr.mxu0 %v3668
    %3809 = vmatpush1.msra.mxu0 %v3667
    %3810 = vmatprep.subr.mxu0 %v3670
    %3811 = vmatpush1.msra.mxu0 %v3669
    %3812 = vmatprep.subr.mxu0 %v3672
    %3813 = vmatpush1.msra.mxu0 %v3671
    %3814 = vmatprep.subr.mxu0 %v3674
    %3815 = vmatpush1.msra.mxu0 %v3673
    %3816 = vmatprep.mubr.f32.mxu0 %v3257
    %3817 = vmatmul.mubr.f32.gmra.mrb[0].mxu0 %v3256
    %v3818 = vpop.f32.mrb[0].mxu0
    %v3819 = vadd.f32 %v3742, %v3818
    %v3820 = vpop.f32.mrb[0].mxu0
    %v3821 = vadd.f32 %v3744, %v3820
    %3822 = vmatprep.mubr.f32.mxu0 %v3261
    %3823 = vmatmul.mubr.f32.gmra.mrb[0].mxu0 %v3260
    %v3824 = vpop.f32.mrb[0].mxu0
    %v3825 = vadd.f32 %v3748, %v3824
    %v3826 = vpop.f32.mrb[0].mxu0
    %v3827 = vadd.f32 %v3750, %v3826
    %3828 = vdwg.mxu0
    %s3829 = scalar_lea.vmem [#allocation8], 16
    %v3830 = vld [vmem:[%s3829] sm:$0xff]
    %v3831 = vld [vmem:[%s3829 + $0x8] sm:$0xff]
    %v3833 = vsel %vm233, %v3830, 0
    %v3836 = vsel %vm233, %v3831, 0
    %3838 = vmatprep.subr.mxu0 %v3821
    %3839 = vmatpush1.msra.mxu0 %v3819
    %3840 = vmatprep.subr.mxu0 %v3827
    %3841 = vmatpush1.msra.mxu0 %v3825
    %3842 = vmatprep.subr.mxu0 0.0
    %3843 = vmatpush1.msra.mxu0 0.0
    %3844 = vmatprep.subr.mxu0 0.0
    %3845 = vmatpush1.msra.mxu0 0.0
    %3846 = vmatprep.subr.mxu0 0.0
    %3847 = vmatpush1.msra.mxu0 0.0
    %3848 = vmatprep.subr.mxu0 0.0
    %3849 = vmatpush1.msra.mxu0 0.0
    %3850 = vmatprep.subr.mxu0 0.0
    %3851 = vmatpush1.msra.mxu0 0.0
    %3852 = vmatprep.subr.mxu0 0.0
    %3853 = vmatpush1.msra.mxu0 0.0
    %3854 = vmatprep.subr.mxu0 0.0
    %3855 = vmatpush1.msra.mxu0 0.0
    %3856 = vmatprep.subr.mxu0 0.0
    %3857 = vmatpush1.msra.mxu0 0.0
    %3858 = vmatprep.subr.mxu0 0.0
    %3859 = vmatpush1.msra.mxu0 0.0
    %3860 = vmatprep.subr.mxu0 0.0
    %3861 = vmatpush1.msra.mxu0 0.0
    %3862 = vmatprep.subr.mxu0 0.0
    %3863 = vmatpush1.msra.mxu0 0.0
    %3864 = vmatprep.subr.mxu0 0.0
    %3865 = vmatpush1.msra.mxu0 0.0
    %3866 = vmatprep.subr.mxu0 0.0
    %3867 = vmatpush1.msra.mxu0 0.0
    %3868 = vmatprep.subr.mxu0 0.0
    %3869 = vmatpush1.msra.mxu0 0.0
    %3870 = vmatprep.subr.mxu0 0.0
    %3871 = vmatpush1.msra.mxu0 0.0
    %3872 = vmatprep.subr.mxu0 0.0
    %3873 = vmatpush1.msra.mxu0 0.0
    %3874 = vmatprep.subr.mxu0 0.0
    %3875 = vmatpush1.msra.mxu0 0.0
    %3876 = vmatprep.subr.mxu0 0.0
    %3877 = vmatpush1.msra.mxu0 0.0
    %3878 = vmatprep.subr.mxu0 0.0
    %3879 = vmatpush1.msra.mxu0 0.0
    %3880 = vmatprep.subr.mxu0 0.0
    %3881 = vmatpush1.msra.mxu0 0.0
    %3882 = vmatprep.subr.mxu0 0.0
    %3883 = vmatpush1.msra.mxu0 0.0
    %3884 = vmatprep.subr.mxu0 0.0
    %3885 = vmatpush1.msra.mxu0 0.0
    %3886 = vmatprep.subr.mxu0 0.0
    %3887 = vmatpush1.msra.mxu0 0.0
    %3888 = vmatprep.subr.mxu0 0.0
    %3889 = vmatpush1.msra.mxu0 0.0
    %3890 = vmatprep.subr.mxu0 0.0
    %3891 = vmatpush1.msra.mxu0 0.0
    %3892 = vmatprep.subr.mxu0 0.0
    %3893 = vmatpush1.msra.mxu0 0.0
    %3894 = vmatprep.subr.mxu0 0.0
    %3895 = vmatpush1.msra.mxu0 0.0
    %3896 = vmatprep.subr.mxu0 0.0
    %3897 = vmatpush1.msra.mxu0 0.0
    %3898 = vmatprep.subr.mxu0 0.0
    %3899 = vmatpush1.msra.mxu0 0.0
    %3900 = vmatprep.subr.mxu0 0.0
    %3901 = vmatpush1.msra.mxu0 0.0
    %3902 = vmatprep.mubr.f32.mxu0 0.0
    %3903 = vmatmul.mubr.f32.gmra.mrb[0].mxu0 %v3833
    %v3904 = vpop.f32.mrb[0].mxu0
    %v3905 = vadd.f32 0.0, %v3904
    %v3906 = vpop.f32.mrb[0].mxu0
    %v3907 = vadd.f32 0.0, %v3906
    %3908 = vmatprep.mubr.f32.mxu0 0.0
    %3909 = vmatmul.mubr.f32.gmra.mrb[0].mxu0 %v3836
    %v3910 = vpop.f32.mrb[0].mxu0
    %v3911 = vadd.f32 0.0, %v3910
    %v3912 = vpop.f32.mrb[0].mxu0
    %v3913 = vadd.f32 0.0, %v3912
    %3914 = vdwg.mxu0
    %v3916 = vsel %vm233, %v3544, 0
    %v3919 = vsel %vm233, %v3545, 0
    %3921 = vmatprep.subr.mxu0 %v3536
    %3922 = vmatpush1.msra.mxu0 %v3534
    %3923 = vmatprep.subr.mxu0 %v3542
    %3924 = vmatpush1.msra.mxu0 %v3540
    %3925 = vmatprep.subr.mxu0 0.0
    %3926 = vmatpush1.msra.mxu0 0.0
    %3927 = vmatprep.subr.mxu0 0.0
    %3928 = vmatpush1.msra.mxu0 0.0
    %3929 = vmatprep.subr.mxu0 0.0
    %3930 = vmatpush1.msra.mxu0 0.0
    %3931 = vmatprep.subr.mxu0 0.0
    %3932 = vmatpush1.msra.mxu0 0.0
    %3933 = vmatprep.subr.mxu0 0.0
    %3934 = vmatpush1.msra.mxu0 0.0
    %3935 = vmatprep.subr.mxu0 0.0
    %3936 = vmatpush1.msra.mxu0 0.0
    %3937 = vmatprep.subr.mxu0 0.0
    %3938 = vmatpush1.msra.mxu0 0.0
    %3939 = vmatprep.subr.mxu0 0.0
    %3940 = vmatpush1.msra.mxu0 0.0
    %3941 = vmatprep.subr.mxu0 0.0
    %3942 = vmatpush1.msra.mxu0 0.0
    %3943 = vmatprep.subr.mxu0 0.0
    %3944 = vmatpush1.msra.mxu0 0.0
    %3945 = vmatprep.subr.mxu0 0.0
    %3946 = vmatpush1.msra.mxu0 0.0
    %3947 = vmatprep.subr.mxu0 0.0
    %3948 = vmatpush1.msra.mxu0 0.0
    %3949 = vmatprep.subr.mxu0 0.0
    %3950 = vmatpush1.msra.mxu0 0.0
    %3951 = vmatprep.subr.mxu0 0.0
    %3952 = vmatpush1.msra.mxu0 0.0
    %3953 = vmatprep.subr.mxu0 0.0
    %3954 = vmatpush1.msra.mxu0 0.0
    %3955 = vmatprep.subr.mxu0 0.0
    %3956 = vmatpush1.msra.mxu0 0.0
    %3957 = vmatprep.subr.mxu0 0.0
    %3958 = vmatpush1.msra.mxu0 0.0
    %3959 = vmatprep.subr.mxu0 0.0
    %3960 = vmatpush1.msra.mxu0 0.0
    %3961 = vmatprep.subr.mxu0 0.0
    %3962 = vmatpush1.msra.mxu0 0.0
    %3963 = vmatprep.subr.mxu0 0.0
    %3964 = vmatpush1.msra.mxu0 0.0
    %3965 = vmatprep.subr.mxu0 0.0
    %3966 = vmatpush1.msra.mxu0 0.0
    %3967 = vmatprep.subr.mxu0 0.0
    %3968 = vmatpush1.msra.mxu0 0.0
    %3969 = vmatprep.subr.mxu0 0.0
    %3970 = vmatpush1.msra.mxu0 0.0
    %3971 = vmatprep.subr.mxu0 0.0
    %3972 = vmatpush1.msra.mxu0 0.0
    %3973 = vmatprep.subr.mxu0 0.0
    %3974 = vmatpush1.msra.mxu0 0.0
    %3975 = vmatprep.subr.mxu0 0.0
    %3976 = vmatpush1.msra.mxu0 0.0
    %3977 = vmatprep.subr.mxu0 0.0
    %3978 = vmatpush1.msra.mxu0 0.0
    %3979 = vmatprep.subr.mxu0 0.0
    %3980 = vmatpush1.msra.mxu0 0.0
    %3981 = vmatprep.subr.mxu0 0.0
    %3982 = vmatpush1.msra.mxu0 0.0
    %3983 = vmatprep.subr.mxu0 0.0
    %3984 = vmatpush1.msra.mxu0 0.0
    %3985 = vmatprep.mubr.f32.mxu0 0.0
    %3986 = vmatmul.mubr.f32.gmra.mrb[0].mxu0 %v3916
    %v3987 = vpop.f32.mrb[0].mxu0
    %v3988 = vadd.f32 %v3905, %v3987
    %v3989 = vpop.f32.mrb[0].mxu0
    %v3990 = vadd.f32 %v3907, %v3989
    %3991 = vmatprep.mubr.f32.mxu0 0.0
    %3992 = vmatmul.mubr.f32.gmra.mrb[0].mxu0 %v3919
    %v3993 = vpop.f32.mrb[0].mxu0
    %v3994 = vadd.f32 %v3911, %v3993
    %v3995 = vpop.f32.mrb[0].mxu0
    %v3996 = vadd.f32 %v3913, %v3995
    %3997 = vdwg.mxu0
    %s3998 = scalar_lea.vmem [#allocation10], 2048
    %v3999 = vld [vmem:[%s3998] sm:$0xff]
    %v4000 = vld [vmem:[%s3998 + $0x8] sm:$0xff]
    %v4001 = vld [vmem:[%s3998 + $0x10] sm:$0xff]
    %v4002 = vld [vmem:[%s3998 + $0x18] sm:$0xff]
    %v4003 = vld [vmem:[%s3998 + $0x20] sm:$0xff]
    %v4004 = vld [vmem:[%s3998 + $0x28] sm:$0xff]
    %v4005 = vld [vmem:[%s3998 + $0x30] sm:$0xff]
    %v4006 = vld [vmem:[%s3998 + $0x38] sm:$0xff]
    %v4007 = vld [vmem:[%s3998 + $0x40] sm:$0xff]
    %v4008 = vld [vmem:[%s3998 + $0x48] sm:$0xff]
    %v4009 = vld [vmem:[%s3998 + $0x50] sm:$0xff]
    %v4010 = vld [vmem:[%s3998 + $0x58] sm:$0xff]
    %v4011 = vld [vmem:[%s3998 + $0x60] sm:$0xff]
    %v4012 = vld [vmem:[%s3998 + $0x68] sm:$0xff]
    %v4013 = vld [vmem:[%s3998 + $0x70] sm:$0xff]
    %v4014 = vld [vmem:[%s3998 + $0x78] sm:$0xff]
    %v4015 = vld [vmem:[%s3998 + $0x80] sm:$0xff]
    %v4016 = vld [vmem:[%s3998 + $0x88] sm:$0xff]
    %v4017 = vld [vmem:[%s3998 + $0x90] sm:$0xff]
    %v4018 = vld [vmem:[%s3998 + $0x98] sm:$0xff]
    %v4019 = vld [vmem:[%s3998 + $0xa0] sm:$0xff]
    %v4020 = vld [vmem:[%s3998 + $0xa8] sm:$0xff]
    %v4021 = vld [vmem:[%s3998 + $0xb0] sm:$0xff]
    %v4022 = vld [vmem:[%s3998 + $0xb8] sm:$0xff]
    %v4023 = vld [vmem:[%s3998 + $0xc0] sm:$0xff]
    %v4024 = vld [vmem:[%s3998 + $0xc8] sm:$0xff]
    %v4025 = vld [vmem:[%s3998 + $0xd0] sm:$0xff]
    %v4026 = vld [vmem:[%s3998 + $0xd8] sm:$0xff]
    %v4027 = vld [vmem:[%s3998 + $0xe0] sm:$0xff]
    %v4028 = vld [vmem:[%s3998 + $0xe8] sm:$0xff]
    %v4029 = vld [vmem:[%s3998 + $0xf0] sm:$0xff]
    %v4030 = vld [vmem:[%s3998 + $0xf8] sm:$0xff]
    %v4031 = vld [vmem:[%s3998 + $0x100] sm:$0xff]
    %v4032 = vld [vmem:[%s3998 + $0x108] sm:$0xff]
    %v4033 = vld [vmem:[%s3998 + $0x110] sm:$0xff]
    %v4034 = vld [vmem:[%s3998 + $0x118] sm:$0xff]
    %v4035 = vld [vmem:[%s3998 + $0x120] sm:$0xff]
    %v4036 = vld [vmem:[%s3998 + $0x128] sm:$0xff]
    %v4037 = vld [vmem:[%s3998 + $0x130] sm:$0xff]
    %v4038 = vld [vmem:[%s3998 + $0x138] sm:$0xff]
    %v4039 = vld [vmem:[%s3998 + $0x140] sm:$0xff]
    %v4040 = vld [vmem:[%s3998 + $0x148] sm:$0xff]
    %v4041 = vld [vmem:[%s3998 + $0x150] sm:$0xff]
    %v4042 = vld [vmem:[%s3998 + $0x158] sm:$0xff]
    %v4043 = vld [vmem:[%s3998 + $0x160] sm:$0xff]
    %v4044 = vld [vmem:[%s3998 + $0x168] sm:$0xff]
    %v4045 = vld [vmem:[%s3998 + $0x170] sm:$0xff]
    %v4046 = vld [vmem:[%s3998 + $0x178] sm:$0xff]
    %v4047 = vld [vmem:[%s3998 + $0x180] sm:$0xff]
    %v4048 = vld [vmem:[%s3998 + $0x188] sm:$0xff]
    %v4049 = vld [vmem:[%s3998 + $0x190] sm:$0xff]
    %v4050 = vld [vmem:[%s3998 + $0x198] sm:$0xff]
    %v4051 = vld [vmem:[%s3998 + $0x1a0] sm:$0xff]
    %v4052 = vld [vmem:[%s3998 + $0x1a8] sm:$0xff]
    %v4053 = vld [vmem:[%s3998 + $0x1b0] sm:$0xff]
    %v4054 = vld [vmem:[%s3998 + $0x1b8] sm:$0xff]
    %v4055 = vld [vmem:[%s3998 + $0x1c0] sm:$0xff]
    %v4056 = vld [vmem:[%s3998 + $0x1c8] sm:$0xff]
    %v4057 = vld [vmem:[%s3998 + $0x1d0] sm:$0xff]
    %v4058 = vld [vmem:[%s3998 + $0x1d8] sm:$0xff]
    %v4059 = vld [vmem:[%s3998 + $0x1e0] sm:$0xff]
    %v4060 = vld [vmem:[%s3998 + $0x1e8] sm:$0xff]
    %v4061 = vld [vmem:[%s3998 + $0x1f0] sm:$0xff]
    %v4062 = vld [vmem:[%s3998 + $0x1f8] sm:$0xff]
    %v4063 = vld [vmem:[%s3998 + $0x200] sm:$0xff]
    %v4064 = vld [vmem:[%s3998 + $0x208] sm:$0xff]
    %v4065 = vld [vmem:[%s3998 + $0x210] sm:$0xff]
    %v4066 = vld [vmem:[%s3998 + $0x218] sm:$0xff]
    %v4067 = vld [vmem:[%s3998 + $0x220] sm:$0xff]
    %v4068 = vld [vmem:[%s3998 + $0x228] sm:$0xff]
    %v4069 = vld [vmem:[%s3998 + $0x230] sm:$0xff]
    %v4070 = vld [vmem:[%s3998 + $0x238] sm:$0xff]
    %v4071 = vld [vmem:[%s3998 + $0x240] sm:$0xff]
    %v4072 = vld [vmem:[%s3998 + $0x248] sm:$0xff]
    %v4073 = vld [vmem:[%s3998 + $0x250] sm:$0xff]
    %v4074 = vld [vmem:[%s3998 + $0x258] sm:$0xff]
    %v4075 = vld [vmem:[%s3998 + $0x260] sm:$0xff]
    %v4076 = vld [vmem:[%s3998 + $0x268] sm:$0xff]
    %v4077 = vld [vmem:[%s3998 + $0x270] sm:$0xff]
    %v4078 = vld [vmem:[%s3998 + $0x278] sm:$0xff]
    %v4079 = vld [vmem:[%s3998 + $0x280] sm:$0xff]
    %v4080 = vld [vmem:[%s3998 + $0x288] sm:$0xff]
    %v4081 = vld [vmem:[%s3998 + $0x290] sm:$0xff]
    %v4082 = vld [vmem:[%s3998 + $0x298] sm:$0xff]
    %v4083 = vld [vmem:[%s3998 + $0x2a0] sm:$0xff]
    %v4084 = vld [vmem:[%s3998 + $0x2a8] sm:$0xff]
    %v4085 = vld [vmem:[%s3998 + $0x2b0] sm:$0xff]
    %v4086 = vld [vmem:[%s3998 + $0x2b8] sm:$0xff]
    %v4087 = vld [vmem:[%s3998 + $0x2c0] sm:$0xff]
    %v4088 = vld [vmem:[%s3998 + $0x2c8] sm:$0xff]
    %v4089 = vld [vmem:[%s3998 + $0x2d0] sm:$0xff]
    %v4090 = vld [vmem:[%s3998 + $0x2d8] sm:$0xff]
    %v4091 = vld [vmem:[%s3998 + $0x2e0] sm:$0xff]
    %v4092 = vld [vmem:[%s3998 + $0x2e8] sm:$0xff]
    %v4093 = vld [vmem:[%s3998 + $0x2f0] sm:$0xff]
    %v4094 = vld [vmem:[%s3998 + $0x2f8] sm:$0xff]
    %v4095 = vld [vmem:[%s3998 + $0x300] sm:$0xff]
    %v4096 = vld [vmem:[%s3998 + $0x308] sm:$0xff]
    %v4097 = vld [vmem:[%s3998 + $0x310] sm:$0xff]
    %v4098 = vld [vmem:[%s3998 + $0x318] sm:$0xff]
    %v4099 = vld [vmem:[%s3998 + $0x320] sm:$0xff]
    %v4100 = vld [vmem:[%s3998 + $0x328] sm:$0xff]
    %v4101 = vld [vmem:[%s3998 + $0x330] sm:$0xff]
    %v4102 = vld [vmem:[%s3998 + $0x338] sm:$0xff]
    %v4103 = vld [vmem:[%s3998 + $0x340] sm:$0xff]
    %v4104 = vld [vmem:[%s3998 + $0x348] sm:$0xff]
    %v4105 = vld [vmem:[%s3998 + $0x350] sm:$0xff]
    %v4106 = vld [vmem:[%s3998 + $0x358] sm:$0xff]
    %v4107 = vld [vmem:[%s3998 + $0x360] sm:$0xff]
    %v4108 = vld [vmem:[%s3998 + $0x368] sm:$0xff]
    %v4109 = vld [vmem:[%s3998 + $0x370] sm:$0xff]
    %v4110 = vld [vmem:[%s3998 + $0x378] sm:$0xff]
    %v4111 = vld [vmem:[%s3998 + $0x380] sm:$0xff]
    %v4112 = vld [vmem:[%s3998 + $0x388] sm:$0xff]
    %v4113 = vld [vmem:[%s3998 + $0x390] sm:$0xff]
    %v4114 = vld [vmem:[%s3998 + $0x398] sm:$0xff]
    %v4115 = vld [vmem:[%s3998 + $0x3a0] sm:$0xff]
    %v4116 = vld [vmem:[%s3998 + $0x3a8] sm:$0xff]
    %v4117 = vld [vmem:[%s3998 + $0x3b0] sm:$0xff]
    %v4118 = vld [vmem:[%s3998 + $0x3b8] sm:$0xff]
    %v4119 = vld [vmem:[%s3998 + $0x3c0] sm:$0xff]
    %v4120 = vld [vmem:[%s3998 + $0x3c8] sm:$0xff]
    %v4121 = vld [vmem:[%s3998 + $0x3d0] sm:$0xff]
    %v4122 = vld [vmem:[%s3998 + $0x3d8] sm:$0xff]
    %v4123 = vld [vmem:[%s3998 + $0x3e0] sm:$0xff]
    %v4124 = vld [vmem:[%s3998 + $0x3e8] sm:$0xff]
    %v4125 = vld [vmem:[%s3998 + $0x3f0] sm:$0xff]
    %v4126 = vld [vmem:[%s3998 + $0x3f8] sm:$0xff]
    %4127 = vmatprep.subr.mxu0 %v4000
    %4128 = vmatpush1.msra.mxu0 %v3999
    %4129 = vmatprep.subr.mxu0 %v4002
    %4130 = vmatpush1.msra.mxu0 %v4001
    %4131 = vmatprep.subr.mxu0 %v4004
    %4132 = vmatpush1.msra.mxu0 %v4003
    %4133 = vmatprep.subr.mxu0 %v4006
    %4134 = vmatpush1.msra.mxu0 %v4005
    %4135 = vmatprep.subr.mxu0 %v4008
    %4136 = vmatpush1.msra.mxu0 %v4007
    %4137 = vmatprep.subr.mxu0 %v4010
    %4138 = vmatpush1.msra.mxu0 %v4009
    %4139 = vmatprep.subr.mxu0 %v4012
    %4140 = vmatpush1.msra.mxu0 %v4011
    %4141 = vmatprep.subr.mxu0 %v4014
    %4142 = vmatpush1.msra.mxu0 %v4013
    %4143 = vmatprep.subr.mxu0 %v4016
    %4144 = vmatpush1.msra.mxu0 %v4015
    %4145 = vmatprep.subr.mxu0 %v4018
    %4146 = vmatpush1.msra.mxu0 %v4017
    %4147 = vmatprep.subr.mxu0 %v4020
    %4148 = vmatpush1.msra.mxu0 %v4019
    %4149 = vmatprep.subr.mxu0 %v4022
    %4150 = vmatpush1.msra.mxu0 %v4021
    %4151 = vmatprep.subr.mxu0 %v4024
    %4152 = vmatpush1.msra.mxu0 %v4023
    %4153 = vmatprep.subr.mxu0 %v4026
    %4154 = vmatpush1.msra.mxu0 %v4025
    %4155 = vmatprep.subr.mxu0 %v4028
    %4156 = vmatpush1.msra.mxu0 %v4027
    %4157 = vmatprep.subr.mxu0 %v4030
    %4158 = vmatpush1.msra.mxu0 %v4029
    %4159 = vmatprep.subr.mxu0 %v4032
    %4160 = vmatpush1.msra.mxu0 %v4031
    %4161 = vmatprep.subr.mxu0 %v4034
    %4162 = vmatpush1.msra.mxu0 %v4033
    %4163 = vmatprep.subr.mxu0 %v4036
    %4164 = vmatpush1.msra.mxu0 %v4035
    %4165 = vmatprep.subr.mxu0 %v4038
    %4166 = vmatpush1.msra.mxu0 %v4037
    %4167 = vmatprep.subr.mxu0 %v4040
    %4168 = vmatpush1.msra.mxu0 %v4039
    %4169 = vmatprep.subr.mxu0 %v4042
    %4170 = vmatpush1.msra.mxu0 %v4041
    %4171 = vmatprep.subr.mxu0 %v4044
    %4172 = vmatpush1.msra.mxu0 %v4043
    %4173 = vmatprep.subr.mxu0 %v4046
    %4174 = vmatpush1.msra.mxu0 %v4045
    %4175 = vmatprep.subr.mxu0 %v4048
    %4176 = vmatpush1.msra.mxu0 %v4047
    %4177 = vmatprep.subr.mxu0 %v4050
    %4178 = vmatpush1.msra.mxu0 %v4049
    %4179 = vmatprep.subr.mxu0 %v4052
    %4180 = vmatpush1.msra.mxu0 %v4051
    %4181 = vmatprep.subr.mxu0 %v4054
    %4182 = vmatpush1.msra.mxu0 %v4053
    %4183 = vmatprep.subr.mxu0 %v4056
    %4184 = vmatpush1.msra.mxu0 %v4055
    %4185 = vmatprep.subr.mxu0 %v4058
    %4186 = vmatpush1.msra.mxu0 %v4057
    %4187 = vmatprep.subr.mxu0 %v4060
    %4188 = vmatpush1.msra.mxu0 %v4059
    %4189 = vmatprep.subr.mxu0 %v4062
    %4190 = vmatpush1.msra.mxu0 %v4061
    %4191 = vmatprep.mubr.f32.mxu0 %v3255
    %4192 = vmatmul.mubr.f32.gmra.mrb[0].mxu0 %v3254
    %v4193 = vpop.f32.mrb[0].mxu0
    %v4194 = vadd.f32 0.0, %v4193
    %v4195 = vpop.f32.mrb[0].mxu0
    %v4196 = vadd.f32 0.0, %v4195
    %4197 = vmatprep.mubr.f32.mxu0 %v3259
    %4198 = vmatmul.mubr.f32.gmra.mrb[0].mxu0 %v3258
    %v4199 = vpop.f32.mrb[0].mxu0
    %v4200 = vadd.f32 0.0, %v4199
    %v4201 = vpop.f32.mrb[0].mxu0
    %v4202 = vadd.f32 0.0, %v4201
    %4203 = vdwg.mxu0
    %4204 = vmatprep.subr.mxu0 %v4064
    %4205 = vmatpush1.msra.mxu0 %v4063
    %4206 = vmatprep.subr.mxu0 %v4066
    %4207 = vmatpush1.msra.mxu0 %v4065
    %4208 = vmatprep.subr.mxu0 %v4068
    %4209 = vmatpush1.msra.mxu0 %v4067
    %4210 = vmatprep.subr.mxu0 %v4070
    %4211 = vmatpush1.msra.mxu0 %v4069
    %4212 = vmatprep.subr.mxu0 %v4072
    %4213 = vmatpush1.msra.mxu0 %v4071
    %4214 = vmatprep.subr.mxu0 %v4074
    %4215 = vmatpush1.msra.mxu0 %v4073
    %4216 = vmatprep.subr.mxu0 %v4076
    %4217 = vmatpush1.msra.mxu0 %v4075
    %4218 = vmatprep.subr.mxu0 %v4078
    %4219 = vmatpush1.msra.mxu0 %v4077
    %4220 = vmatprep.subr.mxu0 %v4080
    %4221 = vmatpush1.msra.mxu0 %v4079
    %4222 = vmatprep.subr.mxu0 %v4082
    %4223 = vmatpush1.msra.mxu0 %v4081
    %4224 = vmatprep.subr.mxu0 %v4084
    %4225 = vmatpush1.msra.mxu0 %v4083
    %4226 = vmatprep.subr.mxu0 %v4086
    %4227 = vmatpush1.msra.mxu0 %v4085
    %4228 = vmatprep.subr.mxu0 %v4088
    %4229 = vmatpush1.msra.mxu0 %v4087
    %4230 = vmatprep.subr.mxu0 %v4090
    %4231 = vmatpush1.msra.mxu0 %v4089
    %4232 = vmatprep.subr.mxu0 %v4092
    %4233 = vmatpush1.msra.mxu0 %v4091
    %4234 = vmatprep.subr.mxu0 %v4094
    %4235 = vmatpush1.msra.mxu0 %v4093
    %4236 = vmatprep.subr.mxu0 %v4096
    %4237 = vmatpush1.msra.mxu0 %v4095
    %4238 = vmatprep.subr.mxu0 %v4098
    %4239 = vmatpush1.msra.mxu0 %v4097
    %4240 = vmatprep.subr.mxu0 %v4100
    %4241 = vmatpush1.msra.mxu0 %v4099
    %4242 = vmatprep.subr.mxu0 %v4102
    %4243 = vmatpush1.msra.mxu0 %v4101
    %4244 = vmatprep.subr.mxu0 %v4104
    %4245 = vmatpush1.msra.mxu0 %v4103
    %4246 = vmatprep.subr.mxu0 %v4106
    %4247 = vmatpush1.msra.mxu0 %v4105
    %4248 = vmatprep.subr.mxu0 %v4108
    %4249 = vmatpush1.msra.mxu0 %v4107
    %4250 = vmatprep.subr.mxu0 %v4110
    %4251 = vmatpush1.msra.mxu0 %v4109
    %4252 = vmatprep.subr.mxu0 %v4112
    %4253 = vmatpush1.msra.mxu0 %v4111
    %4254 = vmatprep.subr.mxu0 %v4114
    %4255 = vmatpush1.msra.mxu0 %v4113
    %4256 = vmatprep.subr.mxu0 %v4116
    %4257 = vmatpush1.msra.mxu0 %v4115
    %4258 = vmatprep.subr.mxu0 %v4118
    %4259 = vmatpush1.msra.mxu0 %v4117
    %4260 = vmatprep.subr.mxu0 %v4120
    %4261 = vmatpush1.msra.mxu0 %v4119
    %4262 = vmatprep.subr.mxu0 %v4122
    %4263 = vmatpush1.msra.mxu0 %v4121
    %4264 = vmatprep.subr.mxu0 %v4124
    %4265 = vmatpush1.msra.mxu0 %v4123
    %4266 = vmatprep.subr.mxu0 %v4126
    %4267 = vmatpush1.msra.mxu0 %v4125
    %4268 = vmatprep.mubr.f32.mxu0 %v3257
    %4269 = vmatmul.mubr.f32.gmra.mrb[0].mxu0 %v3256
    %v4270 = vpop.f32.mrb[0].mxu0
    %v4271 = vadd.f32 %v4194, %v4270
    %v4272 = vpop.f32.mrb[0].mxu0
    %v4273 = vadd.f32 %v4196, %v4272
    %4274 = vmatprep.mubr.f32.mxu0 %v3261
    %4275 = vmatmul.mubr.f32.gmra.mrb[0].mxu0 %v3260
    %v4276 = vpop.f32.mrb[0].mxu0
    %v4277 = vadd.f32 %v4200, %v4276
    %v4278 = vpop.f32.mrb[0].mxu0
    %v4279 = vadd.f32 %v4202, %v4278
    %4280 = vdwg.mxu0
    %s4281 = scalar_lea.vmem [#allocation8], 32
    %v4282 = vld [vmem:[%s4281] sm:$0xff]
    %v4283 = vld [vmem:[%s4281 + $0x8] sm:$0xff]
    %v4285 = vsel %vm233, %v4282, 0
    %v4288 = vsel %vm233, %v4283, 0
    %4290 = vmatprep.subr.mxu0 %v4273
    %4291 = vmatpush1.msra.mxu0 %v4271
    %4292 = vmatprep.subr.mxu0 %v4279
    %4293 = vmatpush1.msra.mxu0 %v4277
    %4294 = vmatprep.subr.mxu0 0.0
    %4295 = vmatpush1.msra.mxu0 0.0
    %4296 = vmatprep.subr.mxu0 0.0
    %4297 = vmatpush1.msra.mxu0 0.0
    %4298 = vmatprep.subr.mxu0 0.0
    %4299 = vmatpush1.msra.mxu0 0.0
    %4300 = vmatprep.subr.mxu0 0.0
    %4301 = vmatpush1.msra.mxu0 0.0
    %4302 = vmatprep.subr.mxu0 0.0
    %4303 = vmatpush1.msra.mxu0 0.0
    %4304 = vmatprep.subr.mxu0 0.0
    %4305 = vmatpush1.msra.mxu0 0.0
    %4306 = vmatprep.subr.mxu0 0.0
    %4307 = vmatpush1.msra.mxu0 0.0
    %4308 = vmatprep.subr.mxu0 0.0
    %4309 = vmatpush1.msra.mxu0 0.0
    %4310 = vmatprep.subr.mxu0 0.0
    %4311 = vmatpush1.msra.mxu0 0.0
    %4312 = vmatprep.subr.mxu0 0.0
    %4313 = vmatpush1.msra.mxu0 0.0
    %4314 = vmatprep.subr.mxu0 0.0
    %4315 = vmatpush1.msra.mxu0 0.0
    %4316 = vmatprep.subr.mxu0 0.0
    %4317 = vmatpush1.msra.mxu0 0.0
    %4318 = vmatprep.subr.mxu0 0.0
    %4319 = vmatpush1.msra.mxu0 0.0
    %4320 = vmatprep.subr.mxu0 0.0
    %4321 = vmatpush1.msra.mxu0 0.0
    %4322 = vmatprep.subr.mxu0 0.0
    %4323 = vmatpush1.msra.mxu0 0.0
    %4324 = vmatprep.subr.mxu0 0.0
    %4325 = vmatpush1.msra.mxu0 0.0
    %4326 = vmatprep.subr.mxu0 0.0
    %4327 = vmatpush1.msra.mxu0 0.0
    %4328 = vmatprep.subr.mxu0 0.0
    %4329 = vmatpush1.msra.mxu0 0.0
    %4330 = vmatprep.subr.mxu0 0.0
    %4331 = vmatpush1.msra.mxu0 0.0
    %4332 = vmatprep.subr.mxu0 0.0
    %4333 = vmatpush1.msra.mxu0 0.0
    %4334 = vmatprep.subr.mxu0 0.0
    %4335 = vmatpush1.msra.mxu0 0.0
    %4336 = vmatprep.subr.mxu0 0.0
    %4337 = vmatpush1.msra.mxu0 0.0
    %4338 = vmatprep.subr.mxu0 0.0
    %4339 = vmatpush1.msra.mxu0 0.0
    %4340 = vmatprep.subr.mxu0 0.0
    %4341 = vmatpush1.msra.mxu0 0.0
    %4342 = vmatprep.subr.mxu0 0.0
    %4343 = vmatpush1.msra.mxu0 0.0
    %4344 = vmatprep.subr.mxu0 0.0
    %4345 = vmatpush1.msra.mxu0 0.0
    %4346 = vmatprep.subr.mxu0 0.0
    %4347 = vmatpush1.msra.mxu0 0.0
    %4348 = vmatprep.subr.mxu0 0.0
    %4349 = vmatpush1.msra.mxu0 0.0
    %4350 = vmatprep.subr.mxu0 0.0
    %4351 = vmatpush1.msra.mxu0 0.0
    %4352 = vmatprep.subr.mxu0 0.0
    %4353 = vmatpush1.msra.mxu0 0.0
    %4354 = vmatprep.mubr.f32.mxu0 0.0
    %4355 = vmatmul.mubr.f32.gmra.mrb[0].mxu0 %v4285
    %v4356 = vpop.f32.mrb[0].mxu0
    %v4357 = vadd.f32 0.0, %v4356
    %v4358 = vpop.f32.mrb[0].mxu0
    %v4359 = vadd.f32 0.0, %v4358
    %4360 = vmatprep.mubr.f32.mxu0 0.0
    %4361 = vmatmul.mubr.f32.gmra.mrb[0].mxu0 %v4288
    %v4362 = vpop.f32.mrb[0].mxu0
    %v4363 = vadd.f32 0.0, %v4362
    %v4364 = vpop.f32.mrb[0].mxu0
    %v4365 = vadd.f32 0.0, %v4364
    %4366 = vdwg.mxu0
    %v4367 = vadd.f32 %v3988, %v4357
    %v4368 = vadd.f32 %v3990, %v4359
    %v4369 = vadd.f32 %v3994, %v4363
    %v4370 = vadd.f32 %v3996, %v4365
    %v4371 = vld [vmem:[#allocation11] sm:$0x3]
    %v4373 = vlaneseq
    %v4374 = vshrl.u32 %v4373, 7
    %v4375 = vsub.s32 0, %v4374
    %v4376 = vrot.slane %v4371, %v4375
    %v4377 = vlaneseq
    %v4378 = vshrl.u32 %v4377, 7
    %v4379 = vsub.s32 1, %v4378
    %v4380 = vrot.slane %v4371, %v4379
    %v4383 = vadd.f32 %v4367, %v4376
    %v4384 = vadd.f32 %v4368, %v4380
    %v4385 = vadd.f32 %v4369, %v4376
    %v4386 = vadd.f32 %v4370, %v4380
    %v4387 = vmax.f32 %v4383, 0.0
    %v4388 = vmax.f32 %v4384, 0.0
    %v4389 = vmax.f32 %v4385, 0.0
    %v4390 = vmax.f32 %v4386, 0.0
    %v4391 = vld [vmem:[%s9] sm:$0xff]
    %v4392 = vld [vmem:[%s9 + $0x8] sm:$0xff]
    %v4393 = vld [vmem:[%s9 + $0x10] sm:$0xff]
    %v4394 = vld [vmem:[%s9 + $0x18] sm:$0xff]
    %v4395 = vld [vmem:[%s9 + $0x20] sm:$0xff]
    %v4396 = vld [vmem:[%s9 + $0x28] sm:$0xff]
    %v4397 = vld [vmem:[%s9 + $0x30] sm:$0xff]
    %v4398 = vld [vmem:[%s9 + $0x38] sm:$0xff]
    %v4399 = vld [vmem:[%s9 + $0x40] sm:$0xff]
    %v4400 = vld [vmem:[%s9 + $0x48] sm:$0xff]
    %v4401 = vld [vmem:[%s9 + $0x50] sm:$0xff]
    %v4402 = vld [vmem:[%s9 + $0x58] sm:$0xff]
    %v4403 = vld [vmem:[%s9 + $0x60] sm:$0xff]
    %v4404 = vld [vmem:[%s9 + $0x68] sm:$0xff]
    %v4405 = vld [vmem:[%s9 + $0x70] sm:$0xff]
    %v4406 = vld [vmem:[%s9 + $0x78] sm:$0xff]
    %v4407 = vld [vmem:[%s9 + $0x80] sm:$0xff]
    %v4408 = vld [vmem:[%s9 + $0x88] sm:$0xff]
    %v4409 = vld [vmem:[%s9 + $0x90] sm:$0xff]
    %v4410 = vld [vmem:[%s9 + $0x98] sm:$0xff]
    %v4411 = vld [vmem:[%s9 + $0xa0] sm:$0xff]
    %v4412 = vld [vmem:[%s9 + $0xa8] sm:$0xff]
    %v4413 = vld [vmem:[%s9 + $0xb0] sm:$0xff]
    %v4414 = vld [vmem:[%s9 + $0xb8] sm:$0xff]
    %v4415 = vld [vmem:[%s9 + $0xc0] sm:$0xff]
    %v4416 = vld [vmem:[%s9 + $0xc8] sm:$0xff]
    %v4417 = vld [vmem:[%s9 + $0xd0] sm:$0xff]
    %v4418 = vld [vmem:[%s9 + $0xd8] sm:$0xff]
    %v4419 = vld [vmem:[%s9 + $0xe0] sm:$0xff]
    %v4420 = vld [vmem:[%s9 + $0xe8] sm:$0xff]
    %v4421 = vld [vmem:[%s9 + $0xf0] sm:$0xff]
    %v4422 = vld [vmem:[%s9 + $0xf8] sm:$0xff]
    %4423 = vmatprep.subr.mxu0 0.0
    %4424 = vmatpush1.msra.mxu0 %v4391
    %4425 = vmatprep.subr.mxu0 0.0
    %4426 = vmatpush1.msra.mxu0 %v4392
    %4427 = vmatprep.subr.mxu0 0.0
    %4428 = vmatpush1.msra.mxu0 %v4393
    %4429 = vmatprep.subr.mxu0 0.0
    %4430 = vmatpush1.msra.mxu0 %v4394
    %4431 = vmatprep.subr.mxu0 0.0
    %4432 = vmatpush1.msra.mxu0 %v4395
    %4433 = vmatprep.subr.mxu0 0.0
    %4434 = vmatpush1.msra.mxu0 %v4396
    %4435 = vmatprep.subr.mxu0 0.0
    %4436 = vmatpush1.msra.mxu0 %v4397
    %4437 = vmatprep.subr.mxu0 0.0
    %4438 = vmatpush1.msra.mxu0 %v4398
    %4439 = vmatprep.subr.mxu0 0.0
    %4440 = vmatpush1.msra.mxu0 %v4399
    %4441 = vmatprep.subr.mxu0 0.0
    %4442 = vmatpush1.msra.mxu0 %v4400
    %4443 = vmatprep.subr.mxu0 0.0
    %4444 = vmatpush1.msra.mxu0 %v4401
    %4445 = vmatprep.subr.mxu0 0.0
    %4446 = vmatpush1.msra.mxu0 %v4402
    %4447 = vmatprep.subr.mxu0 0.0
    %4448 = vmatpush1.msra.mxu0 %v4403
    %4449 = vmatprep.subr.mxu0 0.0
    %4450 = vmatpush1.msra.mxu0 %v4404
    %4451 = vmatprep.subr.mxu0 0.0
    %4452 = vmatpush1.msra.mxu0 %v4405
    %4453 = vmatprep.subr.mxu0 0.0
    %4454 = vmatpush1.msra.mxu0 %v4406
    %4455 = vmatprep.subr.mxu0 0.0
    %4456 = vmatpush1.msra.mxu0 %v4407
    %4457 = vmatprep.subr.mxu0 0.0
    %4458 = vmatpush1.msra.mxu0 %v4408
    %4459 = vmatprep.subr.mxu0 0.0
    %4460 = vmatpush1.msra.mxu0 %v4409
    %4461 = vmatprep.subr.mxu0 0.0
    %4462 = vmatpush1.msra.mxu0 %v4410
    %4463 = vmatprep.subr.mxu0 0.0
    %4464 = vmatpush1.msra.mxu0 %v4411
    %4465 = vmatprep.subr.mxu0 0.0
    %4466 = vmatpush1.msra.mxu0 %v4412
    %4467 = vmatprep.subr.mxu0 0.0
    %4468 = vmatpush1.msra.mxu0 %v4413
    %4469 = vmatprep.subr.mxu0 0.0
    %4470 = vmatpush1.msra.mxu0 %v4414
    %4471 = vmatprep.subr.mxu0 0.0
    %4472 = vmatpush1.msra.mxu0 %v4415
    %4473 = vmatprep.subr.mxu0 0.0
    %4474 = vmatpush1.msra.mxu0 %v4416
    %4475 = vmatprep.subr.mxu0 0.0
    %4476 = vmatpush1.msra.mxu0 %v4417
    %4477 = vmatprep.subr.mxu0 0.0
    %4478 = vmatpush1.msra.mxu0 %v4418
    %4479 = vmatprep.subr.mxu0 0.0
    %4480 = vmatpush1.msra.mxu0 %v4419
    %4481 = vmatprep.subr.mxu0 0.0
    %4482 = vmatpush1.msra.mxu0 %v4420
    %4483 = vmatprep.subr.mxu0 0.0
    %4484 = vmatpush1.msra.mxu0 %v4421
    %4485 = vmatprep.subr.mxu0 0.0
    %4486 = vmatpush1.msra.mxu0 %v4422
    %4487 = vmatprep.mubr.f32.mxu0 %v4388
    %4488 = vmatmul.mubr.f32.gmra.mrb[0].mxu0 %v4387
    %v4489 = vpop.f32.mrb[0].mxu0
    %v4490 = vadd.f32 0.0, %v4489
    %v4491 = vpop.f32.mrb[0].mxu0
    %4492 = vmatprep.mubr.f32.mxu0 %v4390
    %4493 = vmatmul.mubr.f32.gmra.mrb[0].mxu0 %v4389
    %v4494 = vpop.f32.mrb[0].mxu0
    %v4495 = vadd.f32 0.0, %v4494
    %v4496 = vpop.f32.mrb[0].mxu0
    %4497 = vdwg.mxu0
    %v4498 = vld [vmem:[#allocation13] sm:$0xff]
    %v4499 = vld [vmem:[#allocation13 + $0x8] sm:$0xff]
    %s4500 = scalar_lea.vmem %s9, 256
    %v4501 = vld [vmem:[%s4500] sm:$0xff]
    %v4502 = vld [vmem:[%s4500 + $0x8] sm:$0xff]
    %v4503 = vld [vmem:[%s4500 + $0x10] sm:$0xff]
    %v4504 = vld [vmem:[%s4500 + $0x18] sm:$0xff]
    %v4505 = vld [vmem:[%s4500 + $0x20] sm:$0xff]
    %v4506 = vld [vmem:[%s4500 + $0x28] sm:$0xff]
    %v4507 = vld [vmem:[%s4500 + $0x30] sm:$0xff]
    %v4508 = vld [vmem:[%s4500 + $0x38] sm:$0xff]
    %v4509 = vld [vmem:[%s4500 + $0x40] sm:$0xff]
    %v4510 = vld [vmem:[%s4500 + $0x48] sm:$0xff]
    %v4511 = vld [vmem:[%s4500 + $0x50] sm:$0xff]
    %v4512 = vld [vmem:[%s4500 + $0x58] sm:$0xff]
    %v4513 = vld [vmem:[%s4500 + $0x60] sm:$0xff]
    %v4514 = vld [vmem:[%s4500 + $0x68] sm:$0xff]
    %v4515 = vld [vmem:[%s4500 + $0x70] sm:$0xff]
    %v4516 = vld [vmem:[%s4500 + $0x78] sm:$0xff]
    %v4517 = vld [vmem:[%s4500 + $0x80] sm:$0xff]
    %v4518 = vld [vmem:[%s4500 + $0x88] sm:$0xff]
    %v4519 = vld [vmem:[%s4500 + $0x90] sm:$0xff]
    %v4520 = vld [vmem:[%s4500 + $0x98] sm:$0xff]
    %v4521 = vld [vmem:[%s4500 + $0xa0] sm:$0xff]
    %v4522 = vld [vmem:[%s4500 + $0xa8] sm:$0xff]
    %v4523 = vld [vmem:[%s4500 + $0xb0] sm:$0xff]
    %v4524 = vld [vmem:[%s4500 + $0xb8] sm:$0xff]
    %v4525 = vld [vmem:[%s4500 + $0xc0] sm:$0xff]
    %v4526 = vld [vmem:[%s4500 + $0xc8] sm:$0xff]
    %v4527 = vld [vmem:[%s4500 + $0xd0] sm:$0xff]
    %v4528 = vld [vmem:[%s4500 + $0xd8] sm:$0xff]
    %v4529 = vld [vmem:[%s4500 + $0xe0] sm:$0xff]
    %v4530 = vld [vmem:[%s4500 + $0xe8] sm:$0xff]
    %v4531 = vld [vmem:[%s4500 + $0xf0] sm:$0xff]
    %v4532 = vld [vmem:[%s4500 + $0xf8] sm:$0xff]
    %4533 = vmatprep.subr.mxu0 0.0
    %4534 = vmatpush1.msra.mxu0 %v4501
    %4535 = vmatprep.subr.mxu0 0.0
    %4536 = vmatpush1.msra.mxu0 %v4502
    %4537 = vmatprep.subr.mxu0 0.0
    %4538 = vmatpush1.msra.mxu0 %v4503
    %4539 = vmatprep.subr.mxu0 0.0
    %4540 = vmatpush1.msra.mxu0 %v4504
    %4541 = vmatprep.subr.mxu0 0.0
    %4542 = vmatpush1.msra.mxu0 %v4505
    %4543 = vmatprep.subr.mxu0 0.0
    %4544 = vmatpush1.msra.mxu0 %v4506
    %4545 = vmatprep.subr.mxu0 0.0
    %4546 = vmatpush1.msra.mxu0 %v4507
    %4547 = vmatprep.subr.mxu0 0.0
    %4548 = vmatpush1.msra.mxu0 %v4508
    %4549 = vmatprep.subr.mxu0 0.0
    %4550 = vmatpush1.msra.mxu0 %v4509
    %4551 = vmatprep.subr.mxu0 0.0
    %4552 = vmatpush1.msra.mxu0 %v4510
    %4553 = vmatprep.subr.mxu0 0.0
    %4554 = vmatpush1.msra.mxu0 %v4511
    %4555 = vmatprep.subr.mxu0 0.0
    %4556 = vmatpush1.msra.mxu0 %v4512
    %4557 = vmatprep.subr.mxu0 0.0
    %4558 = vmatpush1.msra.mxu0 %v4513
    %4559 = vmatprep.subr.mxu0 0.0
    %4560 = vmatpush1.msra.mxu0 %v4514
    %4561 = vmatprep.subr.mxu0 0.0
    %4562 = vmatpush1.msra.mxu0 %v4515
    %4563 = vmatprep.subr.mxu0 0.0
    %4564 = vmatpush1.msra.mxu0 %v4516
    %4565 = vmatprep.subr.mxu0 0.0
    %4566 = vmatpush1.msra.mxu0 %v4517
    %4567 = vmatprep.subr.mxu0 0.0
    %4568 = vmatpush1.msra.mxu0 %v4518
    %4569 = vmatprep.subr.mxu0 0.0
    %4570 = vmatpush1.msra.mxu0 %v4519
    %4571 = vmatprep.subr.mxu0 0.0
    %4572 = vmatpush1.msra.mxu0 %v4520
    %4573 = vmatprep.subr.mxu0 0.0
    %4574 = vmatpush1.msra.mxu0 %v4521
    %4575 = vmatprep.subr.mxu0 0.0
    %4576 = vmatpush1.msra.mxu0 %v4522
    %4577 = vmatprep.subr.mxu0 0.0
    %4578 = vmatpush1.msra.mxu0 %v4523
    %4579 = vmatprep.subr.mxu0 0.0
    %4580 = vmatpush1.msra.mxu0 %v4524
    %4581 = vmatprep.subr.mxu0 0.0
    %4582 = vmatpush1.msra.mxu0 %v4525
    %4583 = vmatprep.subr.mxu0 0.0
    %4584 = vmatpush1.msra.mxu0 %v4526
    %4585 = vmatprep.subr.mxu0 0.0
    %4586 = vmatpush1.msra.mxu0 %v4527
    %4587 = vmatprep.subr.mxu0 0.0
    %4588 = vmatpush1.msra.mxu0 %v4528
    %4589 = vmatprep.subr.mxu0 0.0
    %4590 = vmatpush1.msra.mxu0 %v4529
    %4591 = vmatprep.subr.mxu0 0.0
    %4592 = vmatpush1.msra.mxu0 %v4530
    %4593 = vmatprep.subr.mxu0 0.0
    %4594 = vmatpush1.msra.mxu0 %v4531
    %4595 = vmatprep.subr.mxu0 0.0
    %4596 = vmatpush1.msra.mxu0 %v4532
    %4597 = vmatprep.mubr.f32.mxu0 %v4388
    %4598 = vmatmul.mubr.f32.gmra.mrb[0].mxu0 %v4387
    %v4599 = vpop.f32.mrb[0].mxu0
    %v4600 = vadd.f32 0.0, %v4599
    %v4601 = vpop.f32.mrb[0].mxu0
    %4602 = vmatprep.mubr.f32.mxu0 %v4390
    %4603 = vmatmul.mubr.f32.gmra.mrb[0].mxu0 %v4389
    %v4604 = vpop.f32.mrb[0].mxu0
    %v4605 = vadd.f32 0.0, %v4604
    %v4606 = vpop.f32.mrb[0].mxu0
    %4607 = vdwg.mxu0
    %s4608 = scalar_lea.vmem [#allocation13], 16
    %v4609 = vld [vmem:[%s4608] sm:$0xff]
    %v4610 = vld [vmem:[%s4608 + $0x8] sm:$0xff]
    %v4612 = vsel %vm233, %v4609, 0
    %v4615 = vsel %vm233, %v4610, 0
    %4617 = vmatprep.subr.mxu0 0.0
    %4618 = vmatpush1.msra.mxu0 %v4600
    %4619 = vmatprep.subr.mxu0 0.0
    %4620 = vmatpush1.msra.mxu0 %v4605
    %4621 = vmatprep.subr.mxu0 0.0
    %4622 = vmatpush1.msra.mxu0 0.0
    %4623 = vmatprep.subr.mxu0 0.0
    %4624 = vmatpush1.msra.mxu0 0.0
    %4625 = vmatprep.subr.mxu0 0.0
    %4626 = vmatpush1.msra.mxu0 0.0
    %4627 = vmatprep.subr.mxu0 0.0
    %4628 = vmatpush1.msra.mxu0 0.0
    %4629 = vmatprep.subr.mxu0 0.0
    %4630 = vmatpush1.msra.mxu0 0.0
    %4631 = vmatprep.subr.mxu0 0.0
    %4632 = vmatpush1.msra.mxu0 0.0
    %4633 = vmatprep.subr.mxu0 0.0
    %4634 = vmatpush1.msra.mxu0 0.0
    %4635 = vmatprep.subr.mxu0 0.0
    %4636 = vmatpush1.msra.mxu0 0.0
    %4637 = vmatprep.subr.mxu0 0.0
    %4638 = vmatpush1.msra.mxu0 0.0
    %4639 = vmatprep.subr.mxu0 0.0
    %4640 = vmatpush1.msra.mxu0 0.0
    %4641 = vmatprep.subr.mxu0 0.0
    %4642 = vmatpush1.msra.mxu0 0.0
    %4643 = vmatprep.subr.mxu0 0.0
    %4644 = vmatpush1.msra.mxu0 0.0
    %4645 = vmatprep.subr.mxu0 0.0
    %4646 = vmatpush1.msra.mxu0 0.0
    %4647 = vmatprep.subr.mxu0 0.0
    %4648 = vmatpush1.msra.mxu0 0.0
    %4649 = vmatprep.subr.mxu0 0.0
    %4650 = vmatpush1.msra.mxu0 0.0
    %4651 = vmatprep.subr.mxu0 0.0
    %4652 = vmatpush1.msra.mxu0 0.0
    %4653 = vmatprep.subr.mxu0 0.0
    %4654 = vmatpush1.msra.mxu0 0.0
    %4655 = vmatprep.subr.mxu0 0.0
    %4656 = vmatpush1.msra.mxu0 0.0
    %4657 = vmatprep.subr.mxu0 0.0
    %4658 = vmatpush1.msra.mxu0 0.0
    %4659 = vmatprep.subr.mxu0 0.0
    %4660 = vmatpush1.msra.mxu0 0.0
    %4661 = vmatprep.subr.mxu0 0.0
    %4662 = vmatpush1.msra.mxu0 0.0
    %4663 = vmatprep.subr.mxu0 0.0
    %4664 = vmatpush1.msra.mxu0 0.0
    %4665 = vmatprep.subr.mxu0 0.0
    %4666 = vmatpush1.msra.mxu0 0.0
    %4667 = vmatprep.subr.mxu0 0.0
    %4668 = vmatpush1.msra.mxu0 0.0
    %4669 = vmatprep.subr.mxu0 0.0
    %4670 = vmatpush1.msra.mxu0 0.0
    %4671 = vmatprep.subr.mxu0 0.0
    %4672 = vmatpush1.msra.mxu0 0.0
    %4673 = vmatprep.subr.mxu0 0.0
    %4674 = vmatpush1.msra.mxu0 0.0
    %4675 = vmatprep.subr.mxu0 0.0
    %4676 = vmatpush1.msra.mxu0 0.0
    %4677 = vmatprep.subr.mxu0 0.0
    %4678 = vmatpush1.msra.mxu0 0.0
    %4679 = vmatprep.subr.mxu0 0.0
    %4680 = vmatpush1.msra.mxu0 0.0
    %4681 = vmatprep.mubr.f32.mxu0 0.0
    %4682 = vmatmul.mubr.f32.gmra.mrb[0].mxu0 %v4612
    %v4683 = vpop.f32.mrb[0].mxu0
    %v4684 = vadd.f32 0.0, %v4683
    %v4685 = vpop.f32.mrb[0].mxu0
    %4686 = vmatprep.mubr.f32.mxu0 0.0
    %4687 = vmatmul.mubr.f32.gmra.mrb[0].mxu0 %v4615
    %v4688 = vpop.f32.mrb[0].mxu0
    %v4689 = vadd.f32 0.0, %v4688
    %v4690 = vpop.f32.mrb[0].mxu0
    %4691 = vdwg.mxu0
    %v4693 = vsel %vm233, %v4498, 0
    %v4696 = vsel %vm233, %v4499, 0
    %4698 = vmatprep.subr.mxu0 0.0
    %4699 = vmatpush1.msra.mxu0 %v4490
    %4700 = vmatprep.subr.mxu0 0.0
    %4701 = vmatpush1.msra.mxu0 %v4495
    %4702 = vmatprep.subr.mxu0 0.0
    %4703 = vmatpush1.msra.mxu0 0.0
    %4704 = vmatprep.subr.mxu0 0.0
    %4705 = vmatpush1.msra.mxu0 0.0
    %4706 = vmatprep.subr.mxu0 0.0
    %4707 = vmatpush1.msra.mxu0 0.0
    %4708 = vmatprep.subr.mxu0 0.0
    %4709 = vmatpush1.msra.mxu0 0.0
    %4710 = vmatprep.subr.mxu0 0.0
    %4711 = vmatpush1.msra.mxu0 0.0
    %4712 = vmatprep.subr.mxu0 0.0
    %4713 = vmatpush1.msra.mxu0 0.0
    %4714 = vmatprep.subr.mxu0 0.0
    %4715 = vmatpush1.msra.mxu0 0.0
    %4716 = vmatprep.subr.mxu0 0.0
    %4717 = vmatpush1.msra.mxu0 0.0
    %4718 = vmatprep.subr.mxu0 0.0
    %4719 = vmatpush1.msra.mxu0 0.0
    %4720 = vmatprep.subr.mxu0 0.0
    %4721 = vmatpush1.msra.mxu0 0.0
    %4722 = vmatprep.subr.mxu0 0.0
    %4723 = vmatpush1.msra.mxu0 0.0
    %4724 = vmatprep.subr.mxu0 0.0
    %4725 = vmatpush1.msra.mxu0 0.0
    %4726 = vmatprep.subr.mxu0 0.0
    %4727 = vmatpush1.msra.mxu0 0.0
    %4728 = vmatprep.subr.mxu0 0.0
    %4729 = vmatpush1.msra.mxu0 0.0
    %4730 = vmatprep.subr.mxu0 0.0
    %4731 = vmatpush1.msra.mxu0 0.0
    %4732 = vmatprep.subr.mxu0 0.0
    %4733 = vmatpush1.msra.mxu0 0.0
    %4734 = vmatprep.subr.mxu0 0.0
    %4735 = vmatpush1.msra.mxu0 0.0
    %4736 = vmatprep.subr.mxu0 0.0
    %4737 = vmatpush1.msra.mxu0 0.0
    %4738 = vmatprep.subr.mxu0 0.0
    %4739 = vmatpush1.msra.mxu0 0.0
    %4740 = vmatprep.subr.mxu0 0.0
    %4741 = vmatpush1.msra.mxu0 0.0
    %4742 = vmatprep.subr.mxu0 0.0
    %4743 = vmatpush1.msra.mxu0 0.0
    %4744 = vmatprep.subr.mxu0 0.0
    %4745 = vmatpush1.msra.mxu0 0.0
    %4746 = vmatprep.subr.mxu0 0.0
    %4747 = vmatpush1.msra.mxu0 0.0
    %4748 = vmatprep.subr.mxu0 0.0
    %4749 = vmatpush1.msra.mxu0 0.0
    %4750 = vmatprep.subr.mxu0 0.0
    %4751 = vmatpush1.msra.mxu0 0.0
    %4752 = vmatprep.subr.mxu0 0.0
    %4753 = vmatpush1.msra.mxu0 0.0
    %4754 = vmatprep.subr.mxu0 0.0
    %4755 = vmatpush1.msra.mxu0 0.0
    %4756 = vmatprep.subr.mxu0 0.0
    %4757 = vmatpush1.msra.mxu0 0.0
    %4758 = vmatprep.subr.mxu0 0.0
    %4759 = vmatpush1.msra.mxu0 0.0
    %4760 = vmatprep.subr.mxu0 0.0
    %4761 = vmatpush1.msra.mxu0 0.0
    %4762 = vmatprep.mubr.f32.mxu0 0.0
    %4763 = vmatmul.mubr.f32.gmra.mrb[0].mxu0 %v4693
    %v4764 = vpop.f32.mrb[0].mxu0
    %v4765 = vadd.f32 %v4684, %v4764
    %v4766 = vpop.f32.mrb[0].mxu0
    %4767 = vmatprep.mubr.f32.mxu0 0.0
    %4768 = vmatmul.mubr.f32.gmra.mrb[0].mxu0 %v4696
    %v4769 = vpop.f32.mrb[0].mxu0
    %v4770 = vadd.f32 %v4689, %v4769
    %v4771 = vpop.f32.mrb[0].mxu0
    %4772 = vdwg.mxu0
    %s4773 = scalar_lea.vmem %s9, 512
    %v4774 = vld [vmem:[%s4773] sm:$0xff]
    %v4775 = vld [vmem:[%s4773 + $0x8] sm:$0xff]
    %v4776 = vld [vmem:[%s4773 + $0x10] sm:$0xff]
    %v4777 = vld [vmem:[%s4773 + $0x18] sm:$0xff]
    %v4778 = vld [vmem:[%s4773 + $0x20] sm:$0xff]
    %v4779 = vld [vmem:[%s4773 + $0x28] sm:$0xff]
    %v4780 = vld [vmem:[%s4773 + $0x30] sm:$0xff]
    %v4781 = vld [vmem:[%s4773 + $0x38] sm:$0xff]
    %v4782 = vld [vmem:[%s4773 + $0x40] sm:$0xff]
    %v4783 = vld [vmem:[%s4773 + $0x48] sm:$0xff]
    %v4784 = vld [vmem:[%s4773 + $0x50] sm:$0xff]
    %v4785 = vld [vmem:[%s4773 + $0x58] sm:$0xff]
    %v4786 = vld [vmem:[%s4773 + $0x60] sm:$0xff]
    %v4787 = vld [vmem:[%s4773 + $0x68] sm:$0xff]
    %v4788 = vld [vmem:[%s4773 + $0x70] sm:$0xff]
    %v4789 = vld [vmem:[%s4773 + $0x78] sm:$0xff]
    %v4790 = vld [vmem:[%s4773 + $0x80] sm:$0xff]
    %v4791 = vld [vmem:[%s4773 + $0x88] sm:$0xff]
    %v4792 = vld [vmem:[%s4773 + $0x90] sm:$0xff]
    %v4793 = vld [vmem:[%s4773 + $0x98] sm:$0xff]
    %v4794 = vld [vmem:[%s4773 + $0xa0] sm:$0xff]
    %v4795 = vld [vmem:[%s4773 + $0xa8] sm:$0xff]
    %v4796 = vld [vmem:[%s4773 + $0xb0] sm:$0xff]
    %v4797 = vld [vmem:[%s4773 + $0xb8] sm:$0xff]
    %v4798 = vld [vmem:[%s4773 + $0xc0] sm:$0xff]
    %v4799 = vld [vmem:[%s4773 + $0xc8] sm:$0xff]
    %v4800 = vld [vmem:[%s4773 + $0xd0] sm:$0xff]
    %v4801 = vld [vmem:[%s4773 + $0xd8] sm:$0xff]
    %v4802 = vld [vmem:[%s4773 + $0xe0] sm:$0xff]
    %v4803 = vld [vmem:[%s4773 + $0xe8] sm:$0xff]
    %v4804 = vld [vmem:[%s4773 + $0xf0] sm:$0xff]
    %v4805 = vld [vmem:[%s4773 + $0xf8] sm:$0xff]
    %4806 = vmatprep.subr.mxu0 0.0
    %4807 = vmatpush1.msra.mxu0 %v4774
    %4808 = vmatprep.subr.mxu0 0.0
    %4809 = vmatpush1.msra.mxu0 %v4775
    %4810 = vmatprep.subr.mxu0 0.0
    %4811 = vmatpush1.msra.mxu0 %v4776
    %4812 = vmatprep.subr.mxu0 0.0
    %4813 = vmatpush1.msra.mxu0 %v4777
    %4814 = vmatprep.subr.mxu0 0.0
    %4815 = vmatpush1.msra.mxu0 %v4778
    %4816 = vmatprep.subr.mxu0 0.0
    %4817 = vmatpush1.msra.mxu0 %v4779
    %4818 = vmatprep.subr.mxu0 0.0
    %4819 = vmatpush1.msra.mxu0 %v4780
    %4820 = vmatprep.subr.mxu0 0.0
    %4821 = vmatpush1.msra.mxu0 %v4781
    %4822 = vmatprep.subr.mxu0 0.0
    %4823 = vmatpush1.msra.mxu0 %v4782
    %4824 = vmatprep.subr.mxu0 0.0
    %4825 = vmatpush1.msra.mxu0 %v4783
    %4826 = vmatprep.subr.mxu0 0.0
    %4827 = vmatpush1.msra.mxu0 %v4784
    %4828 = vmatprep.subr.mxu0 0.0
    %4829 = vmatpush1.msra.mxu0 %v4785
    %4830 = vmatprep.subr.mxu0 0.0
    %4831 = vmatpush1.msra.mxu0 %v4786
    %4832 = vmatprep.subr.mxu0 0.0
    %4833 = vmatpush1.msra.mxu0 %v4787
    %4834 = vmatprep.subr.mxu0 0.0
    %4835 = vmatpush1.msra.mxu0 %v4788
    %4836 = vmatprep.subr.mxu0 0.0
    %4837 = vmatpush1.msra.mxu0 %v4789
    %4838 = vmatprep.subr.mxu0 0.0
    %4839 = vmatpush1.msra.mxu0 %v4790
    %4840 = vmatprep.subr.mxu0 0.0
    %4841 = vmatpush1.msra.mxu0 %v4791
    %4842 = vmatprep.subr.mxu0 0.0
    %4843 = vmatpush1.msra.mxu0 %v4792
    %4844 = vmatprep.subr.mxu0 0.0
    %4845 = vmatpush1.msra.mxu0 %v4793
    %4846 = vmatprep.subr.mxu0 0.0
    %4847 = vmatpush1.msra.mxu0 %v4794
    %4848 = vmatprep.subr.mxu0 0.0
    %4849 = vmatpush1.msra.mxu0 %v4795
    %4850 = vmatprep.subr.mxu0 0.0
    %4851 = vmatpush1.msra.mxu0 %v4796
    %4852 = vmatprep.subr.mxu0 0.0
    %4853 = vmatpush1.msra.mxu0 %v4797
    %4854 = vmatprep.subr.mxu0 0.0
    %4855 = vmatpush1.msra.mxu0 %v4798
    %4856 = vmatprep.subr.mxu0 0.0
    %4857 = vmatpush1.msra.mxu0 %v4799
    %4858 = vmatprep.subr.mxu0 0.0
    %4859 = vmatpush1.msra.mxu0 %v4800
    %4860 = vmatprep.subr.mxu0 0.0
    %4861 = vmatpush1.msra.mxu0 %v4801
    %4862 = vmatprep.subr.mxu0 0.0
    %4863 = vmatpush1.msra.mxu0 %v4802
    %4864 = vmatprep.subr.mxu0 0.0
    %4865 = vmatpush1.msra.mxu0 %v4803
    %4866 = vmatprep.subr.mxu0 0.0
    %4867 = vmatpush1.msra.mxu0 %v4804
    %4868 = vmatprep.subr.mxu0 0.0
    %4869 = vmatpush1.msra.mxu0 %v4805
    %4870 = vmatprep.mubr.f32.mxu0 %v4388
    %4871 = vmatmul.mubr.f32.gmra.mrb[0].mxu0 %v4387
    %v4872 = vpop.f32.mrb[0].mxu0
    %v4873 = vadd.f32 0.0, %v4872
    %v4874 = vpop.f32.mrb[0].mxu0
    %4875 = vmatprep.mubr.f32.mxu0 %v4390
    %4876 = vmatmul.mubr.f32.gmra.mrb[0].mxu0 %v4389
    %v4877 = vpop.f32.mrb[0].mxu0
    %v4878 = vadd.f32 0.0, %v4877
    %v4879 = vpop.f32.mrb[0].mxu0
    %4880 = vdwg.mxu0
    %s4881 = scalar_lea.vmem [#allocation13], 32
    %v4882 = vld [vmem:[%s4881] sm:$0xff]
    %v4883 = vld [vmem:[%s4881 + $0x8] sm:$0xff]
    %v4885 = vsel %vm233, %v4882, 0
    %v4888 = vsel %vm233, %v4883, 0
    %4890 = vmatprep.subr.mxu0 0.0
    %4891 = vmatpush1.msra.mxu0 %v4873
    %4892 = vmatprep.subr.mxu0 0.0
    %4893 = vmatpush1.msra.mxu0 %v4878
    %4894 = vmatprep.subr.mxu0 0.0
    %4895 = vmatpush1.msra.mxu0 0.0
    %4896 = vmatprep.subr.mxu0 0.0
    %4897 = vmatpush1.msra.mxu0 0.0
    %4898 = vmatprep.subr.mxu0 0.0
    %4899 = vmatpush1.msra.mxu0 0.0
    %4900 = vmatprep.subr.mxu0 0.0
    %4901 = vmatpush1.msra.mxu0 0.0
    %4902 = vmatprep.subr.mxu0 0.0
    %4903 = vmatpush1.msra.mxu0 0.0
    %4904 = vmatprep.subr.mxu0 0.0
    %4905 = vmatpush1.msra.mxu0 0.0
    %4906 = vmatprep.subr.mxu0 0.0
    %4907 = vmatpush1.msra.mxu0 0.0
    %4908 = vmatprep.subr.mxu0 0.0
    %4909 = vmatpush1.msra.mxu0 0.0
    %4910 = vmatprep.subr.mxu0 0.0
    %4911 = vmatpush1.msra.mxu0 0.0
    %4912 = vmatprep.subr.mxu0 0.0
    %4913 = vmatpush1.msra.mxu0 0.0
    %4914 = vmatprep.subr.mxu0 0.0
    %4915 = vmatpush1.msra.mxu0 0.0
    %4916 = vmatprep.subr.mxu0 0.0
    %4917 = vmatpush1.msra.mxu0 0.0
    %4918 = vmatprep.subr.mxu0 0.0
    %4919 = vmatpush1.msra.mxu0 0.0
    %4920 = vmatprep.subr.mxu0 0.0
    %4921 = vmatpush1.msra.mxu0 0.0
    %4922 = vmatprep.subr.mxu0 0.0
    %4923 = vmatpush1.msra.mxu0 0.0
    %4924 = vmatprep.subr.mxu0 0.0
    %4925 = vmatpush1.msra.mxu0 0.0
    %4926 = vmatprep.subr.mxu0 0.0
    %4927 = vmatpush1.msra.mxu0 0.0
    %4928 = vmatprep.subr.mxu0 0.0
    %4929 = vmatpush1.msra.mxu0 0.0
    %4930 = vmatprep.subr.mxu0 0.0
    %4931 = vmatpush1.msra.mxu0 0.0
    %4932 = vmatprep.subr.mxu0 0.0
    %4933 = vmatpush1.msra.mxu0 0.0
    %4934 = vmatprep.subr.mxu0 0.0
    %4935 = vmatpush1.msra.mxu0 0.0
    %4936 = vmatprep.subr.mxu0 0.0
    %4937 = vmatpush1.msra.mxu0 0.0
    %4938 = vmatprep.subr.mxu0 0.0
    %4939 = vmatpush1.msra.mxu0 0.0
    %4940 = vmatprep.subr.mxu0 0.0
    %4941 = vmatpush1.msra.mxu0 0.0
    %4942 = vmatprep.subr.mxu0 0.0
    %4943 = vmatpush1.msra.mxu0 0.0
    %4944 = vmatprep.subr.mxu0 0.0
    %4945 = vmatpush1.msra.mxu0 0.0
    %4946 = vmatprep.subr.mxu0 0.0
    %4947 = vmatpush1.msra.mxu0 0.0
    %4948 = vmatprep.subr.mxu0 0.0
    %4949 = vmatpush1.msra.mxu0 0.0
    %4950 = vmatprep.subr.mxu0 0.0
    %4951 = vmatpush1.msra.mxu0 0.0
    %4952 = vmatprep.subr.mxu0 0.0
    %4953 = vmatpush1.msra.mxu0 0.0
    %4954 = vmatprep.mubr.f32.mxu0 0.0
    %4955 = vmatmul.mubr.f32.gmra.mrb[0].mxu0 %v4885
    %v4956 = vpop.f32.mrb[0].mxu0
    %v4957 = vadd.f32 0.0, %v4956
    %v4958 = vpop.f32.mrb[0].mxu0
    %4959 = vmatprep.mubr.f32.mxu0 0.0
    %4960 = vmatmul.mubr.f32.gmra.mrb[0].mxu0 %v4888
    %v4961 = vpop.f32.mrb[0].mxu0
    %v4962 = vadd.f32 0.0, %v4961
    %v4963 = vpop.f32.mrb[0].mxu0
    %4964 = vdwg.mxu0
    %v4965 = vadd.f32 %v4765, %v4957
    %v4966 = vadd.f32 %v4770, %v4962
    %v4967 = vld [vmem:[#allocation14] sm:$0x1]
    %v4969 = vlaneseq
    %v4970 = vshrl.u32 %v4969, 7
    %v4971 = vsub.s32 0, %v4970
    %v4972 = vrot.slane %v4967, %v4971
    %v4974 = vadd.f32 %v4965, %v4972
    %v4975 = vadd.f32 %v4966, %v4972
    %v4976 = vmax.f32 %v4974, 0.0
    %v4977 = vmax.f32 %v4975, 0.0
    %v4978 = vld [vmem:[#allocation16] sm:$0xff]
    %v4980 = vsel %vm233, %v4978, 0
    %4982 = vmatprep.subr.mxu0 0.0
    %4983 = vmatpush1.msra.mxu0 %v4976
    %4984 = vmatprep.subr.mxu0 0.0
    %4985 = vmatpush1.msra.mxu0 %v4977
    %4986 = vmatprep.subr.mxu0 0.0
    %4987 = vmatpush1.msra.mxu0 0.0
    %4988 = vmatprep.subr.mxu0 0.0
    %4989 = vmatpush1.msra.mxu0 0.0
    %4990 = vmatprep.subr.mxu0 0.0
    %4991 = vmatpush1.msra.mxu0 0.0
    %4992 = vmatprep.subr.mxu0 0.0
    %4993 = vmatpush1.msra.mxu0 0.0
    %4994 = vmatprep.subr.mxu0 0.0
    %4995 = vmatpush1.msra.mxu0 0.0
    %4996 = vmatprep.subr.mxu0 0.0
    %4997 = vmatpush1.msra.mxu0 0.0
    %4998 = vmatprep.subr.mxu0 0.0
    %4999 = vmatpush1.msra.mxu0 0.0
    %5000 = vmatprep.subr.mxu0 0.0
    %5001 = vmatpush1.msra.mxu0 0.0
    %5002 = vmatprep.subr.mxu0 0.0
    %5003 = vmatpush1.msra.mxu0 0.0
    %5004 = vmatprep.subr.mxu0 0.0
    %5005 = vmatpush1.msra.mxu0 0.0
    %5006 = vmatprep.subr.mxu0 0.0
    %5007 = vmatpush1.msra.mxu0 0.0
    %5008 = vmatprep.subr.mxu0 0.0
    %5009 = vmatpush1.msra.mxu0 0.0
    %5010 = vmatprep.subr.mxu0 0.0
    %5011 = vmatpush1.msra.mxu0 0.0
    %5012 = vmatprep.subr.mxu0 0.0
    %5013 = vmatpush1.msra.mxu0 0.0
    %5014 = vmatprep.subr.mxu0 0.0
    %5015 = vmatpush1.msra.mxu0 0.0
    %5016 = vmatprep.subr.mxu0 0.0
    %5017 = vmatpush1.msra.mxu0 0.0
    %5018 = vmatprep.subr.mxu0 0.0
    %5019 = vmatpush1.msra.mxu0 0.0
    %5020 = vmatprep.subr.mxu0 0.0
    %5021 = vmatpush1.msra.mxu0 0.0
    %5022 = vmatprep.subr.mxu0 0.0
    %5023 = vmatpush1.msra.mxu0 0.0
    %5024 = vmatprep.subr.mxu0 0.0
    %5025 = vmatpush1.msra.mxu0 0.0
    %5026 = vmatprep.subr.mxu0 0.0
    %5027 = vmatpush1.msra.mxu0 0.0
    %5028 = vmatprep.subr.mxu0 0.0
    %5029 = vmatpush1.msra.mxu0 0.0
    %5030 = vmatprep.subr.mxu0 0.0
    %5031 = vmatpush1.msra.mxu0 0.0
    %5032 = vmatprep.subr.mxu0 0.0
    %5033 = vmatpush1.msra.mxu0 0.0
    %5034 = vmatprep.subr.mxu0 0.0
    %5035 = vmatpush1.msra.mxu0 0.0
    %5036 = vmatprep.subr.mxu0 0.0
    %5037 = vmatpush1.msra.mxu0 0.0
    %5038 = vmatprep.subr.mxu0 0.0
    %5039 = vmatpush1.msra.mxu0 0.0
    %5040 = vmatprep.subr.mxu0 0.0
    %5041 = vmatpush1.msra.mxu0 0.0
    %5042 = vmatprep.subr.mxu0 0.0
    %5043 = vmatpush1.msra.mxu0 0.0
    %5044 = vmatprep.subr.mxu0 0.0
    %5045 = vmatpush1.msra.mxu0 0.0
    %5046 = vmatprep.mubr.f32.mxu0 0.0
    %5047 = vmatmul.mubr.f32.gmra.mrb[0].mxu0 %v4980
    %v5048 = vpop.f32.mrb[0].mxu0
    %v5049 = vadd.f32 0.0, %v5048
    %v5050 = vpop.f32.mrb[0].mxu0
    %5051 = vdwg.mxu0
    %s5052 = scalar_lea.vmem [#allocation16], 8
    %v5053 = vld [vmem:[%s5052] sm:$0xff]
    %v5055 = vsel %vm233, %v5053, 0
    %5057 = vmatprep.subr.mxu0 0.0
    %5058 = vmatpush1.msra.mxu0 %v4976
    %5059 = vmatprep.subr.mxu0 0.0
    %5060 = vmatpush1.msra.mxu0 %v4977
    %5061 = vmatprep.subr.mxu0 0.0
    %5062 = vmatpush1.msra.mxu0 0.0
    %5063 = vmatprep.subr.mxu0 0.0
    %5064 = vmatpush1.msra.mxu0 0.0
    %5065 = vmatprep.subr.mxu0 0.0
    %5066 = vmatpush1.msra.mxu0 0.0
    %5067 = vmatprep.subr.mxu0 0.0
    %5068 = vmatpush1.msra.mxu0 0.0
    %5069 = vmatprep.subr.mxu0 0.0
    %5070 = vmatpush1.msra.mxu0 0.0
    %5071 = vmatprep.subr.mxu0 0.0
    %5072 = vmatpush1.msra.mxu0 0.0
    %5073 = vmatprep.subr.mxu0 0.0
    %5074 = vmatpush1.msra.mxu0 0.0
    %5075 = vmatprep.subr.mxu0 0.0
    %5076 = vmatpush1.msra.mxu0 0.0
    %5077 = vmatprep.subr.mxu0 0.0
    %5078 = vmatpush1.msra.mxu0 0.0
    %5079 = vmatprep.subr.mxu0 0.0
    %5080 = vmatpush1.msra.mxu0 0.0
    %5081 = vmatprep.subr.mxu0 0.0
    %5082 = vmatpush1.msra.mxu0 0.0
    %5083 = vmatprep.subr.mxu0 0.0
    %5084 = vmatpush1.msra.mxu0 0.0
    %5085 = vmatprep.subr.mxu0 0.0
    %5086 = vmatpush1.msra.mxu0 0.0
    %5087 = vmatprep.subr.mxu0 0.0
    %5088 = vmatpush1.msra.mxu0 0.0
    %5089 = vmatprep.subr.mxu0 0.0
    %5090 = vmatpush1.msra.mxu0 0.0
    %5091 = vmatprep.subr.mxu0 0.0
    %5092 = vmatpush1.msra.mxu0 0.0
    %5093 = vmatprep.subr.mxu0 0.0
    %5094 = vmatpush1.msra.mxu0 0.0
    %5095 = vmatprep.subr.mxu0 0.0
    %5096 = vmatpush1.msra.mxu0 0.0
    %5097 = vmatprep.subr.mxu0 0.0
    %5098 = vmatpush1.msra.mxu0 0.0
    %5099 = vmatprep.subr.mxu0 0.0
    %5100 = vmatpush1.msra.mxu0 0.0
    %5101 = vmatprep.subr.mxu0 0.0
    %5102 = vmatpush1.msra.mxu0 0.0
    %5103 = vmatprep.subr.mxu0 0.0
    %5104 = vmatpush1.msra.mxu0 0.0
    %5105 = vmatprep.subr.mxu0 0.0
    %5106 = vmatpush1.msra.mxu0 0.0
    %5107 = vmatprep.subr.mxu0 0.0
    %5108 = vmatpush1.msra.mxu0 0.0
    %5109 = vmatprep.subr.mxu0 0.0
    %5110 = vmatpush1.msra.mxu0 0.0
    %5111 = vmatprep.subr.mxu0 0.0
    %5112 = vmatpush1.msra.mxu0 0.0
    %5113 = vmatprep.subr.mxu0 0.0
    %5114 = vmatpush1.msra.mxu0 0.0
    %5115 = vmatprep.subr.mxu0 0.0
    %5116 = vmatpush1.msra.mxu0 0.0
    %5117 = vmatprep.subr.mxu0 0.0
    %5118 = vmatpush1.msra.mxu0 0.0
    %5119 = vmatprep.subr.mxu0 0.0
    %5120 = vmatpush1.msra.mxu0 0.0
    %5121 = vmatprep.mubr.f32.mxu0 0.0
    %5122 = vmatmul.mubr.f32.gmra.mrb[0].mxu0 %v5055
    %v5123 = vpop.f32.mrb[0].mxu0
    %v5124 = vadd.f32 0.0, %v5123
    %v5125 = vpop.f32.mrb[0].mxu0
    %5126 = vdwg.mxu0
    %v5127 = vmax.f32 %v5049, %v5124
    %v5128 = vld [vmem:[%s12] sm:$0xff]
    %v5129 = vld [vmem:[%s12 + $0x8] sm:$0xff]
    %v5130 = vld [vmem:[%s12 + $0x10] sm:$0xff]
    %v5131 = vld [vmem:[%s12 + $0x18] sm:$0xff]
    %v5133 = vsel %vm984, %v5127, 0
    %5135 = vmatprep.subr.mxu0 0.0
    %5136 = vmatpush1.msra.mxu0 %v5128
    %5137 = vmatprep.subr.mxu0 0.0
    %5138 = vmatpush1.msra.mxu0 %v5129
    %5139 = vmatprep.subr.mxu0 0.0
    %5140 = vmatpush1.msra.mxu0 %v5130
    %5141 = vmatprep.subr.mxu0 0.0
    %5142 = vmatpush1.msra.mxu0 %v5131
    %5143 = vmatprep.subr.mxu0 0.0
    %5144 = vmatpush1.msra.mxu0 0.0
    %5145 = vmatprep.subr.mxu0 0.0
    %5146 = vmatpush1.msra.mxu0 0.0
    %5147 = vmatprep.subr.mxu0 0.0
    %5148 = vmatpush1.msra.mxu0 0.0
    %5149 = vmatprep.subr.mxu0 0.0
    %5150 = vmatpush1.msra.mxu0 0.0
    %5151 = vmatprep.subr.mxu0 0.0
    %5152 = vmatpush1.msra.mxu0 0.0
    %5153 = vmatprep.subr.mxu0 0.0
    %5154 = vmatpush1.msra.mxu0 0.0
    %5155 = vmatprep.subr.mxu0 0.0
    %5156 = vmatpush1.msra.mxu0 0.0
    %5157 = vmatprep.subr.mxu0 0.0
    %5158 = vmatpush1.msra.mxu0 0.0
    %5159 = vmatprep.subr.mxu0 0.0
    %5160 = vmatpush1.msra.mxu0 0.0
    %5161 = vmatprep.subr.mxu0 0.0
    %5162 = vmatpush1.msra.mxu0 0.0
    %5163 = vmatprep.subr.mxu0 0.0
    %5164 = vmatpush1.msra.mxu0 0.0
    %5165 = vmatprep.subr.mxu0 0.0
    %5166 = vmatpush1.msra.mxu0 0.0
    %5167 = vmatprep.subr.mxu0 0.0
    %5168 = vmatpush1.msra.mxu0 0.0
    %5169 = vmatprep.subr.mxu0 0.0
    %5170 = vmatpush1.msra.mxu0 0.0
    %5171 = vmatprep.subr.mxu0 0.0
    %5172 = vmatpush1.msra.mxu0 0.0
    %5173 = vmatprep.subr.mxu0 0.0
    %5174 = vmatpush1.msra.mxu0 0.0
    %5175 = vmatprep.subr.mxu0 0.0
    %5176 = vmatpush1.msra.mxu0 0.0
    %5177 = vmatprep.subr.mxu0 0.0
    %5178 = vmatpush1.msra.mxu0 0.0
    %5179 = vmatprep.subr.mxu0 0.0
    %5180 = vmatpush1.msra.mxu0 0.0
    %5181 = vmatprep.subr.mxu0 0.0
    %5182 = vmatpush1.msra.mxu0 0.0
    %5183 = vmatprep.subr.mxu0 0.0
    %5184 = vmatpush1.msra.mxu0 0.0
    %5185 = vmatprep.subr.mxu0 0.0
    %5186 = vmatpush1.msra.mxu0 0.0
    %5187 = vmatprep.subr.mxu0 0.0
    %5188 = vmatpush1.msra.mxu0 0.0
    %5189 = vmatprep.subr.mxu0 0.0
    %5190 = vmatpush1.msra.mxu0 0.0
    %5191 = vmatprep.subr.mxu0 0.0
    %5192 = vmatpush1.msra.mxu0 0.0
    %5193 = vmatprep.subr.mxu0 0.0
    %5194 = vmatpush1.msra.mxu0 0.0
    %5195 = vmatprep.subr.mxu0 0.0
    %5196 = vmatpush1.msra.mxu0 0.0
    %5197 = vmatprep.subr.mxu0 0.0
    %5198 = vmatpush1.msra.mxu0 0.0
    %5199 = vmatprep.mubr.f32.mxu0 0.0
    %5200 = vmatmul.mubr.f32.gmra.mrb[0].mxu0 %v5133
    %v5201 = vpop.f32.mrb[0].mxu0
    %v5202 = vadd.f32 0.0, %v5201
    %v5203 = vpop.f32.mrb[0].mxu0
    %5204 = vdwg.mxu0
    %s5205 = scalar_lea.vmem %s12, 32
    %v5206 = vld [vmem:[%s5205] sm:$0xff]
    %v5207 = vld [vmem:[%s5205 + $0x8] sm:$0xff]
    %v5208 = vld [vmem:[%s5205 + $0x10] sm:$0xff]
    %v5209 = vld [vmem:[%s5205 + $0x18] sm:$0xff]
    %5210 = vmatprep.subr.mxu0 0.0
    %5211 = vmatpush1.msra.mxu0 %v5206
    %5212 = vmatprep.subr.mxu0 0.0
    %5213 = vmatpush1.msra.mxu0 %v5207
    %5214 = vmatprep.subr.mxu0 0.0
    %5215 = vmatpush1.msra.mxu0 %v5208
    %5216 = vmatprep.subr.mxu0 0.0
    %5217 = vmatpush1.msra.mxu0 %v5209
    %5218 = vmatprep.subr.mxu0 0.0
    %5219 = vmatpush1.msra.mxu0 0.0
    %5220 = vmatprep.subr.mxu0 0.0
    %5221 = vmatpush1.msra.mxu0 0.0
    %5222 = vmatprep.subr.mxu0 0.0
    %5223 = vmatpush1.msra.mxu0 0.0
    %5224 = vmatprep.subr.mxu0 0.0
    %5225 = vmatpush1.msra.mxu0 0.0
    %5226 = vmatprep.subr.mxu0 0.0
    %5227 = vmatpush1.msra.mxu0 0.0
    %5228 = vmatprep.subr.mxu0 0.0
    %5229 = vmatpush1.msra.mxu0 0.0
    %5230 = vmatprep.subr.mxu0 0.0
    %5231 = vmatpush1.msra.mxu0 0.0
    %5232 = vmatprep.subr.mxu0 0.0
    %5233 = vmatpush1.msra.mxu0 0.0
    %5234 = vmatprep.subr.mxu0 0.0
    %5235 = vmatpush1.msra.mxu0 0.0
    %5236 = vmatprep.subr.mxu0 0.0
    %5237 = vmatpush1.msra.mxu0 0.0
    %5238 = vmatprep.subr.mxu0 0.0
    %5239 = vmatpush1.msra.mxu0 0.0
    %5240 = vmatprep.subr.mxu0 0.0
    %5241 = vmatpush1.msra.mxu0 0.0
    %5242 = vmatprep.subr.mxu0 0.0
    %5243 = vmatpush1.msra.mxu0 0.0
    %5244 = vmatprep.subr.mxu0 0.0
    %5245 = vmatpush1.msra.mxu0 0.0
    %5246 = vmatprep.subr.mxu0 0.0
    %5247 = vmatpush1.msra.mxu0 0.0
    %5248 = vmatprep.subr.mxu0 0.0
    %5249 = vmatpush1.msra.mxu0 0.0
    %5250 = vmatprep.subr.mxu0 0.0
    %5251 = vmatpush1.msra.mxu0 0.0
    %5252 = vmatprep.subr.mxu0 0.0
    %5253 = vmatpush1.msra.mxu0 0.0
    %5254 = vmatprep.subr.mxu0 0.0
    %5255 = vmatpush1.msra.mxu0 0.0
    %5256 = vmatprep.subr.mxu0 0.0
    %5257 = vmatpush1.msra.mxu0 0.0
    %5258 = vmatprep.subr.mxu0 0.0
    %5259 = vmatpush1.msra.mxu0 0.0
    %5260 = vmatprep.subr.mxu0 0.0
    %5261 = vmatpush1.msra.mxu0 0.0
    %5262 = vmatprep.subr.mxu0 0.0
    %5263 = vmatpush1.msra.mxu0 0.0
    %5264 = vmatprep.subr.mxu0 0.0
    %5265 = vmatpush1.msra.mxu0 0.0
    %5266 = vmatprep.subr.mxu0 0.0
    %5267 = vmatpush1.msra.mxu0 0.0
    %5268 = vmatprep.subr.mxu0 0.0
    %5269 = vmatpush1.msra.mxu0 0.0
    %5270 = vmatprep.subr.mxu0 0.0
    %5271 = vmatpush1.msra.mxu0 0.0
    %5272 = vmatprep.subr.mxu0 0.0
    %5273 = vmatpush1.msra.mxu0 0.0
    %5274 = vmatprep.mubr.f32.mxu0 0.0
    %5275 = vmatmul.mubr.f32.gmra.mrb[0].mxu0 %v5133
    %v5276 = vpop.f32.mrb[0].mxu0
    %v5277 = vadd.f32 0.0, %v5276
    %v5278 = vpop.f32.mrb[0].mxu0
    %5279 = vdwg.mxu0
    %v5280 = vmax.f32 %v5202, %v5277
    %v5281 = vld [vmem:[%s14] sm:$0xff]
    %v5282 = vld [vmem:[%s14 + $0x8] sm:$0xff]
    %v5284 = vsel %vm233, %v5280, 0
    %5286 = vmatprep.subr.mxu0 0.0
    %5287 = vmatpush1.msra.mxu0 %v5281
    %5288 = vmatprep.subr.mxu0 0.0
    %5289 = vmatpush1.msra.mxu0 %v5282
    %5290 = vmatprep.subr.mxu0 0.0
    %5291 = vmatpush1.msra.mxu0 0.0
    %5292 = vmatprep.subr.mxu0 0.0
    %5293 = vmatpush1.msra.mxu0 0.0
    %5294 = vmatprep.subr.mxu0 0.0
    %5295 = vmatpush1.msra.mxu0 0.0
    %5296 = vmatprep.subr.mxu0 0.0
    %5297 = vmatpush1.msra.mxu0 0.0
    %5298 = vmatprep.subr.mxu0 0.0
    %5299 = vmatpush1.msra.mxu0 0.0
    %5300 = vmatprep.subr.mxu0 0.0
    %5301 = vmatpush1.msra.mxu0 0.0
    %5302 = vmatprep.subr.mxu0 0.0
    %5303 = vmatpush1.msra.mxu0 0.0
    %5304 = vmatprep.subr.mxu0 0.0
    %5305 = vmatpush1.msra.mxu0 0.0
    %5306 = vmatprep.subr.mxu0 0.0
    %5307 = vmatpush1.msra.mxu0 0.0
    %5308 = vmatprep.subr.mxu0 0.0
    %5309 = vmatpush1.msra.mxu0 0.0
    %5310 = vmatprep.subr.mxu0 0.0
    %5311 = vmatpush1.msra.mxu0 0.0
    %5312 = vmatprep.subr.mxu0 0.0
    %5313 = vmatpush1.msra.mxu0 0.0
    %5314 = vmatprep.subr.mxu0 0.0
    %5315 = vmatpush1.msra.mxu0 0.0
    %5316 = vmatprep.subr.mxu0 0.0
    %5317 = vmatpush1.msra.mxu0 0.0
    %5318 = vmatprep.subr.mxu0 0.0
    %5319 = vmatpush1.msra.mxu0 0.0
    %5320 = vmatprep.subr.mxu0 0.0
    %5321 = vmatpush1.msra.mxu0 0.0
    %5322 = vmatprep.subr.mxu0 0.0
    %5323 = vmatpush1.msra.mxu0 0.0
    %5324 = vmatprep.subr.mxu0 0.0
    %5325 = vmatpush1.msra.mxu0 0.0
    %5326 = vmatprep.subr.mxu0 0.0
    %5327 = vmatpush1.msra.mxu0 0.0
    %5328 = vmatprep.subr.mxu0 0.0
    %5329 = vmatpush1.msra.mxu0 0.0
    %5330 = vmatprep.subr.mxu0 0.0
    %5331 = vmatpush1.msra.mxu0 0.0
    %5332 = vmatprep.subr.mxu0 0.0
    %5333 = vmatpush1.msra.mxu0 0.0
    %5334 = vmatprep.subr.mxu0 0.0
    %5335 = vmatpush1.msra.mxu0 0.0
    %5336 = vmatprep.subr.mxu0 0.0
    %5337 = vmatpush1.msra.mxu0 0.0
    %5338 = vmatprep.subr.mxu0 0.0
    %5339 = vmatpush1.msra.mxu0 0.0
    %5340 = vmatprep.subr.mxu0 0.0
    %5341 = vmatpush1.msra.mxu0 0.0
    %5342 = vmatprep.subr.mxu0 0.0
    %5343 = vmatpush1.msra.mxu0 0.0
    %5344 = vmatprep.subr.mxu0 0.0
    %5345 = vmatpush1.msra.mxu0 0.0
    %5346 = vmatprep.subr.mxu0 0.0
    %5347 = vmatpush1.msra.mxu0 0.0
    %5348 = vmatprep.subr.mxu0 0.0
    %5349 = vmatpush1.msra.mxu0 0.0
    %5350 = vmatprep.mubr.f32.mxu0 0.0
    %5351 = vmatmul.mubr.f32.gmra.mrb[0].mxu0 %v5284
    %v5352 = vpop.f32.mrb[0].mxu0
    %v5353 = vadd.f32 0.0, %v5352
    %v5354 = vpop.f32.mrb[0].mxu0
    %5355 = vdwg.mxu0
    %v5356 = vld [vmem:[#allocation17] sm:$0xff]
    %s5357 = scalar_lea.vmem %s14, 16
    %v5358 = vld [vmem:[%s5357] sm:$0xff]
    %v5359 = vld [vmem:[%s5357 + $0x8] sm:$0xff]
    %5360 = vmatprep.subr.mxu0 0.0
    %5361 = vmatpush1.msra.mxu0 %v5358
    %5362 = vmatprep.subr.mxu0 0.0
    %5363 = vmatpush1.msra.mxu0 %v5359
    %5364 = vmatprep.subr.mxu0 0.0
    %5365 = vmatpush1.msra.mxu0 0.0
    %5366 = vmatprep.subr.mxu0 0.0
    %5367 = vmatpush1.msra.mxu0 0.0
    %5368 = vmatprep.subr.mxu0 0.0
    %5369 = vmatpush1.msra.mxu0 0.0
    %5370 = vmatprep.subr.mxu0 0.0
    %5371 = vmatpush1.msra.mxu0 0.0
    %5372 = vmatprep.subr.mxu0 0.0
    %5373 = vmatpush1.msra.mxu0 0.0
    %5374 = vmatprep.subr.mxu0 0.0
    %5375 = vmatpush1.msra.mxu0 0.0
    %5376 = vmatprep.subr.mxu0 0.0
    %5377 = vmatpush1.msra.mxu0 0.0
    %5378 = vmatprep.subr.mxu0 0.0
    %5379 = vmatpush1.msra.mxu0 0.0
    %5380 = vmatprep.subr.mxu0 0.0
    %5381 = vmatpush1.msra.mxu0 0.0
    %5382 = vmatprep.subr.mxu0 0.0
    %5383 = vmatpush1.msra.mxu0 0.0
    %5384 = vmatprep.subr.mxu0 0.0
    %5385 = vmatpush1.msra.mxu0 0.0
    %5386 = vmatprep.subr.mxu0 0.0
    %5387 = vmatpush1.msra.mxu0 0.0
    %5388 = vmatprep.subr.mxu0 0.0
    %5389 = vmatpush1.msra.mxu0 0.0
    %5390 = vmatprep.subr.mxu0 0.0
    %5391 = vmatpush1.msra.mxu0 0.0
    %5392 = vmatprep.subr.mxu0 0.0
    %5393 = vmatpush1.msra.mxu0 0.0
    %5394 = vmatprep.subr.mxu0 0.0
    %5395 = vmatpush1.msra.mxu0 0.0
    %5396 = vmatprep.subr.mxu0 0.0
    %5397 = vmatpush1.msra.mxu0 0.0
    %5398 = vmatprep.subr.mxu0 0.0
    %5399 = vmatpush1.msra.mxu0 0.0
    %5400 = vmatprep.subr.mxu0 0.0
    %5401 = vmatpush1.msra.mxu0 0.0
    %5402 = vmatprep.subr.mxu0 0.0
    %5403 = vmatpush1.msra.mxu0 0.0
    %5404 = vmatprep.subr.mxu0 0.0
    %5405 = vmatpush1.msra.mxu0 0.0
    %5406 = vmatprep.subr.mxu0 0.0
    %5407 = vmatpush1.msra.mxu0 0.0
    %5408 = vmatprep.subr.mxu0 0.0
    %5409 = vmatpush1.msra.mxu0 0.0
    %5410 = vmatprep.subr.mxu0 0.0
    %5411 = vmatpush1.msra.mxu0 0.0
    %5412 = vmatprep.subr.mxu0 0.0
    %5413 = vmatpush1.msra.mxu0 0.0
    %5414 = vmatprep.subr.mxu0 0.0
    %5415 = vmatpush1.msra.mxu0 0.0
    %5416 = vmatprep.subr.mxu0 0.0
    %5417 = vmatpush1.msra.mxu0 0.0
    %5418 = vmatprep.subr.mxu0 0.0
    %5419 = vmatpush1.msra.mxu0 0.0
    %5420 = vmatprep.subr.mxu0 0.0
    %5421 = vmatpush1.msra.mxu0 0.0
    %5422 = vmatprep.subr.mxu0 0.0
    %5423 = vmatpush1.msra.mxu0 0.0
    %5424 = vmatprep.mubr.f32.mxu0 0.0
    %5425 = vmatmul.mubr.f32.gmra.mrb[0].mxu0 %v5284
    %v5426 = vpop.f32.mrb[0].mxu0
    %v5427 = vadd.f32 0.0, %v5426
    %v5428 = vpop.f32.mrb[0].mxu0
    %5429 = vdwg.mxu0
    %s5430 = scalar_lea.vmem [#allocation17], 8
    %v5431 = vld [vmem:[%s5430] sm:$0xff]
    %vm5432 = vcmask 64512
    %v5434 = vsel %vm5432, %v5431, 0
    %5436 = vmatprep.subr.mxu0 0.0
    %5437 = vmatpush1.msra.mxu0 %v5427
    %5438 = vmatprep.subr.mxu0 0.0
    %5439 = vmatpush1.msra.mxu0 0.0
    %5440 = vmatprep.subr.mxu0 0.0
    %5441 = vmatpush1.msra.mxu0 0.0
    %5442 = vmatprep.subr.mxu0 0.0
    %5443 = vmatpush1.msra.mxu0 0.0
    %5444 = vmatprep.subr.mxu0 0.0
    %5445 = vmatpush1.msra.mxu0 0.0
    %5446 = vmatprep.subr.mxu0 0.0
    %5447 = vmatpush1.msra.mxu0 0.0
    %5448 = vmatprep.subr.mxu0 0.0
    %5449 = vmatpush1.msra.mxu0 0.0
    %5450 = vmatprep.subr.mxu0 0.0
    %5451 = vmatpush1.msra.mxu0 0.0
    %5452 = vmatprep.subr.mxu0 0.0
    %5453 = vmatpush1.msra.mxu0 0.0
    %5454 = vmatprep.subr.mxu0 0.0
    %5455 = vmatpush1.msra.mxu0 0.0
    %5456 = vmatprep.subr.mxu0 0.0
    %5457 = vmatpush1.msra.mxu0 0.0
    %5458 = vmatprep.subr.mxu0 0.0
    %5459 = vmatpush1.msra.mxu0 0.0
    %5460 = vmatprep.subr.mxu0 0.0
    %5461 = vmatpush1.msra.mxu0 0.0
    %5462 = vmatprep.subr.mxu0 0.0
    %5463 = vmatpush1.msra.mxu0 0.0
    %5464 = vmatprep.subr.mxu0 0.0
    %5465 = vmatpush1.msra.mxu0 0.0
    %5466 = vmatprep.subr.mxu0 0.0
    %5467 = vmatpush1.msra.mxu0 0.0
    %5468 = vmatprep.subr.mxu0 0.0
    %5469 = vmatpush1.msra.mxu0 0.0
    %5470 = vmatprep.subr.mxu0 0.0
    %5471 = vmatpush1.msra.mxu0 0.0
    %5472 = vmatprep.subr.mxu0 0.0
    %5473 = vmatpush1.msra.mxu0 0.0
    %5474 = vmatprep.subr.mxu0 0.0
    %5475 = vmatpush1.msra.mxu0 0.0
    %5476 = vmatprep.subr.mxu0 0.0
    %5477 = vmatpush1.msra.mxu0 0.0
    %5478 = vmatprep.subr.mxu0 0.0
    %5479 = vmatpush1.msra.mxu0 0.0
    %5480 = vmatprep.subr.mxu0 0.0
    %5481 = vmatpush1.msra.mxu0 0.0
    %5482 = vmatprep.subr.mxu0 0.0
    %5483 = vmatpush1.msra.mxu0 0.0
    %5484 = vmatprep.subr.mxu0 0.0
    %5485 = vmatpush1.msra.mxu0 0.0
    %5486 = vmatprep.subr.mxu0 0.0
    %5487 = vmatpush1.msra.mxu0 0.0
    %5488 = vmatprep.subr.mxu0 0.0
    %5489 = vmatpush1.msra.mxu0 0.0
    %5490 = vmatprep.subr.mxu0 0.0
    %5491 = vmatpush1.msra.mxu0 0.0
    %5492 = vmatprep.subr.mxu0 0.0
    %5493 = vmatpush1.msra.mxu0 0.0
    %5494 = vmatprep.subr.mxu0 0.0
    %5495 = vmatpush1.msra.mxu0 0.0
    %5496 = vmatprep.subr.mxu0 0.0
    %5497 = vmatpush1.msra.mxu0 0.0
    %5498 = vmatprep.subr.mxu0 0.0
    %5499 = vmatpush1.msra.mxu0 0.0
    %5500 = vmatprep.mubr.f32.mxu0 0.0
    %5501 = vmatmul.mubr.f32.gmra.mrb[0].mxu0 %v5434
    %v5502 = vpop.f32.mrb[0].mxu0
    %v5503 = vadd.f32 0.0, %v5502
    %v5504 = vpop.f32.mrb[0].mxu0
    %5505 = vdwg.mxu0
    %v5507 = vsel %vm5432, %v5356, 0
    %5509 = vmatprep.subr.mxu0 0.0
    %5510 = vmatpush1.msra.mxu0 %v5353
    %5511 = vmatprep.subr.mxu0 0.0
    %5512 = vmatpush1.msra.mxu0 0.0
    %5513 = vmatprep.subr.mxu0 0.0
    %5514 = vmatpush1.msra.mxu0 0.0
    %5515 = vmatprep.subr.mxu0 0.0
    %5516 = vmatpush1.msra.mxu0 0.0
    %5517 = vmatprep.subr.mxu0 0.0
    %5518 = vmatpush1.msra.mxu0 0.0
    %5519 = vmatprep.subr.mxu0 0.0
    %5520 = vmatpush1.msra.mxu0 0.0
    %5521 = vmatprep.subr.mxu0 0.0
    %5522 = vmatpush1.msra.mxu0 0.0
    %5523 = vmatprep.subr.mxu0 0.0
    %5524 = vmatpush1.msra.mxu0 0.0
    %5525 = vmatprep.subr.mxu0 0.0
    %5526 = vmatpush1.msra.mxu0 0.0
    %5527 = vmatprep.subr.mxu0 0.0
    %5528 = vmatpush1.msra.mxu0 0.0
    %5529 = vmatprep.subr.mxu0 0.0
    %5530 = vmatpush1.msra.mxu0 0.0
    %5531 = vmatprep.subr.mxu0 0.0
    %5532 = vmatpush1.msra.mxu0 0.0
    %5533 = vmatprep.subr.mxu0 0.0
    %5534 = vmatpush1.msra.mxu0 0.0
    %5535 = vmatprep.subr.mxu0 0.0
    %5536 = vmatpush1.msra.mxu0 0.0
    %5537 = vmatprep.subr.mxu0 0.0
    %5538 = vmatpush1.msra.mxu0 0.0
    %5539 = vmatprep.subr.mxu0 0.0
    %5540 = vmatpush1.msra.mxu0 0.0
    %5541 = vmatprep.subr.mxu0 0.0
    %5542 = vmatpush1.msra.mxu0 0.0
    %5543 = vmatprep.subr.mxu0 0.0
    %5544 = vmatpush1.msra.mxu0 0.0
    %5545 = vmatprep.subr.mxu0 0.0
    %5546 = vmatpush1.msra.mxu0 0.0
    %5547 = vmatprep.subr.mxu0 0.0
    %5548 = vmatpush1.msra.mxu0 0.0
    %5549 = vmatprep.subr.mxu0 0.0
    %5550 = vmatpush1.msra.mxu0 0.0
    %5551 = vmatprep.subr.mxu0 0.0
    %5552 = vmatpush1.msra.mxu0 0.0
    %5553 = vmatprep.subr.mxu0 0.0
    %5554 = vmatpush1.msra.mxu0 0.0
    %5555 = vmatprep.subr.mxu0 0.0
    %5556 = vmatpush1.msra.mxu0 0.0
    %5557 = vmatprep.subr.mxu0 0.0
    %5558 = vmatpush1.msra.mxu0 0.0
    %5559 = vmatprep.subr.mxu0 0.0
    %5560 = vmatpush1.msra.mxu0 0.0
    %5561 = vmatprep.subr.mxu0 0.0
    %5562 = vmatpush1.msra.mxu0 0.0
    %5563 = vmatprep.subr.mxu0 0.0
    %5564 = vmatpush1.msra.mxu0 0.0
    %5565 = vmatprep.subr.mxu0 0.0
    %5566 = vmatpush1.msra.mxu0 0.0
    %5567 = vmatprep.subr.mxu0 0.0
    %5568 = vmatpush1.msra.mxu0 0.0
    %5569 = vmatprep.subr.mxu0 0.0
    %5570 = vmatpush1.msra.mxu0 0.0
    %5571 = vmatprep.subr.mxu0 0.0
    %5572 = vmatpush1.msra.mxu0 0.0
    %5573 = vmatprep.mubr.f32.mxu0 0.0
    %5574 = vmatmul.mubr.f32.gmra.mrb[0].mxu0 %v5507
    %v5575 = vpop.f32.mrb[0].mxu0
    %v5576 = vadd.f32 %v5503, %v5575
    %v5577 = vpop.f32.mrb[0].mxu0
    %5578 = vdwg.mxu0
    %s5579 = scalar_lea.vmem %s14, 32
    %v5580 = vld [vmem:[%s5579] sm:$0xff]
    %v5581 = vld [vmem:[%s5579 + $0x8] sm:$0xff]
    %5582 = vmatprep.subr.mxu0 0.0
    %5583 = vmatpush1.msra.mxu0 %v5580
    %5584 = vmatprep.subr.mxu0 0.0
    %5585 = vmatpush1.msra.mxu0 %v5581
    %5586 = vmatprep.subr.mxu0 0.0
    %5587 = vmatpush1.msra.mxu0 0.0
    %5588 = vmatprep.subr.mxu0 0.0
    %5589 = vmatpush1.msra.mxu0 0.0
    %5590 = vmatprep.subr.mxu0 0.0
    %5591 = vmatpush1.msra.mxu0 0.0
    %5592 = vmatprep.subr.mxu0 0.0
    %5593 = vmatpush1.msra.mxu0 0.0
    %5594 = vmatprep.subr.mxu0 0.0
    %5595 = vmatpush1.msra.mxu0 0.0
    %5596 = vmatprep.subr.mxu0 0.0
    %5597 = vmatpush1.msra.mxu0 0.0
    %5598 = vmatprep.subr.mxu0 0.0
    %5599 = vmatpush1.msra.mxu0 0.0
    %5600 = vmatprep.subr.mxu0 0.0
    %5601 = vmatpush1.msra.mxu0 0.0
    %5602 = vmatprep.subr.mxu0 0.0
    %5603 = vmatpush1.msra.mxu0 0.0
    %5604 = vmatprep.subr.mxu0 0.0
    %5605 = vmatpush1.msra.mxu0 0.0
    %5606 = vmatprep.subr.mxu0 0.0
    %5607 = vmatpush1.msra.mxu0 0.0
    %5608 = vmatprep.subr.mxu0 0.0
    %5609 = vmatpush1.msra.mxu0 0.0
    %5610 = vmatprep.subr.mxu0 0.0
    %5611 = vmatpush1.msra.mxu0 0.0
    %5612 = vmatprep.subr.mxu0 0.0
    %5613 = vmatpush1.msra.mxu0 0.0
    %5614 = vmatprep.subr.mxu0 0.0
    %5615 = vmatpush1.msra.mxu0 0.0
    %5616 = vmatprep.subr.mxu0 0.0
    %5617 = vmatpush1.msra.mxu0 0.0
    %5618 = vmatprep.subr.mxu0 0.0
    %5619 = vmatpush1.msra.mxu0 0.0
    %5620 = vmatprep.subr.mxu0 0.0
    %5621 = vmatpush1.msra.mxu0 0.0
    %5622 = vmatprep.subr.mxu0 0.0
    %5623 = vmatpush1.msra.mxu0 0.0
    %5624 = vmatprep.subr.mxu0 0.0
    %5625 = vmatpush1.msra.mxu0 0.0
    %5626 = vmatprep.subr.mxu0 0.0
    %5627 = vmatpush1.msra.mxu0 0.0
    %5628 = vmatprep.subr.mxu0 0.0
    %5629 = vmatpush1.msra.mxu0 0.0
    %5630 = vmatprep.subr.mxu0 0.0
    %5631 = vmatpush1.msra.mxu0 0.0
    %5632 = vmatprep.subr.mxu0 0.0
    %5633 = vmatpush1.msra.mxu0 0.0
    %5634 = vmatprep.subr.mxu0 0.0
    %5635 = vmatpush1.msra.mxu0 0.0
    %5636 = vmatprep.subr.mxu0 0.0
    %5637 = vmatpush1.msra.mxu0 0.0
    %5638 = vmatprep.subr.mxu0 0.0
    %5639 = vmatpush1.msra.mxu0 0.0
    %5640 = vmatprep.subr.mxu0 0.0
    %5641 = vmatpush1.msra.mxu0 0.0
    %5642 = vmatprep.subr.mxu0 0.0
    %5643 = vmatpush1.msra.mxu0 0.0
    %5644 = vmatprep.subr.mxu0 0.0
    %5645 = vmatpush1.msra.mxu0 0.0
    %5646 = vmatprep.mubr.f32.mxu0 0.0
    %5647 = vmatmul.mubr.f32.gmra.mrb[0].mxu0 %v5284
    %v5648 = vpop.f32.mrb[0].mxu0
    %v5649 = vadd.f32 0.0, %v5648
    %v5650 = vpop.f32.mrb[0].mxu0
    %5651 = vdwg.mxu0
    %s5652 = scalar_lea.vmem [#allocation17], 16
    %v5653 = vld [vmem:[%s5652] sm:$0xff]
    %v5655 = vsel %vm5432, %v5653, 0
    %5657 = vmatprep.subr.mxu0 0.0
    %5658 = vmatpush1.msra.mxu0 %v5649
    %5659 = vmatprep.subr.mxu0 0.0
    %5660 = vmatpush1.msra.mxu0 0.0
    %5661 = vmatprep.subr.mxu0 0.0
    %5662 = vmatpush1.msra.mxu0 0.0
    %5663 = vmatprep.subr.mxu0 0.0
    %5664 = vmatpush1.msra.mxu0 0.0
    %5665 = vmatprep.subr.mxu0 0.0
    %5666 = vmatpush1.msra.mxu0 0.0
    %5667 = vmatprep.subr.mxu0 0.0
    %5668 = vmatpush1.msra.mxu0 0.0
    %5669 = vmatprep.subr.mxu0 0.0
    %5670 = vmatpush1.msra.mxu0 0.0
    %5671 = vmatprep.subr.mxu0 0.0
    %5672 = vmatpush1.msra.mxu0 0.0
    %5673 = vmatprep.subr.mxu0 0.0
    %5674 = vmatpush1.msra.mxu0 0.0
    %5675 = vmatprep.subr.mxu0 0.0
    %5676 = vmatpush1.msra.mxu0 0.0
    %5677 = vmatprep.subr.mxu0 0.0
    %5678 = vmatpush1.msra.mxu0 0.0
    %5679 = vmatprep.subr.mxu0 0.0
    %5680 = vmatpush1.msra.mxu0 0.0
    %5681 = vmatprep.subr.mxu0 0.0
    %5682 = vmatpush1.msra.mxu0 0.0
    %5683 = vmatprep.subr.mxu0 0.0
    %5684 = vmatpush1.msra.mxu0 0.0
    %5685 = vmatprep.subr.mxu0 0.0
    %5686 = vmatpush1.msra.mxu0 0.0
    %5687 = vmatprep.subr.mxu0 0.0
    %5688 = vmatpush1.msra.mxu0 0.0
    %5689 = vmatprep.subr.mxu0 0.0
    %5690 = vmatpush1.msra.mxu0 0.0
    %5691 = vmatprep.subr.mxu0 0.0
    %5692 = vmatpush1.msra.mxu0 0.0
    %5693 = vmatprep.subr.mxu0 0.0
    %5694 = vmatpush1.msra.mxu0 0.0
    %5695 = vmatprep.subr.mxu0 0.0
    %5696 = vmatpush1.msra.mxu0 0.0
    %5697 = vmatprep.subr.mxu0 0.0
    %5698 = vmatpush1.msra.mxu0 0.0
    %5699 = vmatprep.subr.mxu0 0.0
    %5700 = vmatpush1.msra.mxu0 0.0
    %5701 = vmatprep.subr.mxu0 0.0
    %5702 = vmatpush1.msra.mxu0 0.0
    %5703 = vmatprep.subr.mxu0 0.0
    %5704 = vmatpush1.msra.mxu0 0.0
    %5705 = vmatprep.subr.mxu0 0.0
    %5706 = vmatpush1.msra.mxu0 0.0
    %5707 = vmatprep.subr.mxu0 0.0
    %5708 = vmatpush1.msra.mxu0 0.0
    %5709 = vmatprep.subr.mxu0 0.0
    %5710 = vmatpush1.msra.mxu0 0.0
    %5711 = vmatprep.subr.mxu0 0.0
    %5712 = vmatpush1.msra.mxu0 0.0
    %5713 = vmatprep.subr.mxu0 0.0
    %5714 = vmatpush1.msra.mxu0 0.0
    %5715 = vmatprep.subr.mxu0 0.0
    %5716 = vmatpush1.msra.mxu0 0.0
    %5717 = vmatprep.subr.mxu0 0.0
    %5718 = vmatpush1.msra.mxu0 0.0
    %5719 = vmatprep.subr.mxu0 0.0
    %5720 = vmatpush1.msra.mxu0 0.0
    %5721 = vmatprep.mubr.f32.mxu0 0.0
    %5722 = vmatmul.mubr.f32.gmra.mrb[0].mxu0 %v5655
    %v5723 = vpop.f32.mrb[0].mxu0
    %v5724 = vadd.f32 0.0, %v5723
    %v5725 = vpop.f32.mrb[0].mxu0
    %5726 = vdwg.mxu0
    %v5727 = vadd.f32 %v5576, %v5724
    %v5728 = vld [vmem:[#allocation19] sm:$0x1]
    %v5730 = vlaneseq
    %v5731 = vshrl.u32 %v5730, 7
    %v5732 = vsub.s32 0, %v5731
    %v5733 = vrot.slane %v5728, %v5732
    %v5735 = vadd.f32 %v5727, %v5733
    %v5736 = vmax.f32 %v5735, 0.0
    %v5737 = vld [vmem:[%s17] sm:$0xff]
    %v5738 = vld [vmem:[%s17 + $0x8] sm:$0xff]
    %v5739 = vld [vmem:[%s17 + $0x10] sm:$0xff]
    %v5740 = vld [vmem:[%s17 + $0x18] sm:$0xff]
    %v5741 = vld [vmem:[%s17 + $0x20] sm:$0xff]
    %v5742 = vld [vmem:[%s17 + $0x28] sm:$0xff]
    %v5743 = vld [vmem:[%s17 + $0x30] sm:$0xff]
    %v5744 = vld [vmem:[%s17 + $0x38] sm:$0xff]
    %v5745 = vld [vmem:[%s17 + $0x40] sm:$0xff]
    %v5746 = vld [vmem:[%s17 + $0x48] sm:$0xff]
    %v5747 = vld [vmem:[%s17 + $0x50] sm:$0xff]
    %v5748 = vld [vmem:[%s17 + $0x58] sm:$0xff]
    %v5749 = vld [vmem:[%s17 + $0x60] sm:$0xff]
    %v5750 = vld [vmem:[%s17 + $0x68] sm:$0xff]
    %v5751 = vld [vmem:[%s17 + $0x70] sm:$0xff]
    %v5752 = vld [vmem:[%s17 + $0x78] sm:$0xff]
    %v5753 = vld [vmem:[%s17 + $0x80] sm:$0xff]
    %v5754 = vld [vmem:[%s17 + $0x88] sm:$0xff]
    %v5755 = vld [vmem:[%s17 + $0x90] sm:$0xff]
    %v5756 = vld [vmem:[%s17 + $0x98] sm:$0xff]
    %v5757 = vld [vmem:[%s17 + $0xa0] sm:$0xff]
    %v5758 = vld [vmem:[%s17 + $0xa8] sm:$0xff]
    %v5759 = vld [vmem:[%s17 + $0xb0] sm:$0xff]
    %v5760 = vld [vmem:[%s17 + $0xb8] sm:$0xff]
    %v5761 = vld [vmem:[%s17 + $0xc0] sm:$0xff]
    %v5762 = vld [vmem:[%s17 + $0xc8] sm:$0xff]
    %v5763 = vld [vmem:[%s17 + $0xd0] sm:$0xff]
    %v5764 = vld [vmem:[%s17 + $0xd8] sm:$0xff]
    %v5765 = vld [vmem:[%s17 + $0xe0] sm:$0xff]
    %v5766 = vld [vmem:[%s17 + $0xe8] sm:$0xff]
    %v5767 = vld [vmem:[%s17 + $0xf0] sm:$0xff]
    %v5768 = vld [vmem:[%s17 + $0xf8] sm:$0xff]
    %v5769 = vld [vmem:[%s17 + $0x100] sm:$0xff]
    %v5770 = vld [vmem:[%s17 + $0x108] sm:$0xff]
    %v5771 = vld [vmem:[%s17 + $0x110] sm:$0xff]
    %v5772 = vld [vmem:[%s17 + $0x118] sm:$0xff]
    %v5773 = vld [vmem:[%s17 + $0x120] sm:$0xff]
    %v5774 = vld [vmem:[%s17 + $0x128] sm:$0xff]
    %v5775 = vld [vmem:[%s17 + $0x130] sm:$0xff]
    %v5776 = vld [vmem:[%s17 + $0x138] sm:$0xff]
    %v5777 = vld [vmem:[%s17 + $0x140] sm:$0xff]
    %v5778 = vld [vmem:[%s17 + $0x148] sm:$0xff]
    %v5779 = vld [vmem:[%s17 + $0x150] sm:$0xff]
    %v5780 = vld [vmem:[%s17 + $0x158] sm:$0xff]
    %v5781 = vld [vmem:[%s17 + $0x160] sm:$0xff]
    %v5782 = vld [vmem:[%s17 + $0x168] sm:$0xff]
    %v5783 = vld [vmem:[%s17 + $0x170] sm:$0xff]
    %v5784 = vld [vmem:[%s17 + $0x178] sm:$0xff]
    %v5785 = vld [vmem:[%s17 + $0x180] sm:$0xff]
    %v5786 = vld [vmem:[%s17 + $0x188] sm:$0xff]
    %v5787 = vld [vmem:[%s17 + $0x190] sm:$0xff]
    %v5788 = vld [vmem:[%s17 + $0x198] sm:$0xff]
    %v5789 = vld [vmem:[%s17 + $0x1a0] sm:$0xff]
    %v5790 = vld [vmem:[%s17 + $0x1a8] sm:$0xff]
    %v5791 = vld [vmem:[%s17 + $0x1b0] sm:$0xff]
    %v5792 = vld [vmem:[%s17 + $0x1b8] sm:$0xff]
    %v5793 = vld [vmem:[%s17 + $0x1c0] sm:$0xff]
    %v5794 = vld [vmem:[%s17 + $0x1c8] sm:$0xff]
    %v5795 = vld [vmem:[%s17 + $0x1d0] sm:$0xff]
    %v5796 = vld [vmem:[%s17 + $0x1d8] sm:$0xff]
    %v5797 = vld [vmem:[%s17 + $0x1e0] sm:$0xff]
    %v5798 = vld [vmem:[%s17 + $0x1e8] sm:$0xff]
    %v5799 = vld [vmem:[%s17 + $0x1f0] sm:$0xff]
    %v5800 = vld [vmem:[%s17 + $0x1f8] sm:$0xff]
    %5801 = vmatprep.subr.mxu0 %v5738
    %5802 = vmatpush1.msra.mxu0 %v5737
    %5803 = vmatprep.subr.mxu0 %v5742
    %5804 = vmatpush1.msra.mxu0 %v5741
    %5805 = vmatprep.subr.mxu0 %v5746
    %5806 = vmatpush1.msra.mxu0 %v5745
    %5807 = vmatprep.subr.mxu0 %v5750
    %5808 = vmatpush1.msra.mxu0 %v5749
    %5809 = vmatprep.subr.mxu0 %v5754
    %5810 = vmatpush1.msra.mxu0 %v5753
    %5811 = vmatprep.subr.mxu0 %v5758
    %5812 = vmatpush1.msra.mxu0 %v5757
    %5813 = vmatprep.subr.mxu0 %v5762
    %5814 = vmatpush1.msra.mxu0 %v5761
    %5815 = vmatprep.subr.mxu0 %v5766
    %5816 = vmatpush1.msra.mxu0 %v5765
    %5817 = vmatprep.subr.mxu0 %v5770
    %5818 = vmatpush1.msra.mxu0 %v5769
    %5819 = vmatprep.subr.mxu0 %v5774
    %5820 = vmatpush1.msra.mxu0 %v5773
    %5821 = vmatprep.subr.mxu0 %v5778
    %5822 = vmatpush1.msra.mxu0 %v5777
    %5823 = vmatprep.subr.mxu0 %v5782
    %5824 = vmatpush1.msra.mxu0 %v5781
    %5825 = vmatprep.subr.mxu0 %v5786
    %5826 = vmatpush1.msra.mxu0 %v5785
    %5827 = vmatprep.subr.mxu0 %v5790
    %5828 = vmatpush1.msra.mxu0 %v5789
    %5829 = vmatprep.subr.mxu0 %v5794
    %5830 = vmatpush1.msra.mxu0 %v5793
    %5831 = vmatprep.subr.mxu0 %v5798
    %5832 = vmatpush1.msra.mxu0 %v5797
    %5833 = vmatprep.subr.mxu0 0.0
    %5834 = vmatpush1.msra.mxu0 0.0
    %5835 = vmatprep.subr.mxu0 0.0
    %5836 = vmatpush1.msra.mxu0 0.0
    %5837 = vmatprep.subr.mxu0 0.0
    %5838 = vmatpush1.msra.mxu0 0.0
    %5839 = vmatprep.subr.mxu0 0.0
    %5840 = vmatpush1.msra.mxu0 0.0
    %5841 = vmatprep.subr.mxu0 0.0
    %5842 = vmatpush1.msra.mxu0 0.0
    %5843 = vmatprep.subr.mxu0 0.0
    %5844 = vmatpush1.msra.mxu0 0.0
    %5845 = vmatprep.subr.mxu0 0.0
    %5846 = vmatpush1.msra.mxu0 0.0
    %5847 = vmatprep.subr.mxu0 0.0
    %5848 = vmatpush1.msra.mxu0 0.0
    %5849 = vmatprep.subr.mxu0 0.0
    %5850 = vmatpush1.msra.mxu0 0.0
    %5851 = vmatprep.subr.mxu0 0.0
    %5852 = vmatpush1.msra.mxu0 0.0
    %5853 = vmatprep.subr.mxu0 0.0
    %5854 = vmatpush1.msra.mxu0 0.0
    %5855 = vmatprep.subr.mxu0 0.0
    %5856 = vmatpush1.msra.mxu0 0.0
    %5857 = vmatprep.subr.mxu0 0.0
    %5858 = vmatpush1.msra.mxu0 0.0
    %5859 = vmatprep.subr.mxu0 0.0
    %5860 = vmatpush1.msra.mxu0 0.0
    %5861 = vmatprep.subr.mxu0 0.0
    %5862 = vmatpush1.msra.mxu0 0.0
    %5863 = vmatprep.subr.mxu0 0.0
    %5864 = vmatpush1.msra.mxu0 0.0
    %5865 = vmatprep.mubr.f32.mxu0 0.0
    %5866 = vmatmul.mubr.f32.gmra.mrb[0].mxu0 %v5736
    %v5867 = vpop.f32.mrb[0].mxu0
    %v5868 = vadd.f32 0.0, %v5867
    %v5869 = vpop.f32.mrb[0].mxu0
    %v5870 = vadd.f32 0.0, %v5869
    %5871 = vdwg.mxu0
    %5872 = vmatprep.subr.mxu0 %v5740
    %5873 = vmatpush1.msra.mxu0 %v5739
    %5874 = vmatprep.subr.mxu0 %v5744
    %5875 = vmatpush1.msra.mxu0 %v5743
    %5876 = vmatprep.subr.mxu0 %v5748
    %5877 = vmatpush1.msra.mxu0 %v5747
    %5878 = vmatprep.subr.mxu0 %v5752
    %5879 = vmatpush1.msra.mxu0 %v5751
    %5880 = vmatprep.subr.mxu0 %v5756
    %5881 = vmatpush1.msra.mxu0 %v5755
    %5882 = vmatprep.subr.mxu0 %v5760
    %5883 = vmatpush1.msra.mxu0 %v5759
    %5884 = vmatprep.subr.mxu0 %v5764
    %5885 = vmatpush1.msra.mxu0 %v5763
    %5886 = vmatprep.subr.mxu0 %v5768
    %5887 = vmatpush1.msra.mxu0 %v5767
    %5888 = vmatprep.subr.mxu0 %v5772
    %5889 = vmatpush1.msra.mxu0 %v5771
    %5890 = vmatprep.subr.mxu0 %v5776
    %5891 = vmatpush1.msra.mxu0 %v5775
    %5892 = vmatprep.subr.mxu0 %v5780
    %5893 = vmatpush1.msra.mxu0 %v5779
    %5894 = vmatprep.subr.mxu0 %v5784
    %5895 = vmatpush1.msra.mxu0 %v5783
    %5896 = vmatprep.subr.mxu0 %v5788
    %5897 = vmatpush1.msra.mxu0 %v5787
    %5898 = vmatprep.subr.mxu0 %v5792
    %5899 = vmatpush1.msra.mxu0 %v5791
    %5900 = vmatprep.subr.mxu0 %v5796
    %5901 = vmatpush1.msra.mxu0 %v5795
    %5902 = vmatprep.subr.mxu0 %v5800
    %5903 = vmatpush1.msra.mxu0 %v5799
    %5904 = vmatprep.subr.mxu0 0.0
    %5905 = vmatpush1.msra.mxu0 0.0
    %5906 = vmatprep.subr.mxu0 0.0
    %5907 = vmatpush1.msra.mxu0 0.0
    %5908 = vmatprep.subr.mxu0 0.0
    %5909 = vmatpush1.msra.mxu0 0.0
    %5910 = vmatprep.subr.mxu0 0.0
    %5911 = vmatpush1.msra.mxu0 0.0
    %5912 = vmatprep.subr.mxu0 0.0
    %5913 = vmatpush1.msra.mxu0 0.0
    %5914 = vmatprep.subr.mxu0 0.0
    %5915 = vmatpush1.msra.mxu0 0.0
    %5916 = vmatprep.subr.mxu0 0.0
    %5917 = vmatpush1.msra.mxu0 0.0
    %5918 = vmatprep.subr.mxu0 0.0
    %5919 = vmatpush1.msra.mxu0 0.0
    %5920 = vmatprep.subr.mxu0 0.0
    %5921 = vmatpush1.msra.mxu0 0.0
    %5922 = vmatprep.subr.mxu0 0.0
    %5923 = vmatpush1.msra.mxu0 0.0
    %5924 = vmatprep.subr.mxu0 0.0
    %5925 = vmatpush1.msra.mxu0 0.0
    %5926 = vmatprep.subr.mxu0 0.0
    %5927 = vmatpush1.msra.mxu0 0.0
    %5928 = vmatprep.subr.mxu0 0.0
    %5929 = vmatpush1.msra.mxu0 0.0
    %5930 = vmatprep.subr.mxu0 0.0
    %5931 = vmatpush1.msra.mxu0 0.0
    %5932 = vmatprep.subr.mxu0 0.0
    %5933 = vmatpush1.msra.mxu0 0.0
    %5934 = vmatprep.subr.mxu0 0.0
    %5935 = vmatpush1.msra.mxu0 0.0
    %5936 = vmatprep.mubr.f32.mxu0 0.0
    %5937 = vmatmul.mubr.f32.gmra.mrb[0].mxu0 %v5736
    %v5938 = vpop.f32.mrb[0].mxu0
    %v5939 = vadd.f32 0.0, %v5938
    %v5940 = vpop.f32.mrb[0].mxu0
    %v5941 = vadd.f32 0.0, %v5940
    %5942 = vdwg.mxu0
    %v5943 = vld [vmem:[%s16] sm:$0xff]
    %v5944 = vld [vmem:[%s16 + $0x8] sm:$0xff]
    %s5945 = scalar_lea.vmem %s17, 512
    %v5946 = vld [vmem:[%s5945] sm:$0xff]
    %v5947 = vld [vmem:[%s5945 + $0x8] sm:$0xff]
    %v5948 = vld [vmem:[%s5945 + $0x10] sm:$0xff]
    %v5949 = vld [vmem:[%s5945 + $0x18] sm:$0xff]
    %v5950 = vld [vmem:[%s5945 + $0x20] sm:$0xff]
    %v5951 = vld [vmem:[%s5945 + $0x28] sm:$0xff]
    %v5952 = vld [vmem:[%s5945 + $0x30] sm:$0xff]
    %v5953 = vld [vmem:[%s5945 + $0x38] sm:$0xff]
    %v5954 = vld [vmem:[%s5945 + $0x40] sm:$0xff]
    %v5955 = vld [vmem:[%s5945 + $0x48] sm:$0xff]
    %v5956 = vld [vmem:[%s5945 + $0x50] sm:$0xff]
    %v5957 = vld [vmem:[%s5945 + $0x58] sm:$0xff]
    %v5958 = vld [vmem:[%s5945 + $0x60] sm:$0xff]
    %v5959 = vld [vmem:[%s5945 + $0x68] sm:$0xff]
    %v5960 = vld [vmem:[%s5945 + $0x70] sm:$0xff]
    %v5961 = vld [vmem:[%s5945 + $0x78] sm:$0xff]
    %v5962 = vld [vmem:[%s5945 + $0x80] sm:$0xff]
    %v5963 = vld [vmem:[%s5945 + $0x88] sm:$0xff]
    %v5964 = vld [vmem:[%s5945 + $0x90] sm:$0xff]
    %v5965 = vld [vmem:[%s5945 + $0x98] sm:$0xff]
    %v5966 = vld [vmem:[%s5945 + $0xa0] sm:$0xff]
    %v5967 = vld [vmem:[%s5945 + $0xa8] sm:$0xff]
    %v5968 = vld [vmem:[%s5945 + $0xb0] sm:$0xff]
    %v5969 = vld [vmem:[%s5945 + $0xb8] sm:$0xff]
    %v5970 = vld [vmem:[%s5945 + $0xc0] sm:$0xff]
    %v5971 = vld [vmem:[%s5945 + $0xc8] sm:$0xff]
    %v5972 = vld [vmem:[%s5945 + $0xd0] sm:$0xff]
    %v5973 = vld [vmem:[%s5945 + $0xd8] sm:$0xff]
    %v5974 = vld [vmem:[%s5945 + $0xe0] sm:$0xff]
    %v5975 = vld [vmem:[%s5945 + $0xe8] sm:$0xff]
    %v5976 = vld [vmem:[%s5945 + $0xf0] sm:$0xff]
    %v5977 = vld [vmem:[%s5945 + $0xf8] sm:$0xff]
    %v5978 = vld [vmem:[%s5945 + $0x100] sm:$0xff]
    %v5979 = vld [vmem:[%s5945 + $0x108] sm:$0xff]
    %v5980 = vld [vmem:[%s5945 + $0x110] sm:$0xff]
    %v5981 = vld [vmem:[%s5945 + $0x118] sm:$0xff]
    %v5982 = vld [vmem:[%s5945 + $0x120] sm:$0xff]
    %v5983 = vld [vmem:[%s5945 + $0x128] sm:$0xff]
    %v5984 = vld [vmem:[%s5945 + $0x130] sm:$0xff]
    %v5985 = vld [vmem:[%s5945 + $0x138] sm:$0xff]
    %v5986 = vld [vmem:[%s5945 + $0x140] sm:$0xff]
    %v5987 = vld [vmem:[%s5945 + $0x148] sm:$0xff]
    %v5988 = vld [vmem:[%s5945 + $0x150] sm:$0xff]
    %v5989 = vld [vmem:[%s5945 + $0x158] sm:$0xff]
    %v5990 = vld [vmem:[%s5945 + $0x160] sm:$0xff]
    %v5991 = vld [vmem:[%s5945 + $0x168] sm:$0xff]
    %v5992 = vld [vmem:[%s5945 + $0x170] sm:$0xff]
    %v5993 = vld [vmem:[%s5945 + $0x178] sm:$0xff]
    %v5994 = vld [vmem:[%s5945 + $0x180] sm:$0xff]
    %v5995 = vld [vmem:[%s5945 + $0x188] sm:$0xff]
    %v5996 = vld [vmem:[%s5945 + $0x190] sm:$0xff]
    %v5997 = vld [vmem:[%s5945 + $0x198] sm:$0xff]
    %v5998 = vld [vmem:[%s5945 + $0x1a0] sm:$0xff]
    %v5999 = vld [vmem:[%s5945 + $0x1a8] sm:$0xff]
    %v6000 = vld [vmem:[%s5945 + $0x1b0] sm:$0xff]
    %v6001 = vld [vmem:[%s5945 + $0x1b8] sm:$0xff]
    %v6002 = vld [vmem:[%s5945 + $0x1c0] sm:$0xff]
    %v6003 = vld [vmem:[%s5945 + $0x1c8] sm:$0xff]
    %v6004 = vld [vmem:[%s5945 + $0x1d0] sm:$0xff]
    %v6005 = vld [vmem:[%s5945 + $0x1d8] sm:$0xff]
    %v6006 = vld [vmem:[%s5945 + $0x1e0] sm:$0xff]
    %v6007 = vld [vmem:[%s5945 + $0x1e8] sm:$0xff]
    %v6008 = vld [vmem:[%s5945 + $0x1f0] sm:$0xff]
    %v6009 = vld [vmem:[%s5945 + $0x1f8] sm:$0xff]
    %6010 = vmatprep.subr.mxu0 %v5947
    %6011 = vmatpush1.msra.mxu0 %v5946
    %6012 = vmatprep.subr.mxu0 %v5951
    %6013 = vmatpush1.msra.mxu0 %v5950
    %6014 = vmatprep.subr.mxu0 %v5955
    %6015 = vmatpush1.msra.mxu0 %v5954
    %6016 = vmatprep.subr.mxu0 %v5959
    %6017 = vmatpush1.msra.mxu0 %v5958
    %6018 = vmatprep.subr.mxu0 %v5963
    %6019 = vmatpush1.msra.mxu0 %v5962
    %6020 = vmatprep.subr.mxu0 %v5967
    %6021 = vmatpush1.msra.mxu0 %v5966
    %6022 = vmatprep.subr.mxu0 %v5971
    %6023 = vmatpush1.msra.mxu0 %v5970
    %6024 = vmatprep.subr.mxu0 %v5975
    %6025 = vmatpush1.msra.mxu0 %v5974
    %6026 = vmatprep.subr.mxu0 %v5979
    %6027 = vmatpush1.msra.mxu0 %v5978
    %6028 = vmatprep.subr.mxu0 %v5983
    %6029 = vmatpush1.msra.mxu0 %v5982
    %6030 = vmatprep.subr.mxu0 %v5987
    %6031 = vmatpush1.msra.mxu0 %v5986
    %6032 = vmatprep.subr.mxu0 %v5991
    %6033 = vmatpush1.msra.mxu0 %v5990
    %6034 = vmatprep.subr.mxu0 %v5995
    %6035 = vmatpush1.msra.mxu0 %v5994
    %6036 = vmatprep.subr.mxu0 %v5999
    %6037 = vmatpush1.msra.mxu0 %v5998
    %6038 = vmatprep.subr.mxu0 %v6003
    %6039 = vmatpush1.msra.mxu0 %v6002
    %6040 = vmatprep.subr.mxu0 %v6007
    %6041 = vmatpush1.msra.mxu0 %v6006
    %6042 = vmatprep.subr.mxu0 0.0
    %6043 = vmatpush1.msra.mxu0 0.0
    %6044 = vmatprep.subr.mxu0 0.0
    %6045 = vmatpush1.msra.mxu0 0.0
    %6046 = vmatprep.subr.mxu0 0.0
    %6047 = vmatpush1.msra.mxu0 0.0
    %6048 = vmatprep.subr.mxu0 0.0
    %6049 = vmatpush1.msra.mxu0 0.0
    %6050 = vmatprep.subr.mxu0 0.0
    %6051 = vmatpush1.msra.mxu0 0.0
    %6052 = vmatprep.subr.mxu0 0.0
    %6053 = vmatpush1.msra.mxu0 0.0
    %6054 = vmatprep.subr.mxu0 0.0
    %6055 = vmatpush1.msra.mxu0 0.0
    %6056 = vmatprep.subr.mxu0 0.0
    %6057 = vmatpush1.msra.mxu0 0.0
    %6058 = vmatprep.subr.mxu0 0.0
    %6059 = vmatpush1.msra.mxu0 0.0
    %6060 = vmatprep.subr.mxu0 0.0
    %6061 = vmatpush1.msra.mxu0 0.0
    %6062 = vmatprep.subr.mxu0 0.0
    %6063 = vmatpush1.msra.mxu0 0.0
    %6064 = vmatprep.subr.mxu0 0.0
    %6065 = vmatpush1.msra.mxu0 0.0
    %6066 = vmatprep.subr.mxu0 0.0
    %6067 = vmatpush1.msra.mxu0 0.0
    %6068 = vmatprep.subr.mxu0 0.0
    %6069 = vmatpush1.msra.mxu0 0.0
    %6070 = vmatprep.subr.mxu0 0.0
    %6071 = vmatpush1.msra.mxu0 0.0
    %6072 = vmatprep.subr.mxu0 0.0
    %6073 = vmatpush1.msra.mxu0 0.0
    %6074 = vmatprep.mubr.f32.mxu0 0.0
    %6075 = vmatmul.mubr.f32.gmra.mrb[0].mxu0 %v5736
    %v6076 = vpop.f32.mrb[0].mxu0
    %v6077 = vadd.f32 0.0, %v6076
    %v6078 = vpop.f32.mrb[0].mxu0
    %v6079 = vadd.f32 0.0, %v6078
    %6080 = vdwg.mxu0
    %6081 = vmatprep.subr.mxu0 %v5949
    %6082 = vmatpush1.msra.mxu0 %v5948
    %6083 = vmatprep.subr.mxu0 %v5953
    %6084 = vmatpush1.msra.mxu0 %v5952
    %6085 = vmatprep.subr.mxu0 %v5957
    %6086 = vmatpush1.msra.mxu0 %v5956
    %6087 = vmatprep.subr.mxu0 %v5961
    %6088 = vmatpush1.msra.mxu0 %v5960
    %6089 = vmatprep.subr.mxu0 %v5965
    %6090 = vmatpush1.msra.mxu0 %v5964
    %6091 = vmatprep.subr.mxu0 %v5969
    %6092 = vmatpush1.msra.mxu0 %v5968
    %6093 = vmatprep.subr.mxu0 %v5973
    %6094 = vmatpush1.msra.mxu0 %v5972
    %6095 = vmatprep.subr.mxu0 %v5977
    %6096 = vmatpush1.msra.mxu0 %v5976
    %6097 = vmatprep.subr.mxu0 %v5981
    %6098 = vmatpush1.msra.mxu0 %v5980
    %6099 = vmatprep.subr.mxu0 %v5985
    %6100 = vmatpush1.msra.mxu0 %v5984
    %6101 = vmatprep.subr.mxu0 %v5989
    %6102 = vmatpush1.msra.mxu0 %v5988
    %6103 = vmatprep.subr.mxu0 %v5993
    %6104 = vmatpush1.msra.mxu0 %v5992
    %6105 = vmatprep.subr.mxu0 %v5997
    %6106 = vmatpush1.msra.mxu0 %v5996
    %6107 = vmatprep.subr.mxu0 %v6001
    %6108 = vmatpush1.msra.mxu0 %v6000
    %6109 = vmatprep.subr.mxu0 %v6005
    %6110 = vmatpush1.msra.mxu0 %v6004
    %6111 = vmatprep.subr.mxu0 %v6009
    %6112 = vmatpush1.msra.mxu0 %v6008
    %6113 = vmatprep.subr.mxu0 0.0
    %6114 = vmatpush1.msra.mxu0 0.0
    %6115 = vmatprep.subr.mxu0 0.0
    %6116 = vmatpush1.msra.mxu0 0.0
    %6117 = vmatprep.subr.mxu0 0.0
    %6118 = vmatpush1.msra.mxu0 0.0
    %6119 = vmatprep.subr.mxu0 0.0
    %6120 = vmatpush1.msra.mxu0 0.0
    %6121 = vmatprep.subr.mxu0 0.0
    %6122 = vmatpush1.msra.mxu0 0.0
    %6123 = vmatprep.subr.mxu0 0.0
    %6124 = vmatpush1.msra.mxu0 0.0
    %6125 = vmatprep.subr.mxu0 0.0
    %6126 = vmatpush1.msra.mxu0 0.0
    %6127 = vmatprep.subr.mxu0 0.0
    %6128 = vmatpush1.msra.mxu0 0.0
    %6129 = vmatprep.subr.mxu0 0.0
    %6130 = vmatpush1.msra.mxu0 0.0
    %6131 = vmatprep.subr.mxu0 0.0
    %6132 = vmatpush1.msra.mxu0 0.0
    %6133 = vmatprep.subr.mxu0 0.0
    %6134 = vmatpush1.msra.mxu0 0.0
    %6135 = vmatprep.subr.mxu0 0.0
    %6136 = vmatpush1.msra.mxu0 0.0
    %6137 = vmatprep.subr.mxu0 0.0
    %6138 = vmatpush1.msra.mxu0 0.0
    %6139 = vmatprep.subr.mxu0 0.0
    %6140 = vmatpush1.msra.mxu0 0.0
    %6141 = vmatprep.subr.mxu0 0.0
    %6142 = vmatpush1.msra.mxu0 0.0
    %6143 = vmatprep.subr.mxu0 0.0
    %6144 = vmatpush1.msra.mxu0 0.0
    %6145 = vmatprep.mubr.f32.mxu0 0.0
    %6146 = vmatmul.mubr.f32.gmra.mrb[0].mxu0 %v5736
    %v6147 = vpop.f32.mrb[0].mxu0
    %v6148 = vadd.f32 0.0, %v6147
    %v6149 = vpop.f32.mrb[0].mxu0
    %v6150 = vadd.f32 0.0, %v6149
    %6151 = vdwg.mxu0
    %s6152 = scalar_lea.vmem %s16, 16
    %v6153 = vld [vmem:[%s6152] sm:$0xff]
    %v6154 = vld [vmem:[%s6152 + $0x8] sm:$0xff]
    %v6156 = vsel %vm5432, %v6153, 0
    %v6159 = vsel %vm5432, %v6154, 0
    %6161 = vmatprep.subr.mxu0 %v6079
    %6162 = vmatpush1.msra.mxu0 %v6077
    %6163 = vmatprep.subr.mxu0 0.0
    %6164 = vmatpush1.msra.mxu0 0.0
    %6165 = vmatprep.subr.mxu0 0.0
    %6166 = vmatpush1.msra.mxu0 0.0
    %6167 = vmatprep.subr.mxu0 0.0
    %6168 = vmatpush1.msra.mxu0 0.0
    %6169 = vmatprep.subr.mxu0 0.0
    %6170 = vmatpush1.msra.mxu0 0.0
    %6171 = vmatprep.subr.mxu0 0.0
    %6172 = vmatpush1.msra.mxu0 0.0
    %6173 = vmatprep.subr.mxu0 0.0
    %6174 = vmatpush1.msra.mxu0 0.0
    %6175 = vmatprep.subr.mxu0 0.0
    %6176 = vmatpush1.msra.mxu0 0.0
    %6177 = vmatprep.subr.mxu0 0.0
    %6178 = vmatpush1.msra.mxu0 0.0
    %6179 = vmatprep.subr.mxu0 0.0
    %6180 = vmatpush1.msra.mxu0 0.0
    %6181 = vmatprep.subr.mxu0 0.0
    %6182 = vmatpush1.msra.mxu0 0.0
    %6183 = vmatprep.subr.mxu0 0.0
    %6184 = vmatpush1.msra.mxu0 0.0
    %6185 = vmatprep.subr.mxu0 0.0
    %6186 = vmatpush1.msra.mxu0 0.0
    %6187 = vmatprep.subr.mxu0 0.0
    %6188 = vmatpush1.msra.mxu0 0.0
    %6189 = vmatprep.subr.mxu0 0.0
    %6190 = vmatpush1.msra.mxu0 0.0
    %6191 = vmatprep.subr.mxu0 0.0
    %6192 = vmatpush1.msra.mxu0 0.0
    %6193 = vmatprep.subr.mxu0 0.0
    %6194 = vmatpush1.msra.mxu0 0.0
    %6195 = vmatprep.subr.mxu0 0.0
    %6196 = vmatpush1.msra.mxu0 0.0
    %6197 = vmatprep.subr.mxu0 0.0
    %6198 = vmatpush1.msra.mxu0 0.0
    %6199 = vmatprep.subr.mxu0 0.0
    %6200 = vmatpush1.msra.mxu0 0.0
    %6201 = vmatprep.subr.mxu0 0.0
    %6202 = vmatpush1.msra.mxu0 0.0
    %6203 = vmatprep.subr.mxu0 0.0
    %6204 = vmatpush1.msra.mxu0 0.0
    %6205 = vmatprep.subr.mxu0 0.0
    %6206 = vmatpush1.msra.mxu0 0.0
    %6207 = vmatprep.subr.mxu0 0.0
    %6208 = vmatpush1.msra.mxu0 0.0
    %6209 = vmatprep.subr.mxu0 0.0
    %6210 = vmatpush1.msra.mxu0 0.0
    %6211 = vmatprep.subr.mxu0 0.0
    %6212 = vmatpush1.msra.mxu0 0.0
    %6213 = vmatprep.subr.mxu0 0.0
    %6214 = vmatpush1.msra.mxu0 0.0
    %6215 = vmatprep.subr.mxu0 0.0
    %6216 = vmatpush1.msra.mxu0 0.0
    %6217 = vmatprep.subr.mxu0 0.0
    %6218 = vmatpush1.msra.mxu0 0.0
    %6219 = vmatprep.subr.mxu0 0.0
    %6220 = vmatpush1.msra.mxu0 0.0
    %6221 = vmatprep.subr.mxu0 0.0
    %6222 = vmatpush1.msra.mxu0 0.0
    %6223 = vmatprep.subr.mxu0 0.0
    %6224 = vmatpush1.msra.mxu0 0.0
    %6225 = vmatprep.mubr.f32.mxu0 0.0
    %6226 = vmatmul.mubr.f32.gmra.mrb[0].mxu0 %v6156
    %v6227 = vpop.f32.mrb[0].mxu0
    %v6228 = vadd.f32 0.0, %v6227
    %v6229 = vpop.f32.mrb[0].mxu0
    %v6230 = vadd.f32 0.0, %v6229
    %6231 = vmatprep.mubr.f32.mxu0 0.0
    %6232 = vmatmul.mubr.f32.gmra.mrb[0].mxu0 %v6159
    %v6233 = vpop.f32.mrb[0].mxu0
    %v6234 = vadd.f32 0.0, %v6233
    %v6235 = vpop.f32.mrb[0].mxu0
    %v6236 = vadd.f32 0.0, %v6235
    %6237 = vdwg.mxu0
    %6238 = vmatprep.subr.mxu0 %v6150
    %6239 = vmatpush1.msra.mxu0 %v6148
    %6240 = vmatprep.subr.mxu0 0.0
    %6241 = vmatpush1.msra.mxu0 0.0
    %6242 = vmatprep.subr.mxu0 0.0
    %6243 = vmatpush1.msra.mxu0 0.0
    %6244 = vmatprep.subr.mxu0 0.0
    %6245 = vmatpush1.msra.mxu0 0.0
    %6246 = vmatprep.subr.mxu0 0.0
    %6247 = vmatpush1.msra.mxu0 0.0
    %6248 = vmatprep.subr.mxu0 0.0
    %6249 = vmatpush1.msra.mxu0 0.0
    %6250 = vmatprep.subr.mxu0 0.0
    %6251 = vmatpush1.msra.mxu0 0.0
    %6252 = vmatprep.subr.mxu0 0.0
    %6253 = vmatpush1.msra.mxu0 0.0
    %6254 = vmatprep.subr.mxu0 0.0
    %6255 = vmatpush1.msra.mxu0 0.0
    %6256 = vmatprep.subr.mxu0 0.0
    %6257 = vmatpush1.msra.mxu0 0.0
    %6258 = vmatprep.subr.mxu0 0.0
    %6259 = vmatpush1.msra.mxu0 0.0
    %6260 = vmatprep.subr.mxu0 0.0
    %6261 = vmatpush1.msra.mxu0 0.0
    %6262 = vmatprep.subr.mxu0 0.0
    %6263 = vmatpush1.msra.mxu0 0.0
    %6264 = vmatprep.subr.mxu0 0.0
    %6265 = vmatpush1.msra.mxu0 0.0
    %6266 = vmatprep.subr.mxu0 0.0
    %6267 = vmatpush1.msra.mxu0 0.0
    %6268 = vmatprep.subr.mxu0 0.0
    %6269 = vmatpush1.msra.mxu0 0.0
    %6270 = vmatprep.subr.mxu0 0.0
    %6271 = vmatpush1.msra.mxu0 0.0
    %6272 = vmatprep.subr.mxu0 0.0
    %6273 = vmatpush1.msra.mxu0 0.0
    %6274 = vmatprep.subr.mxu0 0.0
    %6275 = vmatpush1.msra.mxu0 0.0
    %6276 = vmatprep.subr.mxu0 0.0
    %6277 = vmatpush1.msra.mxu0 0.0
    %6278 = vmatprep.subr.mxu0 0.0
    %6279 = vmatpush1.msra.mxu0 0.0
    %6280 = vmatprep.subr.mxu0 0.0
    %6281 = vmatpush1.msra.mxu0 0.0
    %6282 = vmatprep.subr.mxu0 0.0
    %6283 = vmatpush1.msra.mxu0 0.0
    %6284 = vmatprep.subr.mxu0 0.0
    %6285 = vmatpush1.msra.mxu0 0.0
    %6286 = vmatprep.subr.mxu0 0.0
    %6287 = vmatpush1.msra.mxu0 0.0
    %6288 = vmatprep.subr.mxu0 0.0
    %6289 = vmatpush1.msra.mxu0 0.0
    %6290 = vmatprep.subr.mxu0 0.0
    %6291 = vmatpush1.msra.mxu0 0.0
    %6292 = vmatprep.subr.mxu0 0.0
    %6293 = vmatpush1.msra.mxu0 0.0
    %6294 = vmatprep.subr.mxu0 0.0
    %6295 = vmatpush1.msra.mxu0 0.0
    %6296 = vmatprep.subr.mxu0 0.0
    %6297 = vmatpush1.msra.mxu0 0.0
    %6298 = vmatprep.subr.mxu0 0.0
    %6299 = vmatpush1.msra.mxu0 0.0
    %6300 = vmatprep.subr.mxu0 0.0
    %6301 = vmatpush1.msra.mxu0 0.0
    %6302 = vmatprep.mubr.f32.mxu0 0.0
    %6303 = vmatmul.mubr.f32.gmra.mrb[0].mxu0 %v6156
    %v6304 = vpop.f32.mrb[0].mxu0
    %v6305 = vadd.f32 0.0, %v6304
    %v6306 = vpop.f32.mrb[0].mxu0
    %v6307 = vadd.f32 0.0, %v6306
    %6308 = vmatprep.mubr.f32.mxu0 0.0
    %6309 = vmatmul.mubr.f32.gmra.mrb[0].mxu0 %v6159
    %v6310 = vpop.f32.mrb[0].mxu0
    %v6311 = vadd.f32 0.0, %v6310
    %v6312 = vpop.f32.mrb[0].mxu0
    %v6313 = vadd.f32 0.0, %v6312
    %6314 = vdwg.mxu0
    %v6316 = vsel %vm5432, %v5943, 0
    %v6319 = vsel %vm5432, %v5944, 0
    %6321 = vmatprep.subr.mxu0 %v5870
    %6322 = vmatpush1.msra.mxu0 %v5868
    %6323 = vmatprep.subr.mxu0 0.0
    %6324 = vmatpush1.msra.mxu0 0.0
    %6325 = vmatprep.subr.mxu0 0.0
    %6326 = vmatpush1.msra.mxu0 0.0
    %6327 = vmatprep.subr.mxu0 0.0
    %6328 = vmatpush1.msra.mxu0 0.0
    %6329 = vmatprep.subr.mxu0 0.0
    %6330 = vmatpush1.msra.mxu0 0.0
    %6331 = vmatprep.subr.mxu0 0.0
    %6332 = vmatpush1.msra.mxu0 0.0
    %6333 = vmatprep.subr.mxu0 0.0
    %6334 = vmatpush1.msra.mxu0 0.0
    %6335 = vmatprep.subr.mxu0 0.0
    %6336 = vmatpush1.msra.mxu0 0.0
    %6337 = vmatprep.subr.mxu0 0.0
    %6338 = vmatpush1.msra.mxu0 0.0
    %6339 = vmatprep.subr.mxu0 0.0
    %6340 = vmatpush1.msra.mxu0 0.0
    %6341 = vmatprep.subr.mxu0 0.0
    %6342 = vmatpush1.msra.mxu0 0.0
    %6343 = vmatprep.subr.mxu0 0.0
    %6344 = vmatpush1.msra.mxu0 0.0
    %6345 = vmatprep.subr.mxu0 0.0
    %6346 = vmatpush1.msra.mxu0 0.0
    %6347 = vmatprep.subr.mxu0 0.0
    %6348 = vmatpush1.msra.mxu0 0.0
    %6349 = vmatprep.subr.mxu0 0.0
    %6350 = vmatpush1.msra.mxu0 0.0
    %6351 = vmatprep.subr.mxu0 0.0
    %6352 = vmatpush1.msra.mxu0 0.0
    %6353 = vmatprep.subr.mxu0 0.0
    %6354 = vmatpush1.msra.mxu0 0.0
    %6355 = vmatprep.subr.mxu0 0.0
    %6356 = vmatpush1.msra.mxu0 0.0
    %6357 = vmatprep.subr.mxu0 0.0
    %6358 = vmatpush1.msra.mxu0 0.0
    %6359 = vmatprep.subr.mxu0 0.0
    %6360 = vmatpush1.msra.mxu0 0.0
    %6361 = vmatprep.subr.mxu0 0.0
    %6362 = vmatpush1.msra.mxu0 0.0
    %6363 = vmatprep.subr.mxu0 0.0
    %6364 = vmatpush1.msra.mxu0 0.0
    %6365 = vmatprep.subr.mxu0 0.0
    %6366 = vmatpush1.msra.mxu0 0.0
    %6367 = vmatprep.subr.mxu0 0.0
    %6368 = vmatpush1.msra.mxu0 0.0
    %6369 = vmatprep.subr.mxu0 0.0
    %6370 = vmatpush1.msra.mxu0 0.0
    %6371 = vmatprep.subr.mxu0 0.0
    %6372 = vmatpush1.msra.mxu0 0.0
    %6373 = vmatprep.subr.mxu0 0.0
    %6374 = vmatpush1.msra.mxu0 0.0
    %6375 = vmatprep.subr.mxu0 0.0
    %6376 = vmatpush1.msra.mxu0 0.0
    %6377 = vmatprep.subr.mxu0 0.0
    %6378 = vmatpush1.msra.mxu0 0.0
    %6379 = vmatprep.subr.mxu0 0.0
    %6380 = vmatpush1.msra.mxu0 0.0
    %6381 = vmatprep.subr.mxu0 0.0
    %6382 = vmatpush1.msra.mxu0 0.0
    %6383 = vmatprep.subr.mxu0 0.0
    %6384 = vmatpush1.msra.mxu0 0.0
    %6385 = vmatprep.mubr.f32.mxu0 0.0
    %6386 = vmatmul.mubr.f32.gmra.mrb[0].mxu0 %v6316
    %v6387 = vpop.f32.mrb[0].mxu0
    %v6388 = vadd.f32 %v6228, %v6387
    %v6389 = vpop.f32.mrb[0].mxu0
    %v6390 = vadd.f32 %v6230, %v6389
    %6391 = vmatprep.mubr.f32.mxu0 0.0
    %6392 = vmatmul.mubr.f32.gmra.mrb[0].mxu0 %v6319
    %v6393 = vpop.f32.mrb[0].mxu0
    %v6394 = vadd.f32 %v6234, %v6393
    %v6395 = vpop.f32.mrb[0].mxu0
    %v6396 = vadd.f32 %v6236, %v6395
    %6397 = vdwg.mxu0
    %6398 = vmatprep.subr.mxu0 %v5941
    %6399 = vmatpush1.msra.mxu0 %v5939
    %6400 = vmatprep.subr.mxu0 0.0
    %6401 = vmatpush1.msra.mxu0 0.0
    %6402 = vmatprep.subr.mxu0 0.0
    %6403 = vmatpush1.msra.mxu0 0.0
    %6404 = vmatprep.subr.mxu0 0.0
    %6405 = vmatpush1.msra.mxu0 0.0
    %6406 = vmatprep.subr.mxu0 0.0
    %6407 = vmatpush1.msra.mxu0 0.0
    %6408 = vmatprep.subr.mxu0 0.0
    %6409 = vmatpush1.msra.mxu0 0.0
    %6410 = vmatprep.subr.mxu0 0.0
    %6411 = vmatpush1.msra.mxu0 0.0
    %6412 = vmatprep.subr.mxu0 0.0
    %6413 = vmatpush1.msra.mxu0 0.0
    %6414 = vmatprep.subr.mxu0 0.0
    %6415 = vmatpush1.msra.mxu0 0.0
    %6416 = vmatprep.subr.mxu0 0.0
    %6417 = vmatpush1.msra.mxu0 0.0
    %6418 = vmatprep.subr.mxu0 0.0
    %6419 = vmatpush1.msra.mxu0 0.0
    %6420 = vmatprep.subr.mxu0 0.0
    %6421 = vmatpush1.msra.mxu0 0.0
    %6422 = vmatprep.subr.mxu0 0.0
    %6423 = vmatpush1.msra.mxu0 0.0
    %6424 = vmatprep.subr.mxu0 0.0
    %6425 = vmatpush1.msra.mxu0 0.0
    %6426 = vmatprep.subr.mxu0 0.0
    %6427 = vmatpush1.msra.mxu0 0.0
    %6428 = vmatprep.subr.mxu0 0.0
    %6429 = vmatpush1.msra.mxu0 0.0
    %6430 = vmatprep.subr.mxu0 0.0
    %6431 = vmatpush1.msra.mxu0 0.0
    %6432 = vmatprep.subr.mxu0 0.0
    %6433 = vmatpush1.msra.mxu0 0.0
    %6434 = vmatprep.subr.mxu0 0.0
    %6435 = vmatpush1.msra.mxu0 0.0
    %6436 = vmatprep.subr.mxu0 0.0
    %6437 = vmatpush1.msra.mxu0 0.0
    %6438 = vmatprep.subr.mxu0 0.0
    %6439 = vmatpush1.msra.mxu0 0.0
    %6440 = vmatprep.subr.mxu0 0.0
    %6441 = vmatpush1.msra.mxu0 0.0
    %6442 = vmatprep.subr.mxu0 0.0
    %6443 = vmatpush1.msra.mxu0 0.0
    %6444 = vmatprep.subr.mxu0 0.0
    %6445 = vmatpush1.msra.mxu0 0.0
    %6446 = vmatprep.subr.mxu0 0.0
    %6447 = vmatpush1.msra.mxu0 0.0
    %6448 = vmatprep.subr.mxu0 0.0
    %6449 = vmatpush1.msra.mxu0 0.0
    %6450 = vmatprep.subr.mxu0 0.0
    %6451 = vmatpush1.msra.mxu0 0.0
    %6452 = vmatprep.subr.mxu0 0.0
    %6453 = vmatpush1.msra.mxu0 0.0
    %6454 = vmatprep.subr.mxu0 0.0
    %6455 = vmatpush1.msra.mxu0 0.0
    %6456 = vmatprep.subr.mxu0 0.0
    %6457 = vmatpush1.msra.mxu0 0.0
    %6458 = vmatprep.subr.mxu0 0.0
    %6459 = vmatpush1.msra.mxu0 0.0
    %6460 = vmatprep.subr.mxu0 0.0
    %6461 = vmatpush1.msra.mxu0 0.0
    %6462 = vmatprep.mubr.f32.mxu0 0.0
    %6463 = vmatmul.mubr.f32.gmra.mrb[0].mxu0 %v6316
    %v6464 = vpop.f32.mrb[0].mxu0
    %v6465 = vadd.f32 %v6305, %v6464
    %v6466 = vpop.f32.mrb[0].mxu0
    %v6467 = vadd.f32 %v6307, %v6466
    %6468 = vmatprep.mubr.f32.mxu0 0.0
    %6469 = vmatmul.mubr.f32.gmra.mrb[0].mxu0 %v6319
    %v6470 = vpop.f32.mrb[0].mxu0
    %v6471 = vadd.f32 %v6311, %v6470
    %v6472 = vpop.f32.mrb[0].mxu0
    %v6473 = vadd.f32 %v6313, %v6472
    %6474 = vdwg.mxu0
    %s6475 = scalar_lea.vmem %s17, 1024
    %v6476 = vld [vmem:[%s6475] sm:$0xff]
    %v6477 = vld [vmem:[%s6475 + $0x8] sm:$0xff]
    %v6478 = vld [vmem:[%s6475 + $0x10] sm:$0xff]
    %v6479 = vld [vmem:[%s6475 + $0x18] sm:$0xff]
    %v6480 = vld [vmem:[%s6475 + $0x20] sm:$0xff]
    %v6481 = vld [vmem:[%s6475 + $0x28] sm:$0xff]
    %v6482 = vld [vmem:[%s6475 + $0x30] sm:$0xff]
    %v6483 = vld [vmem:[%s6475 + $0x38] sm:$0xff]
    %v6484 = vld [vmem:[%s6475 + $0x40] sm:$0xff]
    %v6485 = vld [vmem:[%s6475 + $0x48] sm:$0xff]
    %v6486 = vld [vmem:[%s6475 + $0x50] sm:$0xff]
    %v6487 = vld [vmem:[%s6475 + $0x58] sm:$0xff]
    %v6488 = vld [vmem:[%s6475 + $0x60] sm:$0xff]
    %v6489 = vld [vmem:[%s6475 + $0x68] sm:$0xff]
    %v6490 = vld [vmem:[%s6475 + $0x70] sm:$0xff]
    %v6491 = vld [vmem:[%s6475 + $0x78] sm:$0xff]
    %v6492 = vld [vmem:[%s6475 + $0x80] sm:$0xff]
    %v6493 = vld [vmem:[%s6475 + $0x88] sm:$0xff]
    %v6494 = vld [vmem:[%s6475 + $0x90] sm:$0xff]
    %v6495 = vld [vmem:[%s6475 + $0x98] sm:$0xff]
    %v6496 = vld [vmem:[%s6475 + $0xa0] sm:$0xff]
    %v6497 = vld [vmem:[%s6475 + $0xa8] sm:$0xff]
    %v6498 = vld [vmem:[%s6475 + $0xb0] sm:$0xff]
    %v6499 = vld [vmem:[%s6475 + $0xb8] sm:$0xff]
    %v6500 = vld [vmem:[%s6475 + $0xc0] sm:$0xff]
    %v6501 = vld [vmem:[%s6475 + $0xc8] sm:$0xff]
    %v6502 = vld [vmem:[%s6475 + $0xd0] sm:$0xff]
    %v6503 = vld [vmem:[%s6475 + $0xd8] sm:$0xff]
    %v6504 = vld [vmem:[%s6475 + $0xe0] sm:$0xff]
    %v6505 = vld [vmem:[%s6475 + $0xe8] sm:$0xff]
    %v6506 = vld [vmem:[%s6475 + $0xf0] sm:$0xff]
    %v6507 = vld [vmem:[%s6475 + $0xf8] sm:$0xff]
    %v6508 = vld [vmem:[%s6475 + $0x100] sm:$0xff]
    %v6509 = vld [vmem:[%s6475 + $0x108] sm:$0xff]
    %v6510 = vld [vmem:[%s6475 + $0x110] sm:$0xff]
    %v6511 = vld [vmem:[%s6475 + $0x118] sm:$0xff]
    %v6512 = vld [vmem:[%s6475 + $0x120] sm:$0xff]
    %v6513 = vld [vmem:[%s6475 + $0x128] sm:$0xff]
    %v6514 = vld [vmem:[%s6475 + $0x130] sm:$0xff]
    %v6515 = vld [vmem:[%s6475 + $0x138] sm:$0xff]
    %v6516 = vld [vmem:[%s6475 + $0x140] sm:$0xff]
    %v6517 = vld [vmem:[%s6475 + $0x148] sm:$0xff]
    %v6518 = vld [vmem:[%s6475 + $0x150] sm:$0xff]
    %v6519 = vld [vmem:[%s6475 + $0x158] sm:$0xff]
    %v6520 = vld [vmem:[%s6475 + $0x160] sm:$0xff]
    %v6521 = vld [vmem:[%s6475 + $0x168] sm:$0xff]
    %v6522 = vld [vmem:[%s6475 + $0x170] sm:$0xff]
    %v6523 = vld [vmem:[%s6475 + $0x178] sm:$0xff]
    %v6524 = vld [vmem:[%s6475 + $0x180] sm:$0xff]
    %v6525 = vld [vmem:[%s6475 + $0x188] sm:$0xff]
    %v6526 = vld [vmem:[%s6475 + $0x190] sm:$0xff]
    %v6527 = vld [vmem:[%s6475 + $0x198] sm:$0xff]
    %v6528 = vld [vmem:[%s6475 + $0x1a0] sm:$0xff]
    %v6529 = vld [vmem:[%s6475 + $0x1a8] sm:$0xff]
    %v6530 = vld [vmem:[%s6475 + $0x1b0] sm:$0xff]
    %v6531 = vld [vmem:[%s6475 + $0x1b8] sm:$0xff]
    %v6532 = vld [vmem:[%s6475 + $0x1c0] sm:$0xff]
    %v6533 = vld [vmem:[%s6475 + $0x1c8] sm:$0xff]
    %v6534 = vld [vmem:[%s6475 + $0x1d0] sm:$0xff]
    %v6535 = vld [vmem:[%s6475 + $0x1d8] sm:$0xff]
    %v6536 = vld [vmem:[%s6475 + $0x1e0] sm:$0xff]
    %v6537 = vld [vmem:[%s6475 + $0x1e8] sm:$0xff]
    %v6538 = vld [vmem:[%s6475 + $0x1f0] sm:$0xff]
    %v6539 = vld [vmem:[%s6475 + $0x1f8] sm:$0xff]
    %6540 = vmatprep.subr.mxu0 %v6477
    %6541 = vmatpush1.msra.mxu0 %v6476
    %6542 = vmatprep.subr.mxu0 %v6481
    %6543 = vmatpush1.msra.mxu0 %v6480
    %6544 = vmatprep.subr.mxu0 %v6485
    %6545 = vmatpush1.msra.mxu0 %v6484
    %6546 = vmatprep.subr.mxu0 %v6489
    %6547 = vmatpush1.msra.mxu0 %v6488
    %6548 = vmatprep.subr.mxu0 %v6493
    %6549 = vmatpush1.msra.mxu0 %v6492
    %6550 = vmatprep.subr.mxu0 %v6497
    %6551 = vmatpush1.msra.mxu0 %v6496
    %6552 = vmatprep.subr.mxu0 %v6501
    %6553 = vmatpush1.msra.mxu0 %v6500
    %6554 = vmatprep.subr.mxu0 %v6505
    %6555 = vmatpush1.msra.mxu0 %v6504
    %6556 = vmatprep.subr.mxu0 %v6509
    %6557 = vmatpush1.msra.mxu0 %v6508
    %6558 = vmatprep.subr.mxu0 %v6513
    %6559 = vmatpush1.msra.mxu0 %v6512
    %6560 = vmatprep.subr.mxu0 %v6517
    %6561 = vmatpush1.msra.mxu0 %v6516
    %6562 = vmatprep.subr.mxu0 %v6521
    %6563 = vmatpush1.msra.mxu0 %v6520
    %6564 = vmatprep.subr.mxu0 %v6525
    %6565 = vmatpush1.msra.mxu0 %v6524
    %6566 = vmatprep.subr.mxu0 %v6529
    %6567 = vmatpush1.msra.mxu0 %v6528
    %6568 = vmatprep.subr.mxu0 %v6533
    %6569 = vmatpush1.msra.mxu0 %v6532
    %6570 = vmatprep.subr.mxu0 %v6537
    %6571 = vmatpush1.msra.mxu0 %v6536
    %6572 = vmatprep.subr.mxu0 0.0
    %6573 = vmatpush1.msra.mxu0 0.0
    %6574 = vmatprep.subr.mxu0 0.0
    %6575 = vmatpush1.msra.mxu0 0.0
    %6576 = vmatprep.subr.mxu0 0.0
    %6577 = vmatpush1.msra.mxu0 0.0
    %6578 = vmatprep.subr.mxu0 0.0
    %6579 = vmatpush1.msra.mxu0 0.0
    %6580 = vmatprep.subr.mxu0 0.0
    %6581 = vmatpush1.msra.mxu0 0.0
    %6582 = vmatprep.subr.mxu0 0.0
    %6583 = vmatpush1.msra.mxu0 0.0
    %6584 = vmatprep.subr.mxu0 0.0
    %6585 = vmatpush1.msra.mxu0 0.0
    %6586 = vmatprep.subr.mxu0 0.0
    %6587 = vmatpush1.msra.mxu0 0.0
    %6588 = vmatprep.subr.mxu0 0.0
    %6589 = vmatpush1.msra.mxu0 0.0
    %6590 = vmatprep.subr.mxu0 0.0
    %6591 = vmatpush1.msra.mxu0 0.0
    %6592 = vmatprep.subr.mxu0 0.0
    %6593 = vmatpush1.msra.mxu0 0.0
    %6594 = vmatprep.subr.mxu0 0.0
    %6595 = vmatpush1.msra.mxu0 0.0
    %6596 = vmatprep.subr.mxu0 0.0
    %6597 = vmatpush1.msra.mxu0 0.0
    %6598 = vmatprep.subr.mxu0 0.0
    %6599 = vmatpush1.msra.mxu0 0.0
    %6600 = vmatprep.subr.mxu0 0.0
    %6601 = vmatpush1.msra.mxu0 0.0
    %6602 = vmatprep.subr.mxu0 0.0
    %6603 = vmatpush1.msra.mxu0 0.0
    %6604 = vmatprep.mubr.f32.mxu0 0.0
    %6605 = vmatmul.mubr.f32.gmra.mrb[0].mxu0 %v5736
    %v6606 = vpop.f32.mrb[0].mxu0
    %v6607 = vadd.f32 0.0, %v6606
    %v6608 = vpop.f32.mrb[0].mxu0
    %v6609 = vadd.f32 0.0, %v6608
    %6610 = vdwg.mxu0
    %6611 = vmatprep.subr.mxu0 %v6479
    %6612 = vmatpush1.msra.mxu0 %v6478
    %6613 = vmatprep.subr.mxu0 %v6483
    %6614 = vmatpush1.msra.mxu0 %v6482
    %6615 = vmatprep.subr.mxu0 %v6487
    %6616 = vmatpush1.msra.mxu0 %v6486
    %6617 = vmatprep.subr.mxu0 %v6491
    %6618 = vmatpush1.msra.mxu0 %v6490
    %6619 = vmatprep.subr.mxu0 %v6495
    %6620 = vmatpush1.msra.mxu0 %v6494
    %6621 = vmatprep.subr.mxu0 %v6499
    %6622 = vmatpush1.msra.mxu0 %v6498
    %6623 = vmatprep.subr.mxu0 %v6503
    %6624 = vmatpush1.msra.mxu0 %v6502
    %6625 = vmatprep.subr.mxu0 %v6507
    %6626 = vmatpush1.msra.mxu0 %v6506
    %6627 = vmatprep.subr.mxu0 %v6511
    %6628 = vmatpush1.msra.mxu0 %v6510
    %6629 = vmatprep.subr.mxu0 %v6515
    %6630 = vmatpush1.msra.mxu0 %v6514
    %6631 = vmatprep.subr.mxu0 %v6519
    %6632 = vmatpush1.msra.mxu0 %v6518
    %6633 = vmatprep.subr.mxu0 %v6523
    %6634 = vmatpush1.msra.mxu0 %v6522
    %6635 = vmatprep.subr.mxu0 %v6527
    %6636 = vmatpush1.msra.mxu0 %v6526
    %6637 = vmatprep.subr.mxu0 %v6531
    %6638 = vmatpush1.msra.mxu0 %v6530
    %6639 = vmatprep.subr.mxu0 %v6535
    %6640 = vmatpush1.msra.mxu0 %v6534
    %6641 = vmatprep.subr.mxu0 %v6539
    %6642 = vmatpush1.msra.mxu0 %v6538
    %6643 = vmatprep.subr.mxu0 0.0
    %6644 = vmatpush1.msra.mxu0 0.0
    %6645 = vmatprep.subr.mxu0 0.0
    %6646 = vmatpush1.msra.mxu0 0.0
    %6647 = vmatprep.subr.mxu0 0.0
    %6648 = vmatpush1.msra.mxu0 0.0
    %6649 = vmatprep.subr.mxu0 0.0
    %6650 = vmatpush1.msra.mxu0 0.0
    %6651 = vmatprep.subr.mxu0 0.0
    %6652 = vmatpush1.msra.mxu0 0.0
    %6653 = vmatprep.subr.mxu0 0.0
    %6654 = vmatpush1.msra.mxu0 0.0
    %6655 = vmatprep.subr.mxu0 0.0
    %6656 = vmatpush1.msra.mxu0 0.0
    %6657 = vmatprep.subr.mxu0 0.0
    %6658 = vmatpush1.msra.mxu0 0.0
    %6659 = vmatprep.subr.mxu0 0.0
    %6660 = vmatpush1.msra.mxu0 0.0
    %6661 = vmatprep.subr.mxu0 0.0
    %6662 = vmatpush1.msra.mxu0 0.0
    %6663 = vmatprep.subr.mxu0 0.0
    %6664 = vmatpush1.msra.mxu0 0.0
    %6665 = vmatprep.subr.mxu0 0.0
    %6666 = vmatpush1.msra.mxu0 0.0
    %6667 = vmatprep.subr.mxu0 0.0
    %6668 = vmatpush1.msra.mxu0 0.0
    %6669 = vmatprep.subr.mxu0 0.0
    %6670 = vmatpush1.msra.mxu0 0.0
    %6671 = vmatprep.subr.mxu0 0.0
    %6672 = vmatpush1.msra.mxu0 0.0
    %6673 = vmatprep.subr.mxu0 0.0
    %6674 = vmatpush1.msra.mxu0 0.0
    %6675 = vmatprep.mubr.f32.mxu0 0.0
    %6676 = vmatmul.mubr.f32.gmra.mrb[0].mxu0 %v5736
    %v6677 = vpop.f32.mrb[0].mxu0
    %v6678 = vadd.f32 0.0, %v6677
    %v6679 = vpop.f32.mrb[0].mxu0
    %v6680 = vadd.f32 0.0, %v6679
    %6681 = vdwg.mxu0
    %s6682 = scalar_lea.vmem %s16, 32
    %v6683 = vld [vmem:[%s6682] sm:$0xff]
    %v6684 = vld [vmem:[%s6682 + $0x8] sm:$0xff]
    %v6686 = vsel %vm5432, %v6683, 0
    %v6689 = vsel %vm5432, %v6684, 0
    %6691 = vmatprep.subr.mxu0 %v6609
    %6692 = vmatpush1.msra.mxu0 %v6607
    %6693 = vmatprep.subr.mxu0 0.0
    %6694 = vmatpush1.msra.mxu0 0.0
    %6695 = vmatprep.subr.mxu0 0.0
    %6696 = vmatpush1.msra.mxu0 0.0
    %6697 = vmatprep.subr.mxu0 0.0
    %6698 = vmatpush1.msra.mxu0 0.0
    %6699 = vmatprep.subr.mxu0 0.0
    %6700 = vmatpush1.msra.mxu0 0.0
    %6701 = vmatprep.subr.mxu0 0.0
    %6702 = vmatpush1.msra.mxu0 0.0
    %6703 = vmatprep.subr.mxu0 0.0
    %6704 = vmatpush1.msra.mxu0 0.0
    %6705 = vmatprep.subr.mxu0 0.0
    %6706 = vmatpush1.msra.mxu0 0.0
    %6707 = vmatprep.subr.mxu0 0.0
    %6708 = vmatpush1.msra.mxu0 0.0
    %6709 = vmatprep.subr.mxu0 0.0
    %6710 = vmatpush1.msra.mxu0 0.0
    %6711 = vmatprep.subr.mxu0 0.0
    %6712 = vmatpush1.msra.mxu0 0.0
    %6713 = vmatprep.subr.mxu0 0.0
    %6714 = vmatpush1.msra.mxu0 0.0
    %6715 = vmatprep.subr.mxu0 0.0
    %6716 = vmatpush1.msra.mxu0 0.0
    %6717 = vmatprep.subr.mxu0 0.0
    %6718 = vmatpush1.msra.mxu0 0.0
    %6719 = vmatprep.subr.mxu0 0.0
    %6720 = vmatpush1.msra.mxu0 0.0
    %6721 = vmatprep.subr.mxu0 0.0
    %6722 = vmatpush1.msra.mxu0 0.0
    %6723 = vmatprep.subr.mxu0 0.0
    %6724 = vmatpush1.msra.mxu0 0.0
    %6725 = vmatprep.subr.mxu0 0.0
    %6726 = vmatpush1.msra.mxu0 0.0
    %6727 = vmatprep.subr.mxu0 0.0
    %6728 = vmatpush1.msra.mxu0 0.0
    %6729 = vmatprep.subr.mxu0 0.0
    %6730 = vmatpush1.msra.mxu0 0.0
    %6731 = vmatprep.subr.mxu0 0.0
    %6732 = vmatpush1.msra.mxu0 0.0
    %6733 = vmatprep.subr.mxu0 0.0
    %6734 = vmatpush1.msra.mxu0 0.0
    %6735 = vmatprep.subr.mxu0 0.0
    %6736 = vmatpush1.msra.mxu0 0.0
    %6737 = vmatprep.subr.mxu0 0.0
    %6738 = vmatpush1.msra.mxu0 0.0
    %6739 = vmatprep.subr.mxu0 0.0
    %6740 = vmatpush1.msra.mxu0 0.0
    %6741 = vmatprep.subr.mxu0 0.0
    %6742 = vmatpush1.msra.mxu0 0.0
    %6743 = vmatprep.subr.mxu0 0.0
    %6744 = vmatpush1.msra.mxu0 0.0
    %6745 = vmatprep.subr.mxu0 0.0
    %6746 = vmatpush1.msra.mxu0 0.0
    %6747 = vmatprep.subr.mxu0 0.0
    %6748 = vmatpush1.msra.mxu0 0.0
    %6749 = vmatprep.subr.mxu0 0.0
    %6750 = vmatpush1.msra.mxu0 0.0
    %6751 = vmatprep.subr.mxu0 0.0
    %6752 = vmatpush1.msra.mxu0 0.0
    %6753 = vmatprep.subr.mxu0 0.0
    %6754 = vmatpush1.msra.mxu0 0.0
    %6755 = vmatprep.mubr.f32.mxu0 0.0
    %6756 = vmatmul.mubr.f32.gmra.mrb[0].mxu0 %v6686
    %v6757 = vpop.f32.mrb[0].mxu0
    %v6758 = vadd.f32 0.0, %v6757
    %v6759 = vpop.f32.mrb[0].mxu0
    %v6760 = vadd.f32 0.0, %v6759
    %6761 = vmatprep.mubr.f32.mxu0 0.0
    %6762 = vmatmul.mubr.f32.gmra.mrb[0].mxu0 %v6689
    %v6763 = vpop.f32.mrb[0].mxu0
    %v6764 = vadd.f32 0.0, %v6763
    %v6765 = vpop.f32.mrb[0].mxu0
    %v6766 = vadd.f32 0.0, %v6765
    %6767 = vdwg.mxu0
    %6768 = vmatprep.subr.mxu0 %v6680
    %6769 = vmatpush1.msra.mxu0 %v6678
    %6770 = vmatprep.subr.mxu0 0.0
    %6771 = vmatpush1.msra.mxu0 0.0
    %6772 = vmatprep.subr.mxu0 0.0
    %6773 = vmatpush1.msra.mxu0 0.0
    %6774 = vmatprep.subr.mxu0 0.0
    %6775 = vmatpush1.msra.mxu0 0.0
    %6776 = vmatprep.subr.mxu0 0.0
    %6777 = vmatpush1.msra.mxu0 0.0
    %6778 = vmatprep.subr.mxu0 0.0
    %6779 = vmatpush1.msra.mxu0 0.0
    %6780 = vmatprep.subr.mxu0 0.0
    %6781 = vmatpush1.msra.mxu0 0.0
    %6782 = vmatprep.subr.mxu0 0.0
    %6783 = vmatpush1.msra.mxu0 0.0
    %6784 = vmatprep.subr.mxu0 0.0
    %6785 = vmatpush1.msra.mxu0 0.0
    %6786 = vmatprep.subr.mxu0 0.0
    %6787 = vmatpush1.msra.mxu0 0.0
    %6788 = vmatprep.subr.mxu0 0.0
    %6789 = vmatpush1.msra.mxu0 0.0
    %6790 = vmatprep.subr.mxu0 0.0
    %6791 = vmatpush1.msra.mxu0 0.0
    %6792 = vmatprep.subr.mxu0 0.0
    %6793 = vmatpush1.msra.mxu0 0.0
    %6794 = vmatprep.subr.mxu0 0.0
    %6795 = vmatpush1.msra.mxu0 0.0
    %6796 = vmatprep.subr.mxu0 0.0
    %6797 = vmatpush1.msra.mxu0 0.0
    %6798 = vmatprep.subr.mxu0 0.0
    %6799 = vmatpush1.msra.mxu0 0.0
    %6800 = vmatprep.subr.mxu0 0.0
    %6801 = vmatpush1.msra.mxu0 0.0
    %6802 = vmatprep.subr.mxu0 0.0
    %6803 = vmatpush1.msra.mxu0 0.0
    %6804 = vmatprep.subr.mxu0 0.0
    %6805 = vmatpush1.msra.mxu0 0.0
    %6806 = vmatprep.subr.mxu0 0.0
    %6807 = vmatpush1.msra.mxu0 0.0
    %6808 = vmatprep.subr.mxu0 0.0
    %6809 = vmatpush1.msra.mxu0 0.0
    %6810 = vmatprep.subr.mxu0 0.0
    %6811 = vmatpush1.msra.mxu0 0.0
    %6812 = vmatprep.subr.mxu0 0.0
    %6813 = vmatpush1.msra.mxu0 0.0
    %6814 = vmatprep.subr.mxu0 0.0
    %6815 = vmatpush1.msra.mxu0 0.0
    %6816 = vmatprep.subr.mxu0 0.0
    %6817 = vmatpush1.msra.mxu0 0.0
    %6818 = vmatprep.subr.mxu0 0.0
    %6819 = vmatpush1.msra.mxu0 0.0
    %6820 = vmatprep.subr.mxu0 0.0
    %6821 = vmatpush1.msra.mxu0 0.0
    %6822 = vmatprep.subr.mxu0 0.0
    %6823 = vmatpush1.msra.mxu0 0.0
    %6824 = vmatprep.subr.mxu0 0.0
    %6825 = vmatpush1.msra.mxu0 0.0
    %6826 = vmatprep.subr.mxu0 0.0
    %6827 = vmatpush1.msra.mxu0 0.0
    %6828 = vmatprep.subr.mxu0 0.0
    %6829 = vmatpush1.msra.mxu0 0.0
    %6830 = vmatprep.subr.mxu0 0.0
    %6831 = vmatpush1.msra.mxu0 0.0
    %6832 = vmatprep.mubr.f32.mxu0 0.0
    %6833 = vmatmul.mubr.f32.gmra.mrb[0].mxu0 %v6686
    %v6834 = vpop.f32.mrb[0].mxu0
    %v6835 = vadd.f32 0.0, %v6834
    %v6836 = vpop.f32.mrb[0].mxu0
    %v6837 = vadd.f32 0.0, %v6836
    %6838 = vmatprep.mubr.f32.mxu0 0.0
    %6839 = vmatmul.mubr.f32.gmra.mrb[0].mxu0 %v6689
    %v6840 = vpop.f32.mrb[0].mxu0
    %v6841 = vadd.f32 0.0, %v6840
    %v6842 = vpop.f32.mrb[0].mxu0
    %v6843 = vadd.f32 0.0, %v6842
    %6844 = vdwg.mxu0
    %v6845 = vadd.f32 %v6388, %v6758
    %v6846 = vadd.f32 %v6390, %v6760
    %v6847 = vadd.f32 %v6465, %v6835
    %v6848 = vadd.f32 %v6467, %v6837
    %v6849 = vadd.f32 %v6394, %v6764
    %v6850 = vadd.f32 %v6396, %v6766
    %v6851 = vadd.f32 %v6471, %v6841
    %v6852 = vadd.f32 %v6473, %v6843
    %v6853 = vld [vmem:[%s18] sm:$0xf]
    %v6855 = vlaneseq
    %v6856 = vshrl.u32 %v6855, 7
    %v6857 = vsub.s32 0, %v6856
    %v6858 = vrot.slane %v6853, %v6857
    %v6859 = vlaneseq
    %v6860 = vshrl.u32 %v6859, 7
    %v6861 = vsub.s32 1, %v6860
    %v6862 = vrot.slane %v6853, %v6861
    %v6863 = vlaneseq
    %v6864 = vshrl.u32 %v6863, 7
    %v6865 = vsub.s32 2, %v6864
    %v6866 = vrot.slane %v6853, %v6865
    %v6867 = vlaneseq
    %v6868 = vshrl.u32 %v6867, 7
    %v6869 = vsub.s32 3, %v6868
    %v6870 = vrot.slane %v6853, %v6869
    %v6875 = vadd.f32 %v6845, %v6858
    %v6876 = vadd.f32 %v6846, %v6862
    %v6877 = vadd.f32 %v6847, %v6866
    %v6878 = vadd.f32 %v6848, %v6870
    %v6879 = vadd.f32 %v6849, %v6858
    %v6880 = vadd.f32 %v6850, %v6862
    %v6881 = vadd.f32 %v6851, %v6866
    %v6882 = vadd.f32 %v6852, %v6870
    %v6883 = vmax.f32 %v6875, 0.0
    %v6884 = vmax.f32 %v6876, 0.0
    %v6885 = vmax.f32 %v6877, 0.0
    %v6886 = vmax.f32 %v6878, 0.0
    %v6887 = vmax.f32 %v6879, 0.0
    %v6888 = vmax.f32 %v6880, 0.0
    %v6889 = vmax.f32 %v6881, 0.0
    %v6890 = vmax.f32 %v6882, 0.0
    %v6891 = vld [vmem:[%s20] sm:$0xff]
    %v6892 = vld [vmem:[%s20 + $0x8] sm:$0xff]
    %v6893 = vld [vmem:[%s20 + $0x10] sm:$0xff]
    %v6894 = vld [vmem:[%s20 + $0x18] sm:$0xff]
    %v6895 = vld [vmem:[%s20 + $0x20] sm:$0xff]
    %v6896 = vld [vmem:[%s20 + $0x28] sm:$0xff]
    %v6897 = vld [vmem:[%s20 + $0x30] sm:$0xff]
    %v6898 = vld [vmem:[%s20 + $0x38] sm:$0xff]
    %v6899 = vld [vmem:[%s20 + $0x40] sm:$0xff]
    %v6900 = vld [vmem:[%s20 + $0x48] sm:$0xff]
    %v6901 = vld [vmem:[%s20 + $0x50] sm:$0xff]
    %v6902 = vld [vmem:[%s20 + $0x58] sm:$0xff]
    %v6903 = vld [vmem:[%s20 + $0x60] sm:$0xff]
    %v6904 = vld [vmem:[%s20 + $0x68] sm:$0xff]
    %v6905 = vld [vmem:[%s20 + $0x70] sm:$0xff]
    %v6906 = vld [vmem:[%s20 + $0x78] sm:$0xff]
    %v6907 = vld [vmem:[%s20 + $0x80] sm:$0xff]
    %v6908 = vld [vmem:[%s20 + $0x88] sm:$0xff]
    %v6909 = vld [vmem:[%s20 + $0x90] sm:$0xff]
    %v6910 = vld [vmem:[%s20 + $0x98] sm:$0xff]
    %v6911 = vld [vmem:[%s20 + $0xa0] sm:$0xff]
    %v6912 = vld [vmem:[%s20 + $0xa8] sm:$0xff]
    %v6913 = vld [vmem:[%s20 + $0xb0] sm:$0xff]
    %v6914 = vld [vmem:[%s20 + $0xb8] sm:$0xff]
    %v6915 = vld [vmem:[%s20 + $0xc0] sm:$0xff]
    %v6916 = vld [vmem:[%s20 + $0xc8] sm:$0xff]
    %v6917 = vld [vmem:[%s20 + $0xd0] sm:$0xff]
    %v6918 = vld [vmem:[%s20 + $0xd8] sm:$0xff]
    %v6919 = vld [vmem:[%s20 + $0xe0] sm:$0xff]
    %v6920 = vld [vmem:[%s20 + $0xe8] sm:$0xff]
    %v6921 = vld [vmem:[%s20 + $0xf0] sm:$0xff]
    %v6922 = vld [vmem:[%s20 + $0xf8] sm:$0xff]
    %v6923 = vld [vmem:[%s20 + $0x100] sm:$0xff]
    %v6924 = vld [vmem:[%s20 + $0x108] sm:$0xff]
    %v6925 = vld [vmem:[%s20 + $0x110] sm:$0xff]
    %v6926 = vld [vmem:[%s20 + $0x118] sm:$0xff]
    %v6927 = vld [vmem:[%s20 + $0x120] sm:$0xff]
    %v6928 = vld [vmem:[%s20 + $0x128] sm:$0xff]
    %v6929 = vld [vmem:[%s20 + $0x130] sm:$0xff]
    %v6930 = vld [vmem:[%s20 + $0x138] sm:$0xff]
    %v6931 = vld [vmem:[%s20 + $0x140] sm:$0xff]
    %v6932 = vld [vmem:[%s20 + $0x148] sm:$0xff]
    %v6933 = vld [vmem:[%s20 + $0x150] sm:$0xff]
    %v6934 = vld [vmem:[%s20 + $0x158] sm:$0xff]
    %v6935 = vld [vmem:[%s20 + $0x160] sm:$0xff]
    %v6936 = vld [vmem:[%s20 + $0x168] sm:$0xff]
    %v6937 = vld [vmem:[%s20 + $0x170] sm:$0xff]
    %v6938 = vld [vmem:[%s20 + $0x178] sm:$0xff]
    %v6939 = vld [vmem:[%s20 + $0x180] sm:$0xff]
    %v6940 = vld [vmem:[%s20 + $0x188] sm:$0xff]
    %v6941 = vld [vmem:[%s20 + $0x190] sm:$0xff]
    %v6942 = vld [vmem:[%s20 + $0x198] sm:$0xff]
    %v6943 = vld [vmem:[%s20 + $0x1a0] sm:$0xff]
    %v6944 = vld [vmem:[%s20 + $0x1a8] sm:$0xff]
    %v6945 = vld [vmem:[%s20 + $0x1b0] sm:$0xff]
    %v6946 = vld [vmem:[%s20 + $0x1b8] sm:$0xff]
    %v6947 = vld [vmem:[%s20 + $0x1c0] sm:$0xff]
    %v6948 = vld [vmem:[%s20 + $0x1c8] sm:$0xff]
    %v6949 = vld [vmem:[%s20 + $0x1d0] sm:$0xff]
    %v6950 = vld [vmem:[%s20 + $0x1d8] sm:$0xff]
    %v6951 = vld [vmem:[%s20 + $0x1e0] sm:$0xff]
    %v6952 = vld [vmem:[%s20 + $0x1e8] sm:$0xff]
    %v6953 = vld [vmem:[%s20 + $0x1f0] sm:$0xff]
    %v6954 = vld [vmem:[%s20 + $0x1f8] sm:$0xff]
    %6955 = vmatprep.subr.mxu0 0.0
    %6956 = vmatpush1.msra.mxu0 %v6891
    %6957 = vmatprep.subr.mxu0 0.0
    %6958 = vmatpush1.msra.mxu0 %v6892
    %6959 = vmatprep.subr.mxu0 0.0
    %6960 = vmatpush1.msra.mxu0 %v6893
    %6961 = vmatprep.subr.mxu0 0.0
    %6962 = vmatpush1.msra.mxu0 %v6894
    %6963 = vmatprep.subr.mxu0 0.0
    %6964 = vmatpush1.msra.mxu0 %v6895
    %6965 = vmatprep.subr.mxu0 0.0
    %6966 = vmatpush1.msra.mxu0 %v6896
    %6967 = vmatprep.subr.mxu0 0.0
    %6968 = vmatpush1.msra.mxu0 %v6897
    %6969 = vmatprep.subr.mxu0 0.0
    %6970 = vmatpush1.msra.mxu0 %v6898
    %6971 = vmatprep.subr.mxu0 0.0
    %6972 = vmatpush1.msra.mxu0 %v6899
    %6973 = vmatprep.subr.mxu0 0.0
    %6974 = vmatpush1.msra.mxu0 %v6900
    %6975 = vmatprep.subr.mxu0 0.0
    %6976 = vmatpush1.msra.mxu0 %v6901
    %6977 = vmatprep.subr.mxu0 0.0
    %6978 = vmatpush1.msra.mxu0 %v6902
    %6979 = vmatprep.subr.mxu0 0.0
    %6980 = vmatpush1.msra.mxu0 %v6903
    %6981 = vmatprep.subr.mxu0 0.0
    %6982 = vmatpush1.msra.mxu0 %v6904
    %6983 = vmatprep.subr.mxu0 0.0
    %6984 = vmatpush1.msra.mxu0 %v6905
    %6985 = vmatprep.subr.mxu0 0.0
    %6986 = vmatpush1.msra.mxu0 %v6906
    %6987 = vmatprep.subr.mxu0 0.0
    %6988 = vmatpush1.msra.mxu0 %v6907
    %6989 = vmatprep.subr.mxu0 0.0
    %6990 = vmatpush1.msra.mxu0 %v6908
    %6991 = vmatprep.subr.mxu0 0.0
    %6992 = vmatpush1.msra.mxu0 %v6909
    %6993 = vmatprep.subr.mxu0 0.0
    %6994 = vmatpush1.msra.mxu0 %v6910
    %6995 = vmatprep.subr.mxu0 0.0
    %6996 = vmatpush1.msra.mxu0 %v6911
    %6997 = vmatprep.subr.mxu0 0.0
    %6998 = vmatpush1.msra.mxu0 %v6912
    %6999 = vmatprep.subr.mxu0 0.0
    %7000 = vmatpush1.msra.mxu0 %v6913
    %7001 = vmatprep.subr.mxu0 0.0
    %7002 = vmatpush1.msra.mxu0 %v6914
    %7003 = vmatprep.subr.mxu0 0.0
    %7004 = vmatpush1.msra.mxu0 %v6915
    %7005 = vmatprep.subr.mxu0 0.0
    %7006 = vmatpush1.msra.mxu0 %v6916
    %7007 = vmatprep.subr.mxu0 0.0
    %7008 = vmatpush1.msra.mxu0 %v6917
    %7009 = vmatprep.subr.mxu0 0.0
    %7010 = vmatpush1.msra.mxu0 %v6918
    %7011 = vmatprep.subr.mxu0 0.0
    %7012 = vmatpush1.msra.mxu0 %v6919
    %7013 = vmatprep.subr.mxu0 0.0
    %7014 = vmatpush1.msra.mxu0 %v6920
    %7015 = vmatprep.subr.mxu0 0.0
    %7016 = vmatpush1.msra.mxu0 %v6921
    %7017 = vmatprep.subr.mxu0 0.0
    %7018 = vmatpush1.msra.mxu0 %v6922
    %7019 = vmatprep.mubr.f32.mxu0 %v6884
    %7020 = vmatmul.mubr.f32.gmra.mrb[0].mxu0 %v6883
    %v7021 = vpop.f32.mrb[0].mxu0
    %v7022 = vadd.f32 0.0, %v7021
    %v7023 = vpop.f32.mrb[0].mxu0
    %7024 = vmatprep.mubr.f32.mxu0 %v6888
    %7025 = vmatmul.mubr.f32.gmra.mrb[0].mxu0 %v6887
    %v7026 = vpop.f32.mrb[0].mxu0
    %v7027 = vadd.f32 0.0, %v7026
    %v7028 = vpop.f32.mrb[0].mxu0
    %7029 = vdwg.mxu0
    %7030 = vmatprep.subr.mxu0 0.0
    %7031 = vmatpush1.msra.mxu0 %v6923
    %7032 = vmatprep.subr.mxu0 0.0
    %7033 = vmatpush1.msra.mxu0 %v6924
    %7034 = vmatprep.subr.mxu0 0.0
    %7035 = vmatpush1.msra.mxu0 %v6925
    %7036 = vmatprep.subr.mxu0 0.0
    %7037 = vmatpush1.msra.mxu0 %v6926
    %7038 = vmatprep.subr.mxu0 0.0
    %7039 = vmatpush1.msra.mxu0 %v6927
    %7040 = vmatprep.subr.mxu0 0.0
    %7041 = vmatpush1.msra.mxu0 %v6928
    %7042 = vmatprep.subr.mxu0 0.0
    %7043 = vmatpush1.msra.mxu0 %v6929
    %7044 = vmatprep.subr.mxu0 0.0
    %7045 = vmatpush1.msra.mxu0 %v6930
    %7046 = vmatprep.subr.mxu0 0.0
    %7047 = vmatpush1.msra.mxu0 %v6931
    %7048 = vmatprep.subr.mxu0 0.0
    %7049 = vmatpush1.msra.mxu0 %v6932
    %7050 = vmatprep.subr.mxu0 0.0
    %7051 = vmatpush1.msra.mxu0 %v6933
    %7052 = vmatprep.subr.mxu0 0.0
    %7053 = vmatpush1.msra.mxu0 %v6934
    %7054 = vmatprep.subr.mxu0 0.0
    %7055 = vmatpush1.msra.mxu0 %v6935
    %7056 = vmatprep.subr.mxu0 0.0
    %7057 = vmatpush1.msra.mxu0 %v6936
    %7058 = vmatprep.subr.mxu0 0.0
    %7059 = vmatpush1.msra.mxu0 %v6937
    %7060 = vmatprep.subr.mxu0 0.0
    %7061 = vmatpush1.msra.mxu0 %v6938
    %7062 = vmatprep.subr.mxu0 0.0
    %7063 = vmatpush1.msra.mxu0 %v6939
    %7064 = vmatprep.subr.mxu0 0.0
    %7065 = vmatpush1.msra.mxu0 %v6940
    %7066 = vmatprep.subr.mxu0 0.0
    %7067 = vmatpush1.msra.mxu0 %v6941
    %7068 = vmatprep.subr.mxu0 0.0
    %7069 = vmatpush1.msra.mxu0 %v6942
    %7070 = vmatprep.subr.mxu0 0.0
    %7071 = vmatpush1.msra.mxu0 %v6943
    %7072 = vmatprep.subr.mxu0 0.0
    %7073 = vmatpush1.msra.mxu0 %v6944
    %7074 = vmatprep.subr.mxu0 0.0
    %7075 = vmatpush1.msra.mxu0 %v6945
    %7076 = vmatprep.subr.mxu0 0.0
    %7077 = vmatpush1.msra.mxu0 %v6946
    %7078 = vmatprep.subr.mxu0 0.0
    %7079 = vmatpush1.msra.mxu0 %v6947
    %7080 = vmatprep.subr.mxu0 0.0
    %7081 = vmatpush1.msra.mxu0 %v6948
    %7082 = vmatprep.subr.mxu0 0.0
    %7083 = vmatpush1.msra.mxu0 %v6949
    %7084 = vmatprep.subr.mxu0 0.0
    %7085 = vmatpush1.msra.mxu0 %v6950
    %7086 = vmatprep.subr.mxu0 0.0
    %7087 = vmatpush1.msra.mxu0 %v6951
    %7088 = vmatprep.subr.mxu0 0.0
    %7089 = vmatpush1.msra.mxu0 %v6952
    %7090 = vmatprep.subr.mxu0 0.0
    %7091 = vmatpush1.msra.mxu0 %v6953
    %7092 = vmatprep.subr.mxu0 0.0
    %7093 = vmatpush1.msra.mxu0 %v6954
    %7094 = vmatprep.mubr.f32.mxu0 %v6886
    %7095 = vmatmul.mubr.f32.gmra.mrb[0].mxu0 %v6885
    %v7096 = vpop.f32.mrb[0].mxu0
    %v7097 = vadd.f32 %v7022, %v7096
    %v7098 = vpop.f32.mrb[0].mxu0
    %7099 = vmatprep.mubr.f32.mxu0 %v6890
    %7100 = vmatmul.mubr.f32.gmra.mrb[0].mxu0 %v6889
    %v7101 = vpop.f32.mrb[0].mxu0
    %v7102 = vadd.f32 %v7027, %v7101
    %v7103 = vpop.f32.mrb[0].mxu0
    %7104 = vdwg.mxu0
    %v7105 = vld [vmem:[%s19] sm:$0xff]
    %v7106 = vld [vmem:[%s19 + $0x8] sm:$0xff]
    %v7107 = vld [vmem:[%s19 + $0x10] sm:$0xff]
    %v7108 = vld [vmem:[%s19 + $0x18] sm:$0xff]
    %s7109 = scalar_lea.vmem %s20, 512
    %v7110 = vld [vmem:[%s7109] sm:$0xff]
    %v7111 = vld [vmem:[%s7109 + $0x8] sm:$0xff]
    %v7112 = vld [vmem:[%s7109 + $0x10] sm:$0xff]
    %v7113 = vld [vmem:[%s7109 + $0x18] sm:$0xff]
    %v7114 = vld [vmem:[%s7109 + $0x20] sm:$0xff]
    %v7115 = vld [vmem:[%s7109 + $0x28] sm:$0xff]
    %v7116 = vld [vmem:[%s7109 + $0x30] sm:$0xff]
    %v7117 = vld [vmem:[%s7109 + $0x38] sm:$0xff]
    %v7118 = vld [vmem:[%s7109 + $0x40] sm:$0xff]
    %v7119 = vld [vmem:[%s7109 + $0x48] sm:$0xff]
    %v7120 = vld [vmem:[%s7109 + $0x50] sm:$0xff]
    %v7121 = vld [vmem:[%s7109 + $0x58] sm:$0xff]
    %v7122 = vld [vmem:[%s7109 + $0x60] sm:$0xff]
    %v7123 = vld [vmem:[%s7109 + $0x68] sm:$0xff]
    %v7124 = vld [vmem:[%s7109 + $0x70] sm:$0xff]
    %v7125 = vld [vmem:[%s7109 + $0x78] sm:$0xff]
    %v7126 = vld [vmem:[%s7109 + $0x80] sm:$0xff]
    %v7127 = vld [vmem:[%s7109 + $0x88] sm:$0xff]
    %v7128 = vld [vmem:[%s7109 + $0x90] sm:$0xff]
    %v7129 = vld [vmem:[%s7109 + $0x98] sm:$0xff]
    %v7130 = vld [vmem:[%s7109 + $0xa0] sm:$0xff]
    %v7131 = vld [vmem:[%s7109 + $0xa8] sm:$0xff]
    %v7132 = vld [vmem:[%s7109 + $0xb0] sm:$0xff]
    %v7133 = vld [vmem:[%s7109 + $0xb8] sm:$0xff]
    %v7134 = vld [vmem:[%s7109 + $0xc0] sm:$0xff]
    %v7135 = vld [vmem:[%s7109 + $0xc8] sm:$0xff]
    %v7136 = vld [vmem:[%s7109 + $0xd0] sm:$0xff]
    %v7137 = vld [vmem:[%s7109 + $0xd8] sm:$0xff]
    %v7138 = vld [vmem:[%s7109 + $0xe0] sm:$0xff]
    %v7139 = vld [vmem:[%s7109 + $0xe8] sm:$0xff]
    %v7140 = vld [vmem:[%s7109 + $0xf0] sm:$0xff]
    %v7141 = vld [vmem:[%s7109 + $0xf8] sm:$0xff]
    %v7142 = vld [vmem:[%s7109 + $0x100] sm:$0xff]
    %v7143 = vld [vmem:[%s7109 + $0x108] sm:$0xff]
    %v7144 = vld [vmem:[%s7109 + $0x110] sm:$0xff]
    %v7145 = vld [vmem:[%s7109 + $0x118] sm:$0xff]
    %v7146 = vld [vmem:[%s7109 + $0x120] sm:$0xff]
    %v7147 = vld [vmem:[%s7109 + $0x128] sm:$0xff]
    %v7148 = vld [vmem:[%s7109 + $0x130] sm:$0xff]
    %v7149 = vld [vmem:[%s7109 + $0x138] sm:$0xff]
    %v7150 = vld [vmem:[%s7109 + $0x140] sm:$0xff]
    %v7151 = vld [vmem:[%s7109 + $0x148] sm:$0xff]
    %v7152 = vld [vmem:[%s7109 + $0x150] sm:$0xff]
    %v7153 = vld [vmem:[%s7109 + $0x158] sm:$0xff]
    %v7154 = vld [vmem:[%s7109 + $0x160] sm:$0xff]
    %v7155 = vld [vmem:[%s7109 + $0x168] sm:$0xff]
    %v7156 = vld [vmem:[%s7109 + $0x170] sm:$0xff]
    %v7157 = vld [vmem:[%s7109 + $0x178] sm:$0xff]
    %v7158 = vld [vmem:[%s7109 + $0x180] sm:$0xff]
    %v7159 = vld [vmem:[%s7109 + $0x188] sm:$0xff]
    %v7160 = vld [vmem:[%s7109 + $0x190] sm:$0xff]
    %v7161 = vld [vmem:[%s7109 + $0x198] sm:$0xff]
    %v7162 = vld [vmem:[%s7109 + $0x1a0] sm:$0xff]
    %v7163 = vld [vmem:[%s7109 + $0x1a8] sm:$0xff]
    %v7164 = vld [vmem:[%s7109 + $0x1b0] sm:$0xff]
    %v7165 = vld [vmem:[%s7109 + $0x1b8] sm:$0xff]
    %v7166 = vld [vmem:[%s7109 + $0x1c0] sm:$0xff]
    %v7167 = vld [vmem:[%s7109 + $0x1c8] sm:$0xff]
    %v7168 = vld [vmem:[%s7109 + $0x1d0] sm:$0xff]
    %v7169 = vld [vmem:[%s7109 + $0x1d8] sm:$0xff]
    %v7170 = vld [vmem:[%s7109 + $0x1e0] sm:$0xff]
    %v7171 = vld [vmem:[%s7109 + $0x1e8] sm:$0xff]
    %v7172 = vld [vmem:[%s7109 + $0x1f0] sm:$0xff]
    %v7173 = vld [vmem:[%s7109 + $0x1f8] sm:$0xff]
    %7174 = vmatprep.subr.mxu0 0.0
    %7175 = vmatpush1.msra.mxu0 %v7110
    %7176 = vmatprep.subr.mxu0 0.0
    %7177 = vmatpush1.msra.mxu0 %v7111
    %7178 = vmatprep.subr.mxu0 0.0
    %7179 = vmatpush1.msra.mxu0 %v7112
    %7180 = vmatprep.subr.mxu0 0.0
    %7181 = vmatpush1.msra.mxu0 %v7113
    %7182 = vmatprep.subr.mxu0 0.0
    %7183 = vmatpush1.msra.mxu0 %v7114
    %7184 = vmatprep.subr.mxu0 0.0
    %7185 = vmatpush1.msra.mxu0 %v7115
    %7186 = vmatprep.subr.mxu0 0.0
    %7187 = vmatpush1.msra.mxu0 %v7116
    %7188 = vmatprep.subr.mxu0 0.0
    %7189 = vmatpush1.msra.mxu0 %v7117
    %7190 = vmatprep.subr.mxu0 0.0
    %7191 = vmatpush1.msra.mxu0 %v7118
    %7192 = vmatprep.subr.mxu0 0.0
    %7193 = vmatpush1.msra.mxu0 %v7119
    %7194 = vmatprep.subr.mxu0 0.0
    %7195 = vmatpush1.msra.mxu0 %v7120
    %7196 = vmatprep.subr.mxu0 0.0
    %7197 = vmatpush1.msra.mxu0 %v7121
    %7198 = vmatprep.subr.mxu0 0.0
    %7199 = vmatpush1.msra.mxu0 %v7122
    %7200 = vmatprep.subr.mxu0 0.0
    %7201 = vmatpush1.msra.mxu0 %v7123
    %7202 = vmatprep.subr.mxu0 0.0
    %7203 = vmatpush1.msra.mxu0 %v7124
    %7204 = vmatprep.subr.mxu0 0.0
    %7205 = vmatpush1.msra.mxu0 %v7125
    %7206 = vmatprep.subr.mxu0 0.0
    %7207 = vmatpush1.msra.mxu0 %v7126
    %7208 = vmatprep.subr.mxu0 0.0
    %7209 = vmatpush1.msra.mxu0 %v7127
    %7210 = vmatprep.subr.mxu0 0.0
    %7211 = vmatpush1.msra.mxu0 %v7128
    %7212 = vmatprep.subr.mxu0 0.0
    %7213 = vmatpush1.msra.mxu0 %v7129
    %7214 = vmatprep.subr.mxu0 0.0
    %7215 = vmatpush1.msra.mxu0 %v7130
    %7216 = vmatprep.subr.mxu0 0.0
    %7217 = vmatpush1.msra.mxu0 %v7131
    %7218 = vmatprep.subr.mxu0 0.0
    %7219 = vmatpush1.msra.mxu0 %v7132
    %7220 = vmatprep.subr.mxu0 0.0
    %7221 = vmatpush1.msra.mxu0 %v7133
    %7222 = vmatprep.subr.mxu0 0.0
    %7223 = vmatpush1.msra.mxu0 %v7134
    %7224 = vmatprep.subr.mxu0 0.0
    %7225 = vmatpush1.msra.mxu0 %v7135
    %7226 = vmatprep.subr.mxu0 0.0
    %7227 = vmatpush1.msra.mxu0 %v7136
    %7228 = vmatprep.subr.mxu0 0.0
    %7229 = vmatpush1.msra.mxu0 %v7137
    %7230 = vmatprep.subr.mxu0 0.0
    %7231 = vmatpush1.msra.mxu0 %v7138
    %7232 = vmatprep.subr.mxu0 0.0
    %7233 = vmatpush1.msra.mxu0 %v7139
    %7234 = vmatprep.subr.mxu0 0.0
    %7235 = vmatpush1.msra.mxu0 %v7140
    %7236 = vmatprep.subr.mxu0 0.0
    %7237 = vmatpush1.msra.mxu0 %v7141
    %7238 = vmatprep.mubr.f32.mxu0 %v6884
    %7239 = vmatmul.mubr.f32.gmra.mrb[0].mxu0 %v6883
    %v7240 = vpop.f32.mrb[0].mxu0
    %v7241 = vadd.f32 0.0, %v7240
    %v7242 = vpop.f32.mrb[0].mxu0
    %7243 = vmatprep.mubr.f32.mxu0 %v6888
    %7244 = vmatmul.mubr.f32.gmra.mrb[0].mxu0 %v6887
    %v7245 = vpop.f32.mrb[0].mxu0
    %v7246 = vadd.f32 0.0, %v7245
    %v7247 = vpop.f32.mrb[0].mxu0
    %7248 = vdwg.mxu0
    %7249 = vmatprep.subr.mxu0 0.0
    %7250 = vmatpush1.msra.mxu0 %v7142
    %7251 = vmatprep.subr.mxu0 0.0
    %7252 = vmatpush1.msra.mxu0 %v7143
    %7253 = vmatprep.subr.mxu0 0.0
    %7254 = vmatpush1.msra.mxu0 %v7144
    %7255 = vmatprep.subr.mxu0 0.0
    %7256 = vmatpush1.msra.mxu0 %v7145
    %7257 = vmatprep.subr.mxu0 0.0
    %7258 = vmatpush1.msra.mxu0 %v7146
    %7259 = vmatprep.subr.mxu0 0.0
    %7260 = vmatpush1.msra.mxu0 %v7147
    %7261 = vmatprep.subr.mxu0 0.0
    %7262 = vmatpush1.msra.mxu0 %v7148
    %7263 = vmatprep.subr.mxu0 0.0
    %7264 = vmatpush1.msra.mxu0 %v7149
    %7265 = vmatprep.subr.mxu0 0.0
    %7266 = vmatpush1.msra.mxu0 %v7150
    %7267 = vmatprep.subr.mxu0 0.0
    %7268 = vmatpush1.msra.mxu0 %v7151
    %7269 = vmatprep.subr.mxu0 0.0
    %7270 = vmatpush1.msra.mxu0 %v7152
    %7271 = vmatprep.subr.mxu0 0.0
    %7272 = vmatpush1.msra.mxu0 %v7153
    %7273 = vmatprep.subr.mxu0 0.0
    %7274 = vmatpush1.msra.mxu0 %v7154
    %7275 = vmatprep.subr.mxu0 0.0
    %7276 = vmatpush1.msra.mxu0 %v7155
    %7277 = vmatprep.subr.mxu0 0.0
    %7278 = vmatpush1.msra.mxu0 %v7156
    %7279 = vmatprep.subr.mxu0 0.0
    %7280 = vmatpush1.msra.mxu0 %v7157
    %7281 = vmatprep.subr.mxu0 0.0
    %7282 = vmatpush1.msra.mxu0 %v7158
    %7283 = vmatprep.subr.mxu0 0.0
    %7284 = vmatpush1.msra.mxu0 %v7159
    %7285 = vmatprep.subr.mxu0 0.0
    %7286 = vmatpush1.msra.mxu0 %v7160
    %7287 = vmatprep.subr.mxu0 0.0
    %7288 = vmatpush1.msra.mxu0 %v7161
    %7289 = vmatprep.subr.mxu0 0.0
    %7290 = vmatpush1.msra.mxu0 %v7162
    %7291 = vmatprep.subr.mxu0 0.0
    %7292 = vmatpush1.msra.mxu0 %v7163
    %7293 = vmatprep.subr.mxu0 0.0
    %7294 = vmatpush1.msra.mxu0 %v7164
    %7295 = vmatprep.subr.mxu0 0.0
    %7296 = vmatpush1.msra.mxu0 %v7165
    %7297 = vmatprep.subr.mxu0 0.0
    %7298 = vmatpush1.msra.mxu0 %v7166
    %7299 = vmatprep.subr.mxu0 0.0
    %7300 = vmatpush1.msra.mxu0 %v7167
    %7301 = vmatprep.subr.mxu0 0.0
    %7302 = vmatpush1.msra.mxu0 %v7168
    %7303 = vmatprep.subr.mxu0 0.0
    %7304 = vmatpush1.msra.mxu0 %v7169
    %7305 = vmatprep.subr.mxu0 0.0
    %7306 = vmatpush1.msra.mxu0 %v7170
    %7307 = vmatprep.subr.mxu0 0.0
    %7308 = vmatpush1.msra.mxu0 %v7171
    %7309 = vmatprep.subr.mxu0 0.0
    %7310 = vmatpush1.msra.mxu0 %v7172
    %7311 = vmatprep.subr.mxu0 0.0
    %7312 = vmatpush1.msra.mxu0 %v7173
    %7313 = vmatprep.mubr.f32.mxu0 %v6886
    %7314 = vmatmul.mubr.f32.gmra.mrb[0].mxu0 %v6885
    %v7315 = vpop.f32.mrb[0].mxu0
    %v7316 = vadd.f32 %v7241, %v7315
    %v7317 = vpop.f32.mrb[0].mxu0
    %7318 = vmatprep.mubr.f32.mxu0 %v6890
    %7319 = vmatmul.mubr.f32.gmra.mrb[0].mxu0 %v6889
    %v7320 = vpop.f32.mrb[0].mxu0
    %v7321 = vadd.f32 %v7246, %v7320
    %v7322 = vpop.f32.mrb[0].mxu0
    %7323 = vdwg.mxu0
    %s7324 = scalar_lea.vmem %s19, 32
    %v7325 = vld [vmem:[%s7324] sm:$0xff]
    %v7326 = vld [vmem:[%s7324 + $0x8] sm:$0xff]
    %v7327 = vld [vmem:[%s7324 + $0x10] sm:$0xff]
    %v7328 = vld [vmem:[%s7324 + $0x18] sm:$0xff]
    %v7330 = vsel %vm233, %v7325, 0
    %v7333 = vsel %vm233, %v7326, 0
    %v7336 = vsel %vm233, %v7327, 0
    %v7339 = vsel %vm233, %v7328, 0
    %7341 = vmatprep.subr.mxu0 0.0
    %7342 = vmatpush1.msra.mxu0 %v7316
    %7343 = vmatprep.subr.mxu0 0.0
    %7344 = vmatpush1.msra.mxu0 %v7321
    %7345 = vmatprep.subr.mxu0 0.0
    %7346 = vmatpush1.msra.mxu0 0.0
    %7347 = vmatprep.subr.mxu0 0.0
    %7348 = vmatpush1.msra.mxu0 0.0
    %7349 = vmatprep.subr.mxu0 0.0
    %7350 = vmatpush1.msra.mxu0 0.0
    %7351 = vmatprep.subr.mxu0 0.0
    %7352 = vmatpush1.msra.mxu0 0.0
    %7353 = vmatprep.subr.mxu0 0.0
    %7354 = vmatpush1.msra.mxu0 0.0
    %7355 = vmatprep.subr.mxu0 0.0
    %7356 = vmatpush1.msra.mxu0 0.0
    %7357 = vmatprep.subr.mxu0 0.0
    %7358 = vmatpush1.msra.mxu0 0.0
    %7359 = vmatprep.subr.mxu0 0.0
    %7360 = vmatpush1.msra.mxu0 0.0
    %7361 = vmatprep.subr.mxu0 0.0
    %7362 = vmatpush1.msra.mxu0 0.0
    %7363 = vmatprep.subr.mxu0 0.0
    %7364 = vmatpush1.msra.mxu0 0.0
    %7365 = vmatprep.subr.mxu0 0.0
    %7366 = vmatpush1.msra.mxu0 0.0
    %7367 = vmatprep.subr.mxu0 0.0
    %7368 = vmatpush1.msra.mxu0 0.0
    %7369 = vmatprep.subr.mxu0 0.0
    %7370 = vmatpush1.msra.mxu0 0.0
    %7371 = vmatprep.subr.mxu0 0.0
    %7372 = vmatpush1.msra.mxu0 0.0
    %7373 = vmatprep.subr.mxu0 0.0
    %7374 = vmatpush1.msra.mxu0 0.0
    %7375 = vmatprep.subr.mxu0 0.0
    %7376 = vmatpush1.msra.mxu0 0.0
    %7377 = vmatprep.subr.mxu0 0.0
    %7378 = vmatpush1.msra.mxu0 0.0
    %7379 = vmatprep.subr.mxu0 0.0
    %7380 = vmatpush1.msra.mxu0 0.0
    %7381 = vmatprep.subr.mxu0 0.0
    %7382 = vmatpush1.msra.mxu0 0.0
    %7383 = vmatprep.subr.mxu0 0.0
    %7384 = vmatpush1.msra.mxu0 0.0
    %7385 = vmatprep.subr.mxu0 0.0
    %7386 = vmatpush1.msra.mxu0 0.0
    %7387 = vmatprep.subr.mxu0 0.0
    %7388 = vmatpush1.msra.mxu0 0.0
    %7389 = vmatprep.subr.mxu0 0.0
    %7390 = vmatpush1.msra.mxu0 0.0
    %7391 = vmatprep.subr.mxu0 0.0
    %7392 = vmatpush1.msra.mxu0 0.0
    %7393 = vmatprep.subr.mxu0 0.0
    %7394 = vmatpush1.msra.mxu0 0.0
    %7395 = vmatprep.subr.mxu0 0.0
    %7396 = vmatpush1.msra.mxu0 0.0
    %7397 = vmatprep.subr.mxu0 0.0
    %7398 = vmatpush1.msra.mxu0 0.0
    %7399 = vmatprep.subr.mxu0 0.0
    %7400 = vmatpush1.msra.mxu0 0.0
    %7401 = vmatprep.subr.mxu0 0.0
    %7402 = vmatpush1.msra.mxu0 0.0
    %7403 = vmatprep.subr.mxu0 0.0
    %7404 = vmatpush1.msra.mxu0 0.0
    %7405 = vmatprep.mubr.f32.mxu0 0.0
    %7406 = vmatmul.mubr.f32.gmra.mrb[0].mxu0 %v7330
    %v7407 = vpop.f32.mrb[0].mxu0
    %v7408 = vadd.f32 0.0, %v7407
    %v7409 = vpop.f32.mrb[0].mxu0
    %7410 = vmatprep.mubr.f32.mxu0 0.0
    %7411 = vmatmul.mubr.f32.gmra.mrb[0].mxu0 %v7333
    %v7412 = vpop.f32.mrb[0].mxu0
    %v7413 = vadd.f32 0.0, %v7412
    %v7414 = vpop.f32.mrb[0].mxu0
    %7415 = vmatprep.mubr.f32.mxu0 0.0
    %7416 = vmatmul.mubr.f32.gmra.mrb[0].mxu0 %v7336
    %v7417 = vpop.f32.mrb[0].mxu0
    %v7418 = vadd.f32 0.0, %v7417
    %v7419 = vpop.f32.mrb[0].mxu0
    %7420 = vmatprep.mubr.f32.mxu0 0.0
    %7421 = vmatmul.mubr.f32.gmra.mrb[0].mxu0 %v7339
    %v7422 = vpop.f32.mrb[0].mxu0
    %v7423 = vadd.f32 0.0, %v7422
    %v7424 = vpop.f32.mrb[0].mxu0
    %7425 = vdwg.mxu0
    %v7427 = vsel %vm233, %v7105, 0
    %v7430 = vsel %vm233, %v7106, 0
    %v7433 = vsel %vm233, %v7107, 0
    %v7436 = vsel %vm233, %v7108, 0
    %7438 = vmatprep.subr.mxu0 0.0
    %7439 = vmatpush1.msra.mxu0 %v7097
    %7440 = vmatprep.subr.mxu0 0.0
    %7441 = vmatpush1.msra.mxu0 %v7102
    %7442 = vmatprep.subr.mxu0 0.0
    %7443 = vmatpush1.msra.mxu0 0.0
    %7444 = vmatprep.subr.mxu0 0.0
    %7445 = vmatpush1.msra.mxu0 0.0
    %7446 = vmatprep.subr.mxu0 0.0
    %7447 = vmatpush1.msra.mxu0 0.0
    %7448 = vmatprep.subr.mxu0 0.0
    %7449 = vmatpush1.msra.mxu0 0.0
    %7450 = vmatprep.subr.mxu0 0.0
    %7451 = vmatpush1.msra.mxu0 0.0
    %7452 = vmatprep.subr.mxu0 0.0
    %7453 = vmatpush1.msra.mxu0 0.0
    %7454 = vmatprep.subr.mxu0 0.0
    %7455 = vmatpush1.msra.mxu0 0.0
    %7456 = vmatprep.subr.mxu0 0.0
    %7457 = vmatpush1.msra.mxu0 0.0
    %7458 = vmatprep.subr.mxu0 0.0
    %7459 = vmatpush1.msra.mxu0 0.0
    %7460 = vmatprep.subr.mxu0 0.0
    %7461 = vmatpush1.msra.mxu0 0.0
    %7462 = vmatprep.subr.mxu0 0.0
    %7463 = vmatpush1.msra.mxu0 0.0
    %7464 = vmatprep.subr.mxu0 0.0
    %7465 = vmatpush1.msra.mxu0 0.0
    %7466 = vmatprep.subr.mxu0 0.0
    %7467 = vmatpush1.msra.mxu0 0.0
    %7468 = vmatprep.subr.mxu0 0.0
    %7469 = vmatpush1.msra.mxu0 0.0
    %7470 = vmatprep.subr.mxu0 0.0
    %7471 = vmatpush1.msra.mxu0 0.0
    %7472 = vmatprep.subr.mxu0 0.0
    %7473 = vmatpush1.msra.mxu0 0.0
    %7474 = vmatprep.subr.mxu0 0.0
    %7475 = vmatpush1.msra.mxu0 0.0
    %7476 = vmatprep.subr.mxu0 0.0
    %7477 = vmatpush1.msra.mxu0 0.0
    %7478 = vmatprep.subr.mxu0 0.0
    %7479 = vmatpush1.msra.mxu0 0.0
    %7480 = vmatprep.subr.mxu0 0.0
    %7481 = vmatpush1.msra.mxu0 0.0
    %7482 = vmatprep.subr.mxu0 0.0
    %7483 = vmatpush1.msra.mxu0 0.0
    %7484 = vmatprep.subr.mxu0 0.0
    %7485 = vmatpush1.msra.mxu0 0.0
    %7486 = vmatprep.subr.mxu0 0.0
    %7487 = vmatpush1.msra.mxu0 0.0
    %7488 = vmatprep.subr.mxu0 0.0
    %7489 = vmatpush1.msra.mxu0 0.0
    %7490 = vmatprep.subr.mxu0 0.0
    %7491 = vmatpush1.msra.mxu0 0.0
    %7492 = vmatprep.subr.mxu0 0.0
    %7493 = vmatpush1.msra.mxu0 0.0
    %7494 = vmatprep.subr.mxu0 0.0
    %7495 = vmatpush1.msra.mxu0 0.0
    %7496 = vmatprep.subr.mxu0 0.0
    %7497 = vmatpush1.msra.mxu0 0.0
    %7498 = vmatprep.subr.mxu0 0.0
    %7499 = vmatpush1.msra.mxu0 0.0
    %7500 = vmatprep.subr.mxu0 0.0
    %7501 = vmatpush1.msra.mxu0 0.0
    %7502 = vmatprep.mubr.f32.mxu0 0.0
    %7503 = vmatmul.mubr.f32.gmra.mrb[0].mxu0 %v7427
    %v7504 = vpop.f32.mrb[0].mxu0
    %v7505 = vadd.f32 %v7408, %v7504
    %v7506 = vpop.f32.mrb[0].mxu0
    %7507 = vmatprep.mubr.f32.mxu0 0.0
    %7508 = vmatmul.mubr.f32.gmra.mrb[0].mxu0 %v7430
    %v7509 = vpop.f32.mrb[0].mxu0
    %v7510 = vadd.f32 %v7413, %v7509
    %v7511 = vpop.f32.mrb[0].mxu0
    %7512 = vmatprep.mubr.f32.mxu0 0.0
    %7513 = vmatmul.mubr.f32.gmra.mrb[0].mxu0 %v7433
    %v7514 = vpop.f32.mrb[0].mxu0
    %v7515 = vadd.f32 %v7418, %v7514
    %v7516 = vpop.f32.mrb[0].mxu0
    %7517 = vmatprep.mubr.f32.mxu0 0.0
    %7518 = vmatmul.mubr.f32.gmra.mrb[0].mxu0 %v7436
    %v7519 = vpop.f32.mrb[0].mxu0
    %v7520 = vadd.f32 %v7423, %v7519
    %v7521 = vpop.f32.mrb[0].mxu0
    %7522 = vdwg.mxu0
    %s7523 = scalar_lea.vmem %s20, 1024
    %v7524 = vld [vmem:[%s7523] sm:$0xff]
    %v7525 = vld [vmem:[%s7523 + $0x8] sm:$0xff]
    %v7526 = vld [vmem:[%s7523 + $0x10] sm:$0xff]
    %v7527 = vld [vmem:[%s7523 + $0x18] sm:$0xff]
    %v7528 = vld [vmem:[%s7523 + $0x20] sm:$0xff]
    %v7529 = vld [vmem:[%s7523 + $0x28] sm:$0xff]
    %v7530 = vld [vmem:[%s7523 + $0x30] sm:$0xff]
    %v7531 = vld [vmem:[%s7523 + $0x38] sm:$0xff]
    %v7532 = vld [vmem:[%s7523 + $0x40] sm:$0xff]
    %v7533 = vld [vmem:[%s7523 + $0x48] sm:$0xff]
    %v7534 = vld [vmem:[%s7523 + $0x50] sm:$0xff]
    %v7535 = vld [vmem:[%s7523 + $0x58] sm:$0xff]
    %v7536 = vld [vmem:[%s7523 + $0x60] sm:$0xff]
    %v7537 = vld [vmem:[%s7523 + $0x68] sm:$0xff]
    %v7538 = vld [vmem:[%s7523 + $0x70] sm:$0xff]
    %v7539 = vld [vmem:[%s7523 + $0x78] sm:$0xff]
    %v7540 = vld [vmem:[%s7523 + $0x80] sm:$0xff]
    %v7541 = vld [vmem:[%s7523 + $0x88] sm:$0xff]
    %v7542 = vld [vmem:[%s7523 + $0x90] sm:$0xff]
    %v7543 = vld [vmem:[%s7523 + $0x98] sm:$0xff]
    %v7544 = vld [vmem:[%s7523 + $0xa0] sm:$0xff]
    %v7545 = vld [vmem:[%s7523 + $0xa8] sm:$0xff]
    %v7546 = vld [vmem:[%s7523 + $0xb0] sm:$0xff]
    %v7547 = vld [vmem:[%s7523 + $0xb8] sm:$0xff]
    %v7548 = vld [vmem:[%s7523 + $0xc0] sm:$0xff]
    %v7549 = vld [vmem:[%s7523 + $0xc8] sm:$0xff]
    %v7550 = vld [vmem:[%s7523 + $0xd0] sm:$0xff]
    %v7551 = vld [vmem:[%s7523 + $0xd8] sm:$0xff]
    %v7552 = vld [vmem:[%s7523 + $0xe0] sm:$0xff]
    %v7553 = vld [vmem:[%s7523 + $0xe8] sm:$0xff]
    %v7554 = vld [vmem:[%s7523 + $0xf0] sm:$0xff]
    %v7555 = vld [vmem:[%s7523 + $0xf8] sm:$0xff]
    %v7556 = vld [vmem:[%s7523 + $0x100] sm:$0xff]
    %v7557 = vld [vmem:[%s7523 + $0x108] sm:$0xff]
    %v7558 = vld [vmem:[%s7523 + $0x110] sm:$0xff]
    %v7559 = vld [vmem:[%s7523 + $0x118] sm:$0xff]
    %v7560 = vld [vmem:[%s7523 + $0x120] sm:$0xff]
    %v7561 = vld [vmem:[%s7523 + $0x128] sm:$0xff]
    %v7562 = vld [vmem:[%s7523 + $0x130] sm:$0xff]
    %v7563 = vld [vmem:[%s7523 + $0x138] sm:$0xff]
    %v7564 = vld [vmem:[%s7523 + $0x140] sm:$0xff]
    %v7565 = vld [vmem:[%s7523 + $0x148] sm:$0xff]
    %v7566 = vld [vmem:[%s7523 + $0x150] sm:$0xff]
    %v7567 = vld [vmem:[%s7523 + $0x158] sm:$0xff]
    %v7568 = vld [vmem:[%s7523 + $0x160] sm:$0xff]
    %v7569 = vld [vmem:[%s7523 + $0x168] sm:$0xff]
    %v7570 = vld [vmem:[%s7523 + $0x170] sm:$0xff]
    %v7571 = vld [vmem:[%s7523 + $0x178] sm:$0xff]
    %v7572 = vld [vmem:[%s7523 + $0x180] sm:$0xff]
    %v7573 = vld [vmem:[%s7523 + $0x188] sm:$0xff]
    %v7574 = vld [vmem:[%s7523 + $0x190] sm:$0xff]
    %v7575 = vld [vmem:[%s7523 + $0x198] sm:$0xff]
    %v7576 = vld [vmem:[%s7523 + $0x1a0] sm:$0xff]
    %v7577 = vld [vmem:[%s7523 + $0x1a8] sm:$0xff]
    %v7578 = vld [vmem:[%s7523 + $0x1b0] sm:$0xff]
    %v7579 = vld [vmem:[%s7523 + $0x1b8] sm:$0xff]
    %v7580 = vld [vmem:[%s7523 + $0x1c0] sm:$0xff]
    %v7581 = vld [vmem:[%s7523 + $0x1c8] sm:$0xff]
    %v7582 = vld [vmem:[%s7523 + $0x1d0] sm:$0xff]
    %v7583 = vld [vmem:[%s7523 + $0x1d8] sm:$0xff]
    %v7584 = vld [vmem:[%s7523 + $0x1e0] sm:$0xff]
    %v7585 = vld [vmem:[%s7523 + $0x1e8] sm:$0xff]
    %v7586 = vld [vmem:[%s7523 + $0x1f0] sm:$0xff]
    %v7587 = vld [vmem:[%s7523 + $0x1f8] sm:$0xff]
    %7588 = vmatprep.subr.mxu0 0.0
    %7589 = vmatpush1.msra.mxu0 %v7524
    %7590 = vmatprep.subr.mxu0 0.0
    %7591 = vmatpush1.msra.mxu0 %v7525
    %7592 = vmatprep.subr.mxu0 0.0
    %7593 = vmatpush1.msra.mxu0 %v7526
    %7594 = vmatprep.subr.mxu0 0.0
    %7595 = vmatpush1.msra.mxu0 %v7527
    %7596 = vmatprep.subr.mxu0 0.0
    %7597 = vmatpush1.msra.mxu0 %v7528
    %7598 = vmatprep.subr.mxu0 0.0
    %7599 = vmatpush1.msra.mxu0 %v7529
    %7600 = vmatprep.subr.mxu0 0.0
    %7601 = vmatpush1.msra.mxu0 %v7530
    %7602 = vmatprep.subr.mxu0 0.0
    %7603 = vmatpush1.msra.mxu0 %v7531
    %7604 = vmatprep.subr.mxu0 0.0
    %7605 = vmatpush1.msra.mxu0 %v7532
    %7606 = vmatprep.subr.mxu0 0.0
    %7607 = vmatpush1.msra.mxu0 %v7533
    %7608 = vmatprep.subr.mxu0 0.0
    %7609 = vmatpush1.msra.mxu0 %v7534
    %7610 = vmatprep.subr.mxu0 0.0
    %7611 = vmatpush1.msra.mxu0 %v7535
    %7612 = vmatprep.subr.mxu0 0.0
    %7613 = vmatpush1.msra.mxu0 %v7536
    %7614 = vmatprep.subr.mxu0 0.0
    %7615 = vmatpush1.msra.mxu0 %v7537
    %7616 = vmatprep.subr.mxu0 0.0
    %7617 = vmatpush1.msra.mxu0 %v7538
    %7618 = vmatprep.subr.mxu0 0.0
    %7619 = vmatpush1.msra.mxu0 %v7539
    %7620 = vmatprep.subr.mxu0 0.0
    %7621 = vmatpush1.msra.mxu0 %v7540
    %7622 = vmatprep.subr.mxu0 0.0
    %7623 = vmatpush1.msra.mxu0 %v7541
    %7624 = vmatprep.subr.mxu0 0.0
    %7625 = vmatpush1.msra.mxu0 %v7542
    %7626 = vmatprep.subr.mxu0 0.0
    %7627 = vmatpush1.msra.mxu0 %v7543
    %7628 = vmatprep.subr.mxu0 0.0
    %7629 = vmatpush1.msra.mxu0 %v7544
    %7630 = vmatprep.subr.mxu0 0.0
    %7631 = vmatpush1.msra.mxu0 %v7545
    %7632 = vmatprep.subr.mxu0 0.0
    %7633 = vmatpush1.msra.mxu0 %v7546
    %7634 = vmatprep.subr.mxu0 0.0
    %7635 = vmatpush1.msra.mxu0 %v7547
    %7636 = vmatprep.subr.mxu0 0.0
    %7637 = vmatpush1.msra.mxu0 %v7548
    %7638 = vmatprep.subr.mxu0 0.0
    %7639 = vmatpush1.msra.mxu0 %v7549
    %7640 = vmatprep.subr.mxu0 0.0
    %7641 = vmatpush1.msra.mxu0 %v7550
    %7642 = vmatprep.subr.mxu0 0.0
    %7643 = vmatpush1.msra.mxu0 %v7551
    %7644 = vmatprep.subr.mxu0 0.0
    %7645 = vmatpush1.msra.mxu0 %v7552
    %7646 = vmatprep.subr.mxu0 0.0
    %7647 = vmatpush1.msra.mxu0 %v7553
    %7648 = vmatprep.subr.mxu0 0.0
    %7649 = vmatpush1.msra.mxu0 %v7554
    %7650 = vmatprep.subr.mxu0 0.0
    %7651 = vmatpush1.msra.mxu0 %v7555
    %7652 = vmatprep.mubr.f32.mxu0 %v6884
    %7653 = vmatmul.mubr.f32.gmra.mrb[0].mxu0 %v6883
    %v7654 = vpop.f32.mrb[0].mxu0
    %v7655 = vadd.f32 0.0, %v7654
    %v7656 = vpop.f32.mrb[0].mxu0
    %7657 = vmatprep.mubr.f32.mxu0 %v6888
    %7658 = vmatmul.mubr.f32.gmra.mrb[0].mxu0 %v6887
    %v7659 = vpop.f32.mrb[0].mxu0
    %v7660 = vadd.f32 0.0, %v7659
    %v7661 = vpop.f32.mrb[0].mxu0
    %7662 = vdwg.mxu0
    %7663 = vmatprep.subr.mxu0 0.0
    %7664 = vmatpush1.msra.mxu0 %v7556
    %7665 = vmatprep.subr.mxu0 0.0
    %7666 = vmatpush1.msra.mxu0 %v7557
    %7667 = vmatprep.subr.mxu0 0.0
    %7668 = vmatpush1.msra.mxu0 %v7558
    %7669 = vmatprep.subr.mxu0 0.0
    %7670 = vmatpush1.msra.mxu0 %v7559
    %7671 = vmatprep.subr.mxu0 0.0
    %7672 = vmatpush1.msra.mxu0 %v7560
    %7673 = vmatprep.subr.mxu0 0.0
    %7674 = vmatpush1.msra.mxu0 %v7561
    %7675 = vmatprep.subr.mxu0 0.0
    %7676 = vmatpush1.msra.mxu0 %v7562
    %7677 = vmatprep.subr.mxu0 0.0
    %7678 = vmatpush1.msra.mxu0 %v7563
    %7679 = vmatprep.subr.mxu0 0.0
    %7680 = vmatpush1.msra.mxu0 %v7564
    %7681 = vmatprep.subr.mxu0 0.0
    %7682 = vmatpush1.msra.mxu0 %v7565
    %7683 = vmatprep.subr.mxu0 0.0
    %7684 = vmatpush1.msra.mxu0 %v7566
    %7685 = vmatprep.subr.mxu0 0.0
    %7686 = vmatpush1.msra.mxu0 %v7567
    %7687 = vmatprep.subr.mxu0 0.0
    %7688 = vmatpush1.msra.mxu0 %v7568
    %7689 = vmatprep.subr.mxu0 0.0
    %7690 = vmatpush1.msra.mxu0 %v7569
    %7691 = vmatprep.subr.mxu0 0.0
    %7692 = vmatpush1.msra.mxu0 %v7570
    %7693 = vmatprep.subr.mxu0 0.0
    %7694 = vmatpush1.msra.mxu0 %v7571
    %7695 = vmatprep.subr.mxu0 0.0
    %7696 = vmatpush1.msra.mxu0 %v7572
    %7697 = vmatprep.subr.mxu0 0.0
    %7698 = vmatpush1.msra.mxu0 %v7573
    %7699 = vmatprep.subr.mxu0 0.0
    %7700 = vmatpush1.msra.mxu0 %v7574
    %7701 = vmatprep.subr.mxu0 0.0
    %7702 = vmatpush1.msra.mxu0 %v7575
    %7703 = vmatprep.subr.mxu0 0.0
    %7704 = vmatpush1.msra.mxu0 %v7576
    %7705 = vmatprep.subr.mxu0 0.0
    %7706 = vmatpush1.msra.mxu0 %v7577
    %7707 = vmatprep.subr.mxu0 0.0
    %7708 = vmatpush1.msra.mxu0 %v7578
    %7709 = vmatprep.subr.mxu0 0.0
    %7710 = vmatpush1.msra.mxu0 %v7579
    %7711 = vmatprep.subr.mxu0 0.0
    %7712 = vmatpush1.msra.mxu0 %v7580
    %7713 = vmatprep.subr.mxu0 0.0
    %7714 = vmatpush1.msra.mxu0 %v7581
    %7715 = vmatprep.subr.mxu0 0.0
    %7716 = vmatpush1.msra.mxu0 %v7582
    %7717 = vmatprep.subr.mxu0 0.0
    %7718 = vmatpush1.msra.mxu0 %v7583
    %7719 = vmatprep.subr.mxu0 0.0
    %7720 = vmatpush1.msra.mxu0 %v7584
    %7721 = vmatprep.subr.mxu0 0.0
    %7722 = vmatpush1.msra.mxu0 %v7585
    %7723 = vmatprep.subr.mxu0 0.0
    %7724 = vmatpush1.msra.mxu0 %v7586
    %7725 = vmatprep.subr.mxu0 0.0
    %7726 = vmatpush1.msra.mxu0 %v7587
    %7727 = vmatprep.mubr.f32.mxu0 %v6886
    %7728 = vmatmul.mubr.f32.gmra.mrb[0].mxu0 %v6885
    %v7729 = vpop.f32.mrb[0].mxu0
    %v7730 = vadd.f32 %v7655, %v7729
    %v7731 = vpop.f32.mrb[0].mxu0
    %7732 = vmatprep.mubr.f32.mxu0 %v6890
    %7733 = vmatmul.mubr.f32.gmra.mrb[0].mxu0 %v6889
    %v7734 = vpop.f32.mrb[0].mxu0
    %v7735 = vadd.f32 %v7660, %v7734
    %v7736 = vpop.f32.mrb[0].mxu0
    %7737 = vdwg.mxu0
    %s7738 = scalar_lea.vmem %s19, 64
    %v7739 = vld [vmem:[%s7738] sm:$0xff]
    %v7740 = vld [vmem:[%s7738 + $0x8] sm:$0xff]
    %v7741 = vld [vmem:[%s7738 + $0x10] sm:$0xff]
    %v7742 = vld [vmem:[%s7738 + $0x18] sm:$0xff]
    %v7744 = vsel %vm233, %v7739, 0
    %v7747 = vsel %vm233, %v7740, 0
    %v7750 = vsel %vm233, %v7741, 0
    %v7753 = vsel %vm233, %v7742, 0
    %7755 = vmatprep.subr.mxu0 0.0
    %7756 = vmatpush1.msra.mxu0 %v7730
    %7757 = vmatprep.subr.mxu0 0.0
    %7758 = vmatpush1.msra.mxu0 %v7735
    %7759 = vmatprep.subr.mxu0 0.0
    %7760 = vmatpush1.msra.mxu0 0.0
    %7761 = vmatprep.subr.mxu0 0.0
    %7762 = vmatpush1.msra.mxu0 0.0
    %7763 = vmatprep.subr.mxu0 0.0
    %7764 = vmatpush1.msra.mxu0 0.0
    %7765 = vmatprep.subr.mxu0 0.0
    %7766 = vmatpush1.msra.mxu0 0.0
    %7767 = vmatprep.subr.mxu0 0.0
    %7768 = vmatpush1.msra.mxu0 0.0
    %7769 = vmatprep.subr.mxu0 0.0
    %7770 = vmatpush1.msra.mxu0 0.0
    %7771 = vmatprep.subr.mxu0 0.0
    %7772 = vmatpush1.msra.mxu0 0.0
    %7773 = vmatprep.subr.mxu0 0.0
    %7774 = vmatpush1.msra.mxu0 0.0
    %7775 = vmatprep.subr.mxu0 0.0
    %7776 = vmatpush1.msra.mxu0 0.0
    %7777 = vmatprep.subr.mxu0 0.0
    %7778 = vmatpush1.msra.mxu0 0.0
    %7779 = vmatprep.subr.mxu0 0.0
    %7780 = vmatpush1.msra.mxu0 0.0
    %7781 = vmatprep.subr.mxu0 0.0
    %7782 = vmatpush1.msra.mxu0 0.0
    %7783 = vmatprep.subr.mxu0 0.0
    %7784 = vmatpush1.msra.mxu0 0.0
    %7785 = vmatprep.subr.mxu0 0.0
    %7786 = vmatpush1.msra.mxu0 0.0
    %7787 = vmatprep.subr.mxu0 0.0
    %7788 = vmatpush1.msra.mxu0 0.0
    %7789 = vmatprep.subr.mxu0 0.0
    %7790 = vmatpush1.msra.mxu0 0.0
    %7791 = vmatprep.subr.mxu0 0.0
    %7792 = vmatpush1.msra.mxu0 0.0
    %7793 = vmatprep.subr.mxu0 0.0
    %7794 = vmatpush1.msra.mxu0 0.0
    %7795 = vmatprep.subr.mxu0 0.0
    %7796 = vmatpush1.msra.mxu0 0.0
    %7797 = vmatprep.subr.mxu0 0.0
    %7798 = vmatpush1.msra.mxu0 0.0
    %7799 = vmatprep.subr.mxu0 0.0
    %7800 = vmatpush1.msra.mxu0 0.0
    %7801 = vmatprep.subr.mxu0 0.0
    %7802 = vmatpush1.msra.mxu0 0.0
    %7803 = vmatprep.subr.mxu0 0.0
    %7804 = vmatpush1.msra.mxu0 0.0
    %7805 = vmatprep.subr.mxu0 0.0
    %7806 = vmatpush1.msra.mxu0 0.0
    %7807 = vmatprep.subr.mxu0 0.0
    %7808 = vmatpush1.msra.mxu0 0.0
    %7809 = vmatprep.subr.mxu0 0.0
    %7810 = vmatpush1.msra.mxu0 0.0
    %7811 = vmatprep.subr.mxu0 0.0
    %7812 = vmatpush1.msra.mxu0 0.0
    %7813 = vmatprep.subr.mxu0 0.0
    %7814 = vmatpush1.msra.mxu0 0.0
    %7815 = vmatprep.subr.mxu0 0.0
    %7816 = vmatpush1.msra.mxu0 0.0
    %7817 = vmatprep.subr.mxu0 0.0
    %7818 = vmatpush1.msra.mxu0 0.0
    %7819 = vmatprep.mubr.f32.mxu0 0.0
    %7820 = vmatmul.mubr.f32.gmra.mrb[0].mxu0 %v7744
    %v7821 = vpop.f32.mrb[0].mxu0
    %v7822 = vadd.f32 0.0, %v7821
    %v7823 = vpop.f32.mrb[0].mxu0
    %7824 = vmatprep.mubr.f32.mxu0 0.0
    %7825 = vmatmul.mubr.f32.gmra.mrb[0].mxu0 %v7747
    %v7826 = vpop.f32.mrb[0].mxu0
    %v7827 = vadd.f32 0.0, %v7826
    %v7828 = vpop.f32.mrb[0].mxu0
    %7829 = vmatprep.mubr.f32.mxu0 0.0
    %7830 = vmatmul.mubr.f32.gmra.mrb[0].mxu0 %v7750
    %v7831 = vpop.f32.mrb[0].mxu0
    %v7832 = vadd.f32 0.0, %v7831
    %v7833 = vpop.f32.mrb[0].mxu0
    %7834 = vmatprep.mubr.f32.mxu0 0.0
    %7835 = vmatmul.mubr.f32.gmra.mrb[0].mxu0 %v7753
    %v7836 = vpop.f32.mrb[0].mxu0
    %v7837 = vadd.f32 0.0, %v7836
    %v7838 = vpop.f32.mrb[0].mxu0
    %7839 = vdwg.mxu0
    %v7840 = vadd.f32 %v7505, %v7822
    %v7841 = vadd.f32 %v7510, %v7827
    %v7842 = vadd.f32 %v7515, %v7832
    %v7843 = vadd.f32 %v7520, %v7837
    %v7844 = vld [vmem:[%s21] sm:$0x1]
    %v7846 = vlaneseq
    %v7847 = vshrl.u32 %v7846, 7
    %v7848 = vsub.s32 0, %v7847
    %v7849 = vrot.slane %v7844, %v7848
    %v7851 = vadd.f32 %v7840, %v7849
    %v7852 = vadd.f32 %v7841, %v7849
    %v7853 = vadd.f32 %v7842, %v7849
    %v7854 = vadd.f32 %v7843, %v7849
    %v7855 = vtanh.pop %v7851
    %v7856 = vtanh.pop %v7852
    %v7857 = vtanh.pop %v7853
    %v7858 = vtanh.pop %v7854
    %7859 = vst.msk [vmem:[#allocation20] sm:$0xff] %vm233, %v7855
    %7860 = vst.msk [vmem:[#allocation20 + $0x8] sm:$0xff] %vm233, %v7856
    %7861 = vst.msk [vmem:[#allocation20 + $0x10] sm:$0xff] %vm233, %v7857
    %7862 = vst.msk [vmem:[#allocation20 + $0x18] sm:$0xff] %vm233, %v7858
    // Predicated region
    $region134: #{denoiser_forward.1} parent=1 // pred_check
      _
    $region135: #{denoiser_forward.1} parent=1 // pred_check_branch
      %7864 = sbr.rel (0) target = $region137
    $region136: #{denoiser_forward.1} parent=1 // pred_region
      %s7866 = ssub.s32 512, 512
      %7867 = vsyncadd [#allocation4], %s7866
      %s7868 = sshll.u32 [#allocation20], 4
      %s7869 = int_to_ptr.vmem [resolvable:$true] %s7868
      %7874 = dma.vmem_to_hbm [thread:$0]  %s7869, 512, %s22, [#allocation4], 128, 128, 8
    $region137: #{denoiser_forward.1} parent=1 // pred_fallthru
      _
    // Predicated region
    $region138: #{denoiser_forward.1} parent=1 // pred_check
      _
    $region139: #{denoiser_forward.1} parent=1 // pred_check_branch
      %7876 = sbr.rel (0) target = $region141
    $region140: #{denoiser_forward.1} parent=1 // pred_region
      %7877 = dma.done [#allocation4], 512
    $region141: #{denoiser_forward.1} parent=1 // pred_fallthru
      _
    %7878 = vsyncpa [#allocation3], 1
    %7879 = vsyncpa [#allocation6], 1
    %7880 = vsyncpa [#allocation9], 1
    %7881 = vsyncpa [#allocation12], 1
    %7882 = vsyncpa [#allocation15], 1
    %7883 = vsyncpa [#allocation18], 1
    %7884 = vsyncpa [#allocation4], 1

</llo_original>
